<compile_context>
chip_gen: v7x
topology: tpu7x:2x2x1
jax: 0.10.0
libtpu: 0.0.40
codegen_flags: <defaults>
</compile_context>

<pallas_src>
import numpy as np
import jax
import jax.numpy as jnp
from jax import lax
from jax.experimental import pallas as pl
from jax.experimental.pallas import tpu as pltpu

# ----------------------------- configuration --------------------------------
INPUT_DIM   = 6            # forced by PositionalEncoding(6, 300)
SEQ_LEN     = 300          # forced by Linear(input_dim * 300, ...)
NUM_HEADS   = 2
HEAD_DIM    = INPUT_DIM // NUM_HEADS
FF_DIM      = 16
NUM_BLOCKS  = 2
NUM_ACTIONS = 4
HIDDEN      = 32
BATCH       = 2
LN_EPS      = 1e-5

# ---- packed small f32 per-layer params: (L, SMALLP_ROWS, 1), 8-aligned offsets --
LN1G_OFF, LN1B_OFF, LN2G_OFF, LN2B_OFF = 0, 8, 16, 24
BOUT_OFF, B2F_OFF, B1F_OFF, BQKV_OFF = 32, 40, 48, 64
SMALLP_ROWS = 112
QKV_ROWS = 48              # [Q0|Q1|K0|K1|(1;V0)|(1;V1)] x 8-row blocks

# ---- packed bf16 per-layer weights: (L, WBIG_ROWS, 16), 16-aligned offsets -----
WQKV_OFF, W1F_OFF, WOUT_OFF, W2F_OFF = 0, 48, 64, 96
WOUT_STRIDE = 16
WBIG_ROWS = 112

# ---- packed f32 dueling-head params: (HEADP_ROWS, 2*HIDDEN) ---------------------
HEADP_ROWS = 8 + 2 * HIDDEN          # row0 = b1(v||a), row1 = [b2v|b2a], 8.. = w2


# --------------------------- fused model kernel ------------------------------
def fused_model_kernel(x_ref, pe_ref, smallp_ref, wbig_ref, w1h_ref, headp_ref,
                       o_ref):
    E, S, dh, H, F = INPUT_DIM, SEQ_LEN, HEAD_DIM, NUM_HEADS, FF_DIM
    f32, bf16 = jnp.float32, jnp.bfloat16

    def mm(a, b, dims):
        """MXU matmul: bf16 operands (no-op when already bf16), f32 accumulation."""
        return lax.dot_general(a.astype(bf16), b.astype(bf16), (dims, ((), ())),
                               preferred_element_type=f32)

    def layernorm(z, g, b):
        # feature axis is the sublane axis (axis 0) -> cheap reduction, f32 math
        mu = jnp.mean(z, axis=0, keepdims=True)
        var = jnp.mean(jnp.square(z - mu), axis=0, keepdims=True)
        return (z - mu) * lax.rsqrt(var + LN_EPS) * g + b

    x = x_ref[0]                     # (E, S) f32 residual stream, feature-on-sublanes
    pe = pe_ref[...]                 # (E, S) f32

    for l in range(NUM_BLOCKS):
        def sp(off, n, _l=l):
            return smallp_ref[_l, off:off + n, :]          # (n, 1) f32, 8-aligned

        # positional encoding is applied at the top of every layer (per spec)
        x = x + pe

        # ---- pre-norm (norm1) + multi-head self-attention + residual ----
        xn = layernorm(x, sp(LN1G_OFF, E), sp(LN1B_OFF, E))
        wqkv = wbig_ref[l, WQKV_OFF:WQKV_OFF + QKV_ROWS, 0:E]       # (48, E) bf16
        # fused, 8-sublane-padded QKV projection; 1/sqrt(dh) folded into Q rows,
        # softmax-denominator ones-row baked in as row 0 of each head's V block.
        # Kept f32 so the 8-row per-head slices stay (8,128)-tile aligned; each
        # slice is cast to bf16 exactly once inside mm().
        qkv = mm(wqkv, xn, ((1,), (0,))) + sp(BQKV_OFF, QKV_ROWS)   # (48, S) f32

        attn = sp(BOUT_OFF, E)                                      # out-proj bias
        for h in range(H):
            qb = qkv[8 * h:8 * h + 8, :]                  # (8,S) scaled Q rows, pad=0
            kb = qkv[16 + 8 * h:24 + 8 * h, :]            # (8,S) K rows, pad=0
            vb = qkv[32 + 8 * h:40 + 8 * h, :]            # (8,S) [1; V; 0-pad]
            # scores: contract the 8 zero-padded feature rows -> (Sq, Sk) f32
            s = mm(qb, kb, ((0,), (0,)))
            # flash-style numerator; exp in bf16 (native on v6e/v7x EUP, upcast on
            # v5e) -> p stored at half width either way.
            p = jnp.exp((s - jnp.max(s, axis=-1, keepdims=True)).astype(bf16))
            # P @ (1;V): row 0 of the result is the softmax denominator, rows 1..dh
            # the unnormalized context -- one matmul, no concatenation.
            ovl = mm(vb, p, ((1,), (1,)))                           # (8, Sq) f32
            inv_l = pl.reciprocal(ovl[0:1, :], approx=True)         # (1, Sq) EUP
            oh = ovl * inv_l                                        # (8, Sq) f32
            # per-head padded out-projection slice (col 0 / pad cols are zero),
            # accumulated directly -> no head concat, no relayout.
            wout_h = wbig_ref[l, WOUT_OFF + WOUT_STRIDE * h:
                              WOUT_OFF + WOUT_STRIDE * h + E, 0:8]  # (E, 8) bf16
            attn = attn + mm(wout_h, oh, ((1,), (0,)))
        x = x + attn                                                # dropout1 = id

        # ---- pre-norm (norm2) + ReLU feed-forward + residual ----
        xn = layernorm(x, sp(LN2G_OFF, E), sp(LN2B_OFF, E))
        w1f = wbig_ref[l, W1F_OFF:W1F_OFF + F, 0:E]                 # (F, E) bf16
        h1 = jnp.maximum(mm(w1f, xn, ((1,), (0,))) + sp(B1F_OFF, F), 0.0)
        w2f = wbig_ref[l, W2F_OFF:W2F_OFF + E, 0:F]                 # (E, F) bf16
        x = x + mm(w2f, h1, ((1,), (0,))) + sp(B2F_OFF, E)          # dropout2 = id

    # ---- fused dueling-head epilogue (value || advantage branches fused) ----
    # flatten over (S, E) expressed as per-feature dots against the pre-permuted
    # (E, S, 2H) weight -> no in-kernel relayout of the activations.
    # TODO(synk): a single batched dot_general over E would drop 5 MXU issues, but
    # the degenerate (E,S)x(E,S,2H) batched form has lowering risk; kept unrolled.
    acc = headp_ref[0:1, :]                                         # b1 (1, 2HID) f32
    for e in range(E):
        acc = acc + mm(x[e:e + 1, :], w1h_ref[e], ((1,), (0,)))
    hid = jnp.maximum(acc, 0.0)                                     # (1, 2HID) f32
    w2h = headp_ref[8:8 + 2 * HIDDEN, 0:1 + NUM_ACTIONS]            # (2HID, 1+A) f32
    out = lax.dot_general(hid, w2h, (((1,), (0,)), ((), ())),
                          preferred_element_type=jnp.float32)
    out = out + headp_ref[1:2, 0:1 + NUM_ACTIONS]                   # [b2v | b2a]
    val, adv = out[:, 0:1], out[:, 1:]
    o_ref[0] = val + (adv - jnp.mean(adv, axis=-1, keepdims=True))


def _const_map(ndim):
    return lambda b, _n=ndim: (0,) * _n


def run_fused(x, kparams):
    """x: (B, S, E) f32 -> q-values (B, NUM_ACTIONS)."""
    B = x.shape[0]
    xt = jnp.transpose(x, (0, 2, 1))          # (B, E, S): lane-dense kernel layout
    pe_t, smallp, wbig, w1h, headp = kparams

    in_specs = [pl.BlockSpec((1, INPUT_DIM, SEQ_LEN), lambda b: (b, 0, 0))]
    for p in (pe_t, smallp, wbig, w1h, headp):
        in_specs.append(pl.BlockSpec(p.shape, _const_map(p.ndim)))
    out_spec = pl.BlockSpec((1, 1, NUM_ACTIONS), lambda b: (b, 0, 0))

    out = pl.pallas_call(
        fused_model_kernel,
        out_shape=jax.ShapeDtypeStruct((B, 1, NUM_ACTIONS), jnp.float32),
        grid_spec=pltpu.PrefetchScalarGridSpec(
            num_scalar_prefetch=0, grid=(B,),
            in_specs=in_specs, out_specs=out_spec),
        compiler_params=pltpu.CompilerParams(
            dimension_semantics=("parallel",)),
    )(xt, pe_t, smallp, wbig, w1h, headp)
    return out[:, 0, :]


transformer_dueling_forward = jax.jit(run_fused)


# ------------------------------ parameter setup ------------------------------
def positional_encoding(d_model=INPUT_DIM, max_len=SEQ_LEN):
    position = np.arange(max_len, dtype=np.float32)[:, None]
    div_term = np.exp(np.arange(0, d_model, 2, dtype=np.float32)
                      * (-np.log(10000.0) / d_model))
    pe = np.zeros((max_len, d_model), np.float32)
    pe[:, 0::2] = np.sin(position * div_term)
    pe[:, 1::2] = np.cos(position * div_term)
    return jnp.asarray(pe)[None]                                  # (1, S, E)


def init_params(key):
    """Parameters in PyTorch layout (weight = (out_features, in_features))."""
    ks = iter(jax.random.split(key, 64))

    def nrm(shape, s=0.05):
        return s * jax.random.normal(next(ks), shape, jnp.float32)

    E, F, S = INPUT_DIM, FF_DIM, SEQ_LEN
    layers = []
    for _ in range(NUM_BLOCKS):
        layers.append(dict(
            ln1_w=1.0 + nrm((E,)), ln1_b=nrm((E,)),
            in_proj_w=nrm((3 * E, E)), in_proj_b=nrm((3 * E,)),
            out_proj_w=nrm((E, E)), out_proj_b=nrm((E,)),
            ln2_w=1.0 + nrm((E,)), ln2_b=nrm((E,)),
            lin1_w=nrm((F, E)), lin1_b=nrm((F,)),
            lin2_w=nrm((E, F)), lin2_b=nrm((E,)),
        ))
    head_in = S * E
    return dict(
        layers=layers,
        w1v=nrm((HIDDEN, head_in)), b1v=nrm((HIDDEN,)),
        w2v=nrm((1, HIDDEN)),       b2v=nrm((1,)),
        w1a=nrm((HIDDEN, head_in)), b1a=nrm((HIDDEN,)),
        w2a=nrm((NUM_ACTIONS, HIDDEN)), b2a=nrm((NUM_ACTIONS,)),
    )


def prepare_kernel_params(pe, params):
    """Host-side layout prep: 8/16-sublane-aligned padded weight blocks, scale
    folded into Q, softmax ones-row baked into the V blocks, fused dueling head,
    and everything packed into 5 operands (pe, small-f32, big-bf16, w1h, head)."""
    E, F, S, H, dh, L = INPUT_DIM, FF_DIM, SEQ_LEN, NUM_HEADS, HEAD_DIM, NUM_BLOCKS
    scale = 1.0 / np.sqrt(dh)

    pe_t = jnp.asarray(pe[0].T, jnp.float32)                      # (E, S)

    smallp = np.zeros((L, SMALLP_ROWS, 1), np.float32)
    wbig = np.zeros((L, WBIG_ROWS, 16), np.float32)

    for l, lp in enumerate(params["layers"]):
        w_in = np.asarray(lp["in_proj_w"], np.float32)            # (3E, E)
        b_in = np.asarray(lp["in_proj_b"], np.float32)            # (3E,)
        w_out = np.asarray(lp["out_proj_w"], np.float32)          # (E, E)
        for h in range(H):
            qr, kr, vr = h * dh, E + h * dh, 2 * E + h * dh       # PyTorch rows
            qo, ko, vo = 8 * h, 16 + 8 * h, 32 + 8 * h            # padded offsets
            # Q (1/sqrt(dh) folded into weight AND bias), then K
            wbig[l, WQKV_OFF + qo:WQKV_OFF + qo + dh, :E] = w_in[qr:qr + dh] * scale
            smallp[l, BQKV_OFF + qo:BQKV_OFF + qo + dh, 0] = b_in[qr:qr + dh] * scale
            wbig[l, WQKV_OFF + ko:WQKV_OFF + ko + dh, :E] = w_in[kr:kr + dh]
            smallp[l, BQKV_OFF + ko:BQKV_OFF + ko + dh, 0] = b_in[kr:kr + dh]
            # V block: row 0 = softmax-denominator ones-row (zero weight, bias 1.0)
            smallp[l, BQKV_OFF + vo, 0] = 1.0
            wbig[l, WQKV_OFF + vo + 1:WQKV_OFF + vo + 1 + dh, :E] = w_in[vr:vr + dh]
            smallp[l, BQKV_OFF + vo + 1:BQKV_OFF + vo + 1 + dh, 0] = b_in[vr:vr + dh]
            # per-head out-projection slice: col 0 (ones-row slot) + pad cols stay 0
            wbig[l, WOUT_OFF + WOUT_STRIDE * h:WOUT_OFF + WOUT_STRIDE * h + E,
                 1:1 + dh] = w_out[:, h * dh:(h + 1) * dh]
        wbig[l, W1F_OFF:W1F_OFF + F, :E] = np.asarray(lp["lin1_w"], np.float32)
        wbig[l, W2F_OFF:W2F_OFF + E, :F] = np.asarray(lp["lin2_w"], np.float32)
        smallp[l, LN1G_OFF:LN1G_OFF + E, 0] = np.asarray(lp["ln1_w"], np.float32)
        smallp[l, LN1B_OFF:LN1B_OFF + E, 0] = np.asarray(lp["ln1_b"], np.float32)
        smallp[l, LN2G_OFF:LN2G_OFF + E, 0] = np.asarray(lp["ln2_w"], np.float32)
        smallp[l, LN2B_OFF:LN2B_OFF + E, 0] = np.asarray(lp["ln2_b"], np.float32)
        smallp[l, BOUT_OFF:BOUT_OFF + E, 0] = np.asarray(lp["out_proj_b"], np.float32)
        smallp[l, B1F_OFF:B1F_OFF + F, 0] = np.asarray(lp["lin1_b"], np.float32)
        smallp[l, B2F_OFF:B2F_OFF + E, 0] = np.asarray(lp["lin2_b"], np.float32)

    # dueling head: concat value/advantage branches; permute first-layer weight
    # from flatten order (s*E + e) into (E, S, 2H) to match the kernel layout.
    w1cat = np.concatenate([np.asarray(params["w1v"], np.float32).T,
                            np.asarray(params["w1a"], np.float32).T], axis=1)
    w1h = jnp.asarray(w1cat.reshape(S, E, 2 * HIDDEN).transpose(1, 0, 2),
                      jnp.bfloat16)                               # (E, S, 2HID)
    headp = np.zeros((HEADP_ROWS, 2 * HIDDEN), np.float32)
    headp[0, :] = np.concatenate([np.asarray(params["b1v"]),
                                  np.asarray(params["b1a"])])
    headp[1, 0:1] = np.asarray(params["b2v"])
    headp[1, 1:1 + NUM_ACTIONS] = np.asarray(params["b2a"])
    headp[8:8 + HIDDEN, 0:1] = np.asarray(params["w2v"]).T
    headp[8 + HIDDEN:8 + 2 * HIDDEN, 1:1 + NUM_ACTIONS] = np.asarray(params["w2a"]).T

    return (pe_t,
            jnp.asarray(smallp),
            jnp.asarray(wbig, jnp.bfloat16),
            w1h,
            jnp.asarray(headp))


# ------------------------------ pure-JAX reference ---------------------------
def reference_forward(x, pe, params):
    B, S, E = x.shape
    H, dh = NUM_HEADS, HEAD_DIM
    scale = 1.0 / np.sqrt(dh)

    def layernorm(z, g, b):
        mu = jnp.mean(z, axis=-1, keepdims=True)
        var = jnp.mean((z - mu) ** 2, axis=-1, keepdims=True)
        return (z - mu) / jnp.sqrt(var + LN_EPS) * g + b

    for lp in params["layers"]:
        x = x + pe
        xn = layernorm(x, lp["ln1_w"], lp["ln1_b"])
        qkv = xn @ lp["in_proj_w"].T + lp["in_proj_b"]
        q, k, v = jnp.split(qkv, 3, axis=-1)
        qh = q.reshape(B, S, H, dh).transpose(0, 2, 1, 3)
        kh = k.reshape(B, S, H, dh).transpose(0, 2, 1, 3)
        vh = v.reshape(B, S, H, dh).transpose(0, 2, 1, 3)
        s = jnp.einsum("bhqd,bhkd->bhqk", qh, kh) * scale
        p = jax.nn.softmax(s, axis=-1)
        oh = jnp.einsum("bhqk,bhkd->bhqd", p, vh)
        ao = oh.transpose(0, 2, 1, 3).reshape(B, S, E)
        x = x + (ao @ lp["out_proj_w"].T + lp["out_proj_b"])
        xn = layernorm(x, lp["ln2_w"], lp["ln2_b"])
        hdn = jax.nn.relu(xn @ lp["lin1_w"].T + lp["lin1_b"])
        x = x + (hdn @ lp["lin2_w"].T + lp["lin2_b"])

    xf = x.reshape(B, -1)
    hv = jax.nn.relu(xf @ params["w1v"].T + params["b1v"])
    val = hv @ params["w2v"].T + params["b2v"]
    ha = jax.nn.relu(xf @ params["w1a"].T + params["b1a"])
    adv = ha @ params["w2a"].T + params["b2a"]
    return val + (adv - jnp.mean(adv, axis=1, keepdims=True))


# ------------------------------------ main ------------------------------------
if __name__ == "__main__":
    key = jax.random.PRNGKey(0)
    kx, kp = jax.random.split(key)
    x = jax.random.normal(kx, (BATCH, SEQ_LEN, INPUT_DIM), jnp.float32)
    pe = positional_encoding()
    params = init_params(kp)
    kparams = prepare_kernel_params(pe, params)

    q = transformer_dueling_forward(x, kparams)
    q = jax.block_until_ready(q)

    assert q.shape == (BATCH, NUM_ACTIONS)
    assert np.all(np.isfinite(np.asarray(q)))

    q_ref = np.asarray(reference_forward(x, pe, params))
    np.testing.assert_allclose(np.asarray(q), q_ref, rtol=3e-2, atol=3e-2)

    print("KERNEL_OK")
</pallas_src>

<mosaic_0001>
module attributes {stable_mosaic.version = 11 : i64} {
  func.func @fused_model_kernel(%arg0: i32, %arg1: memref<1x6x300xf32, #tpu.memory_space<vmem>>, %arg2: memref<6x300xf32, #tpu.memory_space<vmem>>, %arg3: memref<2x112x1xf32, #tpu.memory_space<vmem>>, %arg4: memref<2x112x16xbf16, #tpu.memory_space<vmem>>, %arg5: memref<6x300x64xbf16, #tpu.memory_space<vmem>>, %arg6: memref<72x64xf32, #tpu.memory_space<vmem>>, %arg7: memref<1x1x4xf32, #tpu.memory_space<vmem>>) attributes {dimension_semantics = [#tpu.dimension_semantics<parallel>], iteration_bounds = array<i64: 2>, scalar_prefetch = 0 : i64, scratch_operands = 0 : i64, tpu.core_type = #tpu.core_type<tc>, window_params = [{transform_indices = @transform_0, window_bounds = array<i64: 1, 6, 300>}, {pipeline_mode = #tpu.pipeline_mode<synchronous>, transform_indices = @transform_1, window_bounds = array<i64: 6, 300>}, {pipeline_mode = #tpu.pipeline_mode<synchronous>, transform_indices = @transform_2, window_bounds = array<i64: 2, 112, 1>}, {pipeline_mode = #tpu.pipeline_mode<synchronous>, transform_indices = @transform_3, window_bounds = array<i64: 2, 112, 16>}, {pipeline_mode = #tpu.pipeline_mode<synchronous>, transform_indices = @transform_4, window_bounds = array<i64: 6, 300, 64>}, {pipeline_mode = #tpu.pipeline_mode<synchronous>, transform_indices = @transform_5, window_bounds = array<i64: 72, 64>}, {transform_indices = @transform_6, window_bounds = array<i64: 1, 1, 4>}]} {
    %c0 = arith.constant 0 : index
    %c0_0 = arith.constant 0 : index
    %c0_1 = arith.constant 0 : index
    %0 = vector.load %arg1[%c0, %c0_0, %c0_1] : memref<1x6x300xf32, #tpu.memory_space<vmem>>, vector<1x6x300xf32>
    %1 = vector.shape_cast %0 : vector<1x6x300xf32> to vector<6x300xf32>
    %c0_2 = arith.constant 0 : index
    %c0_3 = arith.constant 0 : index
    %2 = vector.load %arg2[%c0_2, %c0_3] : memref<6x300xf32, #tpu.memory_space<vmem>>, vector<6x300xf32>
    %3 = arith.addf %1, %2 : vector<6x300xf32>
    %c0_4 = arith.constant 0 : index
    %c0_5 = arith.constant 0 : index
    %c0_6 = arith.constant 0 : index
    %4 = vector.load %arg3[%c0_4, %c0_5, %c0_6] : memref<2x112x1xf32, #tpu.memory_space<vmem>>, vector<1x6x1xf32>
    %5 = vector.shape_cast %4 : vector<1x6x1xf32> to vector<6x1xf32>
    %c0_7 = arith.constant 0 : index
    %c8 = arith.constant 8 : index
    %c0_8 = arith.constant 0 : index
    %6 = vector.load %arg3[%c0_7, %c8, %c0_8] : memref<2x112x1xf32, #tpu.memory_space<vmem>>, vector<1x6x1xf32>
    %7 = vector.shape_cast %6 : vector<1x6x1xf32> to vector<6x1xf32>
    %cst = arith.constant dense<0.000000e+00> : vector<300xf32>
    %8 = vector.multi_reduction <add>, %3, %cst [0] : vector<6x300xf32> to vector<300xf32>
    %9 = vector.shape_cast %8 : vector<300xf32> to vector<1x300xf32>
    %cst_9 = arith.constant 6.000000e+00 : f32
    %10 = vector.broadcast %cst_9 : f32 to vector<1x300xf32>
    %11 = arith.divf %9, %10 : vector<1x300xf32>
    %12 = vector.broadcast %11 : vector<1x300xf32> to vector<6x300xf32>
    %13 = arith.subf %3, %12 : vector<6x300xf32>
    %14 = arith.mulf %13, %13 : vector<6x300xf32>
    %cst_10 = arith.constant dense<0.000000e+00> : vector<300xf32>
    %15 = vector.multi_reduction <add>, %14, %cst_10 [0] : vector<6x300xf32> to vector<300xf32>
    %16 = vector.shape_cast %15 : vector<300xf32> to vector<1x300xf32>
    %cst_11 = arith.constant 6.000000e+00 : f32
    %17 = vector.broadcast %cst_11 : f32 to vector<1x300xf32>
    %18 = arith.divf %16, %17 : vector<1x300xf32>
    %19 = vector.broadcast %11 : vector<1x300xf32> to vector<6x300xf32>
    %20 = arith.subf %3, %19 : vector<6x300xf32>
    %cst_12 = arith.constant 9.99999974E-6 : f32
    %21 = vector.broadcast %cst_12 : f32 to vector<1x300xf32>
    %22 = arith.addf %18, %21 : vector<1x300xf32>
    %23 = math.rsqrt %22 : vector<1x300xf32>
    %24 = vector.broadcast %23 : vector<1x300xf32> to vector<6x300xf32>
    %25 = arith.mulf %20, %24 : vector<6x300xf32>
    %26 = vector.broadcast %5 : vector<6x1xf32> to vector<6x300xf32>
    %27 = arith.mulf %25, %26 : vector<6x300xf32>
    %28 = vector.broadcast %7 : vector<6x1xf32> to vector<6x300xf32>
    %29 = arith.addf %27, %28 : vector<6x300xf32>
    %c0_13 = arith.constant 0 : index
    %c0_14 = arith.constant 0 : index
    %c0_15 = arith.constant 0 : index
    %30 = vector.load %arg4[%c0_13, %c0_14, %c0_15] : memref<2x112x16xbf16, #tpu.memory_space<vmem>>, vector<1x48x6xbf16>
    %31 = vector.shape_cast %30 : vector<1x48x6xbf16> to vector<48x6xbf16>
    %32 = arith.truncf %29 : vector<6x300xf32> to vector<6x300xbf16>
    %cst_16 = arith.constant dense<0.000000e+00> : vector<48x300xf32>
    %33 = tpu.matmul %31, %32, %cst_16 {dimension_numbers = #tpu.dot_dimension_numbers<[1], [0], [0], [1], [0, 0, 1, 1], [], []>} : vector<48x6xbf16>, vector<6x300xbf16>, vector<48x300xf32> -> vector<48x300xf32>
    %c0_17 = arith.constant 0 : index
    %c64 = arith.constant 64 : index
    %c0_18 = arith.constant 0 : index
    %34 = vector.load %arg3[%c0_17, %c64, %c0_18] : memref<2x112x1xf32, #tpu.memory_space<vmem>>, vector<1x48x1xf32>
    %35 = vector.shape_cast %34 : vector<1x48x1xf32> to vector<48x1xf32>
    %36 = vector.broadcast %35 : vector<48x1xf32> to vector<48x300xf32>
    %37 = arith.addf %33, %36 : vector<48x300xf32>
    %c0_19 = arith.constant 0 : index
    %c32 = arith.constant 32 : index
    %c0_20 = arith.constant 0 : index
    %38 = vector.load %arg3[%c0_19, %c32, %c0_20] : memref<2x112x1xf32, #tpu.memory_space<vmem>>, vector<1x6x1xf32>
    %39 = vector.shape_cast %38 : vector<1x6x1xf32> to vector<6x1xf32>
    %40 = vector.extract_strided_slice %37 {offsets = [0, 0], sizes = [8, 300], strides = [1, 1]} : vector<48x300xf32> to vector<8x300xf32>
    %41 = vector.extract_strided_slice %37 {offsets = [16, 0], sizes = [8, 300], strides = [1, 1]} : vector<48x300xf32> to vector<8x300xf32>
    %42 = vector.extract_strided_slice %37 {offsets = [32, 0], sizes = [8, 300], strides = [1, 1]} : vector<48x300xf32> to vector<8x300xf32>
    %43 = arith.truncf %40 : vector<8x300xf32> to vector<8x300xbf16>
    %44 = arith.truncf %41 : vector<8x300xf32> to vector<8x300xbf16>
    %cst_21 = arith.constant dense<0.000000e+00> : vector<300x300xf32>
    %45 = tpu.matmul %43, %44, %cst_21 {dimension_numbers = #tpu.dot_dimension_numbers<[0], [0], [1], [1], [0, 1, 1, 1], [], []>} : vector<8x300xbf16>, vector<8x300xbf16>, vector<300x300xf32> -> vector<300x300xf32>
    %cst_22 = arith.constant dense<0xFF800000> : vector<300xf32>
    %46 = vector.multi_reduction <maximumf>, %45, %cst_22 [1] : vector<300x300xf32> to vector<300xf32>
    %47 = vector.shape_cast %46 : vector<300xf32> to vector<300x1xf32>
    %48 = vector.broadcast %47 : vector<300x1xf32> to vector<300x300xf32>
    %49 = arith.subf %45, %48 : vector<300x300xf32>
    %50 = arith.truncf %49 : vector<300x300xf32> to vector<300x300xbf16>
    %51 = math.exp %50 : vector<300x300xbf16>
    %52 = arith.truncf %42 : vector<8x300xf32> to vector<8x300xbf16>
    %cst_23 = arith.constant dense<0.000000e+00> : vector<8x300xf32>
    %53 = tpu.matmul %52, %51, %cst_23 {dimension_numbers = #tpu.dot_dimension_numbers<[1], [1], [0], [0], [0, 0, 1, 0], [], []>} : vector<8x300xbf16>, vector<300x300xbf16>, vector<8x300xf32> -> vector<8x300xf32>
    %54 = vector.extract_strided_slice %53 {offsets = [0, 0], sizes = [1, 300], strides = [1, 1]} : vector<8x300xf32> to vector<1x300xf32>
    %55 = tpu.reciprocal %54 {approx = true} : vector<1x300xf32> -> vector<1x300xf32>
    %56 = vector.broadcast %55 : vector<1x300xf32> to vector<8x300xf32>
    %57 = arith.mulf %53, %56 : vector<8x300xf32>
    %c0_24 = arith.constant 0 : index
    %c64_25 = arith.constant 64 : index
    %c0_26 = arith.constant 0 : index
    %58 = vector.load %arg4[%c0_24, %c64_25, %c0_26] : memref<2x112x16xbf16, #tpu.memory_space<vmem>>, vector<1x6x8xbf16>
    %59 = vector.shape_cast %58 : vector<1x6x8xbf16> to vector<6x8xbf16>
    %60 = arith.truncf %57 : vector<8x300xf32> to vector<8x300xbf16>
    %cst_27 = arith.constant dense<0.000000e+00> : vector<6x300xf32>
    %61 = tpu.matmul %59, %60, %cst_27 {dimension_numbers = #tpu.dot_dimension_numbers<[1], [0], [0], [1], [0, 0, 1, 1], [], []>} : vector<6x8xbf16>, vector<8x300xbf16>, vector<6x300xf32> -> vector<6x300xf32>
    %62 = vector.broadcast %39 : vector<6x1xf32> to vector<6x300xf32>
    %63 = arith.addf %62, %61 : vector<6x300xf32>
    %64 = vector.extract_strided_slice %37 {offsets = [8, 0], sizes = [8, 300], strides = [1, 1]} : vector<48x300xf32> to vector<8x300xf32>
    %65 = vector.extract_strided_slice %37 {offsets = [24, 0], sizes = [8, 300], strides = [1, 1]} : vector<48x300xf32> to vector<8x300xf32>
    %66 = vector.extract_strided_slice %37 {offsets = [40, 0], sizes = [8, 300], strides = [1, 1]} : vector<48x300xf32> to vector<8x300xf32>
    %67 = arith.truncf %64 : vector<8x300xf32> to vector<8x300xbf16>
    %68 = arith.truncf %65 : vector<8x300xf32> to vector<8x300xbf16>
    %cst_28 = arith.constant dense<0.000000e+00> : vector<300x300xf32>
    %69 = tpu.matmul %67, %68, %cst_28 {dimension_numbers = #tpu.dot_dimension_numbers<[0], [0], [1], [1], [0, 1, 1, 1], [], []>} : vector<8x300xbf16>, vector<8x300xbf16>, vector<300x300xf32> -> vector<300x300xf32>
    %cst_29 = arith.constant dense<0xFF800000> : vector<300xf32>
    %70 = vector.multi_reduction <maximumf>, %69, %cst_29 [1] : vector<300x300xf32> to vector<300xf32>
    %71 = vector.shape_cast %70 : vector<300xf32> to vector<300x1xf32>
    %72 = vector.broadcast %71 : vector<300x1xf32> to vector<300x300xf32>
    %73 = arith.subf %69, %72 : vector<300x300xf32>
    %74 = arith.truncf %73 : vector<300x300xf32> to vector<300x300xbf16>
    %75 = math.exp %74 : vector<300x300xbf16>
    %76 = arith.truncf %66 : vector<8x300xf32> to vector<8x300xbf16>
    %cst_30 = arith.constant dense<0.000000e+00> : vector<8x300xf32>
    %77 = tpu.matmul %76, %75, %cst_30 {dimension_numbers = #tpu.dot_dimension_numbers<[1], [1], [0], [0], [0, 0, 1, 0], [], []>} : vector<8x300xbf16>, vector<300x300xbf16>, vector<8x300xf32> -> vector<8x300xf32>
    %78 = vector.extract_strided_slice %77 {offsets = [0, 0], sizes = [1, 300], strides = [1, 1]} : vector<8x300xf32> to vector<1x300xf32>
    %79 = tpu.reciprocal %78 {approx = true} : vector<1x300xf32> -> vector<1x300xf32>
    %80 = vector.broadcast %79 : vector<1x300xf32> to vector<8x300xf32>
    %81 = arith.mulf %77, %80 : vector<8x300xf32>
    %c0_31 = arith.constant 0 : index
    %c80 = arith.constant 80 : index
    %c0_32 = arith.constant 0 : index
    %82 = vector.load %arg4[%c0_31, %c80, %c0_32] : memref<2x112x16xbf16, #tpu.memory_space<vmem>>, vector<1x6x8xbf16>
    %83 = vector.shape_cast %82 : vector<1x6x8xbf16> to vector<6x8xbf16>
    %84 = arith.truncf %81 : vector<8x300xf32> to vector<8x300xbf16>
    %cst_33 = arith.constant dense<0.000000e+00> : vector<6x300xf32>
    %85 = tpu.matmul %83, %84, %cst_33 {dimension_numbers = #tpu.dot_dimension_numbers<[1], [0], [0], [1], [0, 0, 1, 1], [], []>} : vector<6x8xbf16>, vector<8x300xbf16>, vector<6x300xf32> -> vector<6x300xf32>
    %86 = arith.addf %63, %85 : vector<6x300xf32>
    %87 = arith.addf %3, %86 : vector<6x300xf32>
    %c0_34 = arith.constant 0 : index
    %c16 = arith.constant 16 : index
    %c0_35 = arith.constant 0 : index
    %88 = vector.load %arg3[%c0_34, %c16, %c0_35] : memref<2x112x1xf32, #tpu.memory_space<vmem>>, vector<1x6x1xf32>
    %89 = vector.shape_cast %88 : vector<1x6x1xf32> to vector<6x1xf32>
    %c0_36 = arith.constant 0 : index
    %c24 = arith.constant 24 : index
    %c0_37 = arith.constant 0 : index
    %90 = vector.load %arg3[%c0_36, %c24, %c0_37] : memref<2x112x1xf32, #tpu.memory_space<vmem>>, vector<1x6x1xf32>
    %91 = vector.shape_cast %90 : vector<1x6x1xf32> to vector<6x1xf32>
    %cst_38 = arith.constant dense<0.000000e+00> : vector<300xf32>
    %92 = vector.multi_reduction <add>, %87, %cst_38 [0] : vector<6x300xf32> to vector<300xf32>
    %93 = vector.shape_cast %92 : vector<300xf32> to vector<1x300xf32>
    %cst_39 = arith.constant 6.000000e+00 : f32
    %94 = vector.broadcast %cst_39 : f32 to vector<1x300xf32>
    %95 = arith.divf %93, %94 : vector<1x300xf32>
    %96 = vector.broadcast %95 : vector<1x300xf32> to vector<6x300xf32>
    %97 = arith.subf %87, %96 : vector<6x300xf32>
    %98 = arith.mulf %97, %97 : vector<6x300xf32>
    %cst_40 = arith.constant dense<0.000000e+00> : vector<300xf32>
    %99 = vector.multi_reduction <add>, %98, %cst_40 [0] : vector<6x300xf32> to vector<300xf32>
    %100 = vector.shape_cast %99 : vector<300xf32> to vector<1x300xf32>
    %cst_41 = arith.constant 6.000000e+00 : f32
    %101 = vector.broadcast %cst_41 : f32 to vector<1x300xf32>
    %102 = arith.divf %100, %101 : vector<1x300xf32>
    %103 = vector.broadcast %95 : vector<1x300xf32> to vector<6x300xf32>
    %104 = arith.subf %87, %103 : vector<6x300xf32>
    %cst_42 = arith.constant 9.99999974E-6 : f32
    %105 = vector.broadcast %cst_42 : f32 to vector<1x300xf32>
    %106 = arith.addf %102, %105 : vector<1x300xf32>
    %107 = math.rsqrt %106 : vector<1x300xf32>
    %108 = vector.broadcast %107 : vector<1x300xf32> to vector<6x300xf32>
    %109 = arith.mulf %104, %108 : vector<6x300xf32>
    %110 = vector.broadcast %89 : vector<6x1xf32> to vector<6x300xf32>
    %111 = arith.mulf %109, %110 : vector<6x300xf32>
    %112 = vector.broadcast %91 : vector<6x1xf32> to vector<6x300xf32>
    %113 = arith.addf %111, %112 : vector<6x300xf32>
    %c0_43 = arith.constant 0 : index
    %c48 = arith.constant 48 : index
    %c0_44 = arith.constant 0 : index
    %114 = vector.load %arg4[%c0_43, %c48, %c0_44] : memref<2x112x16xbf16, #tpu.memory_space<vmem>>, vector<1x16x6xbf16>
    %115 = vector.shape_cast %114 : vector<1x16x6xbf16> to vector<16x6xbf16>
    %116 = arith.truncf %113 : vector<6x300xf32> to vector<6x300xbf16>
    %cst_45 = arith.constant dense<0.000000e+00> : vector<16x300xf32>
    %117 = tpu.matmul %115, %116, %cst_45 {dimension_numbers = #tpu.dot_dimension_numbers<[1], [0], [0], [1], [0, 0, 1, 1], [], []>} : vector<16x6xbf16>, vector<6x300xbf16>, vector<16x300xf32> -> vector<16x300xf32>
    %c0_46 = arith.constant 0 : index
    %c48_47 = arith.constant 48 : index
    %c0_48 = arith.constant 0 : index
    %118 = vector.load %arg3[%c0_46, %c48_47, %c0_48] : memref<2x112x1xf32, #tpu.memory_space<vmem>>, vector<1x16x1xf32>
    %119 = vector.shape_cast %118 : vector<1x16x1xf32> to vector<16x1xf32>
    %120 = vector.broadcast %119 : vector<16x1xf32> to vector<16x300xf32>
    %121 = arith.addf %117, %120 : vector<16x300xf32>
    %cst_49 = arith.constant 0.000000e+00 : f32
    %122 = vector.broadcast %cst_49 : f32 to vector<16x300xf32>
    %123 = arith.maximumf %121, %122 : vector<16x300xf32>
    %c0_50 = arith.constant 0 : index
    %c96 = arith.constant 96 : index
    %c0_51 = arith.constant 0 : index
    %124 = vector.load %arg4[%c0_50, %c96, %c0_51] : memref<2x112x16xbf16, #tpu.memory_space<vmem>>, vector<1x6x16xbf16>
    %125 = vector.shape_cast %124 : vector<1x6x16xbf16> to vector<6x16xbf16>
    %126 = arith.truncf %123 : vector<16x300xf32> to vector<16x300xbf16>
    %cst_52 = arith.constant dense<0.000000e+00> : vector<6x300xf32>
    %127 = tpu.matmul %125, %126, %cst_52 {dimension_numbers = #tpu.dot_dimension_numbers<[1], [0], [0], [1], [0, 0, 1, 1], [], []>} : vector<6x16xbf16>, vector<16x300xbf16>, vector<6x300xf32> -> vector<6x300xf32>
    %128 = arith.addf %87, %127 : vector<6x300xf32>
    %c0_53 = arith.constant 0 : index
    %c40 = arith.constant 40 : index
    %c0_54 = arith.constant 0 : index
    %129 = vector.load %arg3[%c0_53, %c40, %c0_54] : memref<2x112x1xf32, #tpu.memory_space<vmem>>, vector<1x6x1xf32>
    %130 = vector.shape_cast %129 : vector<1x6x1xf32> to vector<6x1xf32>
    %131 = vector.broadcast %130 : vector<6x1xf32> to vector<6x300xf32>
    %132 = arith.addf %128, %131 : vector<6x300xf32>
    %133 = arith.addf %132, %2 : vector<6x300xf32>
    %c1 = arith.constant 1 : index
    %c0_55 = arith.constant 0 : index
    %c0_56 = arith.constant 0 : index
    %134 = vector.load %arg3[%c1, %c0_55, %c0_56] : memref<2x112x1xf32, #tpu.memory_space<vmem>>, vector<1x6x1xf32>
    %135 = vector.shape_cast %134 : vector<1x6x1xf32> to vector<6x1xf32>
    %c1_57 = arith.constant 1 : index
    %c8_58 = arith.constant 8 : index
    %c0_59 = arith.constant 0 : index
    %136 = vector.load %arg3[%c1_57, %c8_58, %c0_59] : memref<2x112x1xf32, #tpu.memory_space<vmem>>, vector<1x6x1xf32>
    %137 = vector.shape_cast %136 : vector<1x6x1xf32> to vector<6x1xf32>
    %cst_60 = arith.constant dense<0.000000e+00> : vector<300xf32>
    %138 = vector.multi_reduction <add>, %133, %cst_60 [0] : vector<6x300xf32> to vector<300xf32>
    %139 = vector.shape_cast %138 : vector<300xf32> to vector<1x300xf32>
    %cst_61 = arith.constant 6.000000e+00 : f32
    %140 = vector.broadcast %cst_61 : f32 to vector<1x300xf32>
    %141 = arith.divf %139, %140 : vector<1x300xf32>
    %142 = vector.broadcast %141 : vector<1x300xf32> to vector<6x300xf32>
    %143 = arith.subf %133, %142 : vector<6x300xf32>
    %144 = arith.mulf %143, %143 : vector<6x300xf32>
    %cst_62 = arith.constant dense<0.000000e+00> : vector<300xf32>
    %145 = vector.multi_reduction <add>, %144, %cst_62 [0] : vector<6x300xf32> to vector<300xf32>
    %146 = vector.shape_cast %145 : vector<300xf32> to vector<1x300xf32>
    %cst_63 = arith.constant 6.000000e+00 : f32
    %147 = vector.broadcast %cst_63 : f32 to vector<1x300xf32>
    %148 = arith.divf %146, %147 : vector<1x300xf32>
    %149 = vector.broadcast %141 : vector<1x300xf32> to vector<6x300xf32>
    %150 = arith.subf %133, %149 : vector<6x300xf32>
    %cst_64 = arith.constant 9.99999974E-6 : f32
    %151 = vector.broadcast %cst_64 : f32 to vector<1x300xf32>
    %152 = arith.addf %148, %151 : vector<1x300xf32>
    %153 = math.rsqrt %152 : vector<1x300xf32>
    %154 = vector.broadcast %153 : vector<1x300xf32> to vector<6x300xf32>
    %155 = arith.mulf %150, %154 : vector<6x300xf32>
    %156 = vector.broadcast %135 : vector<6x1xf32> to vector<6x300xf32>
    %157 = arith.mulf %155, %156 : vector<6x300xf32>
    %158 = vector.broadcast %137 : vector<6x1xf32> to vector<6x300xf32>
    %159 = arith.addf %157, %158 : vector<6x300xf32>
    %c1_65 = arith.constant 1 : index
    %c0_66 = arith.constant 0 : index
    %c0_67 = arith.constant 0 : index
    %160 = vector.load %arg4[%c1_65, %c0_66, %c0_67] : memref<2x112x16xbf16, #tpu.memory_space<vmem>>, vector<1x48x6xbf16>
    %161 = vector.shape_cast %160 : vector<1x48x6xbf16> to vector<48x6xbf16>
    %162 = arith.truncf %159 : vector<6x300xf32> to vector<6x300xbf16>
    %cst_68 = arith.constant dense<0.000000e+00> : vector<48x300xf32>
    %163 = tpu.matmul %161, %162, %cst_68 {dimension_numbers = #tpu.dot_dimension_numbers<[1], [0], [0], [1], [0, 0, 1, 1], [], []>} : vector<48x6xbf16>, vector<6x300xbf16>, vector<48x300xf32> -> vector<48x300xf32>
    %c1_69 = arith.constant 1 : index
    %c64_70 = arith.constant 64 : index
    %c0_71 = arith.constant 0 : index
    %164 = vector.load %arg3[%c1_69, %c64_70, %c0_71] : memref<2x112x1xf32, #tpu.memory_space<vmem>>, vector<1x48x1xf32>
    %165 = vector.shape_cast %164 : vector<1x48x1xf32> to vector<48x1xf32>
    %166 = vector.broadcast %165 : vector<48x1xf32> to vector<48x300xf32>
    %167 = arith.addf %163, %166 : vector<48x300xf32>
    %c1_72 = arith.constant 1 : index
    %c32_73 = arith.constant 32 : index
    %c0_74 = arith.constant 0 : index
    %168 = vector.load %arg3[%c1_72, %c32_73, %c0_74] : memref<2x112x1xf32, #tpu.memory_space<vmem>>, vector<1x6x1xf32>
    %169 = vector.shape_cast %168 : vector<1x6x1xf32> to vector<6x1xf32>
    %170 = vector.extract_strided_slice %167 {offsets = [0, 0], sizes = [8, 300], strides = [1, 1]} : vector<48x300xf32> to vector<8x300xf32>
    %171 = vector.extract_strided_slice %167 {offsets = [16, 0], sizes = [8, 300], strides = [1, 1]} : vector<48x300xf32> to vector<8x300xf32>
    %172 = vector.extract_strided_slice %167 {offsets = [32, 0], sizes = [8, 300], strides = [1, 1]} : vector<48x300xf32> to vector<8x300xf32>
    %173 = arith.truncf %170 : vector<8x300xf32> to vector<8x300xbf16>
    %174 = arith.truncf %171 : vector<8x300xf32> to vector<8x300xbf16>
    %cst_75 = arith.constant dense<0.000000e+00> : vector<300x300xf32>
    %175 = tpu.matmul %173, %174, %cst_75 {dimension_numbers = #tpu.dot_dimension_numbers<[0], [0], [1], [1], [0, 1, 1, 1], [], []>} : vector<8x300xbf16>, vector<8x300xbf16>, vector<300x300xf32> -> vector<300x300xf32>
    %cst_76 = arith.constant dense<0xFF800000> : vector<300xf32>
    %176 = vector.multi_reduction <maximumf>, %175, %cst_76 [1] : vector<300x300xf32> to vector<300xf32>
    %177 = vector.shape_cast %176 : vector<300xf32> to vector<300x1xf32>
    %178 = vector.broadcast %177 : vector<300x1xf32> to vector<300x300xf32>
    %179 = arith.subf %175, %178 : vector<300x300xf32>
    %180 = arith.truncf %179 : vector<300x300xf32> to vector<300x300xbf16>
    %181 = math.exp %180 : vector<300x300xbf16>
    %182 = arith.truncf %172 : vector<8x300xf32> to vector<8x300xbf16>
    %cst_77 = arith.constant dense<0.000000e+00> : vector<8x300xf32>
    %183 = tpu.matmul %182, %181, %cst_77 {dimension_numbers = #tpu.dot_dimension_numbers<[1], [1], [0], [0], [0, 0, 1, 0], [], []>} : vector<8x300xbf16>, vector<300x300xbf16>, vector<8x300xf32> -> vector<8x300xf32>
    %184 = vector.extract_strided_slice %183 {offsets = [0, 0], sizes = [1, 300], strides = [1, 1]} : vector<8x300xf32> to vector<1x300xf32>
    %185 = tpu.reciprocal %184 {approx = true} : vector<1x300xf32> -> vector<1x300xf32>
    %186 = vector.broadcast %185 : vector<1x300xf32> to vector<8x300xf32>
    %187 = arith.mulf %183, %186 : vector<8x300xf32>
    %c1_78 = arith.constant 1 : index
    %c64_79 = arith.constant 64 : index
    %c0_80 = arith.constant 0 : index
    %188 = vector.load %arg4[%c1_78, %c64_79, %c0_80] : memref<2x112x16xbf16, #tpu.memory_space<vmem>>, vector<1x6x8xbf16>
    %189 = vector.shape_cast %188 : vector<1x6x8xbf16> to vector<6x8xbf16>
    %190 = arith.truncf %187 : vector<8x300xf32> to vector<8x300xbf16>
    %cst_81 = arith.constant dense<0.000000e+00> : vector<6x300xf32>
    %191 = tpu.matmul %189, %190, %cst_81 {dimension_numbers = #tpu.dot_dimension_numbers<[1], [0], [0], [1], [0, 0, 1, 1], [], []>} : vector<6x8xbf16>, vector<8x300xbf16>, vector<6x300xf32> -> vector<6x300xf32>
    %192 = vector.broadcast %169 : vector<6x1xf32> to vector<6x300xf32>
    %193 = arith.addf %192, %191 : vector<6x300xf32>
    %194 = vector.extract_strided_slice %167 {offsets = [8, 0], sizes = [8, 300], strides = [1, 1]} : vector<48x300xf32> to vector<8x300xf32>
    %195 = vector.extract_strided_slice %167 {offsets = [24, 0], sizes = [8, 300], strides = [1, 1]} : vector<48x300xf32> to vector<8x300xf32>
    %196 = vector.extract_strided_slice %167 {offsets = [40, 0], sizes = [8, 300], strides = [1, 1]} : vector<48x300xf32> to vector<8x300xf32>
    %197 = arith.truncf %194 : vector<8x300xf32> to vector<8x300xbf16>
    %198 = arith.truncf %195 : vector<8x300xf32> to vector<8x300xbf16>
    %cst_82 = arith.constant dense<0.000000e+00> : vector<300x300xf32>
    %199 = tpu.matmul %197, %198, %cst_82 {dimension_numbers = #tpu.dot_dimension_numbers<[0], [0], [1], [1], [0, 1, 1, 1], [], []>} : vector<8x300xbf16>, vector<8x300xbf16>, vector<300x300xf32> -> vector<300x300xf32>
    %cst_83 = arith.constant dense<0xFF800000> : vector<300xf32>
    %200 = vector.multi_reduction <maximumf>, %199, %cst_83 [1] : vector<300x300xf32> to vector<300xf32>
    %201 = vector.shape_cast %200 : vector<300xf32> to vector<300x1xf32>
    %202 = vector.broadcast %201 : vector<300x1xf32> to vector<300x300xf32>
    %203 = arith.subf %199, %202 : vector<300x300xf32>
    %204 = arith.truncf %203 : vector<300x300xf32> to vector<300x300xbf16>
    %205 = math.exp %204 : vector<300x300xbf16>
    %206 = arith.truncf %196 : vector<8x300xf32> to vector<8x300xbf16>
    %cst_84 = arith.constant dense<0.000000e+00> : vector<8x300xf32>
    %207 = tpu.matmul %206, %205, %cst_84 {dimension_numbers = #tpu.dot_dimension_numbers<[1], [1], [0], [0], [0, 0, 1, 0], [], []>} : vector<8x300xbf16>, vector<300x300xbf16>, vector<8x300xf32> -> vector<8x300xf32>
    %208 = vector.extract_strided_slice %207 {offsets = [0, 0], sizes = [1, 300], strides = [1, 1]} : vector<8x300xf32> to vector<1x300xf32>
    %209 = tpu.reciprocal %208 {approx = true} : vector<1x300xf32> -> vector<1x300xf32>
    %210 = vector.broadcast %209 : vector<1x300xf32> to vector<8x300xf32>
    %211 = arith.mulf %207, %210 : vector<8x300xf32>
    %c1_85 = arith.constant 1 : index
    %c80_86 = arith.constant 80 : index
    %c0_87 = arith.constant 0 : index
    %212 = vector.load %arg4[%c1_85, %c80_86, %c0_87] : memref<2x112x16xbf16, #tpu.memory_space<vmem>>, vector<1x6x8xbf16>
    %213 = vector.shape_cast %212 : vector<1x6x8xbf16> to vector<6x8xbf16>
    %214 = arith.truncf %211 : vector<8x300xf32> to vector<8x300xbf16>
    %cst_88 = arith.constant dense<0.000000e+00> : vector<6x300xf32>
    %215 = tpu.matmul %213, %214, %cst_88 {dimension_numbers = #tpu.dot_dimension_numbers<[1], [0], [0], [1], [0, 0, 1, 1], [], []>} : vector<6x8xbf16>, vector<8x300xbf16>, vector<6x300xf32> -> vector<6x300xf32>
    %216 = arith.addf %193, %215 : vector<6x300xf32>
    %217 = arith.addf %133, %216 : vector<6x300xf32>
    %c1_89 = arith.constant 1 : index
    %c16_90 = arith.constant 16 : index
    %c0_91 = arith.constant 0 : index
    %218 = vector.load %arg3[%c1_89, %c16_90, %c0_91] : memref<2x112x1xf32, #tpu.memory_space<vmem>>, vector<1x6x1xf32>
    %219 = vector.shape_cast %218 : vector<1x6x1xf32> to vector<6x1xf32>
    %c1_92 = arith.constant 1 : index
    %c24_93 = arith.constant 24 : index
    %c0_94 = arith.constant 0 : index
    %220 = vector.load %arg3[%c1_92, %c24_93, %c0_94] : memref<2x112x1xf32, #tpu.memory_space<vmem>>, vector<1x6x1xf32>
    %221 = vector.shape_cast %220 : vector<1x6x1xf32> to vector<6x1xf32>
    %cst_95 = arith.constant dense<0.000000e+00> : vector<300xf32>
    %222 = vector.multi_reduction <add>, %217, %cst_95 [0] : vector<6x300xf32> to vector<300xf32>
    %223 = vector.shape_cast %222 : vector<300xf32> to vector<1x300xf32>
    %cst_96 = arith.constant 6.000000e+00 : f32
    %224 = vector.broadcast %cst_96 : f32 to vector<1x300xf32>
    %225 = arith.divf %223, %224 : vector<1x300xf32>
    %226 = vector.broadcast %225 : vector<1x300xf32> to vector<6x300xf32>
    %227 = arith.subf %217, %226 : vector<6x300xf32>
    %228 = arith.mulf %227, %227 : vector<6x300xf32>
    %cst_97 = arith.constant dense<0.000000e+00> : vector<300xf32>
    %229 = vector.multi_reduction <add>, %228, %cst_97 [0] : vector<6x300xf32> to vector<300xf32>
    %230 = vector.shape_cast %229 : vector<300xf32> to vector<1x300xf32>
    %cst_98 = arith.constant 6.000000e+00 : f32
    %231 = vector.broadcast %cst_98 : f32 to vector<1x300xf32>
    %232 = arith.divf %230, %231 : vector<1x300xf32>
    %233 = vector.broadcast %225 : vector<1x300xf32> to vector<6x300xf32>
    %234 = arith.subf %217, %233 : vector<6x300xf32>
    %cst_99 = arith.constant 9.99999974E-6 : f32
    %235 = vector.broadcast %cst_99 : f32 to vector<1x300xf32>
    %236 = arith.addf %232, %235 : vector<1x300xf32>
    %237 = math.rsqrt %236 : vector<1x300xf32>
    %238 = vector.broadcast %237 : vector<1x300xf32> to vector<6x300xf32>
    %239 = arith.mulf %234, %238 : vector<6x300xf32>
    %240 = vector.broadcast %219 : vector<6x1xf32> to vector<6x300xf32>
    %241 = arith.mulf %239, %240 : vector<6x300xf32>
    %242 = vector.broadcast %221 : vector<6x1xf32> to vector<6x300xf32>
    %243 = arith.addf %241, %242 : vector<6x300xf32>
    %c1_100 = arith.constant 1 : index
    %c48_101 = arith.constant 48 : index
    %c0_102 = arith.constant 0 : index
    %244 = vector.load %arg4[%c1_100, %c48_101, %c0_102] : memref<2x112x16xbf16, #tpu.memory_space<vmem>>, vector<1x16x6xbf16>
    %245 = vector.shape_cast %244 : vector<1x16x6xbf16> to vector<16x6xbf16>
    %246 = arith.truncf %243 : vector<6x300xf32> to vector<6x300xbf16>
    %cst_103 = arith.constant dense<0.000000e+00> : vector<16x300xf32>
    %247 = tpu.matmul %245, %246, %cst_103 {dimension_numbers = #tpu.dot_dimension_numbers<[1], [0], [0], [1], [0, 0, 1, 1], [], []>} : vector<16x6xbf16>, vector<6x300xbf16>, vector<16x300xf32> -> vector<16x300xf32>
    %c1_104 = arith.constant 1 : index
    %c48_105 = arith.constant 48 : index
    %c0_106 = arith.constant 0 : index
    %248 = vector.load %arg3[%c1_104, %c48_105, %c0_106] : memref<2x112x1xf32, #tpu.memory_space<vmem>>, vector<1x16x1xf32>
    %249 = vector.shape_cast %248 : vector<1x16x1xf32> to vector<16x1xf32>
    %250 = vector.broadcast %249 : vector<16x1xf32> to vector<16x300xf32>
    %251 = arith.addf %247, %250 : vector<16x300xf32>
    %cst_107 = arith.constant 0.000000e+00 : f32
    %252 = vector.broadcast %cst_107 : f32 to vector<16x300xf32>
    %253 = arith.maximumf %251, %252 : vector<16x300xf32>
    %c1_108 = arith.constant 1 : index
    %c96_109 = arith.constant 96 : index
    %c0_110 = arith.constant 0 : index
    %254 = vector.load %arg4[%c1_108, %c96_109, %c0_110] : memref<2x112x16xbf16, #tpu.memory_space<vmem>>, vector<1x6x16xbf16>
    %255 = vector.shape_cast %254 : vector<1x6x16xbf16> to vector<6x16xbf16>
    %256 = arith.truncf %253 : vector<16x300xf32> to vector<16x300xbf16>
    %cst_111 = arith.constant dense<0.000000e+00> : vector<6x300xf32>
    %257 = tpu.matmul %255, %256, %cst_111 {dimension_numbers = #tpu.dot_dimension_numbers<[1], [0], [0], [1], [0, 0, 1, 1], [], []>} : vector<6x16xbf16>, vector<16x300xbf16>, vector<6x300xf32> -> vector<6x300xf32>
    %258 = arith.addf %217, %257 : vector<6x300xf32>
    %c1_112 = arith.constant 1 : index
    %c40_113 = arith.constant 40 : index
    %c0_114 = arith.constant 0 : index
    %259 = vector.load %arg3[%c1_112, %c40_113, %c0_114] : memref<2x112x1xf32, #tpu.memory_space<vmem>>, vector<1x6x1xf32>
    %260 = vector.shape_cast %259 : vector<1x6x1xf32> to vector<6x1xf32>
    %261 = vector.broadcast %260 : vector<6x1xf32> to vector<6x300xf32>
    %262 = arith.addf %258, %261 : vector<6x300xf32>
    %c0_115 = arith.constant 0 : index
    %c0_116 = arith.constant 0 : index
    %263 = vector.load %arg6[%c0_115, %c0_116] : memref<72x64xf32, #tpu.memory_space<vmem>>, vector<1x64xf32>
    %264 = vector.extract_strided_slice %262 {offsets = [0, 0], sizes = [1, 300], strides = [1, 1]} : vector<6x300xf32> to vector<1x300xf32>
    %c0_117 = arith.constant 0 : index
    %c0_118 = arith.constant 0 : index
    %c0_119 = arith.constant 0 : index
    %265 = vector.load %arg5[%c0_117, %c0_118, %c0_119] : memref<6x300x64xbf16, #tpu.memory_space<vmem>>, vector<1x300x64xbf16>
    %266 = vector.shape_cast %265 : vector<1x300x64xbf16> to vector<300x64xbf16>
    %267 = arith.truncf %264 : vector<1x300xf32> to vector<1x300xbf16>
    %cst_120 = arith.constant dense<0.000000e+00> : vector<1x64xf32>
    %268 = tpu.matmul %267, %266, %cst_120 {dimension_numbers = #tpu.dot_dimension_numbers<[1], [0], [0], [1], [0, 0, 1, 1], [], []>} : vector<1x300xbf16>, vector<300x64xbf16>, vector<1x64xf32> -> vector<1x64xf32>
    %269 = arith.addf %263, %268 : vector<1x64xf32>
    %270 = vector.extract_strided_slice %262 {offsets = [1, 0], sizes = [1, 300], strides = [1, 1]} : vector<6x300xf32> to vector<1x300xf32>
    %c1_121 = arith.constant 1 : index
    %c0_122 = arith.constant 0 : index
    %c0_123 = arith.constant 0 : index
    %271 = vector.load %arg5[%c1_121, %c0_122, %c0_123] : memref<6x300x64xbf16, #tpu.memory_space<vmem>>, vector<1x300x64xbf16>
    %272 = vector.shape_cast %271 : vector<1x300x64xbf16> to vector<300x64xbf16>
    %273 = arith.truncf %270 : vector<1x300xf32> to vector<1x300xbf16>
    %cst_124 = arith.constant dense<0.000000e+00> : vector<1x64xf32>
    %274 = tpu.matmul %273, %272, %cst_124 {dimension_numbers = #tpu.dot_dimension_numbers<[1], [0], [0], [1], [0, 0, 1, 1], [], []>} : vector<1x300xbf16>, vector<300x64xbf16>, vector<1x64xf32> -> vector<1x64xf32>
    %275 = arith.addf %269, %274 : vector<1x64xf32>
    %276 = vector.extract_strided_slice %262 {offsets = [2, 0], sizes = [1, 300], strides = [1, 1]} : vector<6x300xf32> to vector<1x300xf32>
    %c2 = arith.constant 2 : index
    %c0_125 = arith.constant 0 : index
    %c0_126 = arith.constant 0 : index
    %277 = vector.load %arg5[%c2, %c0_125, %c0_126] : memref<6x300x64xbf16, #tpu.memory_space<vmem>>, vector<1x300x64xbf16>
    %278 = vector.shape_cast %277 : vector<1x300x64xbf16> to vector<300x64xbf16>
    %279 = arith.truncf %276 : vector<1x300xf32> to vector<1x300xbf16>
    %cst_127 = arith.constant dense<0.000000e+00> : vector<1x64xf32>
    %280 = tpu.matmul %279, %278, %cst_127 {dimension_numbers = #tpu.dot_dimension_numbers<[1], [0], [0], [1], [0, 0, 1, 1], [], []>} : vector<1x300xbf16>, vector<300x64xbf16>, vector<1x64xf32> -> vector<1x64xf32>
    %281 = arith.addf %275, %280 : vector<1x64xf32>
    %282 = vector.extract_strided_slice %262 {offsets = [3, 0], sizes = [1, 300], strides = [1, 1]} : vector<6x300xf32> to vector<1x300xf32>
    %c3 = arith.constant 3 : index
    %c0_128 = arith.constant 0 : index
    %c0_129 = arith.constant 0 : index
    %283 = vector.load %arg5[%c3, %c0_128, %c0_129] : memref<6x300x64xbf16, #tpu.memory_space<vmem>>, vector<1x300x64xbf16>
    %284 = vector.shape_cast %283 : vector<1x300x64xbf16> to vector<300x64xbf16>
    %285 = arith.truncf %282 : vector<1x300xf32> to vector<1x300xbf16>
    %cst_130 = arith.constant dense<0.000000e+00> : vector<1x64xf32>
    %286 = tpu.matmul %285, %284, %cst_130 {dimension_numbers = #tpu.dot_dimension_numbers<[1], [0], [0], [1], [0, 0, 1, 1], [], []>} : vector<1x300xbf16>, vector<300x64xbf16>, vector<1x64xf32> -> vector<1x64xf32>
    %287 = arith.addf %281, %286 : vector<1x64xf32>
    %288 = vector.extract_strided_slice %262 {offsets = [4, 0], sizes = [1, 300], strides = [1, 1]} : vector<6x300xf32> to vector<1x300xf32>
    %c4 = arith.constant 4 : index
    %c0_131 = arith.constant 0 : index
    %c0_132 = arith.constant 0 : index
    %289 = vector.load %arg5[%c4, %c0_131, %c0_132] : memref<6x300x64xbf16, #tpu.memory_space<vmem>>, vector<1x300x64xbf16>
    %290 = vector.shape_cast %289 : vector<1x300x64xbf16> to vector<300x64xbf16>
    %291 = arith.truncf %288 : vector<1x300xf32> to vector<1x300xbf16>
    %cst_133 = arith.constant dense<0.000000e+00> : vector<1x64xf32>
    %292 = tpu.matmul %291, %290, %cst_133 {dimension_numbers = #tpu.dot_dimension_numbers<[1], [0], [0], [1], [0, 0, 1, 1], [], []>} : vector<1x300xbf16>, vector<300x64xbf16>, vector<1x64xf32> -> vector<1x64xf32>
    %293 = arith.addf %287, %292 : vector<1x64xf32>
    %294 = vector.extract_strided_slice %262 {offsets = [5, 0], sizes = [1, 300], strides = [1, 1]} : vector<6x300xf32> to vector<1x300xf32>
    %c5 = arith.constant 5 : index
    %c0_134 = arith.constant 0 : index
    %c0_135 = arith.constant 0 : index
    %295 = vector.load %arg5[%c5, %c0_134, %c0_135] : memref<6x300x64xbf16, #tpu.memory_space<vmem>>, vector<1x300x64xbf16>
    %296 = vector.shape_cast %295 : vector<1x300x64xbf16> to vector<300x64xbf16>
    %297 = arith.truncf %294 : vector<1x300xf32> to vector<1x300xbf16>
    %cst_136 = arith.constant dense<0.000000e+00> : vector<1x64xf32>
    %298 = tpu.matmul %297, %296, %cst_136 {dimension_numbers = #tpu.dot_dimension_numbers<[1], [0], [0], [1], [0, 0, 1, 1], [], []>} : vector<1x300xbf16>, vector<300x64xbf16>, vector<1x64xf32> -> vector<1x64xf32>
    %299 = arith.addf %293, %298 : vector<1x64xf32>
    %cst_137 = arith.constant 0.000000e+00 : f32
    %300 = vector.broadcast %cst_137 : f32 to vector<1x64xf32>
    %301 = arith.maximumf %299, %300 : vector<1x64xf32>
    %c8_138 = arith.constant 8 : index
    %c0_139 = arith.constant 0 : index
    %302 = vector.load %arg6[%c8_138, %c0_139] : memref<72x64xf32, #tpu.memory_space<vmem>>, vector<64x5xf32>
    %cst_140 = arith.constant dense<0.000000e+00> : vector<1x5xf32>
    %303 = tpu.matmul %301, %302, %cst_140 {dimension_numbers = #tpu.dot_dimension_numbers<[1], [0], [0], [1], [0, 0, 1, 1], [], []>} : vector<1x64xf32>, vector<64x5xf32>, vector<1x5xf32> -> vector<1x5xf32>
    %c1_141 = arith.constant 1 : index
    %c0_142 = arith.constant 0 : index
    %304 = vector.load %arg6[%c1_141, %c0_142] : memref<72x64xf32, #tpu.memory_space<vmem>>, vector<1x5xf32>
    %305 = arith.addf %303, %304 : vector<1x5xf32>
    %306 = vector.extract_strided_slice %305 {offsets = [0, 0], sizes = [1, 1], strides = [1, 1]} : vector<1x5xf32> to vector<1x1xf32>
    %307 = vector.extract_strided_slice %305 {offsets = [0, 1], sizes = [1, 4], strides = [1, 1]} : vector<1x5xf32> to vector<1x4xf32>
    %cst_143 = arith.constant dense<0.000000e+00> : vector<1xf32>
    %308 = vector.multi_reduction <add>, %307, %cst_143 [1] : vector<1x4xf32> to vector<1xf32>
    %309 = vector.shape_cast %308 : vector<1xf32> to vector<1x1xf32>
    %cst_144 = arith.constant 4.000000e+00 : f32
    %310 = vector.broadcast %cst_144 : f32 to vector<1x1xf32>
    %311 = arith.divf %309, %310 : vector<1x1xf32>
    %312 = vector.broadcast %311 : vector<1x1xf32> to vector<1x4xf32>
    %313 = arith.subf %307, %312 : vector<1x4xf32>
    %314 = vector.broadcast %306 : vector<1x1xf32> to vector<1x4xf32>
    %315 = arith.addf %314, %313 : vector<1x4xf32>
    %c0_145 = arith.constant 0 : index
    %c0_146 = arith.constant 0 : index
    %c0_147 = arith.constant 0 : index
    %316 = vector.load %arg7[%c0_145, %c0_146, %c0_147] : memref<1x1x4xf32, #tpu.memory_space<vmem>>, vector<1x1x4xf32>
    %317 = vector.shape_cast %316 : vector<1x1x4xf32> to vector<1x4xf32>
    %318 = vector.shape_cast %315 : vector<1x4xf32> to vector<1x1x4xf32>
    tpu.vector_store %arg7[%c0_145, %c0_146, %c0_147], %318 {strides = array<i32>} : memref<1x1x4xf32, #tpu.memory_space<vmem>>, vector<1x1x4xf32>,
    return
  }
  func.func @transform_0(%arg0: i32) -> (i32, i32, i32) {
    %c0_i32 = arith.constant 0 : i32
    %c0_i32_0 = arith.constant 0 : i32
    %c0_i32_1 = arith.constant 0 : i32
    return %arg0, %c0_i32, %c0_i32_0 : i32, i32, i32
  }
  func.func @transform_1(%arg0: i32) -> (i32, i32) {
    %c0_i32 = arith.constant 0 : i32
    %c0_i32_0 = arith.constant 0 : i32
    %c0_i32_1 = arith.constant 0 : i32
    return %c0_i32, %c0_i32_0 : i32, i32
  }
  func.func @transform_2(%arg0: i32) -> (i32, i32, i32) {
    %c0_i32 = arith.constant 0 : i32
    %c0_i32_0 = arith.constant 0 : i32
    %c0_i32_1 = arith.constant 0 : i32
    %c0_i32_2 = arith.constant 0 : i32
    return %c0_i32, %c0_i32_0, %c0_i32_1 : i32, i32, i32
  }
  func.func @transform_3(%arg0: i32) -> (i32, i32, i32) {
    %c0_i32 = arith.constant 0 : i32
    %c0_i32_0 = arith.constant 0 : i32
    %c0_i32_1 = arith.constant 0 : i32
    %c0_i32_2 = arith.constant 0 : i32
    return %c0_i32, %c0_i32_0, %c0_i32_1 : i32, i32, i32
  }
  func.func @transform_4(%arg0: i32) -> (i32, i32, i32) {
    %c0_i32 = arith.constant 0 : i32
    %c0_i32_0 = arith.constant 0 : i32
    %c0_i32_1 = arith.constant 0 : i32
    %c0_i32_2 = arith.constant 0 : i32
    return %c0_i32, %c0_i32_0, %c0_i32_1 : i32, i32, i32
  }
  func.func @transform_5(%arg0: i32) -> (i32, i32) {
    %c0_i32 = arith.constant 0 : i32
    %c0_i32_0 = arith.constant 0 : i32
    %c0_i32_1 = arith.constant 0 : i32
    return %c0_i32, %c0_i32_0 : i32, i32
  }
  func.func @transform_6(%arg0: i32) -> (i32, i32, i32) {
    %c0_i32 = arith.constant 0 : i32
    %c0_i32_0 = arith.constant 0 : i32
    %c0_i32_1 = arith.constant 0 : i32
    return %arg0, %c0_i32, %c0_i32_0 : i32, i32, i32
  }
}

</mosaic_0001>

<llo_original>
// kernel: run_fused.1
$region0: #{run_fused.1}
  #allocation0 [shape = 'u32[]', space=smem, size = 0x4, offset = 0x4, fixed_abs, tag = 'smem constant byte address 0x4 - core index']
  #allocation1 [shape = 'u32[144,128]{1,0:T(1,128)}', space=vmem, size = 0x12000, scoped, tag = 'internal scratch']
  %s0 = inlined_call_operand.vmem [shape: f32[2,6,300], index: 0, kind: input, shape index: {}]
  %s1 = inlined_call_operand.vmem [shape: f32[6,300], index: 1, kind: input, shape index: {}]
  %s2 = inlined_call_operand.vmem [shape: f32[2,112,1], index: 2, kind: input, shape index: {}]
  %s3 = inlined_call_operand.vmem [shape: bf16[2,112,16], index: 3, kind: input, shape index: {}]
  %s4 = inlined_call_operand.vmem [shape: bf16[6,300,64], index: 4, kind: input, shape index: {}]
  %s5 = inlined_call_operand.vmem [shape: f32[72,64], index: 5, kind: input, shape index: {}]
  %s6 = inlined_call_operand.hbm [shape: f32[2,1,4], index: 6, kind: output, shape index: {}]
  %s7 = sld [smem:[#allocation0]]
  $region57: #{run_fused.1} parent=0
    _
  %s9 = ssub.s32 1, %s7
  %s10 = scalar_select 0, %s9, %s7
  $region1: #{run_fused.1} parent=0
    #allocation2 [shape = 'u8[1024]{0}', space=vmem, size = 0x400, scoped, tag = 'output window, operand 0']
    #allocation3 [shape = 's32[2]{0}', space=sflag, size = 0x8, scoped, tag = 'scoped memory for run_fused.1']
    %11 = vsyncpa [#allocation3], 0
    %s12 = scalar_lea.sflag [#allocation3], 1
    %13 = vsyncpa %s12, 0
    loop: start=0, step=1, limit=4
    $region2: #{run_fused.1} parent=1 // loop_pre_header
      _
    $region3: #{run_fused.1} parent=1 // loop_header
      %s15 = sphi 0, %s19
      %p16 = scmp.ge.s32.totalorder %s15, 4
      %s25 = sphi 0, %s27
      %s28 = sphi 0, %s25
      %s29 = sphi 0, %s28
      %s45 = sphi 0, %s29
      %s49 = sphi 0, %s49
      %s51 = sphi 0, %s49
      %s52 = sphi 0, %s51
      %s66 = sphi 0, %s52
      %s70 = sphi 0, %s70
      %s72 = sphi 0, %s70
      %s73 = sphi 0, %s72
      %s87 = sphi 0, %s73
      %s91 = sphi 0, %s91
      %s93 = sphi 0, %s91
      %s94 = sphi 0, %s93
      %s108 = sphi 0, %s94
      %s112 = sphi 0, %s112
      %s114 = sphi 0, %s112
      %s115 = sphi 0, %s114
      %s129 = sphi 0, %s115
      %s133 = sphi 0, %s133
      %s135 = sphi 0, %s133
      %s136 = sphi 0, %s135
      %s150 = sphi 0, %s136
      %s156 = sphi 0, %s158
      %s159 = sphi 0, %s156
      %s160 = sphi 0, %s159
      %s176 = sphi 0, %s160
    $region4: #{run_fused.1} parent=1 // loop_header_branch
      %18 = sbr.rel (%p16) target = $region8
    $region5: #{run_fused.1} parent=1 // loop_body
      %s20 = ssub.s32 %s15, 1
      %s21 = ssub.s32 %s15, 2
      %s22 = sadd.s32 %s15, 1
      %s23 = ssub.s32 %s15, %s22
      %p24 = scmp.eq.s32.totalorder %s23, 0
      %s26 = sadd.s32 %s25, 1
      %s27 = scalar_select %p24, %s25, %s26
      %p30 = pneg %p24
      %p31 = scmp.eq.s32.totalorder %s15, 1
      %p32 = por %p30, %p31
      %p33 = scmp.ne.s32.totalorder %s25, %s28
      %p34 = scmp.eq.s32.totalorder %s15, 0
      %p35 = por %p33, %p34
      %p36 = scmp.ne.s32.totalorder %s25, %s28
      %p37 = scmp.eq.s32.totalorder %s20, 1
      %p38 = por %p36, %p37
      %p39 = scmp.ne.s32.totalorder %s28, %s29
      %p40 = scmp.eq.s32.totalorder %s20, 0
      %p41 = por %p39, %p40
      %p42 = scmp.ne.s32.totalorder %s28, %s29
      %p43 = scmp.eq.s32.totalorder %s21, 1
      %p44 = por %p42, %p43
      %p46 = scmp.ne.s32.totalorder %s29, %s45
      %p47 = scmp.eq.s32.totalorder %s21, 0
      %p48 = por %p46, %p47
      %s50 = sadd.s32 %s49, 1
      %p53 = scmp.eq.s32.totalorder %s15, 1
      %p54 = scmp.ne.s32.totalorder %s49, %s51
      %p55 = scmp.eq.s32.totalorder %s15, 0
      %p56 = por %p54, %p55
      %p57 = scmp.ne.s32.totalorder %s49, %s51
      %p58 = scmp.eq.s32.totalorder %s20, 1
      %p59 = por %p57, %p58
      %p60 = scmp.ne.s32.totalorder %s51, %s52
      %p61 = scmp.eq.s32.totalorder %s20, 0
      %p62 = por %p60, %p61
      %p63 = scmp.ne.s32.totalorder %s51, %s52
      %p64 = scmp.eq.s32.totalorder %s21, 1
      %p65 = por %p63, %p64
      %p67 = scmp.ne.s32.totalorder %s52, %s66
      %p68 = scmp.eq.s32.totalorder %s21, 0
      %p69 = por %p67, %p68
      %s71 = sadd.s32 %s70, 1
      %p74 = scmp.eq.s32.totalorder %s15, 1
      %p75 = scmp.ne.s32.totalorder %s70, %s72
      %p76 = scmp.eq.s32.totalorder %s15, 0
      %p77 = por %p75, %p76
      %p78 = scmp.ne.s32.totalorder %s70, %s72
      %p79 = scmp.eq.s32.totalorder %s20, 1
      %p80 = por %p78, %p79
      %p81 = scmp.ne.s32.totalorder %s72, %s73
      %p82 = scmp.eq.s32.totalorder %s20, 0
      %p83 = por %p81, %p82
      %p84 = scmp.ne.s32.totalorder %s72, %s73
      %p85 = scmp.eq.s32.totalorder %s21, 1
      %p86 = por %p84, %p85
      %p88 = scmp.ne.s32.totalorder %s73, %s87
      %p89 = scmp.eq.s32.totalorder %s21, 0
      %p90 = por %p88, %p89
      %s92 = sadd.s32 %s91, 1
      %p95 = scmp.eq.s32.totalorder %s15, 1
      %p96 = scmp.ne.s32.totalorder %s91, %s93
      %p97 = scmp.eq.s32.totalorder %s15, 0
      %p98 = por %p96, %p97
      %p99 = scmp.ne.s32.totalorder %s91, %s93
      %p100 = scmp.eq.s32.totalorder %s20, 1
      %p101 = por %p99, %p100
      %p102 = scmp.ne.s32.totalorder %s93, %s94
      %p103 = scmp.eq.s32.totalorder %s20, 0
      %p104 = por %p102, %p103
      %p105 = scmp.ne.s32.totalorder %s93, %s94
      %p106 = scmp.eq.s32.totalorder %s21, 1
      %p107 = por %p105, %p106
      %p109 = scmp.ne.s32.totalorder %s94, %s108
      %p110 = scmp.eq.s32.totalorder %s21, 0
      %p111 = por %p109, %p110
      %s113 = sadd.s32 %s112, 1
      %p116 = scmp.eq.s32.totalorder %s15, 1
      %p117 = scmp.ne.s32.totalorder %s112, %s114
      %p118 = scmp.eq.s32.totalorder %s15, 0
      %p119 = por %p117, %p118
      %p120 = scmp.ne.s32.totalorder %s112, %s114
      %p121 = scmp.eq.s32.totalorder %s20, 1
      %p122 = por %p120, %p121
      %p123 = scmp.ne.s32.totalorder %s114, %s115
      %p124 = scmp.eq.s32.totalorder %s20, 0
      %p125 = por %p123, %p124
      %p126 = scmp.ne.s32.totalorder %s114, %s115
      %p127 = scmp.eq.s32.totalorder %s21, 1
      %p128 = por %p126, %p127
      %p130 = scmp.ne.s32.totalorder %s115, %s129
      %p131 = scmp.eq.s32.totalorder %s21, 0
      %p132 = por %p130, %p131
      %s134 = sadd.s32 %s133, 1
      %p137 = scmp.eq.s32.totalorder %s15, 1
      %p138 = scmp.ne.s32.totalorder %s133, %s135
      %p139 = scmp.eq.s32.totalorder %s15, 0
      %p140 = por %p138, %p139
      %p141 = scmp.ne.s32.totalorder %s133, %s135
      %p142 = scmp.eq.s32.totalorder %s20, 1
      %p143 = por %p141, %p142
      %p144 = scmp.ne.s32.totalorder %s135, %s136
      %p145 = scmp.eq.s32.totalorder %s20, 0
      %p146 = por %p144, %p145
      %p147 = scmp.ne.s32.totalorder %s135, %s136
      %p148 = scmp.eq.s32.totalorder %s21, 1
      %p149 = por %p147, %p148
      %p151 = scmp.ne.s32.totalorder %s136, %s150
      %p152 = scmp.eq.s32.totalorder %s21, 0
      %p153 = por %p151, %p152
      %s154 = ssub.s32 %s15, %s22
      %p155 = scmp.eq.s32.totalorder %s154, 0
      %s157 = sadd.s32 %s156, 1
      %s158 = scalar_select %p155, %s156, %s157
      %p161 = pneg %p155
      %p162 = scmp.eq.s32.totalorder %s15, 1
      %p163 = por %p161, %p162
      %p164 = scmp.ne.s32.totalorder %s156, %s159
      %p165 = scmp.eq.s32.totalorder %s15, 0
      %p166 = por %p164, %p165
      %p167 = scmp.ne.s32.totalorder %s156, %s159
      %p168 = scmp.eq.s32.totalorder %s20, 1
      %p169 = por %p167, %p168
      %p170 = scmp.ne.s32.totalorder %s159, %s160
      %p171 = scmp.eq.s32.totalorder %s20, 0
      %p172 = por %p170, %p171
      %p173 = scmp.ne.s32.totalorder %s159, %s160
      %p174 = scmp.eq.s32.totalorder %s21, 1
      %p175 = por %p173, %p174
      %p177 = scmp.ne.s32.totalorder %s160, %s176
      %p178 = scmp.eq.s32.totalorder %s21, 0
      %p179 = por %p177, %p178
      %p180 = scmp.le.s32.totalorder 1, %s15
      %p181 = scmp.lt.s32.totalorder %s15, 3
      %p182 = pnand %p180, %p181
      %p183 = pneg %p182
      // Predicated region
      $region9: #{run_fused.1} parent=5 // pred_check
        _
      $region10: #{run_fused.1} parent=5 // pred_check_branch
        %185 = sbr.rel (%p182) target = $region12
      $region11: #{run_fused.1} parent=5 // pred_region
        %s186 = ssub.s32 %s15, 1
        // Predicated region
        $region13: #{run_fused.1} parent=11 // pred_check
          %p187 = pneg %p62
        $region14: #{run_fused.1} parent=11 // pred_check_branch
          %189 = sbr.rel (%p187) target = $region16
        $region15: #{run_fused.1} parent=11 // pred_region
          _
        $region16: #{run_fused.1} parent=11 // pred_fallthru
          _
        // Predicated region
        $region17: #{run_fused.1} parent=11 // pred_check
          %p190 = pneg %p83
        $region18: #{run_fused.1} parent=11 // pred_check_branch
          %192 = sbr.rel (%p190) target = $region20
        $region19: #{run_fused.1} parent=11 // pred_region
          _
        $region20: #{run_fused.1} parent=11 // pred_fallthru
          _
        // Predicated region
        $region21: #{run_fused.1} parent=11 // pred_check
          %p193 = pneg %p104
        $region22: #{run_fused.1} parent=11 // pred_check_branch
          %195 = sbr.rel (%p193) target = $region24
        $region23: #{run_fused.1} parent=11 // pred_region
          _
        $region24: #{run_fused.1} parent=11 // pred_fallthru
          _
        // Predicated region
        $region25: #{run_fused.1} parent=11 // pred_check
          %p196 = pneg %p125
        $region26: #{run_fused.1} parent=11 // pred_check_branch
          %198 = sbr.rel (%p196) target = $region28
        $region27: #{run_fused.1} parent=11 // pred_region
          _
        $region28: #{run_fused.1} parent=11 // pred_fallthru
          _
        // Predicated region
        $region29: #{run_fused.1} parent=11 // pred_check
          %p199 = pneg %p146
        $region30: #{run_fused.1} parent=11 // pred_check_branch
          %201 = sbr.rel (%p199) target = $region32
        $region31: #{run_fused.1} parent=11 // pred_region
          _
        $region32: #{run_fused.1} parent=11 // pred_fallthru
          _
      $region12: #{run_fused.1} parent=5 // pred_fallthru
        _
      %p202 = scmp.lt.s32.totalorder %s15, 2
      // Predicated region
      $region33: #{run_fused.1} parent=5 // pred_check
        %p203 = pneg %p202
      $region34: #{run_fused.1} parent=5 // pred_check_branch
        %205 = sbr.rel (%p203) target = $region36
      $region35: #{run_fused.1} parent=5 // pred_region
        // Predicated region
        $region37: #{run_fused.1} parent=35 // pred_check
          %p206 = pneg %p35
        $region38: #{run_fused.1} parent=35 // pred_check_branch
          %208 = sbr.rel (%p206) target = $region40
        $region39: #{run_fused.1} parent=35 // pred_region
          %p209 = scmp.lt.s32.totalorder %s15, 1
          %s210 = scalar_select %p209, %s15, 1
          %s211 = smul.addr %s210, 3
          %s212 = smul.addr %s211, 8
          %s213 = scalar_lea.vmem %s0, %s212
        $region40: #{run_fused.1} parent=35 // pred_fallthru
          _
      $region36: #{run_fused.1} parent=5 // pred_fallthru
        _
      %p214 = scmp.le.s32.totalorder 1, %s15
      %p215 = scmp.lt.s32.totalorder %s15, 3
      %p216 = pnand %p214, %p215
      %p217 = pneg %p216
      // Predicated region
      $region41: #{run_fused.1} parent=5 // pred_check
        _
      $region42: #{run_fused.1} parent=5 // pred_check_branch
        %219 = sbr.rel (%p216) target = $region44
      $region43: #{run_fused.1} parent=5 // pred_region
        %s220 = ssub.s32 %s15, 1
        %p221 = scmp.lt.s32.totalorder %s20, 1
        %s222 = scalar_select %p221, %s20, 1
        %s223 = smul.addr %s222, 3
        %s224 = smul.addr %s223, 8
        %s225 = scalar_lea.vmem %s0, %s224
        %p226 = pneg %p41
        %p227 = pneg %p38
        %p228 = pneg %p62
        %p229 = pneg %p59
        %p230 = pneg %p83
        %p231 = pneg %p80
        %p232 = pneg %p104
        %p233 = pneg %p101
        %p234 = pneg %p125
        %p235 = pneg %p122
        %p236 = pneg %p146
        %p237 = pneg %p143
        %p238 = pneg %p172
        %p239 = pneg %p169
        %s240 = sand.u32 %s159, 1
        %s241 = scalar_lea.sflag [#allocation3], %s240
        %s242 = sand.u32 %s159, 1
        %s243 = scalar_lea.vmem [#allocation2], %s242
        %p244 = scmp.lt.s32.totalorder %s20, 1
        %s245 = scalar_select %p244, %s20, 1
        %s246 = smul.addr %s245, 3
        %s247 = smul.addr %s246, 8
        %s248 = scalar_lea.vmem %s0, %s247
        %v250 = vld [vmem:[%s248] sm:$0x3f]
        %v251 = vld [vmem:[%s248 + $0x8] sm:$0x3f]
        %v252 = vld [vmem:[%s248 + $0x10] sm:$0x3f]
        %v253 = vld [vmem:[%s1] sm:$0x3f]
        %v254 = vld [vmem:[%s1 + $0x8] sm:$0x3f]
        %v255 = vld [vmem:[%s1 + $0x10] sm:$0x3f]
        %v256 = vadd.f32 %v250, %v253
        %v257 = vadd.f32 %v251, %v254
        %v258 = vadd.f32 %v252, %v255
        %v259 = vld [vmem:[%s2] sm:$0x3f]
        %v260 = vld [vmem:[%s2 + $0x8] sm:$0x3f]
        %vm261 = vcmask 1045504
        %v262 = vsel %vm261, %v256, 0.0
        %v263 = vrot.slane %v262, 4
        %v264 = vadd.f32 %v262, %v263
        %v265 = vrot.slane %v264, 2
        %v266 = vadd.f32 %v264, %v265
        %v267 = vrot.slane %v266, 1
        %v268 = vadd.f32 %v266, %v267
        %v269 = vsel %vm261, %v257, 0.0
        %v270 = vrot.slane %v269, 4
        %v271 = vadd.f32 %v269, %v270
        %v272 = vrot.slane %v271, 2
        %v273 = vadd.f32 %v271, %v272
        %v274 = vrot.slane %v273, 1
        %v275 = vadd.f32 %v273, %v274
        %vm276 = vcmask 357376
        %v277 = vsel %vm276, %v258, 0.0
        %v278 = vrot.slane %v277, 4
        %v279 = vadd.f32 %v277, %v278
        %v280 = vrot.slane %v279, 2
        %v281 = vadd.f32 %v279, %v280
        %v282 = vrot.slane %v281, 1
        %v283 = vadd.f32 %v281, %v282
        %v284 = vrcp.pop 6.0
        %v285 = vmul.f32 %v268, %v284
        %v286 = vmul.f32 %v275, %v284
        %v287 = vmul.f32 %v283, %v284
        %v288 = vsub.f32 %v256, %v285
        %v289 = vsub.f32 %v257, %v286
        %v290 = vsub.f32 %v258, %v287
        %v291 = vmul.f32 %v288, %v288
        %v292 = vmul.f32 %v289, %v289
        %v293 = vmul.f32 %v290, %v290
        %v294 = vsel %vm261, %v291, 0.0
        %v295 = vrot.slane %v294, 4
        %v296 = vadd.f32 %v294, %v295
        %v297 = vrot.slane %v296, 2
        %v298 = vadd.f32 %v296, %v297
        %v299 = vrot.slane %v298, 1
        %v300 = vadd.f32 %v298, %v299
        %v301 = vsel %vm261, %v292, 0.0
        %v302 = vrot.slane %v301, 4
        %v303 = vadd.f32 %v301, %v302
        %v304 = vrot.slane %v303, 2
        %v305 = vadd.f32 %v303, %v304
        %v306 = vrot.slane %v305, 1
        %v307 = vadd.f32 %v305, %v306
        %v308 = vsel %vm276, %v293, 0.0
        %v309 = vrot.slane %v308, 4
        %v310 = vadd.f32 %v308, %v309
        %v311 = vrot.slane %v310, 2
        %v312 = vadd.f32 %v310, %v311
        %v313 = vrot.slane %v312, 1
        %v314 = vadd.f32 %v312, %v313
        %v315 = vmul.f32 %v300, %v284
        %v316 = vmul.f32 %v307, %v284
        %v317 = vmul.f32 %v314, %v284
        %v318 = vadd.f32 %v315, 1e-05
        %v319 = vadd.f32 %v316, 1e-05
        %v320 = vadd.f32 %v317, 1e-05
        %v321 = vrsqrt.pop %v318
        %v322 = vrsqrt.pop %v319
        %v323 = vrsqrt.pop %v320
        %v324 = vmul.f32 %v288, %v321
        %v325 = vmul.f32 %v289, %v322
        %v326 = vmul.f32 %v290, %v323
        %328 = vset.pattern.permute.xlu0 0
        %329 = vperm.xlu0 %328, %v259
        %v330 = vpop.permute.xlu0 %329
        %v332 = vmul.f32 %v324, %v330
        %v333 = vmul.f32 %v325, %v330
        %v334 = vmul.f32 %v326, %v330
        %336 = vset.pattern.permute.xlu0 0
        %337 = vperm.xlu0 %336, %v260
        %v338 = vpop.permute.xlu0 %337
        %v340 = vadd.f32 %v332, %v338
        %v341 = vadd.f32 %v333, %v338
        %v342 = vadd.f32 %v334, %v338
        %v343 = vld [vmem:[%s3] sm:$0xf]
        %v344 = vld [vmem:[%s3 + $0x4] sm:$0xf]
        %v345 = vld [vmem:[%s3 + $0x8] sm:$0xf]
        %v346 = vld [vmem:[%s3 + $0xc] sm:$0xf]
        %v347 = vld [vmem:[%s3 + $0x10] sm:$0xf]
        %v348 = vld [vmem:[%s3 + $0x14] sm:$0xf]
        %v349 = vpack.c.bf16 %v340, %v340
        %v350 = vpack.c.bf16 %v341, %v341
        %v351 = vpack.c.bf16 %v342, %v342
        %v352 = vld [vmem:[%s2 + $0x40] sm:$0xff]
        %v353 = vld [vmem:[%s2 + $0x48] sm:$0xff]
        %v354 = vld [vmem:[%s2 + $0x50] sm:$0xff]
        %v355 = vld [vmem:[%s2 + $0x58] sm:$0xff]
        %v356 = vld [vmem:[%s2 + $0x60] sm:$0xff]
        %v357 = vld [vmem:[%s2 + $0x68] sm:$0xff]
        %359 = vset.pattern.permute.xlu0 0
        %360 = vperm.xlu0 %359, %v352
        %v361 = vpop.permute.xlu0 %360
        %364 = vset.pattern.permute.xlu0 0
        %365 = vperm.xlu0 %364, %v353
        %v366 = vpop.permute.xlu0 %365
        %369 = vset.pattern.permute.xlu0 0
        %370 = vperm.xlu0 %369, %v354
        %v371 = vpop.permute.xlu0 %370
        %374 = vset.pattern.permute.xlu0 0
        %375 = vperm.xlu0 %374, %v355
        %v376 = vpop.permute.xlu0 %375
        %379 = vset.pattern.permute.xlu0 0
        %380 = vperm.xlu0 %379, %v356
        %v381 = vpop.permute.xlu0 %380
        %384 = vset.pattern.permute.xlu0 0
        %385 = vperm.xlu0 %384, %v357
        %v386 = vpop.permute.xlu0 %385
        %v394 = vunpack.c.l.b16 %v343
        %v395 = vunpack.c.l.b16 %v344
        %v396 = vunpack.c.l.b16 %v345
        %v397 = vunpack.c.l.b16 %v346
        %v398 = vunpack.c.l.b16 %v347
        %v399 = vunpack.c.l.b16 %v348
        %v400 = vpack.c.b16 %v395, %v394
        %v401 = vpack.c.b16 %v397, %v396
        %v402 = vpack.c.b16 %v399, %v398
        %vm403 = vcmask 48128
        %v405 = vsel %vm403, %v400, 0
        %v408 = vsel %vm403, %v401, 0
        %v411 = vsel %vm403, %v402, 0
        %vm413 = vcmask 1042432
        %v415 = vsel %vm413, %v349, 0
        %v418 = vsel %vm413, %v350, 0
        %v421 = vsel %vm413, %v351, 0
        %423 = vmatprep.subr.bf16.mxu0 %v418
        %424 = vmatpush1.bf16.msra.mxu0 %v415
        %425 = vmatprep.subr.bf16.mxu0 0
        %426 = vmatpush1.bf16.msra.mxu0 0
        %427 = vmatprep.subr.bf16.mxu0 0
        %428 = vmatpush1.bf16.msra.mxu0 0
        %429 = vmatprep.subr.bf16.mxu0 0
        %430 = vmatpush1.bf16.msra.mxu0 0
        %431 = vmatprep.subr.bf16.mxu0 0
        %432 = vmatpush1.bf16.msra.mxu0 0
        %433 = vmatprep.subr.bf16.mxu0 0
        %434 = vmatpush1.bf16.msra.mxu0 0
        %435 = vmatprep.subr.bf16.mxu0 0
        %436 = vmatpush1.bf16.msra.mxu0 0
        %437 = vmatprep.subr.bf16.mxu0 0
        %438 = vmatpush1.bf16.msra.mxu0 0
        %439 = vmatprep.subr.bf16.mxu0 0
        %440 = vmatpush1.bf16.msra.mxu0 0
        %441 = vmatprep.subr.bf16.mxu0 0
        %442 = vmatpush1.bf16.msra.mxu0 0
        %443 = vmatprep.subr.bf16.mxu0 0
        %444 = vmatpush1.bf16.msra.mxu0 0
        %445 = vmatprep.subr.bf16.mxu0 0
        %446 = vmatpush1.bf16.msra.mxu0 0
        %447 = vmatprep.subr.bf16.mxu0 0
        %448 = vmatpush1.bf16.msra.mxu0 0
        %449 = vmatprep.subr.bf16.mxu0 0
        %450 = vmatpush1.bf16.msra.mxu0 0
        %451 = vmatprep.subr.bf16.mxu0 0
        %452 = vmatpush1.bf16.msra.mxu0 0
        %453 = vmatprep.subr.bf16.mxu0 0
        %454 = vmatpush1.bf16.msra.mxu0 0
        %455 = vmatprep.mubr.bf16.mxu0 0
        %456 = vmatmul.mubr.bf16.gmra.mrb[0].mxu0 %v405
        %v457 = vpop.f32.mrb[0].mxu0
        %v458 = vadd.f32 %v361, %v457
        %v459 = vpop.f32.mrb[0].mxu0
        %v460 = vadd.f32 %v361, %v459
        %v461 = vpop.f32.mrb[0].mxu0
        %v462 = vadd.f32 %v366, %v461
        %v463 = vpop.f32.mrb[0].mxu0
        %v464 = vadd.f32 %v366, %v463
        %465 = vmatprep.mubr.bf16.mxu0 0
        %466 = vmatmul.mubr.bf16.gmra.mrb[0].mxu0 %v408
        %v467 = vpop.f32.mrb[0].mxu0
        %v468 = vadd.f32 %v371, %v467
        %v469 = vpop.f32.mrb[0].mxu0
        %v470 = vadd.f32 %v371, %v469
        %v471 = vpop.f32.mrb[0].mxu0
        %v472 = vadd.f32 %v376, %v471
        %v473 = vpop.f32.mrb[0].mxu0
        %v474 = vadd.f32 %v376, %v473
        %475 = vmatprep.mubr.bf16.mxu0 0
        %476 = vmatmul.mubr.bf16.gmra.mrb[0].mxu0 %v411
        %v477 = vpop.f32.mrb[0].mxu0
        %v478 = vadd.f32 %v381, %v477
        %v479 = vpop.f32.mrb[0].mxu0
        %v480 = vadd.f32 %v381, %v479
        %v481 = vpop.f32.mrb[0].mxu0
        %v482 = vadd.f32 %v386, %v481
        %v483 = vpop.f32.mrb[0].mxu0
        %v484 = vadd.f32 %v386, %v483
        %485 = vdwg.mxu0
        %486 = vmatprep.subr.bf16.mxu0 0
        %487 = vmatpush1.bf16.msra.mxu0 %v421
        %488 = vmatprep.subr.bf16.mxu0 0
        %489 = vmatpush1.bf16.msra.mxu0 0
        %490 = vmatprep.subr.bf16.mxu0 0
        %491 = vmatpush1.bf16.msra.mxu0 0
        %492 = vmatprep.subr.bf16.mxu0 0
        %493 = vmatpush1.bf16.msra.mxu0 0
        %494 = vmatprep.subr.bf16.mxu0 0
        %495 = vmatpush1.bf16.msra.mxu0 0
        %496 = vmatprep.subr.bf16.mxu0 0
        %497 = vmatpush1.bf16.msra.mxu0 0
        %498 = vmatprep.subr.bf16.mxu0 0
        %499 = vmatpush1.bf16.msra.mxu0 0
        %500 = vmatprep.subr.bf16.mxu0 0
        %501 = vmatpush1.bf16.msra.mxu0 0
        %502 = vmatprep.subr.bf16.mxu0 0
        %503 = vmatpush1.bf16.msra.mxu0 0
        %504 = vmatprep.subr.bf16.mxu0 0
        %505 = vmatpush1.bf16.msra.mxu0 0
        %506 = vmatprep.subr.bf16.mxu0 0
        %507 = vmatpush1.bf16.msra.mxu0 0
        %508 = vmatprep.subr.bf16.mxu0 0
        %509 = vmatpush1.bf16.msra.mxu0 0
        %510 = vmatprep.subr.bf16.mxu0 0
        %511 = vmatpush1.bf16.msra.mxu0 0
        %512 = vmatprep.subr.bf16.mxu0 0
        %513 = vmatpush1.bf16.msra.mxu0 0
        %514 = vmatprep.subr.bf16.mxu0 0
        %515 = vmatpush1.bf16.msra.mxu0 0
        %516 = vmatprep.subr.bf16.mxu0 0
        %517 = vmatpush1.bf16.msra.mxu0 0
        %518 = vmatprep.mubr.bf16.mxu0 0
        %519 = vmatmul.mubr.bf16.gmra.mrb[0].mxu0 %v405
        %v520 = vpop.f32.mrb[0].mxu0
        %v521 = vadd.f32 %v361, %v520
        %v522 = vpop.f32.mrb[0].mxu0
        %v523 = vpop.f32.mrb[0].mxu0
        %v524 = vadd.f32 %v366, %v523
        %v525 = vpop.f32.mrb[0].mxu0
        %526 = vmatprep.mubr.bf16.mxu0 0
        %527 = vmatmul.mubr.bf16.gmra.mrb[0].mxu0 %v408
        %v528 = vpop.f32.mrb[0].mxu0
        %v529 = vadd.f32 %v371, %v528
        %v530 = vpop.f32.mrb[0].mxu0
        %v531 = vpop.f32.mrb[0].mxu0
        %v532 = vadd.f32 %v376, %v531
        %v533 = vpop.f32.mrb[0].mxu0
        %534 = vmatprep.mubr.bf16.mxu0 0
        %535 = vmatmul.mubr.bf16.gmra.mrb[0].mxu0 %v411
        %v536 = vpop.f32.mrb[0].mxu0
        %v537 = vadd.f32 %v381, %v536
        %v538 = vpop.f32.mrb[0].mxu0
        %v539 = vpop.f32.mrb[0].mxu0
        %v540 = vadd.f32 %v386, %v539
        %v541 = vpop.f32.mrb[0].mxu0
        %542 = vdwg.mxu0
        %v543 = vld [vmem:[%s2 + $0x20] sm:$0x3f]
        %v544 = vpack.c.bf16 %v458, %v458
        %v545 = vpack.c.bf16 %v460, %v460
        %v546 = vpack.c.bf16 %v521, %v521
        %v547 = vpack.c.bf16 %v468, %v468
        %v548 = vpack.c.bf16 %v470, %v470
        %v549 = vpack.c.bf16 %v529, %v529
        %550 = vxpose.xlu0.c.b16.start [1/8] %v544, 128
        %551 = vxpose.xlu0.c.b16.cont [2/8] 0, 128
        %552 = vxpose.xlu0.c.b16.cont [3/8] 0, 128
        %553 = vxpose.xlu0.c.b16.cont [4/8] 0, 128
        %554 = vxpose.xlu0.c.b16.cont [5/8] 0, 128
        %555 = vxpose.xlu0.c.b16.cont [6/8] 0, 128
        %556 = vxpose.xlu0.c.b16.cont [7/8] 0, 128
        %557 = vxpose.xlu0.c.b16.end [8/8] 0, 128
        %v558 = vpop.trf.xlu0
        %v559 = vpop.trf.xlu0
        %v560 = vpop.trf.xlu0
        %v561 = vpop.trf.xlu0
        %v562 = vpop.trf.xlu0
        %v563 = vpop.trf.xlu0
        %v564 = vpop.trf.xlu0
        %v565 = vpop.trf.xlu0
        %566 = vxpose.xlu0.c.b16.start [1/8] %v545, 128
        %567 = vxpose.xlu0.c.b16.cont [2/8] 0, 128
        %568 = vxpose.xlu0.c.b16.cont [3/8] 0, 128
        %569 = vxpose.xlu0.c.b16.cont [4/8] 0, 128
        %570 = vxpose.xlu0.c.b16.cont [5/8] 0, 128
        %571 = vxpose.xlu0.c.b16.cont [6/8] 0, 128
        %572 = vxpose.xlu0.c.b16.cont [7/8] 0, 128
        %573 = vxpose.xlu0.c.b16.end [8/8] 0, 128
        %v574 = vpop.trf.xlu0
        %v575 = vpop.trf.xlu0
        %v576 = vpop.trf.xlu0
        %v577 = vpop.trf.xlu0
        %v578 = vpop.trf.xlu0
        %v579 = vpop.trf.xlu0
        %v580 = vpop.trf.xlu0
        %v581 = vpop.trf.xlu0
        %582 = vxpose.xlu0.c.b16.start [1/8] %v546, 128
        %583 = vxpose.xlu0.c.b16.cont [2/8] 0, 128
        %584 = vxpose.xlu0.c.b16.cont [3/8] 0, 128
        %585 = vxpose.xlu0.c.b16.cont [4/8] 0, 128
        %586 = vxpose.xlu0.c.b16.cont [5/8] 0, 128
        %587 = vxpose.xlu0.c.b16.cont [6/8] 0, 128
        %588 = vxpose.xlu0.c.b16.cont [7/8] 0, 128
        %589 = vxpose.xlu0.c.b16.end [8/8] 0, 128
        %v590 = vpop.trf.xlu0
        %v591 = vpop.trf.xlu0
        %v592 = vpop.trf.xlu0
        %v593 = vpop.trf.xlu0
        %v594 = vpop.trf.xlu0
        %v595 = vpop.trf.xlu0
        %v596 = vpop.trf.xlu0
        %v597 = vpop.trf.xlu0
        %vm598 = vcmask 64512
        %v600 = vsel %vm598, %v558, 0
        %v603 = vsel %vm598, %v559, 0
        %v606 = vsel %vm598, %v560, 0
        %v609 = vsel %vm598, %v561, 0
        %v612 = vsel %vm598, %v562, 0
        %v615 = vsel %vm598, %v563, 0
        %v618 = vsel %vm598, %v564, 0
        %v621 = vsel %vm598, %v565, 0
        %v624 = vsel %vm598, %v574, 0
        %v627 = vsel %vm598, %v575, 0
        %v630 = vsel %vm598, %v576, 0
        %v633 = vsel %vm598, %v577, 0
        %v636 = vsel %vm598, %v578, 0
        %v639 = vsel %vm598, %v579, 0
        %v642 = vsel %vm598, %v580, 0
        %v645 = vsel %vm598, %v581, 0
        %v648 = vsel %vm598, %v590, 0
        %v651 = vsel %vm598, %v591, 0
        %v654 = vsel %vm598, %v592, 0
        %vm656 = vcmask 1043456
        %v658 = vsel %vm656, %v547, 0
        %v661 = vsel %vm656, %v548, 0
        %v664 = vsel %vm656, %v549, 0
        %666 = vmatprep.subr.bf16.mxu0 %v661
        %667 = vmatpush1.bf16.msra.mxu0 %v658
        %668 = vmatprep.subr.bf16.mxu0 0
        %669 = vmatpush1.bf16.msra.mxu0 0
        %670 = vmatprep.subr.bf16.mxu0 0
        %671 = vmatpush1.bf16.msra.mxu0 0
        %672 = vmatprep.subr.bf16.mxu0 0
        %673 = vmatpush1.bf16.msra.mxu0 0
        %674 = vmatprep.subr.bf16.mxu0 0
        %675 = vmatpush1.bf16.msra.mxu0 0
        %676 = vmatprep.subr.bf16.mxu0 0
        %677 = vmatpush1.bf16.msra.mxu0 0
        %678 = vmatprep.subr.bf16.mxu0 0
        %679 = vmatpush1.bf16.msra.mxu0 0
        %680 = vmatprep.subr.bf16.mxu0 0
        %681 = vmatpush1.bf16.msra.mxu0 0
        %682 = vmatprep.subr.bf16.mxu0 0
        %683 = vmatpush1.bf16.msra.mxu0 0
        %684 = vmatprep.subr.bf16.mxu0 0
        %685 = vmatpush1.bf16.msra.mxu0 0
        %686 = vmatprep.subr.bf16.mxu0 0
        %687 = vmatpush1.bf16.msra.mxu0 0
        %688 = vmatprep.subr.bf16.mxu0 0
        %689 = vmatpush1.bf16.msra.mxu0 0
        %690 = vmatprep.subr.bf16.mxu0 0
        %691 = vmatpush1.bf16.msra.mxu0 0
        %692 = vmatprep.subr.bf16.mxu0 0
        %693 = vmatpush1.bf16.msra.mxu0 0
        %694 = vmatprep.subr.bf16.mxu0 0
        %695 = vmatpush1.bf16.msra.mxu0 0
        %696 = vmatprep.subr.bf16.mxu0 0
        %697 = vmatpush1.bf16.msra.mxu0 0
        %698 = vmatprep.mubr.bf16.mxu0 0
        %699 = vmatmul.mubr.bf16.gmra.mrb[0].mxu0 %v600
        %v700 = vpop.f32.mrb[0].mxu0
        %v701 = vadd.f32 0.0, %v700
        %v702 = vpop.f32.mrb[0].mxu0
        %v703 = vadd.f32 0.0, %v702
        %v704 = vpop.f32.mrb[0].mxu0
        %v705 = vadd.f32 0.0, %v704
        %v706 = vpop.f32.mrb[0].mxu0
        %v707 = vadd.f32 0.0, %v706
        %708 = vmatprep.mubr.bf16.mxu0 0
        %709 = vmatmul.mubr.bf16.gmra.mrb[0].mxu0 %v603
        %v710 = vpop.f32.mrb[0].mxu0
        %v711 = vadd.f32 0.0, %v710
        %v712 = vpop.f32.mrb[0].mxu0
        %v713 = vadd.f32 0.0, %v712
        %v714 = vpop.f32.mrb[0].mxu0
        %v715 = vadd.f32 0.0, %v714
        %v716 = vpop.f32.mrb[0].mxu0
        %v717 = vadd.f32 0.0, %v716
        %718 = vmatprep.mubr.bf16.mxu0 0
        %719 = vmatmul.mubr.bf16.gmra.mrb[0].mxu0 %v606
        %v720 = vpop.f32.mrb[0].mxu0
        %v721 = vadd.f32 0.0, %v720
        %v722 = vpop.f32.mrb[0].mxu0
        %v723 = vadd.f32 0.0, %v722
        %v724 = vpop.f32.mrb[0].mxu0
        %v725 = vadd.f32 0.0, %v724
        %v726 = vpop.f32.mrb[0].mxu0
        %v727 = vadd.f32 0.0, %v726
        %728 = vmatprep.mubr.bf16.mxu0 0
        %729 = vmatmul.mubr.bf16.gmra.mrb[0].mxu0 %v609
        %v730 = vpop.f32.mrb[0].mxu0
        %v731 = vadd.f32 0.0, %v730
        %v732 = vpop.f32.mrb[0].mxu0
        %v733 = vadd.f32 0.0, %v732
        %v734 = vpop.f32.mrb[0].mxu0
        %v735 = vadd.f32 0.0, %v734
        %v736 = vpop.f32.mrb[0].mxu0
        %v737 = vadd.f32 0.0, %v736
        %738 = vmatprep.mubr.bf16.mxu0 0
        %739 = vmatmul.mubr.bf16.gmra.mrb[0].mxu0 %v612
        %v740 = vpop.f32.mrb[0].mxu0
        %v741 = vadd.f32 0.0, %v740
        %v742 = vpop.f32.mrb[0].mxu0
        %v743 = vadd.f32 0.0, %v742
        %v744 = vpop.f32.mrb[0].mxu0
        %v745 = vadd.f32 0.0, %v744
        %v746 = vpop.f32.mrb[0].mxu0
        %v747 = vadd.f32 0.0, %v746
        %748 = vmatprep.mubr.bf16.mxu0 0
        %749 = vmatmul.mubr.bf16.gmra.mrb[0].mxu0 %v615
        %v750 = vpop.f32.mrb[0].mxu0
        %v751 = vadd.f32 0.0, %v750
        %v752 = vpop.f32.mrb[0].mxu0
        %v753 = vadd.f32 0.0, %v752
        %v754 = vpop.f32.mrb[0].mxu0
        %v755 = vadd.f32 0.0, %v754
        %v756 = vpop.f32.mrb[0].mxu0
        %v757 = vadd.f32 0.0, %v756
        %758 = vmatprep.mubr.bf16.mxu0 0
        %759 = vmatmul.mubr.bf16.gmra.mrb[0].mxu0 %v618
        %v760 = vpop.f32.mrb[0].mxu0
        %v761 = vadd.f32 0.0, %v760
        %v762 = vpop.f32.mrb[0].mxu0
        %v763 = vadd.f32 0.0, %v762
        %v764 = vpop.f32.mrb[0].mxu0
        %v765 = vadd.f32 0.0, %v764
        %v766 = vpop.f32.mrb[0].mxu0
        %v767 = vadd.f32 0.0, %v766
        %768 = vmatprep.mubr.bf16.mxu0 0
        %769 = vmatmul.mubr.bf16.gmra.mrb[0].mxu0 %v621
        %v770 = vpop.f32.mrb[0].mxu0
        %v771 = vadd.f32 0.0, %v770
        %v772 = vpop.f32.mrb[0].mxu0
        %v773 = vadd.f32 0.0, %v772
        %v774 = vpop.f32.mrb[0].mxu0
        %v775 = vadd.f32 0.0, %v774
        %v776 = vpop.f32.mrb[0].mxu0
        %v777 = vadd.f32 0.0, %v776
        %778 = vmatprep.mubr.bf16.mxu0 0
        %779 = vmatmul.mubr.bf16.gmra.mrb[0].mxu0 %v624
        %v780 = vpop.f32.mrb[0].mxu0
        %v781 = vadd.f32 0.0, %v780
        %v782 = vpop.f32.mrb[0].mxu0
        %v783 = vadd.f32 0.0, %v782
        %v784 = vpop.f32.mrb[0].mxu0
        %v785 = vadd.f32 0.0, %v784
        %v786 = vpop.f32.mrb[0].mxu0
        %v787 = vadd.f32 0.0, %v786
        %788 = vmatprep.mubr.bf16.mxu0 0
        %789 = vmatmul.mubr.bf16.gmra.mrb[0].mxu0 %v627
        %v790 = vpop.f32.mrb[0].mxu0
        %v791 = vadd.f32 0.0, %v790
        %v792 = vpop.f32.mrb[0].mxu0
        %v793 = vadd.f32 0.0, %v792
        %v794 = vpop.f32.mrb[0].mxu0
        %v795 = vadd.f32 0.0, %v794
        %v796 = vpop.f32.mrb[0].mxu0
        %v797 = vadd.f32 0.0, %v796
        %798 = vmatprep.mubr.bf16.mxu0 0
        %799 = vmatmul.mubr.bf16.gmra.mrb[0].mxu0 %v630
        %v800 = vpop.f32.mrb[0].mxu0
        %v801 = vadd.f32 0.0, %v800
        %v802 = vpop.f32.mrb[0].mxu0
        %v803 = vadd.f32 0.0, %v802
        %v804 = vpop.f32.mrb[0].mxu0
        %v805 = vadd.f32 0.0, %v804
        %v806 = vpop.f32.mrb[0].mxu0
        %v807 = vadd.f32 0.0, %v806
        %808 = vmatprep.mubr.bf16.mxu0 0
        %809 = vmatmul.mubr.bf16.gmra.mrb[0].mxu0 %v633
        %v810 = vpop.f32.mrb[0].mxu0
        %v811 = vadd.f32 0.0, %v810
        %v812 = vpop.f32.mrb[0].mxu0
        %v813 = vadd.f32 0.0, %v812
        %v814 = vpop.f32.mrb[0].mxu0
        %v815 = vadd.f32 0.0, %v814
        %v816 = vpop.f32.mrb[0].mxu0
        %v817 = vadd.f32 0.0, %v816
        %818 = vmatprep.mubr.bf16.mxu0 0
        %819 = vmatmul.mubr.bf16.gmra.mrb[0].mxu0 %v636
        %v820 = vpop.f32.mrb[0].mxu0
        %v821 = vadd.f32 0.0, %v820
        %v822 = vpop.f32.mrb[0].mxu0
        %v823 = vadd.f32 0.0, %v822
        %v824 = vpop.f32.mrb[0].mxu0
        %v825 = vadd.f32 0.0, %v824
        %v826 = vpop.f32.mrb[0].mxu0
        %v827 = vadd.f32 0.0, %v826
        %828 = vmatprep.mubr.bf16.mxu0 0
        %829 = vmatmul.mubr.bf16.gmra.mrb[0].mxu0 %v639
        %v830 = vpop.f32.mrb[0].mxu0
        %v831 = vadd.f32 0.0, %v830
        %v832 = vpop.f32.mrb[0].mxu0
        %v833 = vadd.f32 0.0, %v832
        %v834 = vpop.f32.mrb[0].mxu0
        %v835 = vadd.f32 0.0, %v834
        %v836 = vpop.f32.mrb[0].mxu0
        %v837 = vadd.f32 0.0, %v836
        %838 = vmatprep.mubr.bf16.mxu0 0
        %839 = vmatmul.mubr.bf16.gmra.mrb[0].mxu0 %v642
        %v840 = vpop.f32.mrb[0].mxu0
        %v841 = vadd.f32 0.0, %v840
        %v842 = vpop.f32.mrb[0].mxu0
        %v843 = vadd.f32 0.0, %v842
        %v844 = vpop.f32.mrb[0].mxu0
        %v845 = vadd.f32 0.0, %v844
        %v846 = vpop.f32.mrb[0].mxu0
        %v847 = vadd.f32 0.0, %v846
        %848 = vmatprep.mubr.bf16.mxu0 0
        %849 = vmatmul.mubr.bf16.gmra.mrb[0].mxu0 %v645
        %v850 = vpop.f32.mrb[0].mxu0
        %v851 = vadd.f32 0.0, %v850
        %v852 = vpop.f32.mrb[0].mxu0
        %v853 = vadd.f32 0.0, %v852
        %v854 = vpop.f32.mrb[0].mxu0
        %v855 = vadd.f32 0.0, %v854
        %v856 = vpop.f32.mrb[0].mxu0
        %v857 = vadd.f32 0.0, %v856
        %858 = vmatprep.mubr.bf16.mxu0 0
        %859 = vmatmul.mubr.bf16.gmra.mrb[0].mxu0 %v648
        %v860 = vpop.f32.mrb[0].mxu0
        %v861 = vadd.f32 0.0, %v860
        %v862 = vpop.f32.mrb[0].mxu0
        %v863 = vadd.f32 0.0, %v862
        %v864 = vpop.f32.mrb[0].mxu0
        %v865 = vadd.f32 0.0, %v864
        %v866 = vpop.f32.mrb[0].mxu0
        %v867 = vadd.f32 0.0, %v866
        %868 = vmatprep.mubr.bf16.mxu0 0
        %869 = vmatmul.mubr.bf16.gmra.mrb[0].mxu0 %v651
        %v870 = vpop.f32.mrb[0].mxu0
        %v871 = vadd.f32 0.0, %v870
        %v872 = vpop.f32.mrb[0].mxu0
        %v873 = vadd.f32 0.0, %v872
        %v874 = vpop.f32.mrb[0].mxu0
        %v875 = vadd.f32 0.0, %v874
        %v876 = vpop.f32.mrb[0].mxu0
        %v877 = vadd.f32 0.0, %v876
        %878 = vmatprep.mubr.bf16.mxu0 0
        %879 = vmatmul.mubr.bf16.gmra.mrb[0].mxu0 %v654
        %v880 = vpop.f32.mrb[0].mxu0
        %v881 = vadd.f32 0.0, %v880
        %v882 = vpop.f32.mrb[0].mxu0
        %v883 = vadd.f32 0.0, %v882
        %v884 = vpop.f32.mrb[0].mxu0
        %v885 = vadd.f32 0.0, %v884
        %v886 = vpop.f32.mrb[0].mxu0
        %v887 = vadd.f32 0.0, %v886
        %888 = vdwg.mxu0
        %889 = vmatprep.subr.bf16.mxu0 0
        %890 = vmatpush1.bf16.msra.mxu0 %v664
        %891 = vmatprep.subr.bf16.mxu0 0
        %892 = vmatpush1.bf16.msra.mxu0 0
        %893 = vmatprep.subr.bf16.mxu0 0
        %894 = vmatpush1.bf16.msra.mxu0 0
        %895 = vmatprep.subr.bf16.mxu0 0
        %896 = vmatpush1.bf16.msra.mxu0 0
        %897 = vmatprep.subr.bf16.mxu0 0
        %898 = vmatpush1.bf16.msra.mxu0 0
        %899 = vmatprep.subr.bf16.mxu0 0
        %900 = vmatpush1.bf16.msra.mxu0 0
        %901 = vmatprep.subr.bf16.mxu0 0
        %902 = vmatpush1.bf16.msra.mxu0 0
        %903 = vmatprep.subr.bf16.mxu0 0
        %904 = vmatpush1.bf16.msra.mxu0 0
        %905 = vmatprep.subr.bf16.mxu0 0
        %906 = vmatpush1.bf16.msra.mxu0 0
        %907 = vmatprep.subr.bf16.mxu0 0
        %908 = vmatpush1.bf16.msra.mxu0 0
        %909 = vmatprep.subr.bf16.mxu0 0
        %910 = vmatpush1.bf16.msra.mxu0 0
        %911 = vmatprep.subr.bf16.mxu0 0
        %912 = vmatpush1.bf16.msra.mxu0 0
        %913 = vmatprep.subr.bf16.mxu0 0
        %914 = vmatpush1.bf16.msra.mxu0 0
        %915 = vmatprep.subr.bf16.mxu0 0
        %916 = vmatpush1.bf16.msra.mxu0 0
        %917 = vmatprep.subr.bf16.mxu0 0
        %918 = vmatpush1.bf16.msra.mxu0 0
        %919 = vmatprep.subr.bf16.mxu0 0
        %920 = vmatpush1.bf16.msra.mxu0 0
        %921 = vmatprep.mubr.bf16.mxu0 0
        %922 = vmatmul.mubr.bf16.gmra.mrb[0].mxu0 %v600
        %v923 = vpop.f32.mrb[0].mxu0
        %v924 = vadd.f32 0.0, %v923
        %v925 = vpop.f32.mrb[0].mxu0
        %v926 = vpop.f32.mrb[0].mxu0
        %v927 = vadd.f32 0.0, %v926
        %v928 = vpop.f32.mrb[0].mxu0
        %929 = vmatprep.mubr.bf16.mxu0 0
        %930 = vmatmul.mubr.bf16.gmra.mrb[0].mxu0 %v603
        %v931 = vpop.f32.mrb[0].mxu0
        %v932 = vadd.f32 0.0, %v931
        %v933 = vpop.f32.mrb[0].mxu0
        %v934 = vpop.f32.mrb[0].mxu0
        %v935 = vadd.f32 0.0, %v934
        %v936 = vpop.f32.mrb[0].mxu0
        %937 = vmatprep.mubr.bf16.mxu0 0
        %938 = vmatmul.mubr.bf16.gmra.mrb[0].mxu0 %v606
        %v939 = vpop.f32.mrb[0].mxu0
        %v940 = vadd.f32 0.0, %v939
        %v941 = vpop.f32.mrb[0].mxu0
        %v942 = vpop.f32.mrb[0].mxu0
        %v943 = vadd.f32 0.0, %v942
        %v944 = vpop.f32.mrb[0].mxu0
        %945 = vmatprep.mubr.bf16.mxu0 0
        %946 = vmatmul.mubr.bf16.gmra.mrb[0].mxu0 %v609
        %v947 = vpop.f32.mrb[0].mxu0
        %v948 = vadd.f32 0.0, %v947
        %v949 = vpop.f32.mrb[0].mxu0
        %v950 = vpop.f32.mrb[0].mxu0
        %v951 = vadd.f32 0.0, %v950
        %v952 = vpop.f32.mrb[0].mxu0
        %953 = vmatprep.mubr.bf16.mxu0 0
        %954 = vmatmul.mubr.bf16.gmra.mrb[0].mxu0 %v612
        %v955 = vpop.f32.mrb[0].mxu0
        %v956 = vadd.f32 0.0, %v955
        %v957 = vpop.f32.mrb[0].mxu0
        %v958 = vpop.f32.mrb[0].mxu0
        %v959 = vadd.f32 0.0, %v958
        %v960 = vpop.f32.mrb[0].mxu0
        %961 = vmatprep.mubr.bf16.mxu0 0
        %962 = vmatmul.mubr.bf16.gmra.mrb[0].mxu0 %v615
        %v963 = vpop.f32.mrb[0].mxu0
        %v964 = vadd.f32 0.0, %v963
        %v965 = vpop.f32.mrb[0].mxu0
        %v966 = vpop.f32.mrb[0].mxu0
        %v967 = vadd.f32 0.0, %v966
        %v968 = vpop.f32.mrb[0].mxu0
        %969 = vmatprep.mubr.bf16.mxu0 0
        %970 = vmatmul.mubr.bf16.gmra.mrb[0].mxu0 %v618
        %v971 = vpop.f32.mrb[0].mxu0
        %v972 = vadd.f32 0.0, %v971
        %v973 = vpop.f32.mrb[0].mxu0
        %v974 = vpop.f32.mrb[0].mxu0
        %v975 = vadd.f32 0.0, %v974
        %v976 = vpop.f32.mrb[0].mxu0
        %977 = vmatprep.mubr.bf16.mxu0 0
        %978 = vmatmul.mubr.bf16.gmra.mrb[0].mxu0 %v621
        %v979 = vpop.f32.mrb[0].mxu0
        %v980 = vadd.f32 0.0, %v979
        %v981 = vpop.f32.mrb[0].mxu0
        %v982 = vpop.f32.mrb[0].mxu0
        %v983 = vadd.f32 0.0, %v982
        %v984 = vpop.f32.mrb[0].mxu0
        %985 = vmatprep.mubr.bf16.mxu0 0
        %986 = vmatmul.mubr.bf16.gmra.mrb[0].mxu0 %v624
        %v987 = vpop.f32.mrb[0].mxu0
        %v988 = vadd.f32 0.0, %v987
        %v989 = vpop.f32.mrb[0].mxu0
        %v990 = vpop.f32.mrb[0].mxu0
        %v991 = vadd.f32 0.0, %v990
        %v992 = vpop.f32.mrb[0].mxu0
        %993 = vmatprep.mubr.bf16.mxu0 0
        %994 = vmatmul.mubr.bf16.gmra.mrb[0].mxu0 %v627
        %v995 = vpop.f32.mrb[0].mxu0
        %v996 = vadd.f32 0.0, %v995
        %v997 = vpop.f32.mrb[0].mxu0
        %v998 = vpop.f32.mrb[0].mxu0
        %v999 = vadd.f32 0.0, %v998
        %v1000 = vpop.f32.mrb[0].mxu0
        %1001 = vmatprep.mubr.bf16.mxu0 0
        %1002 = vmatmul.mubr.bf16.gmra.mrb[0].mxu0 %v630
        %v1003 = vpop.f32.mrb[0].mxu0
        %v1004 = vadd.f32 0.0, %v1003
        %v1005 = vpop.f32.mrb[0].mxu0
        %v1006 = vpop.f32.mrb[0].mxu0
        %v1007 = vadd.f32 0.0, %v1006
        %v1008 = vpop.f32.mrb[0].mxu0
        %1009 = vmatprep.mubr.bf16.mxu0 0
        %1010 = vmatmul.mubr.bf16.gmra.mrb[0].mxu0 %v633
        %v1011 = vpop.f32.mrb[0].mxu0
        %v1012 = vadd.f32 0.0, %v1011
        %v1013 = vpop.f32.mrb[0].mxu0
        %v1014 = vpop.f32.mrb[0].mxu0
        %v1015 = vadd.f32 0.0, %v1014
        %v1016 = vpop.f32.mrb[0].mxu0
        %1017 = vmatprep.mubr.bf16.mxu0 0
        %1018 = vmatmul.mubr.bf16.gmra.mrb[0].mxu0 %v636
        %v1019 = vpop.f32.mrb[0].mxu0
        %v1020 = vadd.f32 0.0, %v1019
        %v1021 = vpop.f32.mrb[0].mxu0
        %v1022 = vpop.f32.mrb[0].mxu0
        %v1023 = vadd.f32 0.0, %v1022
        %v1024 = vpop.f32.mrb[0].mxu0
        %1025 = vmatprep.mubr.bf16.mxu0 0
        %1026 = vmatmul.mubr.bf16.gmra.mrb[0].mxu0 %v639
        %v1027 = vpop.f32.mrb[0].mxu0
        %v1028 = vadd.f32 0.0, %v1027
        %v1029 = vpop.f32.mrb[0].mxu0
        %v1030 = vpop.f32.mrb[0].mxu0
        %v1031 = vadd.f32 0.0, %v1030
        %v1032 = vpop.f32.mrb[0].mxu0
        %1033 = vmatprep.mubr.bf16.mxu0 0
        %1034 = vmatmul.mubr.bf16.gmra.mrb[0].mxu0 %v642
        %v1035 = vpop.f32.mrb[0].mxu0
        %v1036 = vadd.f32 0.0, %v1035
        %v1037 = vpop.f32.mrb[0].mxu0
        %v1038 = vpop.f32.mrb[0].mxu0
        %v1039 = vadd.f32 0.0, %v1038
        %v1040 = vpop.f32.mrb[0].mxu0
        %1041 = vmatprep.mubr.bf16.mxu0 0
        %1042 = vmatmul.mubr.bf16.gmra.mrb[0].mxu0 %v645
        %v1043 = vpop.f32.mrb[0].mxu0
        %v1044 = vadd.f32 0.0, %v1043
        %v1045 = vpop.f32.mrb[0].mxu0
        %v1046 = vpop.f32.mrb[0].mxu0
        %v1047 = vadd.f32 0.0, %v1046
        %v1048 = vpop.f32.mrb[0].mxu0
        %1049 = vmatprep.mubr.bf16.mxu0 0
        %1050 = vmatmul.mubr.bf16.gmra.mrb[0].mxu0 %v648
        %v1051 = vpop.f32.mrb[0].mxu0
        %v1052 = vadd.f32 0.0, %v1051
        %v1053 = vpop.f32.mrb[0].mxu0
        %v1054 = vpop.f32.mrb[0].mxu0
        %v1055 = vadd.f32 0.0, %v1054
        %v1056 = vpop.f32.mrb[0].mxu0
        %1057 = vmatprep.mubr.bf16.mxu0 0
        %1058 = vmatmul.mubr.bf16.gmra.mrb[0].mxu0 %v651
        %v1059 = vpop.f32.mrb[0].mxu0
        %v1060 = vadd.f32 0.0, %v1059
        %v1061 = vpop.f32.mrb[0].mxu0
        %v1062 = vpop.f32.mrb[0].mxu0
        %v1063 = vadd.f32 0.0, %v1062
        %v1064 = vpop.f32.mrb[0].mxu0
        %1065 = vmatprep.mubr.bf16.mxu0 0
        %1066 = vmatmul.mubr.bf16.gmra.mrb[0].mxu0 %v654
        %v1067 = vpop.f32.mrb[0].mxu0
        %v1068 = vadd.f32 0.0, %v1067
        %v1069 = vpop.f32.mrb[0].mxu0
        %v1070 = vpop.f32.mrb[0].mxu0
        %v1071 = vadd.f32 0.0, %v1070
        %v1072 = vpop.f32.mrb[0].mxu0
        %1073 = vdwg.mxu0
        %v1074 = vmax.f32 %v701, %v703
        %vm1075 = vcmask 359424
        %v1076 = vsel %vm1075, %v924, -inf
        %v1077 = vmax.f32 %v1074, %v1076
        %1078 = vmax.xlane.f32.xlu0 %v1077
        %v1079 = vpop.xlane.xlu0 %1078
        %v1080 = vmax.f32 %v705, %v707
        %v1081 = vsel %vm1075, %v927, -inf
        %v1082 = vmax.f32 %v1080, %v1081
        %1083 = vmax.xlane.f32.xlu0 %v1082
        %v1084 = vpop.xlane.xlu0 %1083
        %v1085 = vmax.f32 %v711, %v713
        %v1086 = vsel %vm1075, %v932, -inf
        %v1087 = vmax.f32 %v1085, %v1086
        %1088 = vmax.xlane.f32.xlu0 %v1087
        %v1089 = vpop.xlane.xlu0 %1088
        %v1090 = vmax.f32 %v715, %v717
        %v1091 = vsel %vm1075, %v935, -inf
        %v1092 = vmax.f32 %v1090, %v1091
        %1093 = vmax.xlane.f32.xlu0 %v1092
        %v1094 = vpop.xlane.xlu0 %1093
        %v1095 = vmax.f32 %v721, %v723
        %v1096 = vsel %vm1075, %v940, -inf
        %v1097 = vmax.f32 %v1095, %v1096
        %1098 = vmax.xlane.f32.xlu0 %v1097
        %v1099 = vpop.xlane.xlu0 %1098
        %v1100 = vmax.f32 %v725, %v727
        %v1101 = vsel %vm1075, %v943, -inf
        %v1102 = vmax.f32 %v1100, %v1101
        %1103 = vmax.xlane.f32.xlu0 %v1102
        %v1104 = vpop.xlane.xlu0 %1103
        %v1105 = vmax.f32 %v731, %v733
        %v1106 = vsel %vm1075, %v948, -inf
        %v1107 = vmax.f32 %v1105, %v1106
        %1108 = vmax.xlane.f32.xlu0 %v1107
        %v1109 = vpop.xlane.xlu0 %1108
        %v1110 = vmax.f32 %v735, %v737
        %v1111 = vsel %vm1075, %v951, -inf
        %v1112 = vmax.f32 %v1110, %v1111
        %1113 = vmax.xlane.f32.xlu0 %v1112
        %v1114 = vpop.xlane.xlu0 %1113
        %v1115 = vmax.f32 %v741, %v743
        %v1116 = vsel %vm1075, %v956, -inf
        %v1117 = vmax.f32 %v1115, %v1116
        %1118 = vmax.xlane.f32.xlu0 %v1117
        %v1119 = vpop.xlane.xlu0 %1118
        %v1120 = vmax.f32 %v745, %v747
        %v1121 = vsel %vm1075, %v959, -inf
        %v1122 = vmax.f32 %v1120, %v1121
        %1123 = vmax.xlane.f32.xlu0 %v1122
        %v1124 = vpop.xlane.xlu0 %1123
        %v1125 = vmax.f32 %v751, %v753
        %v1126 = vsel %vm1075, %v964, -inf
        %v1127 = vmax.f32 %v1125, %v1126
        %1128 = vmax.xlane.f32.xlu0 %v1127
        %v1129 = vpop.xlane.xlu0 %1128
        %v1130 = vmax.f32 %v755, %v757
        %v1131 = vsel %vm1075, %v967, -inf
        %v1132 = vmax.f32 %v1130, %v1131
        %1133 = vmax.xlane.f32.xlu0 %v1132
        %v1134 = vpop.xlane.xlu0 %1133
        %v1135 = vmax.f32 %v761, %v763
        %v1136 = vsel %vm1075, %v972, -inf
        %v1137 = vmax.f32 %v1135, %v1136
        %1138 = vmax.xlane.f32.xlu0 %v1137
        %v1139 = vpop.xlane.xlu0 %1138
        %v1140 = vmax.f32 %v765, %v767
        %v1141 = vsel %vm1075, %v975, -inf
        %v1142 = vmax.f32 %v1140, %v1141
        %1143 = vmax.xlane.f32.xlu0 %v1142
        %v1144 = vpop.xlane.xlu0 %1143
        %v1145 = vmax.f32 %v771, %v773
        %v1146 = vsel %vm1075, %v980, -inf
        %v1147 = vmax.f32 %v1145, %v1146
        %1148 = vmax.xlane.f32.xlu0 %v1147
        %v1149 = vpop.xlane.xlu0 %1148
        %v1150 = vmax.f32 %v775, %v777
        %v1151 = vsel %vm1075, %v983, -inf
        %v1152 = vmax.f32 %v1150, %v1151
        %1153 = vmax.xlane.f32.xlu0 %v1152
        %v1154 = vpop.xlane.xlu0 %1153
        %v1155 = vmax.f32 %v781, %v783
        %v1156 = vsel %vm1075, %v988, -inf
        %v1157 = vmax.f32 %v1155, %v1156
        %1158 = vmax.xlane.f32.xlu0 %v1157
        %v1159 = vpop.xlane.xlu0 %1158
        %v1160 = vmax.f32 %v785, %v787
        %v1161 = vsel %vm1075, %v991, -inf
        %v1162 = vmax.f32 %v1160, %v1161
        %1163 = vmax.xlane.f32.xlu0 %v1162
        %v1164 = vpop.xlane.xlu0 %1163
        %v1165 = vmax.f32 %v791, %v793
        %v1166 = vsel %vm1075, %v996, -inf
        %v1167 = vmax.f32 %v1165, %v1166
        %1168 = vmax.xlane.f32.xlu0 %v1167
        %v1169 = vpop.xlane.xlu0 %1168
        %v1170 = vmax.f32 %v795, %v797
        %v1171 = vsel %vm1075, %v999, -inf
        %v1172 = vmax.f32 %v1170, %v1171
        %1173 = vmax.xlane.f32.xlu0 %v1172
        %v1174 = vpop.xlane.xlu0 %1173
        %v1175 = vmax.f32 %v801, %v803
        %v1176 = vsel %vm1075, %v1004, -inf
        %v1177 = vmax.f32 %v1175, %v1176
        %1178 = vmax.xlane.f32.xlu0 %v1177
        %v1179 = vpop.xlane.xlu0 %1178
        %v1180 = vmax.f32 %v805, %v807
        %v1181 = vsel %vm1075, %v1007, -inf
        %v1182 = vmax.f32 %v1180, %v1181
        %1183 = vmax.xlane.f32.xlu0 %v1182
        %v1184 = vpop.xlane.xlu0 %1183
        %v1185 = vmax.f32 %v811, %v813
        %v1186 = vsel %vm1075, %v1012, -inf
        %v1187 = vmax.f32 %v1185, %v1186
        %1188 = vmax.xlane.f32.xlu0 %v1187
        %v1189 = vpop.xlane.xlu0 %1188
        %v1190 = vmax.f32 %v815, %v817
        %v1191 = vsel %vm1075, %v1015, -inf
        %v1192 = vmax.f32 %v1190, %v1191
        %1193 = vmax.xlane.f32.xlu0 %v1192
        %v1194 = vpop.xlane.xlu0 %1193
        %v1195 = vmax.f32 %v821, %v823
        %v1196 = vsel %vm1075, %v1020, -inf
        %v1197 = vmax.f32 %v1195, %v1196
        %1198 = vmax.xlane.f32.xlu0 %v1197
        %v1199 = vpop.xlane.xlu0 %1198
        %v1200 = vmax.f32 %v825, %v827
        %v1201 = vsel %vm1075, %v1023, -inf
        %v1202 = vmax.f32 %v1200, %v1201
        %1203 = vmax.xlane.f32.xlu0 %v1202
        %v1204 = vpop.xlane.xlu0 %1203
        %v1205 = vmax.f32 %v831, %v833
        %v1206 = vsel %vm1075, %v1028, -inf
        %v1207 = vmax.f32 %v1205, %v1206
        %1208 = vmax.xlane.f32.xlu0 %v1207
        %v1209 = vpop.xlane.xlu0 %1208
        %v1210 = vmax.f32 %v835, %v837
        %v1211 = vsel %vm1075, %v1031, -inf
        %v1212 = vmax.f32 %v1210, %v1211
        %1213 = vmax.xlane.f32.xlu0 %v1212
        %v1214 = vpop.xlane.xlu0 %1213
        %v1215 = vmax.f32 %v841, %v843
        %v1216 = vsel %vm1075, %v1036, -inf
        %v1217 = vmax.f32 %v1215, %v1216
        %1218 = vmax.xlane.f32.xlu0 %v1217
        %v1219 = vpop.xlane.xlu0 %1218
        %v1220 = vmax.f32 %v845, %v847
        %v1221 = vsel %vm1075, %v1039, -inf
        %v1222 = vmax.f32 %v1220, %v1221
        %1223 = vmax.xlane.f32.xlu0 %v1222
        %v1224 = vpop.xlane.xlu0 %1223
        %v1225 = vmax.f32 %v851, %v853
        %v1226 = vsel %vm1075, %v1044, -inf
        %v1227 = vmax.f32 %v1225, %v1226
        %1228 = vmax.xlane.f32.xlu0 %v1227
        %v1229 = vpop.xlane.xlu0 %1228
        %v1230 = vmax.f32 %v855, %v857
        %v1231 = vsel %vm1075, %v1047, -inf
        %v1232 = vmax.f32 %v1230, %v1231
        %1233 = vmax.xlane.f32.xlu0 %v1232
        %v1234 = vpop.xlane.xlu0 %1233
        %v1235 = vmax.f32 %v861, %v863
        %v1236 = vsel %vm1075, %v1052, -inf
        %v1237 = vmax.f32 %v1235, %v1236
        %1238 = vmax.xlane.f32.xlu0 %v1237
        %v1239 = vpop.xlane.xlu0 %1238
        %v1240 = vmax.f32 %v865, %v867
        %v1241 = vsel %vm1075, %v1055, -inf
        %v1242 = vmax.f32 %v1240, %v1241
        %1243 = vmax.xlane.f32.xlu0 %v1242
        %v1244 = vpop.xlane.xlu0 %1243
        %v1245 = vmax.f32 %v871, %v873
        %v1246 = vsel %vm1075, %v1060, -inf
        %v1247 = vmax.f32 %v1245, %v1246
        %1248 = vmax.xlane.f32.xlu0 %v1247
        %v1249 = vpop.xlane.xlu0 %1248
        %v1250 = vmax.f32 %v875, %v877
        %v1251 = vsel %vm1075, %v1063, -inf
        %v1252 = vmax.f32 %v1250, %v1251
        %1253 = vmax.xlane.f32.xlu0 %v1252
        %v1254 = vpop.xlane.xlu0 %1253
        %v1255 = vmax.f32 %v881, %v883
        %v1256 = vsel %vm1075, %v1068, -inf
        %v1257 = vmax.f32 %v1255, %v1256
        %1258 = vmax.xlane.f32.xlu0 %v1257
        %v1259 = vpop.xlane.xlu0 %1258
        %v1260 = vsel %vm656, %v885, -inf
        %v1261 = vsel %vm656, %v887, -inf
        %v1262 = vmax.f32 %v1260, %v1261
        %vm1263 = vcmask 355328
        %v1264 = vsel %vm1263, %v1071, -inf
        %v1265 = vmax.f32 %v1262, %v1264
        %1266 = vmax.xlane.f32.xlu0 %v1265
        %v1267 = vpop.xlane.xlu0 %1266
        %v1268 = vsub.f32 %v701, %v1079
        %v1269 = vsub.f32 %v703, %v1079
        %v1270 = vsub.f32 %v924, %v1079
        %v1271 = vsub.f32 %v705, %v1084
        %v1272 = vsub.f32 %v707, %v1084
        %v1273 = vsub.f32 %v927, %v1084
        %v1274 = vsub.f32 %v711, %v1089
        %v1275 = vsub.f32 %v713, %v1089
        %v1276 = vsub.f32 %v932, %v1089
        %v1277 = vsub.f32 %v715, %v1094
        %v1278 = vsub.f32 %v717, %v1094
        %v1279 = vsub.f32 %v935, %v1094
        %v1280 = vsub.f32 %v721, %v1099
        %v1281 = vsub.f32 %v723, %v1099
        %v1282 = vsub.f32 %v940, %v1099
        %v1283 = vsub.f32 %v725, %v1104
        %v1284 = vsub.f32 %v727, %v1104
        %v1285 = vsub.f32 %v943, %v1104
        %v1286 = vsub.f32 %v731, %v1109
        %v1287 = vsub.f32 %v733, %v1109
        %v1288 = vsub.f32 %v948, %v1109
        %v1289 = vsub.f32 %v735, %v1114
        %v1290 = vsub.f32 %v737, %v1114
        %v1291 = vsub.f32 %v951, %v1114
        %v1292 = vsub.f32 %v741, %v1119
        %v1293 = vsub.f32 %v743, %v1119
        %v1294 = vsub.f32 %v956, %v1119
        %v1295 = vsub.f32 %v745, %v1124
        %v1296 = vsub.f32 %v747, %v1124
        %v1297 = vsub.f32 %v959, %v1124
        %v1298 = vsub.f32 %v751, %v1129
        %v1299 = vsub.f32 %v753, %v1129
        %v1300 = vsub.f32 %v964, %v1129
        %v1301 = vsub.f32 %v755, %v1134
        %v1302 = vsub.f32 %v757, %v1134
        %v1303 = vsub.f32 %v967, %v1134
        %v1304 = vsub.f32 %v761, %v1139
        %v1305 = vsub.f32 %v763, %v1139
        %v1306 = vsub.f32 %v972, %v1139
        %v1307 = vsub.f32 %v765, %v1144
        %v1308 = vsub.f32 %v767, %v1144
        %v1309 = vsub.f32 %v975, %v1144
        %v1310 = vsub.f32 %v771, %v1149
        %v1311 = vsub.f32 %v773, %v1149
        %v1312 = vsub.f32 %v980, %v1149
        %v1313 = vsub.f32 %v775, %v1154
        %v1314 = vsub.f32 %v777, %v1154
        %v1315 = vsub.f32 %v983, %v1154
        %v1316 = vsub.f32 %v781, %v1159
        %v1317 = vsub.f32 %v783, %v1159
        %v1318 = vsub.f32 %v988, %v1159
        %v1319 = vsub.f32 %v785, %v1164
        %v1320 = vsub.f32 %v787, %v1164
        %v1321 = vsub.f32 %v991, %v1164
        %v1322 = vsub.f32 %v791, %v1169
        %v1323 = vsub.f32 %v793, %v1169
        %v1324 = vsub.f32 %v996, %v1169
        %v1325 = vsub.f32 %v795, %v1174
        %v1326 = vsub.f32 %v797, %v1174
        %v1327 = vsub.f32 %v999, %v1174
        %v1328 = vsub.f32 %v801, %v1179
        %v1329 = vsub.f32 %v803, %v1179
        %v1330 = vsub.f32 %v1004, %v1179
        %v1331 = vsub.f32 %v805, %v1184
        %v1332 = vsub.f32 %v807, %v1184
        %v1333 = vsub.f32 %v1007, %v1184
        %v1334 = vsub.f32 %v811, %v1189
        %v1335 = vsub.f32 %v813, %v1189
        %v1336 = vsub.f32 %v1012, %v1189
        %v1337 = vsub.f32 %v815, %v1194
        %v1338 = vsub.f32 %v817, %v1194
        %v1339 = vsub.f32 %v1015, %v1194
        %v1340 = vsub.f32 %v821, %v1199
        %v1341 = vsub.f32 %v823, %v1199
        %v1342 = vsub.f32 %v1020, %v1199
        %v1343 = vsub.f32 %v825, %v1204
        %v1344 = vsub.f32 %v827, %v1204
        %v1345 = vsub.f32 %v1023, %v1204
        %v1346 = vsub.f32 %v831, %v1209
        %v1347 = vsub.f32 %v833, %v1209
        %v1348 = vsub.f32 %v1028, %v1209
        %v1349 = vsub.f32 %v835, %v1214
        %v1350 = vsub.f32 %v837, %v1214
        %v1351 = vsub.f32 %v1031, %v1214
        %v1352 = vsub.f32 %v841, %v1219
        %v1353 = vsub.f32 %v843, %v1219
        %v1354 = vsub.f32 %v1036, %v1219
        %v1355 = vsub.f32 %v845, %v1224
        %v1356 = vsub.f32 %v847, %v1224
        %v1357 = vsub.f32 %v1039, %v1224
        %v1358 = vsub.f32 %v851, %v1229
        %v1359 = vsub.f32 %v853, %v1229
        %v1360 = vsub.f32 %v1044, %v1229
        %v1361 = vsub.f32 %v855, %v1234
        %v1362 = vsub.f32 %v857, %v1234
        %v1363 = vsub.f32 %v1047, %v1234
        %v1364 = vsub.f32 %v861, %v1239
        %v1365 = vsub.f32 %v863, %v1239
        %v1366 = vsub.f32 %v1052, %v1239
        %v1367 = vsub.f32 %v865, %v1244
        %v1368 = vsub.f32 %v867, %v1244
        %v1369 = vsub.f32 %v1055, %v1244
        %v1370 = vsub.f32 %v871, %v1249
        %v1371 = vsub.f32 %v873, %v1249
        %v1372 = vsub.f32 %v1060, %v1249
        %v1373 = vsub.f32 %v875, %v1254
        %v1374 = vsub.f32 %v877, %v1254
        %v1375 = vsub.f32 %v1063, %v1254
        %v1376 = vsub.f32 %v881, %v1259
        %v1377 = vsub.f32 %v883, %v1259
        %v1378 = vsub.f32 %v1068, %v1259
        %v1379 = vsub.f32 %v885, %v1267
        %v1380 = vsub.f32 %v887, %v1267
        %v1381 = vsub.f32 %v1071, %v1267
        %v1382 = vpack.c.bf16 %v1271, %v1268
        %v1383 = vpack.c.bf16 %v1272, %v1269
        %v1384 = vpack.c.bf16 %v1273, %v1270
        %v1385 = vpack.c.bf16 %v1277, %v1274
        %v1386 = vpack.c.bf16 %v1278, %v1275
        %v1387 = vpack.c.bf16 %v1279, %v1276
        %v1388 = vpack.c.bf16 %v1283, %v1280
        %v1389 = vpack.c.bf16 %v1284, %v1281
        %v1390 = vpack.c.bf16 %v1285, %v1282
        %v1391 = vpack.c.bf16 %v1289, %v1286
        %v1392 = vpack.c.bf16 %v1290, %v1287
        %v1393 = vpack.c.bf16 %v1291, %v1288
        %v1394 = vpack.c.bf16 %v1295, %v1292
        %v1395 = vpack.c.bf16 %v1296, %v1293
        %v1396 = vpack.c.bf16 %v1297, %v1294
        %v1397 = vpack.c.bf16 %v1301, %v1298
        %v1398 = vpack.c.bf16 %v1302, %v1299
        %v1399 = vpack.c.bf16 %v1303, %v1300
        %v1400 = vpack.c.bf16 %v1307, %v1304
        %v1401 = vpack.c.bf16 %v1308, %v1305
        %v1402 = vpack.c.bf16 %v1309, %v1306
        %v1403 = vpack.c.bf16 %v1313, %v1310
        %v1404 = vpack.c.bf16 %v1314, %v1311
        %v1405 = vpack.c.bf16 %v1315, %v1312
        %v1406 = vpack.c.bf16 %v1319, %v1316
        %v1407 = vpack.c.bf16 %v1320, %v1317
        %v1408 = vpack.c.bf16 %v1321, %v1318
        %v1409 = vpack.c.bf16 %v1325, %v1322
        %v1410 = vpack.c.bf16 %v1326, %v1323
        %v1411 = vpack.c.bf16 %v1327, %v1324
        %v1412 = vpack.c.bf16 %v1331, %v1328
        %v1413 = vpack.c.bf16 %v1332, %v1329
        %v1414 = vpack.c.bf16 %v1333, %v1330
        %v1415 = vpack.c.bf16 %v1337, %v1334
        %v1416 = vpack.c.bf16 %v1338, %v1335
        %v1417 = vpack.c.bf16 %v1339, %v1336
        %v1418 = vpack.c.bf16 %v1343, %v1340
        %v1419 = vpack.c.bf16 %v1344, %v1341
        %v1420 = vpack.c.bf16 %v1345, %v1342
        %v1421 = vpack.c.bf16 %v1349, %v1346
        %v1422 = vpack.c.bf16 %v1350, %v1347
        %v1423 = vpack.c.bf16 %v1351, %v1348
        %v1424 = vpack.c.bf16 %v1355, %v1352
        %v1425 = vpack.c.bf16 %v1356, %v1353
        %v1426 = vpack.c.bf16 %v1357, %v1354
        %v1427 = vpack.c.bf16 %v1361, %v1358
        %v1428 = vpack.c.bf16 %v1362, %v1359
        %v1429 = vpack.c.bf16 %v1363, %v1360
        %v1430 = vpack.c.bf16 %v1367, %v1364
        %v1431 = vpack.c.bf16 %v1368, %v1365
        %v1432 = vpack.c.bf16 %v1369, %v1366
        %v1433 = vpack.c.bf16 %v1373, %v1370
        %v1434 = vpack.c.bf16 %v1374, %v1371
        %v1435 = vpack.c.bf16 %v1375, %v1372
        %v1436 = vpack.c.bf16 %v1379, %v1376
        %v1437 = vpack.c.bf16 %v1380, %v1377
        %v1438 = vpack.c.bf16 %v1381, %v1378
        %v1440 = vmul.bf16 %v1382, 1069105081
        %v1441 = vpow.bf16.pop %v1440
        %v1443 = vmul.bf16 %v1383, 1069105081
        %v1444 = vpow.bf16.pop %v1443
        %v1446 = vmul.bf16 %v1384, 1069105081
        %v1447 = vpow.bf16.pop %v1446
        %v1449 = vmul.bf16 %v1385, 1069105081
        %v1450 = vpow.bf16.pop %v1449
        %v1452 = vmul.bf16 %v1386, 1069105081
        %v1453 = vpow.bf16.pop %v1452
        %v1455 = vmul.bf16 %v1387, 1069105081
        %v1456 = vpow.bf16.pop %v1455
        %v1458 = vmul.bf16 %v1388, 1069105081
        %v1459 = vpow.bf16.pop %v1458
        %v1461 = vmul.bf16 %v1389, 1069105081
        %v1462 = vpow.bf16.pop %v1461
        %v1464 = vmul.bf16 %v1390, 1069105081
        %v1465 = vpow.bf16.pop %v1464
        %v1467 = vmul.bf16 %v1391, 1069105081
        %v1468 = vpow.bf16.pop %v1467
        %v1470 = vmul.bf16 %v1392, 1069105081
        %v1471 = vpow.bf16.pop %v1470
        %v1473 = vmul.bf16 %v1393, 1069105081
        %v1474 = vpow.bf16.pop %v1473
        %v1476 = vmul.bf16 %v1394, 1069105081
        %v1477 = vpow.bf16.pop %v1476
        %v1479 = vmul.bf16 %v1395, 1069105081
        %v1480 = vpow.bf16.pop %v1479
        %v1482 = vmul.bf16 %v1396, 1069105081
        %v1483 = vpow.bf16.pop %v1482
        %v1485 = vmul.bf16 %v1397, 1069105081
        %v1486 = vpow.bf16.pop %v1485
        %v1488 = vmul.bf16 %v1398, 1069105081
        %v1489 = vpow.bf16.pop %v1488
        %v1491 = vmul.bf16 %v1399, 1069105081
        %v1492 = vpow.bf16.pop %v1491
        %v1494 = vmul.bf16 %v1400, 1069105081
        %v1495 = vpow.bf16.pop %v1494
        %v1497 = vmul.bf16 %v1401, 1069105081
        %v1498 = vpow.bf16.pop %v1497
        %v1500 = vmul.bf16 %v1402, 1069105081
        %v1501 = vpow.bf16.pop %v1500
        %v1503 = vmul.bf16 %v1403, 1069105081
        %v1504 = vpow.bf16.pop %v1503
        %v1506 = vmul.bf16 %v1404, 1069105081
        %v1507 = vpow.bf16.pop %v1506
        %v1509 = vmul.bf16 %v1405, 1069105081
        %v1510 = vpow.bf16.pop %v1509
        %v1512 = vmul.bf16 %v1406, 1069105081
        %v1513 = vpow.bf16.pop %v1512
        %v1515 = vmul.bf16 %v1407, 1069105081
        %v1516 = vpow.bf16.pop %v1515
        %v1518 = vmul.bf16 %v1408, 1069105081
        %v1519 = vpow.bf16.pop %v1518
        %v1521 = vmul.bf16 %v1409, 1069105081
        %v1522 = vpow.bf16.pop %v1521
        %v1524 = vmul.bf16 %v1410, 1069105081
        %v1525 = vpow.bf16.pop %v1524
        %v1527 = vmul.bf16 %v1411, 1069105081
        %v1528 = vpow.bf16.pop %v1527
        %v1530 = vmul.bf16 %v1412, 1069105081
        %v1531 = vpow.bf16.pop %v1530
        %v1533 = vmul.bf16 %v1413, 1069105081
        %v1534 = vpow.bf16.pop %v1533
        %v1536 = vmul.bf16 %v1414, 1069105081
        %v1537 = vpow.bf16.pop %v1536
        %v1539 = vmul.bf16 %v1415, 1069105081
        %v1540 = vpow.bf16.pop %v1539
        %v1542 = vmul.bf16 %v1416, 1069105081
        %v1543 = vpow.bf16.pop %v1542
        %v1545 = vmul.bf16 %v1417, 1069105081
        %v1546 = vpow.bf16.pop %v1545
        %v1548 = vmul.bf16 %v1418, 1069105081
        %v1549 = vpow.bf16.pop %v1548
        %v1551 = vmul.bf16 %v1419, 1069105081
        %v1552 = vpow.bf16.pop %v1551
        %v1554 = vmul.bf16 %v1420, 1069105081
        %v1555 = vpow.bf16.pop %v1554
        %v1557 = vmul.bf16 %v1421, 1069105081
        %v1558 = vpow.bf16.pop %v1557
        %v1560 = vmul.bf16 %v1422, 1069105081
        %v1561 = vpow.bf16.pop %v1560
        %v1563 = vmul.bf16 %v1423, 1069105081
        %v1564 = vpow.bf16.pop %v1563
        %v1566 = vmul.bf16 %v1424, 1069105081
        %v1567 = vpow.bf16.pop %v1566
        %v1569 = vmul.bf16 %v1425, 1069105081
        %v1570 = vpow.bf16.pop %v1569
        %v1572 = vmul.bf16 %v1426, 1069105081
        %v1573 = vpow.bf16.pop %v1572
        %v1575 = vmul.bf16 %v1427, 1069105081
        %v1576 = vpow.bf16.pop %v1575
        %v1578 = vmul.bf16 %v1428, 1069105081
        %v1579 = vpow.bf16.pop %v1578
        %v1581 = vmul.bf16 %v1429, 1069105081
        %v1582 = vpow.bf16.pop %v1581
        %v1584 = vmul.bf16 %v1430, 1069105081
        %v1585 = vpow.bf16.pop %v1584
        %v1587 = vmul.bf16 %v1431, 1069105081
        %v1588 = vpow.bf16.pop %v1587
        %v1590 = vmul.bf16 %v1432, 1069105081
        %v1591 = vpow.bf16.pop %v1590
        %v1593 = vmul.bf16 %v1433, 1069105081
        %v1594 = vpow.bf16.pop %v1593
        %v1596 = vmul.bf16 %v1434, 1069105081
        %v1597 = vpow.bf16.pop %v1596
        %v1599 = vmul.bf16 %v1435, 1069105081
        %v1600 = vpow.bf16.pop %v1599
        %v1602 = vmul.bf16 %v1436, 1069105081
        %v1603 = vpow.bf16.pop %v1602
        %v1605 = vmul.bf16 %v1437, 1069105081
        %v1606 = vpow.bf16.pop %v1605
        %v1608 = vmul.bf16 %v1438, 1069105081
        %v1609 = vpow.bf16.pop %v1608
        %v1610 = vpack.c.bf16 %v478, %v478
        %v1611 = vpack.c.bf16 %v480, %v480
        %v1612 = vpack.c.bf16 %v537, %v537
        %v1614 = vsel %vm1075, %v1612, 0
        %v1617 = vsel %vm1075, %v1447, 0
        %v1620 = vsel %vm1075, %v1456, 0
        %v1623 = vsel %vm1075, %v1465, 0
        %v1626 = vsel %vm1075, %v1474, 0
        %v1629 = vsel %vm1075, %v1483, 0
        %v1632 = vsel %vm1075, %v1492, 0
        %v1635 = vsel %vm1075, %v1501, 0
        %v1638 = vsel %vm1075, %v1510, 0
        %v1641 = vsel %vm1075, %v1519, 0
        %v1644 = vsel %vm1075, %v1528, 0
        %v1647 = vsel %vm1075, %v1537, 0
        %v1650 = vsel %vm1075, %v1546, 0
        %v1653 = vsel %vm1075, %v1555, 0
        %v1656 = vsel %vm1075, %v1564, 0
        %v1659 = vsel %vm1075, %v1573, 0
        %v1662 = vsel %vm1075, %v1582, 0
        %v1665 = vsel %vm1075, %v1591, 0
        %v1668 = vsel %vm1075, %v1600, 0
        %v1671 = vsel %vm1075, %v1609, 0
        %1673 = vmatprep.subr.bf16.mxu0 %v1444
        %1674 = vmatpush1.bf16.xpose.msra.mxu0 %v1441
        %1675 = vmatprep.subr.bf16.mxu0 %v1453
        %1676 = vmatpush1.bf16.xpose.msra.mxu0 %v1450
        %1677 = vmatprep.subr.bf16.mxu0 %v1462
        %1678 = vmatpush1.bf16.xpose.msra.mxu0 %v1459
        %1679 = vmatprep.subr.bf16.mxu0 %v1471
        %1680 = vmatpush1.bf16.xpose.msra.mxu0 %v1468
        %1681 = vmatprep.subr.bf16.mxu0 %v1480
        %1682 = vmatpush1.bf16.xpose.msra.mxu0 %v1477
        %1683 = vmatprep.subr.bf16.mxu0 %v1489
        %1684 = vmatpush1.bf16.xpose.msra.mxu0 %v1486
        %1685 = vmatprep.subr.bf16.mxu0 %v1498
        %1686 = vmatpush1.bf16.xpose.msra.mxu0 %v1495
        %1687 = vmatprep.subr.bf16.mxu0 %v1507
        %1688 = vmatpush1.bf16.xpose.msra.mxu0 %v1504
        %1689 = vmatprep.subr.bf16.mxu0 %v1516
        %1690 = vmatpush1.bf16.xpose.msra.mxu0 %v1513
        %1691 = vmatprep.subr.bf16.mxu0 %v1525
        %1692 = vmatpush1.bf16.xpose.msra.mxu0 %v1522
        %1693 = vmatprep.subr.bf16.mxu0 %v1534
        %1694 = vmatpush1.bf16.xpose.msra.mxu0 %v1531
        %1695 = vmatprep.subr.bf16.mxu0 %v1543
        %1696 = vmatpush1.bf16.xpose.msra.mxu0 %v1540
        %1697 = vmatprep.subr.bf16.mxu0 %v1552
        %1698 = vmatpush1.bf16.xpose.msra.mxu0 %v1549
        %1699 = vmatprep.subr.bf16.mxu0 %v1561
        %1700 = vmatpush1.bf16.xpose.msra.mxu0 %v1558
        %1701 = vmatprep.subr.bf16.mxu0 %v1570
        %1702 = vmatpush1.bf16.xpose.msra.mxu0 %v1567
        %1703 = vmatprep.subr.bf16.mxu0 %v1579
        %1704 = vmatpush1.bf16.xpose.msra.mxu0 %v1576
        %1705 = vmatprep.mubr.bf16.mxu0 %v1611
        %1706 = vmatmul.mubr.bf16.gmra.mrb[0].mxu0 %v1610
        %v1707 = vpop.f32.mrb[0].mxu0
        %v1708 = vadd.f32 0.0, %v1707
        %v1709 = vpop.f32.mrb[0].mxu0
        %v1710 = vadd.f32 0.0, %v1709
        %v1711 = vpop.f32.mrb[0].mxu0
        %v1712 = vpop.f32.mrb[0].mxu0
        %1713 = vdwg.mxu0
        %1714 = vmatprep.subr.bf16.mxu0 0
        %1715 = vmatpush1.bf16.xpose.msra.mxu0 %v1617
        %1716 = vmatprep.subr.bf16.mxu0 0
        %1717 = vmatpush1.bf16.xpose.msra.mxu0 %v1620
        %1718 = vmatprep.subr.bf16.mxu0 0
        %1719 = vmatpush1.bf16.xpose.msra.mxu0 %v1623
        %1720 = vmatprep.subr.bf16.mxu0 0
        %1721 = vmatpush1.bf16.xpose.msra.mxu0 %v1626
        %1722 = vmatprep.subr.bf16.mxu0 0
        %1723 = vmatpush1.bf16.xpose.msra.mxu0 %v1629
        %1724 = vmatprep.subr.bf16.mxu0 0
        %1725 = vmatpush1.bf16.xpose.msra.mxu0 %v1632
        %1726 = vmatprep.subr.bf16.mxu0 0
        %1727 = vmatpush1.bf16.xpose.msra.mxu0 %v1635
        %1728 = vmatprep.subr.bf16.mxu0 0
        %1729 = vmatpush1.bf16.xpose.msra.mxu0 %v1638
        %1730 = vmatprep.subr.bf16.mxu0 0
        %1731 = vmatpush1.bf16.xpose.msra.mxu0 %v1641
        %1732 = vmatprep.subr.bf16.mxu0 0
        %1733 = vmatpush1.bf16.xpose.msra.mxu0 %v1644
        %1734 = vmatprep.subr.bf16.mxu0 0
        %1735 = vmatpush1.bf16.xpose.msra.mxu0 %v1647
        %1736 = vmatprep.subr.bf16.mxu0 0
        %1737 = vmatpush1.bf16.xpose.msra.mxu0 %v1650
        %1738 = vmatprep.subr.bf16.mxu0 0
        %1739 = vmatpush1.bf16.xpose.msra.mxu0 %v1653
        %1740 = vmatprep.subr.bf16.mxu0 0
        %1741 = vmatpush1.bf16.xpose.msra.mxu0 %v1656
        %1742 = vmatprep.subr.bf16.mxu0 0
        %1743 = vmatpush1.bf16.xpose.msra.mxu0 %v1659
        %1744 = vmatprep.subr.bf16.mxu0 0
        %1745 = vmatpush1.bf16.xpose.msra.mxu0 %v1662
        %1746 = vmatprep.mubr.bf16.mxu0 0
        %1747 = vmatmul.mubr.bf16.gmra.mrb[0].mxu0 %v1614
        %v1748 = vpop.f32.mrb[0].mxu0
        %v1749 = vadd.f32 %v1708, %v1748
        %v1750 = vpop.f32.mrb[0].mxu0
        %v1751 = vadd.f32 %v1710, %v1750
        %v1752 = vpop.f32.mrb[0].mxu0
        %v1753 = vpop.f32.mrb[0].mxu0
        %1754 = vdwg.mxu0
        %1755 = vmatprep.subr.bf16.mxu0 %v1588
        %1756 = vmatpush1.bf16.xpose.msra.mxu0 %v1585
        %1757 = vmatprep.subr.bf16.mxu0 %v1597
        %1758 = vmatpush1.bf16.xpose.msra.mxu0 %v1594
        %1759 = vmatprep.subr.bf16.mxu0 %v1606
        %1760 = vmatpush1.bf16.xpose.msra.mxu0 %v1603
        %1761 = vmatprep.subr.bf16.mxu0 0
        %1762 = vmatpush1.bf16.xpose.msra.mxu0 0
        %1763 = vmatprep.subr.bf16.mxu0 0
        %1764 = vmatpush1.bf16.xpose.msra.mxu0 0
        %1765 = vmatprep.subr.bf16.mxu0 0
        %1766 = vmatpush1.bf16.xpose.msra.mxu0 0
        %1767 = vmatprep.subr.bf16.mxu0 0
        %1768 = vmatpush1.bf16.xpose.msra.mxu0 0
        %1769 = vmatprep.subr.bf16.mxu0 0
        %1770 = vmatpush1.bf16.xpose.msra.mxu0 0
        %1771 = vmatprep.subr.bf16.mxu0 0
        %1772 = vmatpush1.bf16.xpose.msra.mxu0 0
        %1773 = vmatprep.subr.bf16.mxu0 0
        %1774 = vmatpush1.bf16.xpose.msra.mxu0 0
        %1775 = vmatprep.subr.bf16.mxu0 0
        %1776 = vmatpush1.bf16.xpose.msra.mxu0 0
        %1777 = vmatprep.subr.bf16.mxu0 0
        %1778 = vmatpush1.bf16.xpose.msra.mxu0 0
        %1779 = vmatprep.subr.bf16.mxu0 0
        %1780 = vmatpush1.bf16.xpose.msra.mxu0 0
        %1781 = vmatprep.subr.bf16.mxu0 0
        %1782 = vmatpush1.bf16.xpose.msra.mxu0 0
        %1783 = vmatprep.subr.bf16.mxu0 0
        %1784 = vmatpush1.bf16.xpose.msra.mxu0 0
        %1785 = vmatprep.subr.bf16.mxu0 0
        %1786 = vmatpush1.bf16.xpose.msra.mxu0 0
        %1787 = vmatprep.mubr.bf16.mxu0 %v1611
        %1788 = vmatmul.mubr.bf16.gmra.mrb[0].mxu0 %v1610
        %v1789 = vpop.f32.mrb[0].mxu0
        %v1790 = vadd.f32 0.0, %v1789
        %v1791 = vpop.f32.mrb[0].mxu0
        %v1792 = vpop.f32.mrb[0].mxu0
        %v1793 = vpop.f32.mrb[0].mxu0
        %1794 = vdwg.mxu0
        %1795 = vmatprep.subr.bf16.mxu0 0
        %1796 = vmatpush1.bf16.xpose.msra.mxu0 %v1665
        %1797 = vmatprep.subr.bf16.mxu0 0
        %1798 = vmatpush1.bf16.xpose.msra.mxu0 %v1668
        %1799 = vmatprep.subr.bf16.mxu0 0
        %1800 = vmatpush1.bf16.xpose.msra.mxu0 %v1671
        %1801 = vmatprep.subr.bf16.mxu0 0
        %1802 = vmatpush1.bf16.xpose.msra.mxu0 0
        %1803 = vmatprep.subr.bf16.mxu0 0
        %1804 = vmatpush1.bf16.xpose.msra.mxu0 0
        %1805 = vmatprep.subr.bf16.mxu0 0
        %1806 = vmatpush1.bf16.xpose.msra.mxu0 0
        %1807 = vmatprep.subr.bf16.mxu0 0
        %1808 = vmatpush1.bf16.xpose.msra.mxu0 0
        %1809 = vmatprep.subr.bf16.mxu0 0
        %1810 = vmatpush1.bf16.xpose.msra.mxu0 0
        %1811 = vmatprep.subr.bf16.mxu0 0
        %1812 = vmatpush1.bf16.xpose.msra.mxu0 0
        %1813 = vmatprep.subr.bf16.mxu0 0
        %1814 = vmatpush1.bf16.xpose.msra.mxu0 0
        %1815 = vmatprep.subr.bf16.mxu0 0
        %1816 = vmatpush1.bf16.xpose.msra.mxu0 0
        %1817 = vmatprep.subr.bf16.mxu0 0
        %1818 = vmatpush1.bf16.xpose.msra.mxu0 0
        %1819 = vmatprep.subr.bf16.mxu0 0
        %1820 = vmatpush1.bf16.xpose.msra.mxu0 0
        %1821 = vmatprep.subr.bf16.mxu0 0
        %1822 = vmatpush1.bf16.xpose.msra.mxu0 0
        %1823 = vmatprep.subr.bf16.mxu0 0
        %1824 = vmatpush1.bf16.xpose.msra.mxu0 0
        %1825 = vmatprep.subr.bf16.mxu0 0
        %1826 = vmatpush1.bf16.xpose.msra.mxu0 0
        %1827 = vmatprep.mubr.bf16.mxu0 0
        %1828 = vmatmul.mubr.bf16.gmra.mrb[0].mxu0 %v1614
        %v1829 = vpop.f32.mrb[0].mxu0
        %v1830 = vadd.f32 %v1790, %v1829
        %v1831 = vpop.f32.mrb[0].mxu0
        %v1832 = vpop.f32.mrb[0].mxu0
        %v1833 = vpop.f32.mrb[0].mxu0
        %1834 = vdwg.mxu0
        %v1835 = vrcp.pop %v1749
        %v1836 = vrcp.pop %v1751
        %v1837 = vrcp.pop %v1830
        %v1838 = vlaneseq
        %v1839 = vshrl.u32 %v1838, 7
        %v1840 = vsub.s32 0, %v1839
        %v1841 = vrot.slane %v1835, %v1840
        %v1842 = vlaneseq
        %v1843 = vshrl.u32 %v1842, 7
        %v1844 = vsub.s32 0, %v1843
        %v1845 = vrot.slane %v1836, %v1844
        %v1846 = vlaneseq
        %v1847 = vshrl.u32 %v1846, 7
        %v1848 = vsub.s32 0, %v1847
        %v1849 = vrot.slane %v1837, %v1848
        %v1850 = vmul.f32 %v1749, %v1841
        %v1851 = vmul.f32 %v1751, %v1845
        %v1852 = vmul.f32 %v1830, %v1849
        %v1853 = vld [vmem:[%s3 + $0x20] sm:$0x7]
        %v1854 = vpack.c.bf16 %v1850, %v1850
        %v1855 = vpack.c.bf16 %v1851, %v1851
        %v1856 = vpack.c.bf16 %v1852, %v1852
        %v1858 = vsel %vm598, %v1853, 0
        %v1861 = vsel %vm656, %v1854, 0
        %v1864 = vsel %vm656, %v1855, 0
        %v1867 = vsel %vm656, %v1856, 0
        %1869 = vmatprep.subr.bf16.mxu0 %v1864
        %1870 = vmatpush1.bf16.msra.mxu0 %v1861
        %1871 = vmatprep.subr.bf16.mxu0 0
        %1872 = vmatpush1.bf16.msra.mxu0 0
        %1873 = vmatprep.subr.bf16.mxu0 0
        %1874 = vmatpush1.bf16.msra.mxu0 0
        %1875 = vmatprep.subr.bf16.mxu0 0
        %1876 = vmatpush1.bf16.msra.mxu0 0
        %1877 = vmatprep.subr.bf16.mxu0 0
        %1878 = vmatpush1.bf16.msra.mxu0 0
        %1879 = vmatprep.subr.bf16.mxu0 0
        %1880 = vmatpush1.bf16.msra.mxu0 0
        %1881 = vmatprep.subr.bf16.mxu0 0
        %1882 = vmatpush1.bf16.msra.mxu0 0
        %1883 = vmatprep.subr.bf16.mxu0 0
        %1884 = vmatpush1.bf16.msra.mxu0 0
        %1885 = vmatprep.subr.bf16.mxu0 0
        %1886 = vmatpush1.bf16.msra.mxu0 0
        %1887 = vmatprep.subr.bf16.mxu0 0
        %1888 = vmatpush1.bf16.msra.mxu0 0
        %1889 = vmatprep.subr.bf16.mxu0 0
        %1890 = vmatpush1.bf16.msra.mxu0 0
        %1891 = vmatprep.subr.bf16.mxu0 0
        %1892 = vmatpush1.bf16.msra.mxu0 0
        %1893 = vmatprep.subr.bf16.mxu0 0
        %1894 = vmatpush1.bf16.msra.mxu0 0
        %1895 = vmatprep.subr.bf16.mxu0 0
        %1896 = vmatpush1.bf16.msra.mxu0 0
        %1897 = vmatprep.subr.bf16.mxu0 0
        %1898 = vmatpush1.bf16.msra.mxu0 0
        %1899 = vmatprep.subr.bf16.mxu0 0
        %1900 = vmatpush1.bf16.msra.mxu0 0
        %1901 = vmatprep.mubr.bf16.mxu0 0
        %1902 = vmatmul.mubr.bf16.gmra.mrb[0].mxu0 %v1858
        %v1903 = vpop.f32.mrb[0].mxu0
        %v1904 = vadd.f32 0.0, %v1903
        %v1905 = vpop.f32.mrb[0].mxu0
        %v1906 = vadd.f32 0.0, %v1905
        %v1907 = vpop.f32.mrb[0].mxu0
        %v1908 = vpop.f32.mrb[0].mxu0
        %1909 = vdwg.mxu0
        %1910 = vmatprep.subr.bf16.mxu0 0
        %1911 = vmatpush1.bf16.msra.mxu0 %v1867
        %1912 = vmatprep.subr.bf16.mxu0 0
        %1913 = vmatpush1.bf16.msra.mxu0 0
        %1914 = vmatprep.subr.bf16.mxu0 0
        %1915 = vmatpush1.bf16.msra.mxu0 0
        %1916 = vmatprep.subr.bf16.mxu0 0
        %1917 = vmatpush1.bf16.msra.mxu0 0
        %1918 = vmatprep.subr.bf16.mxu0 0
        %1919 = vmatpush1.bf16.msra.mxu0 0
        %1920 = vmatprep.subr.bf16.mxu0 0
        %1921 = vmatpush1.bf16.msra.mxu0 0
        %1922 = vmatprep.subr.bf16.mxu0 0
        %1923 = vmatpush1.bf16.msra.mxu0 0
        %1924 = vmatprep.subr.bf16.mxu0 0
        %1925 = vmatpush1.bf16.msra.mxu0 0
        %1926 = vmatprep.subr.bf16.mxu0 0
        %1927 = vmatpush1.bf16.msra.mxu0 0
        %1928 = vmatprep.subr.bf16.mxu0 0
        %1929 = vmatpush1.bf16.msra.mxu0 0
        %1930 = vmatprep.subr.bf16.mxu0 0
        %1931 = vmatpush1.bf16.msra.mxu0 0
        %1932 = vmatprep.subr.bf16.mxu0 0
        %1933 = vmatpush1.bf16.msra.mxu0 0
        %1934 = vmatprep.subr.bf16.mxu0 0
        %1935 = vmatpush1.bf16.msra.mxu0 0
        %1936 = vmatprep.subr.bf16.mxu0 0
        %1937 = vmatpush1.bf16.msra.mxu0 0
        %1938 = vmatprep.subr.bf16.mxu0 0
        %1939 = vmatpush1.bf16.msra.mxu0 0
        %1940 = vmatprep.subr.bf16.mxu0 0
        %1941 = vmatpush1.bf16.msra.mxu0 0
        %1942 = vmatprep.mubr.bf16.mxu0 0
        %1943 = vmatmul.mubr.bf16.gmra.mrb[0].mxu0 %v1858
        %v1944 = vpop.f32.mrb[0].mxu0
        %v1945 = vadd.f32 0.0, %v1944
        %v1946 = vpop.f32.mrb[0].mxu0
        %v1947 = vpop.f32.mrb[0].mxu0
        %v1948 = vpop.f32.mrb[0].mxu0
        %1949 = vdwg.mxu0
        %1951 = vset.pattern.permute.xlu0 0
        %1952 = vperm.xlu0 %1951, %v543
        %v1953 = vpop.permute.xlu0 %1952
        %v1955 = vadd.f32 %v1953, %v1904
        %v1956 = vadd.f32 %v1953, %v1906
        %v1957 = vadd.f32 %v1953, %v1945
        %v1958 = vpack.c.bf16 %v462, %v462
        %v1959 = vpack.c.bf16 %v464, %v464
        %v1960 = vpack.c.bf16 %v524, %v524
        %v1961 = vpack.c.bf16 %v472, %v472
        %v1962 = vpack.c.bf16 %v474, %v474
        %v1963 = vpack.c.bf16 %v532, %v532
        %1964 = vxpose.xlu0.c.b16.start [1/8] %v1958, 128
        %1965 = vxpose.xlu0.c.b16.cont [2/8] 0, 128
        %1966 = vxpose.xlu0.c.b16.cont [3/8] 0, 128
        %1967 = vxpose.xlu0.c.b16.cont [4/8] 0, 128
        %1968 = vxpose.xlu0.c.b16.cont [5/8] 0, 128
        %1969 = vxpose.xlu0.c.b16.cont [6/8] 0, 128
        %1970 = vxpose.xlu0.c.b16.cont [7/8] 0, 128
        %1971 = vxpose.xlu0.c.b16.end [8/8] 0, 128
        %v1972 = vpop.trf.xlu0
        %v1973 = vpop.trf.xlu0
        %v1974 = vpop.trf.xlu0
        %v1975 = vpop.trf.xlu0
        %v1976 = vpop.trf.xlu0
        %v1977 = vpop.trf.xlu0
        %v1978 = vpop.trf.xlu0
        %v1979 = vpop.trf.xlu0
        %1980 = vxpose.xlu0.c.b16.start [1/8] %v1959, 128
        %1981 = vxpose.xlu0.c.b16.cont [2/8] 0, 128
        %1982 = vxpose.xlu0.c.b16.cont [3/8] 0, 128
        %1983 = vxpose.xlu0.c.b16.cont [4/8] 0, 128
        %1984 = vxpose.xlu0.c.b16.cont [5/8] 0, 128
        %1985 = vxpose.xlu0.c.b16.cont [6/8] 0, 128
        %1986 = vxpose.xlu0.c.b16.cont [7/8] 0, 128
        %1987 = vxpose.xlu0.c.b16.end [8/8] 0, 128
        %v1988 = vpop.trf.xlu0
        %v1989 = vpop.trf.xlu0
        %v1990 = vpop.trf.xlu0
        %v1991 = vpop.trf.xlu0
        %v1992 = vpop.trf.xlu0
        %v1993 = vpop.trf.xlu0
        %v1994 = vpop.trf.xlu0
        %v1995 = vpop.trf.xlu0
        %1996 = vxpose.xlu0.c.b16.start [1/8] %v1960, 128
        %1997 = vxpose.xlu0.c.b16.cont [2/8] 0, 128
        %1998 = vxpose.xlu0.c.b16.cont [3/8] 0, 128
        %1999 = vxpose.xlu0.c.b16.cont [4/8] 0, 128
        %2000 = vxpose.xlu0.c.b16.cont [5/8] 0, 128
        %2001 = vxpose.xlu0.c.b16.cont [6/8] 0, 128
        %2002 = vxpose.xlu0.c.b16.cont [7/8] 0, 128
        %2003 = vxpose.xlu0.c.b16.end [8/8] 0, 128
        %v2004 = vpop.trf.xlu0
        %v2005 = vpop.trf.xlu0
        %v2006 = vpop.trf.xlu0
        %v2007 = vpop.trf.xlu0
        %v2008 = vpop.trf.xlu0
        %v2009 = vpop.trf.xlu0
        %v2010 = vpop.trf.xlu0
        %v2011 = vpop.trf.xlu0
        %v2013 = vsel %vm598, %v1972, 0
        %v2016 = vsel %vm598, %v1973, 0
        %v2019 = vsel %vm598, %v1974, 0
        %v2022 = vsel %vm598, %v1975, 0
        %v2025 = vsel %vm598, %v1976, 0
        %v2028 = vsel %vm598, %v1977, 0
        %v2031 = vsel %vm598, %v1978, 0
        %v2034 = vsel %vm598, %v1979, 0
        %v2037 = vsel %vm598, %v1988, 0
        %v2040 = vsel %vm598, %v1989, 0
        %v2043 = vsel %vm598, %v1990, 0
        %v2046 = vsel %vm598, %v1991, 0
        %v2049 = vsel %vm598, %v1992, 0
        %v2052 = vsel %vm598, %v1993, 0
        %v2055 = vsel %vm598, %v1994, 0
        %v2058 = vsel %vm598, %v1995, 0
        %v2061 = vsel %vm598, %v2004, 0
        %v2064 = vsel %vm598, %v2005, 0
        %v2067 = vsel %vm598, %v2006, 0
        %v2070 = vsel %vm656, %v1961, 0
        %v2073 = vsel %vm656, %v1962, 0
        %v2076 = vsel %vm656, %v1963, 0
        %2078 = vmatprep.subr.bf16.mxu0 %v2073
        %2079 = vmatpush1.bf16.msra.mxu0 %v2070
        %2080 = vmatprep.subr.bf16.mxu0 0
        %2081 = vmatpush1.bf16.msra.mxu0 0
        %2082 = vmatprep.subr.bf16.mxu0 0
        %2083 = vmatpush1.bf16.msra.mxu0 0
        %2084 = vmatprep.subr.bf16.mxu0 0
        %2085 = vmatpush1.bf16.msra.mxu0 0
        %2086 = vmatprep.subr.bf16.mxu0 0
        %2087 = vmatpush1.bf16.msra.mxu0 0
        %2088 = vmatprep.subr.bf16.mxu0 0
        %2089 = vmatpush1.bf16.msra.mxu0 0
        %2090 = vmatprep.subr.bf16.mxu0 0
        %2091 = vmatpush1.bf16.msra.mxu0 0
        %2092 = vmatprep.subr.bf16.mxu0 0
        %2093 = vmatpush1.bf16.msra.mxu0 0
        %2094 = vmatprep.subr.bf16.mxu0 0
        %2095 = vmatpush1.bf16.msra.mxu0 0
        %2096 = vmatprep.subr.bf16.mxu0 0
        %2097 = vmatpush1.bf16.msra.mxu0 0
        %2098 = vmatprep.subr.bf16.mxu0 0
        %2099 = vmatpush1.bf16.msra.mxu0 0
        %2100 = vmatprep.subr.bf16.mxu0 0
        %2101 = vmatpush1.bf16.msra.mxu0 0
        %2102 = vmatprep.subr.bf16.mxu0 0
        %2103 = vmatpush1.bf16.msra.mxu0 0
        %2104 = vmatprep.subr.bf16.mxu0 0
        %2105 = vmatpush1.bf16.msra.mxu0 0
        %2106 = vmatprep.subr.bf16.mxu0 0
        %2107 = vmatpush1.bf16.msra.mxu0 0
        %2108 = vmatprep.subr.bf16.mxu0 0
        %2109 = vmatpush1.bf16.msra.mxu0 0
        %2110 = vmatprep.mubr.bf16.mxu0 0
        %2111 = vmatmul.mubr.bf16.gmra.mrb[0].mxu0 %v2013
        %v2112 = vpop.f32.mrb[0].mxu0
        %v2113 = vadd.f32 0.0, %v2112
        %v2114 = vpop.f32.mrb[0].mxu0
        %v2115 = vadd.f32 0.0, %v2114
        %v2116 = vpop.f32.mrb[0].mxu0
        %v2117 = vadd.f32 0.0, %v2116
        %v2118 = vpop.f32.mrb[0].mxu0
        %v2119 = vadd.f32 0.0, %v2118
        %2120 = vmatprep.mubr.bf16.mxu0 0
        %2121 = vmatmul.mubr.bf16.gmra.mrb[0].mxu0 %v2016
        %v2122 = vpop.f32.mrb[0].mxu0
        %v2123 = vadd.f32 0.0, %v2122
        %v2124 = vpop.f32.mrb[0].mxu0
        %v2125 = vadd.f32 0.0, %v2124
        %v2126 = vpop.f32.mrb[0].mxu0
        %v2127 = vadd.f32 0.0, %v2126
        %v2128 = vpop.f32.mrb[0].mxu0
        %v2129 = vadd.f32 0.0, %v2128
        %2130 = vmatprep.mubr.bf16.mxu0 0
        %2131 = vmatmul.mubr.bf16.gmra.mrb[0].mxu0 %v2019
        %v2132 = vpop.f32.mrb[0].mxu0
        %v2133 = vadd.f32 0.0, %v2132
        %v2134 = vpop.f32.mrb[0].mxu0
        %v2135 = vadd.f32 0.0, %v2134
        %v2136 = vpop.f32.mrb[0].mxu0
        %v2137 = vadd.f32 0.0, %v2136
        %v2138 = vpop.f32.mrb[0].mxu0
        %v2139 = vadd.f32 0.0, %v2138
        %2140 = vmatprep.mubr.bf16.mxu0 0
        %2141 = vmatmul.mubr.bf16.gmra.mrb[0].mxu0 %v2022
        %v2142 = vpop.f32.mrb[0].mxu0
        %v2143 = vadd.f32 0.0, %v2142
        %v2144 = vpop.f32.mrb[0].mxu0
        %v2145 = vadd.f32 0.0, %v2144
        %v2146 = vpop.f32.mrb[0].mxu0
        %v2147 = vadd.f32 0.0, %v2146
        %v2148 = vpop.f32.mrb[0].mxu0
        %v2149 = vadd.f32 0.0, %v2148
        %2150 = vmatprep.mubr.bf16.mxu0 0
        %2151 = vmatmul.mubr.bf16.gmra.mrb[0].mxu0 %v2025
        %v2152 = vpop.f32.mrb[0].mxu0
        %v2153 = vadd.f32 0.0, %v2152
        %v2154 = vpop.f32.mrb[0].mxu0
        %v2155 = vadd.f32 0.0, %v2154
        %v2156 = vpop.f32.mrb[0].mxu0
        %v2157 = vadd.f32 0.0, %v2156
        %v2158 = vpop.f32.mrb[0].mxu0
        %v2159 = vadd.f32 0.0, %v2158
        %2160 = vmatprep.mubr.bf16.mxu0 0
        %2161 = vmatmul.mubr.bf16.gmra.mrb[0].mxu0 %v2028
        %v2162 = vpop.f32.mrb[0].mxu0
        %v2163 = vadd.f32 0.0, %v2162
        %v2164 = vpop.f32.mrb[0].mxu0
        %v2165 = vadd.f32 0.0, %v2164
        %v2166 = vpop.f32.mrb[0].mxu0
        %v2167 = vadd.f32 0.0, %v2166
        %v2168 = vpop.f32.mrb[0].mxu0
        %v2169 = vadd.f32 0.0, %v2168
        %2170 = vmatprep.mubr.bf16.mxu0 0
        %2171 = vmatmul.mubr.bf16.gmra.mrb[0].mxu0 %v2031
        %v2172 = vpop.f32.mrb[0].mxu0
        %v2173 = vadd.f32 0.0, %v2172
        %v2174 = vpop.f32.mrb[0].mxu0
        %v2175 = vadd.f32 0.0, %v2174
        %v2176 = vpop.f32.mrb[0].mxu0
        %v2177 = vadd.f32 0.0, %v2176
        %v2178 = vpop.f32.mrb[0].mxu0
        %v2179 = vadd.f32 0.0, %v2178
        %2180 = vmatprep.mubr.bf16.mxu0 0
        %2181 = vmatmul.mubr.bf16.gmra.mrb[0].mxu0 %v2034
        %v2182 = vpop.f32.mrb[0].mxu0
        %v2183 = vadd.f32 0.0, %v2182
        %v2184 = vpop.f32.mrb[0].mxu0
        %v2185 = vadd.f32 0.0, %v2184
        %v2186 = vpop.f32.mrb[0].mxu0
        %v2187 = vadd.f32 0.0, %v2186
        %v2188 = vpop.f32.mrb[0].mxu0
        %v2189 = vadd.f32 0.0, %v2188
        %2190 = vmatprep.mubr.bf16.mxu0 0
        %2191 = vmatmul.mubr.bf16.gmra.mrb[0].mxu0 %v2037
        %v2192 = vpop.f32.mrb[0].mxu0
        %v2193 = vadd.f32 0.0, %v2192
        %v2194 = vpop.f32.mrb[0].mxu0
        %v2195 = vadd.f32 0.0, %v2194
        %v2196 = vpop.f32.mrb[0].mxu0
        %v2197 = vadd.f32 0.0, %v2196
        %v2198 = vpop.f32.mrb[0].mxu0
        %v2199 = vadd.f32 0.0, %v2198
        %2200 = vmatprep.mubr.bf16.mxu0 0
        %2201 = vmatmul.mubr.bf16.gmra.mrb[0].mxu0 %v2040
        %v2202 = vpop.f32.mrb[0].mxu0
        %v2203 = vadd.f32 0.0, %v2202
        %v2204 = vpop.f32.mrb[0].mxu0
        %v2205 = vadd.f32 0.0, %v2204
        %v2206 = vpop.f32.mrb[0].mxu0
        %v2207 = vadd.f32 0.0, %v2206
        %v2208 = vpop.f32.mrb[0].mxu0
        %v2209 = vadd.f32 0.0, %v2208
        %2210 = vmatprep.mubr.bf16.mxu0 0
        %2211 = vmatmul.mubr.bf16.gmra.mrb[0].mxu0 %v2043
        %v2212 = vpop.f32.mrb[0].mxu0
        %v2213 = vadd.f32 0.0, %v2212
        %v2214 = vpop.f32.mrb[0].mxu0
        %v2215 = vadd.f32 0.0, %v2214
        %v2216 = vpop.f32.mrb[0].mxu0
        %v2217 = vadd.f32 0.0, %v2216
        %v2218 = vpop.f32.mrb[0].mxu0
        %v2219 = vadd.f32 0.0, %v2218
        %2220 = vmatprep.mubr.bf16.mxu0 0
        %2221 = vmatmul.mubr.bf16.gmra.mrb[0].mxu0 %v2046
        %v2222 = vpop.f32.mrb[0].mxu0
        %v2223 = vadd.f32 0.0, %v2222
        %v2224 = vpop.f32.mrb[0].mxu0
        %v2225 = vadd.f32 0.0, %v2224
        %v2226 = vpop.f32.mrb[0].mxu0
        %v2227 = vadd.f32 0.0, %v2226
        %v2228 = vpop.f32.mrb[0].mxu0
        %v2229 = vadd.f32 0.0, %v2228
        %2230 = vmatprep.mubr.bf16.mxu0 0
        %2231 = vmatmul.mubr.bf16.gmra.mrb[0].mxu0 %v2049
        %v2232 = vpop.f32.mrb[0].mxu0
        %v2233 = vadd.f32 0.0, %v2232
        %v2234 = vpop.f32.mrb[0].mxu0
        %v2235 = vadd.f32 0.0, %v2234
        %v2236 = vpop.f32.mrb[0].mxu0
        %v2237 = vadd.f32 0.0, %v2236
        %v2238 = vpop.f32.mrb[0].mxu0
        %v2239 = vadd.f32 0.0, %v2238
        %2240 = vmatprep.mubr.bf16.mxu0 0
        %2241 = vmatmul.mubr.bf16.gmra.mrb[0].mxu0 %v2052
        %v2242 = vpop.f32.mrb[0].mxu0
        %v2243 = vadd.f32 0.0, %v2242
        %v2244 = vpop.f32.mrb[0].mxu0
        %v2245 = vadd.f32 0.0, %v2244
        %v2246 = vpop.f32.mrb[0].mxu0
        %v2247 = vadd.f32 0.0, %v2246
        %v2248 = vpop.f32.mrb[0].mxu0
        %v2249 = vadd.f32 0.0, %v2248
        %2250 = vmatprep.mubr.bf16.mxu0 0
        %2251 = vmatmul.mubr.bf16.gmra.mrb[0].mxu0 %v2055
        %v2252 = vpop.f32.mrb[0].mxu0
        %v2253 = vadd.f32 0.0, %v2252
        %v2254 = vpop.f32.mrb[0].mxu0
        %v2255 = vadd.f32 0.0, %v2254
        %v2256 = vpop.f32.mrb[0].mxu0
        %v2257 = vadd.f32 0.0, %v2256
        %v2258 = vpop.f32.mrb[0].mxu0
        %v2259 = vadd.f32 0.0, %v2258
        %2260 = vmatprep.mubr.bf16.mxu0 0
        %2261 = vmatmul.mubr.bf16.gmra.mrb[0].mxu0 %v2058
        %v2262 = vpop.f32.mrb[0].mxu0
        %v2263 = vadd.f32 0.0, %v2262
        %v2264 = vpop.f32.mrb[0].mxu0
        %v2265 = vadd.f32 0.0, %v2264
        %v2266 = vpop.f32.mrb[0].mxu0
        %v2267 = vadd.f32 0.0, %v2266
        %v2268 = vpop.f32.mrb[0].mxu0
        %v2269 = vadd.f32 0.0, %v2268
        %2270 = vmatprep.mubr.bf16.mxu0 0
        %2271 = vmatmul.mubr.bf16.gmra.mrb[0].mxu0 %v2061
        %v2272 = vpop.f32.mrb[0].mxu0
        %v2273 = vadd.f32 0.0, %v2272
        %v2274 = vpop.f32.mrb[0].mxu0
        %v2275 = vadd.f32 0.0, %v2274
        %v2276 = vpop.f32.mrb[0].mxu0
        %v2277 = vadd.f32 0.0, %v2276
        %v2278 = vpop.f32.mrb[0].mxu0
        %v2279 = vadd.f32 0.0, %v2278
        %2280 = vmatprep.mubr.bf16.mxu0 0
        %2281 = vmatmul.mubr.bf16.gmra.mrb[0].mxu0 %v2064
        %v2282 = vpop.f32.mrb[0].mxu0
        %v2283 = vadd.f32 0.0, %v2282
        %v2284 = vpop.f32.mrb[0].mxu0
        %v2285 = vadd.f32 0.0, %v2284
        %v2286 = vpop.f32.mrb[0].mxu0
        %v2287 = vadd.f32 0.0, %v2286
        %v2288 = vpop.f32.mrb[0].mxu0
        %v2289 = vadd.f32 0.0, %v2288
        %2290 = vmatprep.mubr.bf16.mxu0 0
        %2291 = vmatmul.mubr.bf16.gmra.mrb[0].mxu0 %v2067
        %v2292 = vpop.f32.mrb[0].mxu0
        %v2293 = vadd.f32 0.0, %v2292
        %v2294 = vpop.f32.mrb[0].mxu0
        %v2295 = vadd.f32 0.0, %v2294
        %v2296 = vpop.f32.mrb[0].mxu0
        %v2297 = vadd.f32 0.0, %v2296
        %v2298 = vpop.f32.mrb[0].mxu0
        %v2299 = vadd.f32 0.0, %v2298
        %2300 = vdwg.mxu0
        %2301 = vmatprep.subr.bf16.mxu0 0
        %2302 = vmatpush1.bf16.msra.mxu0 %v2076
        %2303 = vmatprep.subr.bf16.mxu0 0
        %2304 = vmatpush1.bf16.msra.mxu0 0
        %2305 = vmatprep.subr.bf16.mxu0 0
        %2306 = vmatpush1.bf16.msra.mxu0 0
        %2307 = vmatprep.subr.bf16.mxu0 0
        %2308 = vmatpush1.bf16.msra.mxu0 0
        %2309 = vmatprep.subr.bf16.mxu0 0
        %2310 = vmatpush1.bf16.msra.mxu0 0
        %2311 = vmatprep.subr.bf16.mxu0 0
        %2312 = vmatpush1.bf16.msra.mxu0 0
        %2313 = vmatprep.subr.bf16.mxu0 0
        %2314 = vmatpush1.bf16.msra.mxu0 0
        %2315 = vmatprep.subr.bf16.mxu0 0
        %2316 = vmatpush1.bf16.msra.mxu0 0
        %2317 = vmatprep.subr.bf16.mxu0 0
        %2318 = vmatpush1.bf16.msra.mxu0 0
        %2319 = vmatprep.subr.bf16.mxu0 0
        %2320 = vmatpush1.bf16.msra.mxu0 0
        %2321 = vmatprep.subr.bf16.mxu0 0
        %2322 = vmatpush1.bf16.msra.mxu0 0
        %2323 = vmatprep.subr.bf16.mxu0 0
        %2324 = vmatpush1.bf16.msra.mxu0 0
        %2325 = vmatprep.subr.bf16.mxu0 0
        %2326 = vmatpush1.bf16.msra.mxu0 0
        %2327 = vmatprep.subr.bf16.mxu0 0
        %2328 = vmatpush1.bf16.msra.mxu0 0
        %2329 = vmatprep.subr.bf16.mxu0 0
        %2330 = vmatpush1.bf16.msra.mxu0 0
        %2331 = vmatprep.subr.bf16.mxu0 0
        %2332 = vmatpush1.bf16.msra.mxu0 0
        %2333 = vmatprep.mubr.bf16.mxu0 0
        %2334 = vmatmul.mubr.bf16.gmra.mrb[0].mxu0 %v2013
        %v2335 = vpop.f32.mrb[0].mxu0
        %v2336 = vadd.f32 0.0, %v2335
        %v2337 = vpop.f32.mrb[0].mxu0
        %v2338 = vpop.f32.mrb[0].mxu0
        %v2339 = vadd.f32 0.0, %v2338
        %v2340 = vpop.f32.mrb[0].mxu0
        %2341 = vmatprep.mubr.bf16.mxu0 0
        %2342 = vmatmul.mubr.bf16.gmra.mrb[0].mxu0 %v2016
        %v2343 = vpop.f32.mrb[0].mxu0
        %v2344 = vadd.f32 0.0, %v2343
        %v2345 = vpop.f32.mrb[0].mxu0
        %v2346 = vpop.f32.mrb[0].mxu0
        %v2347 = vadd.f32 0.0, %v2346
        %v2348 = vpop.f32.mrb[0].mxu0
        %2349 = vmatprep.mubr.bf16.mxu0 0
        %2350 = vmatmul.mubr.bf16.gmra.mrb[0].mxu0 %v2019
        %v2351 = vpop.f32.mrb[0].mxu0
        %v2352 = vadd.f32 0.0, %v2351
        %v2353 = vpop.f32.mrb[0].mxu0
        %v2354 = vpop.f32.mrb[0].mxu0
        %v2355 = vadd.f32 0.0, %v2354
        %v2356 = vpop.f32.mrb[0].mxu0
        %2357 = vmatprep.mubr.bf16.mxu0 0
        %2358 = vmatmul.mubr.bf16.gmra.mrb[0].mxu0 %v2022
        %v2359 = vpop.f32.mrb[0].mxu0
        %v2360 = vadd.f32 0.0, %v2359
        %v2361 = vpop.f32.mrb[0].mxu0
        %v2362 = vpop.f32.mrb[0].mxu0
        %v2363 = vadd.f32 0.0, %v2362
        %v2364 = vpop.f32.mrb[0].mxu0
        %2365 = vmatprep.mubr.bf16.mxu0 0
        %2366 = vmatmul.mubr.bf16.gmra.mrb[0].mxu0 %v2025
        %v2367 = vpop.f32.mrb[0].mxu0
        %v2368 = vadd.f32 0.0, %v2367
        %v2369 = vpop.f32.mrb[0].mxu0
        %v2370 = vpop.f32.mrb[0].mxu0
        %v2371 = vadd.f32 0.0, %v2370
        %v2372 = vpop.f32.mrb[0].mxu0
        %2373 = vmatprep.mubr.bf16.mxu0 0
        %2374 = vmatmul.mubr.bf16.gmra.mrb[0].mxu0 %v2028
        %v2375 = vpop.f32.mrb[0].mxu0
        %v2376 = vadd.f32 0.0, %v2375
        %v2377 = vpop.f32.mrb[0].mxu0
        %v2378 = vpop.f32.mrb[0].mxu0
        %v2379 = vadd.f32 0.0, %v2378
        %v2380 = vpop.f32.mrb[0].mxu0
        %2381 = vmatprep.mubr.bf16.mxu0 0
        %2382 = vmatmul.mubr.bf16.gmra.mrb[0].mxu0 %v2031
        %v2383 = vpop.f32.mrb[0].mxu0
        %v2384 = vadd.f32 0.0, %v2383
        %v2385 = vpop.f32.mrb[0].mxu0
        %v2386 = vpop.f32.mrb[0].mxu0
        %v2387 = vadd.f32 0.0, %v2386
        %v2388 = vpop.f32.mrb[0].mxu0
        %2389 = vmatprep.mubr.bf16.mxu0 0
        %2390 = vmatmul.mubr.bf16.gmra.mrb[0].mxu0 %v2034
        %v2391 = vpop.f32.mrb[0].mxu0
        %v2392 = vadd.f32 0.0, %v2391
        %v2393 = vpop.f32.mrb[0].mxu0
        %v2394 = vpop.f32.mrb[0].mxu0
        %v2395 = vadd.f32 0.0, %v2394
        %v2396 = vpop.f32.mrb[0].mxu0
        %2397 = vmatprep.mubr.bf16.mxu0 0
        %2398 = vmatmul.mubr.bf16.gmra.mrb[0].mxu0 %v2037
        %v2399 = vpop.f32.mrb[0].mxu0
        %v2400 = vadd.f32 0.0, %v2399
        %v2401 = vpop.f32.mrb[0].mxu0
        %v2402 = vpop.f32.mrb[0].mxu0
        %v2403 = vadd.f32 0.0, %v2402
        %v2404 = vpop.f32.mrb[0].mxu0
        %2405 = vmatprep.mubr.bf16.mxu0 0
        %2406 = vmatmul.mubr.bf16.gmra.mrb[0].mxu0 %v2040
        %v2407 = vpop.f32.mrb[0].mxu0
        %v2408 = vadd.f32 0.0, %v2407
        %v2409 = vpop.f32.mrb[0].mxu0
        %v2410 = vpop.f32.mrb[0].mxu0
        %v2411 = vadd.f32 0.0, %v2410
        %v2412 = vpop.f32.mrb[0].mxu0
        %2413 = vmatprep.mubr.bf16.mxu0 0
        %2414 = vmatmul.mubr.bf16.gmra.mrb[0].mxu0 %v2043
        %v2415 = vpop.f32.mrb[0].mxu0
        %v2416 = vadd.f32 0.0, %v2415
        %v2417 = vpop.f32.mrb[0].mxu0
        %v2418 = vpop.f32.mrb[0].mxu0
        %v2419 = vadd.f32 0.0, %v2418
        %v2420 = vpop.f32.mrb[0].mxu0
        %2421 = vmatprep.mubr.bf16.mxu0 0
        %2422 = vmatmul.mubr.bf16.gmra.mrb[0].mxu0 %v2046
        %v2423 = vpop.f32.mrb[0].mxu0
        %v2424 = vadd.f32 0.0, %v2423
        %v2425 = vpop.f32.mrb[0].mxu0
        %v2426 = vpop.f32.mrb[0].mxu0
        %v2427 = vadd.f32 0.0, %v2426
        %v2428 = vpop.f32.mrb[0].mxu0
        %2429 = vmatprep.mubr.bf16.mxu0 0
        %2430 = vmatmul.mubr.bf16.gmra.mrb[0].mxu0 %v2049
        %v2431 = vpop.f32.mrb[0].mxu0
        %v2432 = vadd.f32 0.0, %v2431
        %v2433 = vpop.f32.mrb[0].mxu0
        %v2434 = vpop.f32.mrb[0].mxu0
        %v2435 = vadd.f32 0.0, %v2434
        %v2436 = vpop.f32.mrb[0].mxu0
        %2437 = vmatprep.mubr.bf16.mxu0 0
        %2438 = vmatmul.mubr.bf16.gmra.mrb[0].mxu0 %v2052
        %v2439 = vpop.f32.mrb[0].mxu0
        %v2440 = vadd.f32 0.0, %v2439
        %v2441 = vpop.f32.mrb[0].mxu0
        %v2442 = vpop.f32.mrb[0].mxu0
        %v2443 = vadd.f32 0.0, %v2442
        %v2444 = vpop.f32.mrb[0].mxu0
        %2445 = vmatprep.mubr.bf16.mxu0 0
        %2446 = vmatmul.mubr.bf16.gmra.mrb[0].mxu0 %v2055
        %v2447 = vpop.f32.mrb[0].mxu0
        %v2448 = vadd.f32 0.0, %v2447
        %v2449 = vpop.f32.mrb[0].mxu0
        %v2450 = vpop.f32.mrb[0].mxu0
        %v2451 = vadd.f32 0.0, %v2450
        %v2452 = vpop.f32.mrb[0].mxu0
        %2453 = vmatprep.mubr.bf16.mxu0 0
        %2454 = vmatmul.mubr.bf16.gmra.mrb[0].mxu0 %v2058
        %v2455 = vpop.f32.mrb[0].mxu0
        %v2456 = vadd.f32 0.0, %v2455
        %v2457 = vpop.f32.mrb[0].mxu0
        %v2458 = vpop.f32.mrb[0].mxu0
        %v2459 = vadd.f32 0.0, %v2458
        %v2460 = vpop.f32.mrb[0].mxu0
        %2461 = vmatprep.mubr.bf16.mxu0 0
        %2462 = vmatmul.mubr.bf16.gmra.mrb[0].mxu0 %v2061
        %v2463 = vpop.f32.mrb[0].mxu0
        %v2464 = vadd.f32 0.0, %v2463
        %v2465 = vpop.f32.mrb[0].mxu0
        %v2466 = vpop.f32.mrb[0].mxu0
        %v2467 = vadd.f32 0.0, %v2466
        %v2468 = vpop.f32.mrb[0].mxu0
        %2469 = vmatprep.mubr.bf16.mxu0 0
        %2470 = vmatmul.mubr.bf16.gmra.mrb[0].mxu0 %v2064
        %v2471 = vpop.f32.mrb[0].mxu0
        %v2472 = vadd.f32 0.0, %v2471
        %v2473 = vpop.f32.mrb[0].mxu0
        %v2474 = vpop.f32.mrb[0].mxu0
        %v2475 = vadd.f32 0.0, %v2474
        %v2476 = vpop.f32.mrb[0].mxu0
        %2477 = vmatprep.mubr.bf16.mxu0 0
        %2478 = vmatmul.mubr.bf16.gmra.mrb[0].mxu0 %v2067
        %v2479 = vpop.f32.mrb[0].mxu0
        %v2480 = vadd.f32 0.0, %v2479
        %v2481 = vpop.f32.mrb[0].mxu0
        %v2482 = vpop.f32.mrb[0].mxu0
        %v2483 = vadd.f32 0.0, %v2482
        %v2484 = vpop.f32.mrb[0].mxu0
        %2485 = vdwg.mxu0
        %v2486 = vmax.f32 %v2113, %v2115
        %v2487 = vsel %vm1075, %v2336, -inf
        %v2488 = vmax.f32 %v2486, %v2487
        %2489 = vmax.xlane.f32.xlu0 %v2488
        %v2490 = vpop.xlane.xlu0 %2489
        %v2491 = vmax.f32 %v2117, %v2119
        %v2492 = vsel %vm1075, %v2339, -inf
        %v2493 = vmax.f32 %v2491, %v2492
        %2494 = vmax.xlane.f32.xlu0 %v2493
        %v2495 = vpop.xlane.xlu0 %2494
        %v2496 = vmax.f32 %v2123, %v2125
        %v2497 = vsel %vm1075, %v2344, -inf
        %v2498 = vmax.f32 %v2496, %v2497
        %2499 = vmax.xlane.f32.xlu0 %v2498
        %v2500 = vpop.xlane.xlu0 %2499
        %v2501 = vmax.f32 %v2127, %v2129
        %v2502 = vsel %vm1075, %v2347, -inf
        %v2503 = vmax.f32 %v2501, %v2502
        %2504 = vmax.xlane.f32.xlu0 %v2503
        %v2505 = vpop.xlane.xlu0 %2504
        %v2506 = vmax.f32 %v2133, %v2135
        %v2507 = vsel %vm1075, %v2352, -inf
        %v2508 = vmax.f32 %v2506, %v2507
        %2509 = vmax.xlane.f32.xlu0 %v2508
        %v2510 = vpop.xlane.xlu0 %2509
        %v2511 = vmax.f32 %v2137, %v2139
        %v2512 = vsel %vm1075, %v2355, -inf
        %v2513 = vmax.f32 %v2511, %v2512
        %2514 = vmax.xlane.f32.xlu0 %v2513
        %v2515 = vpop.xlane.xlu0 %2514
        %v2516 = vmax.f32 %v2143, %v2145
        %v2517 = vsel %vm1075, %v2360, -inf
        %v2518 = vmax.f32 %v2516, %v2517
        %2519 = vmax.xlane.f32.xlu0 %v2518
        %v2520 = vpop.xlane.xlu0 %2519
        %v2521 = vmax.f32 %v2147, %v2149
        %v2522 = vsel %vm1075, %v2363, -inf
        %v2523 = vmax.f32 %v2521, %v2522
        %2524 = vmax.xlane.f32.xlu0 %v2523
        %v2525 = vpop.xlane.xlu0 %2524
        %v2526 = vmax.f32 %v2153, %v2155
        %v2527 = vsel %vm1075, %v2368, -inf
        %v2528 = vmax.f32 %v2526, %v2527
        %2529 = vmax.xlane.f32.xlu0 %v2528
        %v2530 = vpop.xlane.xlu0 %2529
        %v2531 = vmax.f32 %v2157, %v2159
        %v2532 = vsel %vm1075, %v2371, -inf
        %v2533 = vmax.f32 %v2531, %v2532
        %2534 = vmax.xlane.f32.xlu0 %v2533
        %v2535 = vpop.xlane.xlu0 %2534
        %v2536 = vmax.f32 %v2163, %v2165
        %v2537 = vsel %vm1075, %v2376, -inf
        %v2538 = vmax.f32 %v2536, %v2537
        %2539 = vmax.xlane.f32.xlu0 %v2538
        %v2540 = vpop.xlane.xlu0 %2539
        %v2541 = vmax.f32 %v2167, %v2169
        %v2542 = vsel %vm1075, %v2379, -inf
        %v2543 = vmax.f32 %v2541, %v2542
        %2544 = vmax.xlane.f32.xlu0 %v2543
        %v2545 = vpop.xlane.xlu0 %2544
        %v2546 = vmax.f32 %v2173, %v2175
        %v2547 = vsel %vm1075, %v2384, -inf
        %v2548 = vmax.f32 %v2546, %v2547
        %2549 = vmax.xlane.f32.xlu0 %v2548
        %v2550 = vpop.xlane.xlu0 %2549
        %v2551 = vmax.f32 %v2177, %v2179
        %v2552 = vsel %vm1075, %v2387, -inf
        %v2553 = vmax.f32 %v2551, %v2552
        %2554 = vmax.xlane.f32.xlu0 %v2553
        %v2555 = vpop.xlane.xlu0 %2554
        %v2556 = vmax.f32 %v2183, %v2185
        %v2557 = vsel %vm1075, %v2392, -inf
        %v2558 = vmax.f32 %v2556, %v2557
        %2559 = vmax.xlane.f32.xlu0 %v2558
        %v2560 = vpop.xlane.xlu0 %2559
        %v2561 = vmax.f32 %v2187, %v2189
        %v2562 = vsel %vm1075, %v2395, -inf
        %v2563 = vmax.f32 %v2561, %v2562
        %2564 = vmax.xlane.f32.xlu0 %v2563
        %v2565 = vpop.xlane.xlu0 %2564
        %v2566 = vmax.f32 %v2193, %v2195
        %v2567 = vsel %vm1075, %v2400, -inf
        %v2568 = vmax.f32 %v2566, %v2567
        %2569 = vmax.xlane.f32.xlu0 %v2568
        %v2570 = vpop.xlane.xlu0 %2569
        %v2571 = vmax.f32 %v2197, %v2199
        %v2572 = vsel %vm1075, %v2403, -inf
        %v2573 = vmax.f32 %v2571, %v2572
        %2574 = vmax.xlane.f32.xlu0 %v2573
        %v2575 = vpop.xlane.xlu0 %2574
        %v2576 = vmax.f32 %v2203, %v2205
        %v2577 = vsel %vm1075, %v2408, -inf
        %v2578 = vmax.f32 %v2576, %v2577
        %2579 = vmax.xlane.f32.xlu0 %v2578
        %v2580 = vpop.xlane.xlu0 %2579
        %v2581 = vmax.f32 %v2207, %v2209
        %v2582 = vsel %vm1075, %v2411, -inf
        %v2583 = vmax.f32 %v2581, %v2582
        %2584 = vmax.xlane.f32.xlu0 %v2583
        %v2585 = vpop.xlane.xlu0 %2584
        %v2586 = vmax.f32 %v2213, %v2215
        %v2587 = vsel %vm1075, %v2416, -inf
        %v2588 = vmax.f32 %v2586, %v2587
        %2589 = vmax.xlane.f32.xlu0 %v2588
        %v2590 = vpop.xlane.xlu0 %2589
        %v2591 = vmax.f32 %v2217, %v2219
        %v2592 = vsel %vm1075, %v2419, -inf
        %v2593 = vmax.f32 %v2591, %v2592
        %2594 = vmax.xlane.f32.xlu0 %v2593
        %v2595 = vpop.xlane.xlu0 %2594
        %v2596 = vmax.f32 %v2223, %v2225
        %v2597 = vsel %vm1075, %v2424, -inf
        %v2598 = vmax.f32 %v2596, %v2597
        %2599 = vmax.xlane.f32.xlu0 %v2598
        %v2600 = vpop.xlane.xlu0 %2599
        %v2601 = vmax.f32 %v2227, %v2229
        %v2602 = vsel %vm1075, %v2427, -inf
        %v2603 = vmax.f32 %v2601, %v2602
        %2604 = vmax.xlane.f32.xlu0 %v2603
        %v2605 = vpop.xlane.xlu0 %2604
        %v2606 = vmax.f32 %v2233, %v2235
        %v2607 = vsel %vm1075, %v2432, -inf
        %v2608 = vmax.f32 %v2606, %v2607
        %2609 = vmax.xlane.f32.xlu0 %v2608
        %v2610 = vpop.xlane.xlu0 %2609
        %v2611 = vmax.f32 %v2237, %v2239
        %v2612 = vsel %vm1075, %v2435, -inf
        %v2613 = vmax.f32 %v2611, %v2612
        %2614 = vmax.xlane.f32.xlu0 %v2613
        %v2615 = vpop.xlane.xlu0 %2614
        %v2616 = vmax.f32 %v2243, %v2245
        %v2617 = vsel %vm1075, %v2440, -inf
        %v2618 = vmax.f32 %v2616, %v2617
        %2619 = vmax.xlane.f32.xlu0 %v2618
        %v2620 = vpop.xlane.xlu0 %2619
        %v2621 = vmax.f32 %v2247, %v2249
        %v2622 = vsel %vm1075, %v2443, -inf
        %v2623 = vmax.f32 %v2621, %v2622
        %2624 = vmax.xlane.f32.xlu0 %v2623
        %v2625 = vpop.xlane.xlu0 %2624
        %v2626 = vmax.f32 %v2253, %v2255
        %v2627 = vsel %vm1075, %v2448, -inf
        %v2628 = vmax.f32 %v2626, %v2627
        %2629 = vmax.xlane.f32.xlu0 %v2628
        %v2630 = vpop.xlane.xlu0 %2629
        %v2631 = vmax.f32 %v2257, %v2259
        %v2632 = vsel %vm1075, %v2451, -inf
        %v2633 = vmax.f32 %v2631, %v2632
        %2634 = vmax.xlane.f32.xlu0 %v2633
        %v2635 = vpop.xlane.xlu0 %2634
        %v2636 = vmax.f32 %v2263, %v2265
        %v2637 = vsel %vm1075, %v2456, -inf
        %v2638 = vmax.f32 %v2636, %v2637
        %2639 = vmax.xlane.f32.xlu0 %v2638
        %v2640 = vpop.xlane.xlu0 %2639
        %v2641 = vmax.f32 %v2267, %v2269
        %v2642 = vsel %vm1075, %v2459, -inf
        %v2643 = vmax.f32 %v2641, %v2642
        %2644 = vmax.xlane.f32.xlu0 %v2643
        %v2645 = vpop.xlane.xlu0 %2644
        %v2646 = vmax.f32 %v2273, %v2275
        %v2647 = vsel %vm1075, %v2464, -inf
        %v2648 = vmax.f32 %v2646, %v2647
        %2649 = vmax.xlane.f32.xlu0 %v2648
        %v2650 = vpop.xlane.xlu0 %2649
        %v2651 = vmax.f32 %v2277, %v2279
        %v2652 = vsel %vm1075, %v2467, -inf
        %v2653 = vmax.f32 %v2651, %v2652
        %2654 = vmax.xlane.f32.xlu0 %v2653
        %v2655 = vpop.xlane.xlu0 %2654
        %v2656 = vmax.f32 %v2283, %v2285
        %v2657 = vsel %vm1075, %v2472, -inf
        %v2658 = vmax.f32 %v2656, %v2657
        %2659 = vmax.xlane.f32.xlu0 %v2658
        %v2660 = vpop.xlane.xlu0 %2659
        %v2661 = vmax.f32 %v2287, %v2289
        %v2662 = vsel %vm1075, %v2475, -inf
        %v2663 = vmax.f32 %v2661, %v2662
        %2664 = vmax.xlane.f32.xlu0 %v2663
        %v2665 = vpop.xlane.xlu0 %2664
        %v2666 = vmax.f32 %v2293, %v2295
        %v2667 = vsel %vm1075, %v2480, -inf
        %v2668 = vmax.f32 %v2666, %v2667
        %2669 = vmax.xlane.f32.xlu0 %v2668
        %v2670 = vpop.xlane.xlu0 %2669
        %v2671 = vsel %vm656, %v2297, -inf
        %v2672 = vsel %vm656, %v2299, -inf
        %v2673 = vmax.f32 %v2671, %v2672
        %v2674 = vsel %vm1263, %v2483, -inf
        %v2675 = vmax.f32 %v2673, %v2674
        %2676 = vmax.xlane.f32.xlu0 %v2675
        %v2677 = vpop.xlane.xlu0 %2676
        %v2678 = vsub.f32 %v2113, %v2490
        %v2679 = vsub.f32 %v2115, %v2490
        %v2680 = vsub.f32 %v2336, %v2490
        %v2681 = vsub.f32 %v2117, %v2495
        %v2682 = vsub.f32 %v2119, %v2495
        %v2683 = vsub.f32 %v2339, %v2495
        %v2684 = vsub.f32 %v2123, %v2500
        %v2685 = vsub.f32 %v2125, %v2500
        %v2686 = vsub.f32 %v2344, %v2500
        %v2687 = vsub.f32 %v2127, %v2505
        %v2688 = vsub.f32 %v2129, %v2505
        %v2689 = vsub.f32 %v2347, %v2505
        %v2690 = vsub.f32 %v2133, %v2510
        %v2691 = vsub.f32 %v2135, %v2510
        %v2692 = vsub.f32 %v2352, %v2510
        %v2693 = vsub.f32 %v2137, %v2515
        %v2694 = vsub.f32 %v2139, %v2515
        %v2695 = vsub.f32 %v2355, %v2515
        %v2696 = vsub.f32 %v2143, %v2520
        %v2697 = vsub.f32 %v2145, %v2520
        %v2698 = vsub.f32 %v2360, %v2520
        %v2699 = vsub.f32 %v2147, %v2525
        %v2700 = vsub.f32 %v2149, %v2525
        %v2701 = vsub.f32 %v2363, %v2525
        %v2702 = vsub.f32 %v2153, %v2530
        %v2703 = vsub.f32 %v2155, %v2530
        %v2704 = vsub.f32 %v2368, %v2530
        %v2705 = vsub.f32 %v2157, %v2535
        %v2706 = vsub.f32 %v2159, %v2535
        %v2707 = vsub.f32 %v2371, %v2535
        %v2708 = vsub.f32 %v2163, %v2540
        %v2709 = vsub.f32 %v2165, %v2540
        %v2710 = vsub.f32 %v2376, %v2540
        %v2711 = vsub.f32 %v2167, %v2545
        %v2712 = vsub.f32 %v2169, %v2545
        %v2713 = vsub.f32 %v2379, %v2545
        %v2714 = vsub.f32 %v2173, %v2550
        %v2715 = vsub.f32 %v2175, %v2550
        %v2716 = vsub.f32 %v2384, %v2550
        %v2717 = vsub.f32 %v2177, %v2555
        %v2718 = vsub.f32 %v2179, %v2555
        %v2719 = vsub.f32 %v2387, %v2555
        %v2720 = vsub.f32 %v2183, %v2560
        %v2721 = vsub.f32 %v2185, %v2560
        %v2722 = vsub.f32 %v2392, %v2560
        %v2723 = vsub.f32 %v2187, %v2565
        %v2724 = vsub.f32 %v2189, %v2565
        %v2725 = vsub.f32 %v2395, %v2565
        %v2726 = vsub.f32 %v2193, %v2570
        %v2727 = vsub.f32 %v2195, %v2570
        %v2728 = vsub.f32 %v2400, %v2570
        %v2729 = vsub.f32 %v2197, %v2575
        %v2730 = vsub.f32 %v2199, %v2575
        %v2731 = vsub.f32 %v2403, %v2575
        %v2732 = vsub.f32 %v2203, %v2580
        %v2733 = vsub.f32 %v2205, %v2580
        %v2734 = vsub.f32 %v2408, %v2580
        %v2735 = vsub.f32 %v2207, %v2585
        %v2736 = vsub.f32 %v2209, %v2585
        %v2737 = vsub.f32 %v2411, %v2585
        %v2738 = vsub.f32 %v2213, %v2590
        %v2739 = vsub.f32 %v2215, %v2590
        %v2740 = vsub.f32 %v2416, %v2590
        %v2741 = vsub.f32 %v2217, %v2595
        %v2742 = vsub.f32 %v2219, %v2595
        %v2743 = vsub.f32 %v2419, %v2595
        %v2744 = vsub.f32 %v2223, %v2600
        %v2745 = vsub.f32 %v2225, %v2600
        %v2746 = vsub.f32 %v2424, %v2600
        %v2747 = vsub.f32 %v2227, %v2605
        %v2748 = vsub.f32 %v2229, %v2605
        %v2749 = vsub.f32 %v2427, %v2605
        %v2750 = vsub.f32 %v2233, %v2610
        %v2751 = vsub.f32 %v2235, %v2610
        %v2752 = vsub.f32 %v2432, %v2610
        %v2753 = vsub.f32 %v2237, %v2615
        %v2754 = vsub.f32 %v2239, %v2615
        %v2755 = vsub.f32 %v2435, %v2615
        %v2756 = vsub.f32 %v2243, %v2620
        %v2757 = vsub.f32 %v2245, %v2620
        %v2758 = vsub.f32 %v2440, %v2620
        %v2759 = vsub.f32 %v2247, %v2625
        %v2760 = vsub.f32 %v2249, %v2625
        %v2761 = vsub.f32 %v2443, %v2625
        %v2762 = vsub.f32 %v2253, %v2630
        %v2763 = vsub.f32 %v2255, %v2630
        %v2764 = vsub.f32 %v2448, %v2630
        %v2765 = vsub.f32 %v2257, %v2635
        %v2766 = vsub.f32 %v2259, %v2635
        %v2767 = vsub.f32 %v2451, %v2635
        %v2768 = vsub.f32 %v2263, %v2640
        %v2769 = vsub.f32 %v2265, %v2640
        %v2770 = vsub.f32 %v2456, %v2640
        %v2771 = vsub.f32 %v2267, %v2645
        %v2772 = vsub.f32 %v2269, %v2645
        %v2773 = vsub.f32 %v2459, %v2645
        %v2774 = vsub.f32 %v2273, %v2650
        %v2775 = vsub.f32 %v2275, %v2650
        %v2776 = vsub.f32 %v2464, %v2650
        %v2777 = vsub.f32 %v2277, %v2655
        %v2778 = vsub.f32 %v2279, %v2655
        %v2779 = vsub.f32 %v2467, %v2655
        %v2780 = vsub.f32 %v2283, %v2660
        %v2781 = vsub.f32 %v2285, %v2660
        %v2782 = vsub.f32 %v2472, %v2660
        %v2783 = vsub.f32 %v2287, %v2665
        %v2784 = vsub.f32 %v2289, %v2665
        %v2785 = vsub.f32 %v2475, %v2665
        %v2786 = vsub.f32 %v2293, %v2670
        %v2787 = vsub.f32 %v2295, %v2670
        %v2788 = vsub.f32 %v2480, %v2670
        %v2789 = vsub.f32 %v2297, %v2677
        %v2790 = vsub.f32 %v2299, %v2677
        %v2791 = vsub.f32 %v2483, %v2677
        %v2792 = vpack.c.bf16 %v2681, %v2678
        %v2793 = vpack.c.bf16 %v2682, %v2679
        %v2794 = vpack.c.bf16 %v2683, %v2680
        %v2795 = vpack.c.bf16 %v2687, %v2684
        %v2796 = vpack.c.bf16 %v2688, %v2685
        %v2797 = vpack.c.bf16 %v2689, %v2686
        %v2798 = vpack.c.bf16 %v2693, %v2690
        %v2799 = vpack.c.bf16 %v2694, %v2691
        %v2800 = vpack.c.bf16 %v2695, %v2692
        %v2801 = vpack.c.bf16 %v2699, %v2696
        %v2802 = vpack.c.bf16 %v2700, %v2697
        %v2803 = vpack.c.bf16 %v2701, %v2698
        %v2804 = vpack.c.bf16 %v2705, %v2702
        %v2805 = vpack.c.bf16 %v2706, %v2703
        %v2806 = vpack.c.bf16 %v2707, %v2704
        %v2807 = vpack.c.bf16 %v2711, %v2708
        %v2808 = vpack.c.bf16 %v2712, %v2709
        %v2809 = vpack.c.bf16 %v2713, %v2710
        %v2810 = vpack.c.bf16 %v2717, %v2714
        %v2811 = vpack.c.bf16 %v2718, %v2715
        %v2812 = vpack.c.bf16 %v2719, %v2716
        %v2813 = vpack.c.bf16 %v2723, %v2720
        %v2814 = vpack.c.bf16 %v2724, %v2721
        %v2815 = vpack.c.bf16 %v2725, %v2722
        %v2816 = vpack.c.bf16 %v2729, %v2726
        %v2817 = vpack.c.bf16 %v2730, %v2727
        %v2818 = vpack.c.bf16 %v2731, %v2728
        %v2819 = vpack.c.bf16 %v2735, %v2732
        %v2820 = vpack.c.bf16 %v2736, %v2733
        %v2821 = vpack.c.bf16 %v2737, %v2734
        %v2822 = vpack.c.bf16 %v2741, %v2738
        %v2823 = vpack.c.bf16 %v2742, %v2739
        %v2824 = vpack.c.bf16 %v2743, %v2740
        %v2825 = vpack.c.bf16 %v2747, %v2744
        %v2826 = vpack.c.bf16 %v2748, %v2745
        %v2827 = vpack.c.bf16 %v2749, %v2746
        %v2828 = vpack.c.bf16 %v2753, %v2750
        %v2829 = vpack.c.bf16 %v2754, %v2751
        %v2830 = vpack.c.bf16 %v2755, %v2752
        %v2831 = vpack.c.bf16 %v2759, %v2756
        %v2832 = vpack.c.bf16 %v2760, %v2757
        %v2833 = vpack.c.bf16 %v2761, %v2758
        %v2834 = vpack.c.bf16 %v2765, %v2762
        %v2835 = vpack.c.bf16 %v2766, %v2763
        %v2836 = vpack.c.bf16 %v2767, %v2764
        %v2837 = vpack.c.bf16 %v2771, %v2768
        %v2838 = vpack.c.bf16 %v2772, %v2769
        %v2839 = vpack.c.bf16 %v2773, %v2770
        %v2840 = vpack.c.bf16 %v2777, %v2774
        %v2841 = vpack.c.bf16 %v2778, %v2775
        %v2842 = vpack.c.bf16 %v2779, %v2776
        %v2843 = vpack.c.bf16 %v2783, %v2780
        %v2844 = vpack.c.bf16 %v2784, %v2781
        %v2845 = vpack.c.bf16 %v2785, %v2782
        %v2846 = vpack.c.bf16 %v2789, %v2786
        %v2847 = vpack.c.bf16 %v2790, %v2787
        %v2848 = vpack.c.bf16 %v2791, %v2788
        %v2850 = vmul.bf16 %v2792, 1069105081
        %v2851 = vpow.bf16.pop %v2850
        %v2853 = vmul.bf16 %v2793, 1069105081
        %v2854 = vpow.bf16.pop %v2853
        %v2856 = vmul.bf16 %v2794, 1069105081
        %v2857 = vpow.bf16.pop %v2856
        %v2859 = vmul.bf16 %v2795, 1069105081
        %v2860 = vpow.bf16.pop %v2859
        %v2862 = vmul.bf16 %v2796, 1069105081
        %v2863 = vpow.bf16.pop %v2862
        %v2865 = vmul.bf16 %v2797, 1069105081
        %v2866 = vpow.bf16.pop %v2865
        %v2868 = vmul.bf16 %v2798, 1069105081
        %v2869 = vpow.bf16.pop %v2868
        %v2871 = vmul.bf16 %v2799, 1069105081
        %v2872 = vpow.bf16.pop %v2871
        %v2874 = vmul.bf16 %v2800, 1069105081
        %v2875 = vpow.bf16.pop %v2874
        %v2877 = vmul.bf16 %v2801, 1069105081
        %v2878 = vpow.bf16.pop %v2877
        %v2880 = vmul.bf16 %v2802, 1069105081
        %v2881 = vpow.bf16.pop %v2880
        %v2883 = vmul.bf16 %v2803, 1069105081
        %v2884 = vpow.bf16.pop %v2883
        %v2886 = vmul.bf16 %v2804, 1069105081
        %v2887 = vpow.bf16.pop %v2886
        %v2889 = vmul.bf16 %v2805, 1069105081
        %v2890 = vpow.bf16.pop %v2889
        %v2892 = vmul.bf16 %v2806, 1069105081
        %v2893 = vpow.bf16.pop %v2892
        %v2895 = vmul.bf16 %v2807, 1069105081
        %v2896 = vpow.bf16.pop %v2895
        %v2898 = vmul.bf16 %v2808, 1069105081
        %v2899 = vpow.bf16.pop %v2898
        %v2901 = vmul.bf16 %v2809, 1069105081
        %v2902 = vpow.bf16.pop %v2901
        %v2904 = vmul.bf16 %v2810, 1069105081
        %v2905 = vpow.bf16.pop %v2904
        %v2907 = vmul.bf16 %v2811, 1069105081
        %v2908 = vpow.bf16.pop %v2907
        %v2910 = vmul.bf16 %v2812, 1069105081
        %v2911 = vpow.bf16.pop %v2910
        %v2913 = vmul.bf16 %v2813, 1069105081
        %v2914 = vpow.bf16.pop %v2913
        %v2916 = vmul.bf16 %v2814, 1069105081
        %v2917 = vpow.bf16.pop %v2916
        %v2919 = vmul.bf16 %v2815, 1069105081
        %v2920 = vpow.bf16.pop %v2919
        %v2922 = vmul.bf16 %v2816, 1069105081
        %v2923 = vpow.bf16.pop %v2922
        %v2925 = vmul.bf16 %v2817, 1069105081
        %v2926 = vpow.bf16.pop %v2925
        %v2928 = vmul.bf16 %v2818, 1069105081
        %v2929 = vpow.bf16.pop %v2928
        %v2931 = vmul.bf16 %v2819, 1069105081
        %v2932 = vpow.bf16.pop %v2931
        %v2934 = vmul.bf16 %v2820, 1069105081
        %v2935 = vpow.bf16.pop %v2934
        %v2937 = vmul.bf16 %v2821, 1069105081
        %v2938 = vpow.bf16.pop %v2937
        %v2940 = vmul.bf16 %v2822, 1069105081
        %v2941 = vpow.bf16.pop %v2940
        %v2943 = vmul.bf16 %v2823, 1069105081
        %v2944 = vpow.bf16.pop %v2943
        %v2946 = vmul.bf16 %v2824, 1069105081
        %v2947 = vpow.bf16.pop %v2946
        %v2949 = vmul.bf16 %v2825, 1069105081
        %v2950 = vpow.bf16.pop %v2949
        %v2952 = vmul.bf16 %v2826, 1069105081
        %v2953 = vpow.bf16.pop %v2952
        %v2955 = vmul.bf16 %v2827, 1069105081
        %v2956 = vpow.bf16.pop %v2955
        %v2958 = vmul.bf16 %v2828, 1069105081
        %v2959 = vpow.bf16.pop %v2958
        %v2961 = vmul.bf16 %v2829, 1069105081
        %v2962 = vpow.bf16.pop %v2961
        %v2964 = vmul.bf16 %v2830, 1069105081
        %v2965 = vpow.bf16.pop %v2964
        %v2967 = vmul.bf16 %v2831, 1069105081
        %v2968 = vpow.bf16.pop %v2967
        %v2970 = vmul.bf16 %v2832, 1069105081
        %v2971 = vpow.bf16.pop %v2970
        %v2973 = vmul.bf16 %v2833, 1069105081
        %v2974 = vpow.bf16.pop %v2973
        %v2976 = vmul.bf16 %v2834, 1069105081
        %v2977 = vpow.bf16.pop %v2976
        %v2979 = vmul.bf16 %v2835, 1069105081
        %v2980 = vpow.bf16.pop %v2979
        %v2982 = vmul.bf16 %v2836, 1069105081
        %v2983 = vpow.bf16.pop %v2982
        %v2985 = vmul.bf16 %v2837, 1069105081
        %v2986 = vpow.bf16.pop %v2985
        %v2988 = vmul.bf16 %v2838, 1069105081
        %v2989 = vpow.bf16.pop %v2988
        %v2991 = vmul.bf16 %v2839, 1069105081
        %v2992 = vpow.bf16.pop %v2991
        %v2994 = vmul.bf16 %v2840, 1069105081
        %v2995 = vpow.bf16.pop %v2994
        %v2997 = vmul.bf16 %v2841, 1069105081
        %v2998 = vpow.bf16.pop %v2997
        %v3000 = vmul.bf16 %v2842, 1069105081
        %v3001 = vpow.bf16.pop %v3000
        %v3003 = vmul.bf16 %v2843, 1069105081
        %v3004 = vpow.bf16.pop %v3003
        %v3006 = vmul.bf16 %v2844, 1069105081
        %v3007 = vpow.bf16.pop %v3006
        %v3009 = vmul.bf16 %v2845, 1069105081
        %v3010 = vpow.bf16.pop %v3009
        %v3012 = vmul.bf16 %v2846, 1069105081
        %v3013 = vpow.bf16.pop %v3012
        %v3015 = vmul.bf16 %v2847, 1069105081
        %v3016 = vpow.bf16.pop %v3015
        %v3018 = vmul.bf16 %v2848, 1069105081
        %v3019 = vpow.bf16.pop %v3018
        %v3020 = vpack.c.bf16 %v482, %v482
        %v3021 = vpack.c.bf16 %v484, %v484
        %v3022 = vpack.c.bf16 %v540, %v540
        %v3024 = vsel %vm1075, %v3022, 0
        %v3027 = vsel %vm1075, %v2857, 0
        %v3030 = vsel %vm1075, %v2866, 0
        %v3033 = vsel %vm1075, %v2875, 0
        %v3036 = vsel %vm1075, %v2884, 0
        %v3039 = vsel %vm1075, %v2893, 0
        %v3042 = vsel %vm1075, %v2902, 0
        %v3045 = vsel %vm1075, %v2911, 0
        %v3048 = vsel %vm1075, %v2920, 0
        %v3051 = vsel %vm1075, %v2929, 0
        %v3054 = vsel %vm1075, %v2938, 0
        %v3057 = vsel %vm1075, %v2947, 0
        %v3060 = vsel %vm1075, %v2956, 0
        %v3063 = vsel %vm1075, %v2965, 0
        %v3066 = vsel %vm1075, %v2974, 0
        %v3069 = vsel %vm1075, %v2983, 0
        %v3072 = vsel %vm1075, %v2992, 0
        %v3075 = vsel %vm1075, %v3001, 0
        %v3078 = vsel %vm1075, %v3010, 0
        %v3081 = vsel %vm1075, %v3019, 0
        %3083 = vmatprep.subr.bf16.mxu0 %v2854
        %3084 = vmatpush1.bf16.xpose.msra.mxu0 %v2851
        %3085 = vmatprep.subr.bf16.mxu0 %v2863
        %3086 = vmatpush1.bf16.xpose.msra.mxu0 %v2860
        %3087 = vmatprep.subr.bf16.mxu0 %v2872
        %3088 = vmatpush1.bf16.xpose.msra.mxu0 %v2869
        %3089 = vmatprep.subr.bf16.mxu0 %v2881
        %3090 = vmatpush1.bf16.xpose.msra.mxu0 %v2878
        %3091 = vmatprep.subr.bf16.mxu0 %v2890
        %3092 = vmatpush1.bf16.xpose.msra.mxu0 %v2887
        %3093 = vmatprep.subr.bf16.mxu0 %v2899
        %3094 = vmatpush1.bf16.xpose.msra.mxu0 %v2896
        %3095 = vmatprep.subr.bf16.mxu0 %v2908
        %3096 = vmatpush1.bf16.xpose.msra.mxu0 %v2905
        %3097 = vmatprep.subr.bf16.mxu0 %v2917
        %3098 = vmatpush1.bf16.xpose.msra.mxu0 %v2914
        %3099 = vmatprep.subr.bf16.mxu0 %v2926
        %3100 = vmatpush1.bf16.xpose.msra.mxu0 %v2923
        %3101 = vmatprep.subr.bf16.mxu0 %v2935
        %3102 = vmatpush1.bf16.xpose.msra.mxu0 %v2932
        %3103 = vmatprep.subr.bf16.mxu0 %v2944
        %3104 = vmatpush1.bf16.xpose.msra.mxu0 %v2941
        %3105 = vmatprep.subr.bf16.mxu0 %v2953
        %3106 = vmatpush1.bf16.xpose.msra.mxu0 %v2950
        %3107 = vmatprep.subr.bf16.mxu0 %v2962
        %3108 = vmatpush1.bf16.xpose.msra.mxu0 %v2959
        %3109 = vmatprep.subr.bf16.mxu0 %v2971
        %3110 = vmatpush1.bf16.xpose.msra.mxu0 %v2968
        %3111 = vmatprep.subr.bf16.mxu0 %v2980
        %3112 = vmatpush1.bf16.xpose.msra.mxu0 %v2977
        %3113 = vmatprep.subr.bf16.mxu0 %v2989
        %3114 = vmatpush1.bf16.xpose.msra.mxu0 %v2986
        %3115 = vmatprep.mubr.bf16.mxu0 %v3021
        %3116 = vmatmul.mubr.bf16.gmra.mrb[0].mxu0 %v3020
        %v3117 = vpop.f32.mrb[0].mxu0
        %v3118 = vadd.f32 0.0, %v3117
        %v3119 = vpop.f32.mrb[0].mxu0
        %v3120 = vadd.f32 0.0, %v3119
        %v3121 = vpop.f32.mrb[0].mxu0
        %v3122 = vpop.f32.mrb[0].mxu0
        %3123 = vdwg.mxu0
        %3124 = vmatprep.subr.bf16.mxu0 0
        %3125 = vmatpush1.bf16.xpose.msra.mxu0 %v3027
        %3126 = vmatprep.subr.bf16.mxu0 0
        %3127 = vmatpush1.bf16.xpose.msra.mxu0 %v3030
        %3128 = vmatprep.subr.bf16.mxu0 0
        %3129 = vmatpush1.bf16.xpose.msra.mxu0 %v3033
        %3130 = vmatprep.subr.bf16.mxu0 0
        %3131 = vmatpush1.bf16.xpose.msra.mxu0 %v3036
        %3132 = vmatprep.subr.bf16.mxu0 0
        %3133 = vmatpush1.bf16.xpose.msra.mxu0 %v3039
        %3134 = vmatprep.subr.bf16.mxu0 0
        %3135 = vmatpush1.bf16.xpose.msra.mxu0 %v3042
        %3136 = vmatprep.subr.bf16.mxu0 0
        %3137 = vmatpush1.bf16.xpose.msra.mxu0 %v3045
        %3138 = vmatprep.subr.bf16.mxu0 0
        %3139 = vmatpush1.bf16.xpose.msra.mxu0 %v3048
        %3140 = vmatprep.subr.bf16.mxu0 0
        %3141 = vmatpush1.bf16.xpose.msra.mxu0 %v3051
        %3142 = vmatprep.subr.bf16.mxu0 0
        %3143 = vmatpush1.bf16.xpose.msra.mxu0 %v3054
        %3144 = vmatprep.subr.bf16.mxu0 0
        %3145 = vmatpush1.bf16.xpose.msra.mxu0 %v3057
        %3146 = vmatprep.subr.bf16.mxu0 0
        %3147 = vmatpush1.bf16.xpose.msra.mxu0 %v3060
        %3148 = vmatprep.subr.bf16.mxu0 0
        %3149 = vmatpush1.bf16.xpose.msra.mxu0 %v3063
        %3150 = vmatprep.subr.bf16.mxu0 0
        %3151 = vmatpush1.bf16.xpose.msra.mxu0 %v3066
        %3152 = vmatprep.subr.bf16.mxu0 0
        %3153 = vmatpush1.bf16.xpose.msra.mxu0 %v3069
        %3154 = vmatprep.subr.bf16.mxu0 0
        %3155 = vmatpush1.bf16.xpose.msra.mxu0 %v3072
        %3156 = vmatprep.mubr.bf16.mxu0 0
        %3157 = vmatmul.mubr.bf16.gmra.mrb[0].mxu0 %v3024
        %v3158 = vpop.f32.mrb[0].mxu0
        %v3159 = vadd.f32 %v3118, %v3158
        %v3160 = vpop.f32.mrb[0].mxu0
        %v3161 = vadd.f32 %v3120, %v3160
        %v3162 = vpop.f32.mrb[0].mxu0
        %v3163 = vpop.f32.mrb[0].mxu0
        %3164 = vdwg.mxu0
        %3165 = vmatprep.subr.bf16.mxu0 %v2998
        %3166 = vmatpush1.bf16.xpose.msra.mxu0 %v2995
        %3167 = vmatprep.subr.bf16.mxu0 %v3007
        %3168 = vmatpush1.bf16.xpose.msra.mxu0 %v3004
        %3169 = vmatprep.subr.bf16.mxu0 %v3016
        %3170 = vmatpush1.bf16.xpose.msra.mxu0 %v3013
        %3171 = vmatprep.subr.bf16.mxu0 0
        %3172 = vmatpush1.bf16.xpose.msra.mxu0 0
        %3173 = vmatprep.subr.bf16.mxu0 0
        %3174 = vmatpush1.bf16.xpose.msra.mxu0 0
        %3175 = vmatprep.subr.bf16.mxu0 0
        %3176 = vmatpush1.bf16.xpose.msra.mxu0 0
        %3177 = vmatprep.subr.bf16.mxu0 0
        %3178 = vmatpush1.bf16.xpose.msra.mxu0 0
        %3179 = vmatprep.subr.bf16.mxu0 0
        %3180 = vmatpush1.bf16.xpose.msra.mxu0 0
        %3181 = vmatprep.subr.bf16.mxu0 0
        %3182 = vmatpush1.bf16.xpose.msra.mxu0 0
        %3183 = vmatprep.subr.bf16.mxu0 0
        %3184 = vmatpush1.bf16.xpose.msra.mxu0 0
        %3185 = vmatprep.subr.bf16.mxu0 0
        %3186 = vmatpush1.bf16.xpose.msra.mxu0 0
        %3187 = vmatprep.subr.bf16.mxu0 0
        %3188 = vmatpush1.bf16.xpose.msra.mxu0 0
        %3189 = vmatprep.subr.bf16.mxu0 0
        %3190 = vmatpush1.bf16.xpose.msra.mxu0 0
        %3191 = vmatprep.subr.bf16.mxu0 0
        %3192 = vmatpush1.bf16.xpose.msra.mxu0 0
        %3193 = vmatprep.subr.bf16.mxu0 0
        %3194 = vmatpush1.bf16.xpose.msra.mxu0 0
        %3195 = vmatprep.subr.bf16.mxu0 0
        %3196 = vmatpush1.bf16.xpose.msra.mxu0 0
        %3197 = vmatprep.mubr.bf16.mxu0 %v3021
        %3198 = vmatmul.mubr.bf16.gmra.mrb[0].mxu0 %v3020
        %v3199 = vpop.f32.mrb[0].mxu0
        %v3200 = vadd.f32 0.0, %v3199
        %v3201 = vpop.f32.mrb[0].mxu0
        %v3202 = vpop.f32.mrb[0].mxu0
        %v3203 = vpop.f32.mrb[0].mxu0
        %3204 = vdwg.mxu0
        %3205 = vmatprep.subr.bf16.mxu0 0
        %3206 = vmatpush1.bf16.xpose.msra.mxu0 %v3075
        %3207 = vmatprep.subr.bf16.mxu0 0
        %3208 = vmatpush1.bf16.xpose.msra.mxu0 %v3078
        %3209 = vmatprep.subr.bf16.mxu0 0
        %3210 = vmatpush1.bf16.xpose.msra.mxu0 %v3081
        %3211 = vmatprep.subr.bf16.mxu0 0
        %3212 = vmatpush1.bf16.xpose.msra.mxu0 0
        %3213 = vmatprep.subr.bf16.mxu0 0
        %3214 = vmatpush1.bf16.xpose.msra.mxu0 0
        %3215 = vmatprep.subr.bf16.mxu0 0
        %3216 = vmatpush1.bf16.xpose.msra.mxu0 0
        %3217 = vmatprep.subr.bf16.mxu0 0
        %3218 = vmatpush1.bf16.xpose.msra.mxu0 0
        %3219 = vmatprep.subr.bf16.mxu0 0
        %3220 = vmatpush1.bf16.xpose.msra.mxu0 0
        %3221 = vmatprep.subr.bf16.mxu0 0
        %3222 = vmatpush1.bf16.xpose.msra.mxu0 0
        %3223 = vmatprep.subr.bf16.mxu0 0
        %3224 = vmatpush1.bf16.xpose.msra.mxu0 0
        %3225 = vmatprep.subr.bf16.mxu0 0
        %3226 = vmatpush1.bf16.xpose.msra.mxu0 0
        %3227 = vmatprep.subr.bf16.mxu0 0
        %3228 = vmatpush1.bf16.xpose.msra.mxu0 0
        %3229 = vmatprep.subr.bf16.mxu0 0
        %3230 = vmatpush1.bf16.xpose.msra.mxu0 0
        %3231 = vmatprep.subr.bf16.mxu0 0
        %3232 = vmatpush1.bf16.xpose.msra.mxu0 0
        %3233 = vmatprep.subr.bf16.mxu0 0
        %3234 = vmatpush1.bf16.xpose.msra.mxu0 0
        %3235 = vmatprep.subr.bf16.mxu0 0
        %3236 = vmatpush1.bf16.xpose.msra.mxu0 0
        %3237 = vmatprep.mubr.bf16.mxu0 0
        %3238 = vmatmul.mubr.bf16.gmra.mrb[0].mxu0 %v3024
        %v3239 = vpop.f32.mrb[0].mxu0
        %v3240 = vadd.f32 %v3200, %v3239
        %v3241 = vpop.f32.mrb[0].mxu0
        %v3242 = vpop.f32.mrb[0].mxu0
        %v3243 = vpop.f32.mrb[0].mxu0
        %3244 = vdwg.mxu0
        %v3245 = vrcp.pop %v3159
        %v3246 = vrcp.pop %v3161
        %v3247 = vrcp.pop %v3240
        %v3248 = vlaneseq
        %v3249 = vshrl.u32 %v3248, 7
        %v3250 = vsub.s32 0, %v3249
        %v3251 = vrot.slane %v3245, %v3250
        %v3252 = vlaneseq
        %v3253 = vshrl.u32 %v3252, 7
        %v3254 = vsub.s32 0, %v3253
        %v3255 = vrot.slane %v3246, %v3254
        %v3256 = vlaneseq
        %v3257 = vshrl.u32 %v3256, 7
        %v3258 = vsub.s32 0, %v3257
        %v3259 = vrot.slane %v3247, %v3258
        %v3260 = vmul.f32 %v3159, %v3251
        %v3261 = vmul.f32 %v3161, %v3255
        %v3262 = vmul.f32 %v3240, %v3259
        %v3263 = vld [vmem:[%s3 + $0x28] sm:$0x7]
        %v3264 = vpack.c.bf16 %v3260, %v3260
        %v3265 = vpack.c.bf16 %v3261, %v3261
        %v3266 = vpack.c.bf16 %v3262, %v3262
        %v3268 = vsel %vm598, %v3263, 0
        %v3271 = vsel %vm656, %v3264, 0
        %v3274 = vsel %vm656, %v3265, 0
        %v3277 = vsel %vm656, %v3266, 0
        %3279 = vmatprep.subr.bf16.mxu0 %v3274
        %3280 = vmatpush1.bf16.msra.mxu0 %v3271
        %3281 = vmatprep.subr.bf16.mxu0 0
        %3282 = vmatpush1.bf16.msra.mxu0 0
        %3283 = vmatprep.subr.bf16.mxu0 0
        %3284 = vmatpush1.bf16.msra.mxu0 0
        %3285 = vmatprep.subr.bf16.mxu0 0
        %3286 = vmatpush1.bf16.msra.mxu0 0
        %3287 = vmatprep.subr.bf16.mxu0 0
        %3288 = vmatpush1.bf16.msra.mxu0 0
        %3289 = vmatprep.subr.bf16.mxu0 0
        %3290 = vmatpush1.bf16.msra.mxu0 0
        %3291 = vmatprep.subr.bf16.mxu0 0
        %3292 = vmatpush1.bf16.msra.mxu0 0
        %3293 = vmatprep.subr.bf16.mxu0 0
        %3294 = vmatpush1.bf16.msra.mxu0 0
        %3295 = vmatprep.subr.bf16.mxu0 0
        %3296 = vmatpush1.bf16.msra.mxu0 0
        %3297 = vmatprep.subr.bf16.mxu0 0
        %3298 = vmatpush1.bf16.msra.mxu0 0
        %3299 = vmatprep.subr.bf16.mxu0 0
        %3300 = vmatpush1.bf16.msra.mxu0 0
        %3301 = vmatprep.subr.bf16.mxu0 0
        %3302 = vmatpush1.bf16.msra.mxu0 0
        %3303 = vmatprep.subr.bf16.mxu0 0
        %3304 = vmatpush1.bf16.msra.mxu0 0
        %3305 = vmatprep.subr.bf16.mxu0 0
        %3306 = vmatpush1.bf16.msra.mxu0 0
        %3307 = vmatprep.subr.bf16.mxu0 0
        %3308 = vmatpush1.bf16.msra.mxu0 0
        %3309 = vmatprep.subr.bf16.mxu0 0
        %3310 = vmatpush1.bf16.msra.mxu0 0
        %3311 = vmatprep.mubr.bf16.mxu0 0
        %3312 = vmatmul.mubr.bf16.gmra.mrb[0].mxu0 %v3268
        %v3313 = vpop.f32.mrb[0].mxu0
        %v3314 = vadd.f32 0.0, %v3313
        %v3315 = vpop.f32.mrb[0].mxu0
        %v3316 = vadd.f32 0.0, %v3315
        %v3317 = vpop.f32.mrb[0].mxu0
        %v3318 = vpop.f32.mrb[0].mxu0
        %3319 = vdwg.mxu0
        %3320 = vmatprep.subr.bf16.mxu0 0
        %3321 = vmatpush1.bf16.msra.mxu0 %v3277
        %3322 = vmatprep.subr.bf16.mxu0 0
        %3323 = vmatpush1.bf16.msra.mxu0 0
        %3324 = vmatprep.subr.bf16.mxu0 0
        %3325 = vmatpush1.bf16.msra.mxu0 0
        %3326 = vmatprep.subr.bf16.mxu0 0
        %3327 = vmatpush1.bf16.msra.mxu0 0
        %3328 = vmatprep.subr.bf16.mxu0 0
        %3329 = vmatpush1.bf16.msra.mxu0 0
        %3330 = vmatprep.subr.bf16.mxu0 0
        %3331 = vmatpush1.bf16.msra.mxu0 0
        %3332 = vmatprep.subr.bf16.mxu0 0
        %3333 = vmatpush1.bf16.msra.mxu0 0
        %3334 = vmatprep.subr.bf16.mxu0 0
        %3335 = vmatpush1.bf16.msra.mxu0 0
        %3336 = vmatprep.subr.bf16.mxu0 0
        %3337 = vmatpush1.bf16.msra.mxu0 0
        %3338 = vmatprep.subr.bf16.mxu0 0
        %3339 = vmatpush1.bf16.msra.mxu0 0
        %3340 = vmatprep.subr.bf16.mxu0 0
        %3341 = vmatpush1.bf16.msra.mxu0 0
        %3342 = vmatprep.subr.bf16.mxu0 0
        %3343 = vmatpush1.bf16.msra.mxu0 0
        %3344 = vmatprep.subr.bf16.mxu0 0
        %3345 = vmatpush1.bf16.msra.mxu0 0
        %3346 = vmatprep.subr.bf16.mxu0 0
        %3347 = vmatpush1.bf16.msra.mxu0 0
        %3348 = vmatprep.subr.bf16.mxu0 0
        %3349 = vmatpush1.bf16.msra.mxu0 0
        %3350 = vmatprep.subr.bf16.mxu0 0
        %3351 = vmatpush1.bf16.msra.mxu0 0
        %3352 = vmatprep.mubr.bf16.mxu0 0
        %3353 = vmatmul.mubr.bf16.gmra.mrb[0].mxu0 %v3268
        %v3354 = vpop.f32.mrb[0].mxu0
        %v3355 = vadd.f32 0.0, %v3354
        %v3356 = vpop.f32.mrb[0].mxu0
        %v3357 = vpop.f32.mrb[0].mxu0
        %v3358 = vpop.f32.mrb[0].mxu0
        %3359 = vdwg.mxu0
        %v3360 = vadd.f32 %v1955, %v3314
        %v3361 = vadd.f32 %v1956, %v3316
        %v3362 = vadd.f32 %v1957, %v3355
        %v3363 = vadd.f32 %v256, %v3360
        %v3364 = vadd.f32 %v257, %v3361
        %v3365 = vadd.f32 %v258, %v3362
        %v3366 = vld [vmem:[%s2 + $0x10] sm:$0x3f]
        %v3367 = vld [vmem:[%s2 + $0x18] sm:$0x3f]
        %v3368 = vsel %vm261, %v3363, 0.0
        %v3369 = vrot.slane %v3368, 4
        %v3370 = vadd.f32 %v3368, %v3369
        %v3371 = vrot.slane %v3370, 2
        %v3372 = vadd.f32 %v3370, %v3371
        %v3373 = vrot.slane %v3372, 1
        %v3374 = vadd.f32 %v3372, %v3373
        %v3375 = vsel %vm261, %v3364, 0.0
        %v3376 = vrot.slane %v3375, 4
        %v3377 = vadd.f32 %v3375, %v3376
        %v3378 = vrot.slane %v3377, 2
        %v3379 = vadd.f32 %v3377, %v3378
        %v3380 = vrot.slane %v3379, 1
        %v3381 = vadd.f32 %v3379, %v3380
        %v3382 = vsel %vm276, %v3365, 0.0
        %v3383 = vrot.slane %v3382, 4
        %v3384 = vadd.f32 %v3382, %v3383
        %v3385 = vrot.slane %v3384, 2
        %v3386 = vadd.f32 %v3384, %v3385
        %v3387 = vrot.slane %v3386, 1
        %v3388 = vadd.f32 %v3386, %v3387
        %v3389 = vmul.f32 %v3374, %v284
        %v3390 = vmul.f32 %v3381, %v284
        %v3391 = vmul.f32 %v3388, %v284
        %v3392 = vsub.f32 %v3363, %v3389
        %v3393 = vsub.f32 %v3364, %v3390
        %v3394 = vsub.f32 %v3365, %v3391
        %v3395 = vmul.f32 %v3392, %v3392
        %v3396 = vmul.f32 %v3393, %v3393
        %v3397 = vmul.f32 %v3394, %v3394
        %v3398 = vsel %vm261, %v3395, 0.0
        %v3399 = vrot.slane %v3398, 4
        %v3400 = vadd.f32 %v3398, %v3399
        %v3401 = vrot.slane %v3400, 2
        %v3402 = vadd.f32 %v3400, %v3401
        %v3403 = vrot.slane %v3402, 1
        %v3404 = vadd.f32 %v3402, %v3403
        %v3405 = vsel %vm261, %v3396, 0.0
        %v3406 = vrot.slane %v3405, 4
        %v3407 = vadd.f32 %v3405, %v3406
        %v3408 = vrot.slane %v3407, 2
        %v3409 = vadd.f32 %v3407, %v3408
        %v3410 = vrot.slane %v3409, 1
        %v3411 = vadd.f32 %v3409, %v3410
        %v3412 = vsel %vm276, %v3397, 0.0
        %v3413 = vrot.slane %v3412, 4
        %v3414 = vadd.f32 %v3412, %v3413
        %v3415 = vrot.slane %v3414, 2
        %v3416 = vadd.f32 %v3414, %v3415
        %v3417 = vrot.slane %v3416, 1
        %v3418 = vadd.f32 %v3416, %v3417
        %v3419 = vmul.f32 %v3404, %v284
        %v3420 = vmul.f32 %v3411, %v284
        %v3421 = vmul.f32 %v3418, %v284
        %v3422 = vadd.f32 %v3419, 1e-05
        %v3423 = vadd.f32 %v3420, 1e-05
        %v3424 = vadd.f32 %v3421, 1e-05
        %v3425 = vrsqrt.pop %v3422
        %v3426 = vrsqrt.pop %v3423
        %v3427 = vrsqrt.pop %v3424
        %v3428 = vmul.f32 %v3392, %v3425
        %v3429 = vmul.f32 %v3393, %v3426
        %v3430 = vmul.f32 %v3394, %v3427
        %3432 = vset.pattern.permute.xlu0 0
        %3433 = vperm.xlu0 %3432, %v3366
        %v3434 = vpop.permute.xlu0 %3433
        %v3436 = vmul.f32 %v3428, %v3434
        %v3437 = vmul.f32 %v3429, %v3434
        %v3438 = vmul.f32 %v3430, %v3434
        %3440 = vset.pattern.permute.xlu0 0
        %3441 = vperm.xlu0 %3440, %v3367
        %v3442 = vpop.permute.xlu0 %3441
        %v3444 = vadd.f32 %v3436, %v3442
        %v3445 = vadd.f32 %v3437, %v3442
        %v3446 = vadd.f32 %v3438, %v3442
        %v3447 = vld [vmem:[%s3 + $0x18] sm:$0xf]
        %v3448 = vld [vmem:[%s3 + $0x1c] sm:$0xf]
        %v3449 = vpack.c.bf16 %v3444, %v3444
        %v3450 = vpack.c.bf16 %v3445, %v3445
        %v3451 = vpack.c.bf16 %v3446, %v3446
        %v3452 = vld [vmem:[%s2 + $0x30] sm:$0xff]
        %v3453 = vld [vmem:[%s2 + $0x38] sm:$0xff]
        %3455 = vset.pattern.permute.xlu0 0
        %3456 = vperm.xlu0 %3455, %v3452
        %v3457 = vpop.permute.xlu0 %3456
        %3460 = vset.pattern.permute.xlu0 0
        %3461 = vperm.xlu0 %3460, %v3453
        %v3462 = vpop.permute.xlu0 %3461
        %v3466 = vunpack.c.l.b16 %v3447
        %v3467 = vunpack.c.l.b16 %v3448
        %v3468 = vpack.c.b16 %v3467, %v3466
        %v3470 = vsel %vm403, %v3468, 0
        %v3473 = vsel %vm413, %v3449, 0
        %v3476 = vsel %vm413, %v3450, 0
        %v3479 = vsel %vm413, %v3451, 0
        %3481 = vmatprep.subr.bf16.mxu0 %v3476
        %3482 = vmatpush1.bf16.msra.mxu0 %v3473
        %3483 = vmatprep.subr.bf16.mxu0 0
        %3484 = vmatpush1.bf16.msra.mxu0 0
        %3485 = vmatprep.subr.bf16.mxu0 0
        %3486 = vmatpush1.bf16.msra.mxu0 0
        %3487 = vmatprep.subr.bf16.mxu0 0
        %3488 = vmatpush1.bf16.msra.mxu0 0
        %3489 = vmatprep.subr.bf16.mxu0 0
        %3490 = vmatpush1.bf16.msra.mxu0 0
        %3491 = vmatprep.subr.bf16.mxu0 0
        %3492 = vmatpush1.bf16.msra.mxu0 0
        %3493 = vmatprep.subr.bf16.mxu0 0
        %3494 = vmatpush1.bf16.msra.mxu0 0
        %3495 = vmatprep.subr.bf16.mxu0 0
        %3496 = vmatpush1.bf16.msra.mxu0 0
        %3497 = vmatprep.subr.bf16.mxu0 0
        %3498 = vmatpush1.bf16.msra.mxu0 0
        %3499 = vmatprep.subr.bf16.mxu0 0
        %3500 = vmatpush1.bf16.msra.mxu0 0
        %3501 = vmatprep.subr.bf16.mxu0 0
        %3502 = vmatpush1.bf16.msra.mxu0 0
        %3503 = vmatprep.subr.bf16.mxu0 0
        %3504 = vmatpush1.bf16.msra.mxu0 0
        %3505 = vmatprep.subr.bf16.mxu0 0
        %3506 = vmatpush1.bf16.msra.mxu0 0
        %3507 = vmatprep.subr.bf16.mxu0 0
        %3508 = vmatpush1.bf16.msra.mxu0 0
        %3509 = vmatprep.subr.bf16.mxu0 0
        %3510 = vmatpush1.bf16.msra.mxu0 0
        %3511 = vmatprep.subr.bf16.mxu0 0
        %3512 = vmatpush1.bf16.msra.mxu0 0
        %3513 = vmatprep.mubr.bf16.mxu0 0
        %3514 = vmatmul.mubr.bf16.gmra.mrb[0].mxu0 %v3470
        %v3515 = vpop.f32.mrb[0].mxu0
        %v3516 = vadd.f32 %v3457, %v3515
        %v3517 = vpop.f32.mrb[0].mxu0
        %v3518 = vadd.f32 %v3457, %v3517
        %v3519 = vpop.f32.mrb[0].mxu0
        %v3520 = vadd.f32 %v3462, %v3519
        %v3521 = vpop.f32.mrb[0].mxu0
        %v3522 = vadd.f32 %v3462, %v3521
        %3523 = vdwg.mxu0
        %3524 = vmatprep.subr.bf16.mxu0 0
        %3525 = vmatpush1.bf16.msra.mxu0 %v3479
        %3526 = vmatprep.subr.bf16.mxu0 0
        %3527 = vmatpush1.bf16.msra.mxu0 0
        %3528 = vmatprep.subr.bf16.mxu0 0
        %3529 = vmatpush1.bf16.msra.mxu0 0
        %3530 = vmatprep.subr.bf16.mxu0 0
        %3531 = vmatpush1.bf16.msra.mxu0 0
        %3532 = vmatprep.subr.bf16.mxu0 0
        %3533 = vmatpush1.bf16.msra.mxu0 0
        %3534 = vmatprep.subr.bf16.mxu0 0
        %3535 = vmatpush1.bf16.msra.mxu0 0
        %3536 = vmatprep.subr.bf16.mxu0 0
        %3537 = vmatpush1.bf16.msra.mxu0 0
        %3538 = vmatprep.subr.bf16.mxu0 0
        %3539 = vmatpush1.bf16.msra.mxu0 0
        %3540 = vmatprep.subr.bf16.mxu0 0
        %3541 = vmatpush1.bf16.msra.mxu0 0
        %3542 = vmatprep.subr.bf16.mxu0 0
        %3543 = vmatpush1.bf16.msra.mxu0 0
        %3544 = vmatprep.subr.bf16.mxu0 0
        %3545 = vmatpush1.bf16.msra.mxu0 0
        %3546 = vmatprep.subr.bf16.mxu0 0
        %3547 = vmatpush1.bf16.msra.mxu0 0
        %3548 = vmatprep.subr.bf16.mxu0 0
        %3549 = vmatpush1.bf16.msra.mxu0 0
        %3550 = vmatprep.subr.bf16.mxu0 0
        %3551 = vmatpush1.bf16.msra.mxu0 0
        %3552 = vmatprep.subr.bf16.mxu0 0
        %3553 = vmatpush1.bf16.msra.mxu0 0
        %3554 = vmatprep.subr.bf16.mxu0 0
        %3555 = vmatpush1.bf16.msra.mxu0 0
        %3556 = vmatprep.mubr.bf16.mxu0 0
        %3557 = vmatmul.mubr.bf16.gmra.mrb[0].mxu0 %v3470
        %v3558 = vpop.f32.mrb[0].mxu0
        %v3559 = vadd.f32 %v3457, %v3558
        %v3560 = vpop.f32.mrb[0].mxu0
        %v3561 = vpop.f32.mrb[0].mxu0
        %v3562 = vadd.f32 %v3462, %v3561
        %v3563 = vpop.f32.mrb[0].mxu0
        %3564 = vdwg.mxu0
        %v3565 = vmax.f32 %v3516, 0.0
        %v3566 = vmax.f32 %v3518, 0.0
        %v3567 = vmax.f32 %v3559, 0.0
        %v3568 = vmax.f32 %v3520, 0.0
        %v3569 = vmax.f32 %v3522, 0.0
        %v3570 = vmax.f32 %v3562, 0.0
        %v3571 = vld [vmem:[%s3 + $0x30] sm:$0x7]
        %v3572 = vpack.c.bf16 %v3568, %v3565
        %v3573 = vpack.c.bf16 %v3569, %v3566
        %v3574 = vpack.c.bf16 %v3570, %v3567
        %vm3575 = vcmask 130048
        %v3577 = vsel %vm3575, %v3571, 0
        %3579 = vmatprep.subr.bf16.mxu0 %v3573
        %3580 = vmatpush1.bf16.msra.mxu0 %v3572
        %3581 = vmatprep.subr.bf16.mxu0 0
        %3582 = vmatpush1.bf16.msra.mxu0 0
        %3583 = vmatprep.subr.bf16.mxu0 0
        %3584 = vmatpush1.bf16.msra.mxu0 0
        %3585 = vmatprep.subr.bf16.mxu0 0
        %3586 = vmatpush1.bf16.msra.mxu0 0
        %3587 = vmatprep.subr.bf16.mxu0 0
        %3588 = vmatpush1.bf16.msra.mxu0 0
        %3589 = vmatprep.subr.bf16.mxu0 0
        %3590 = vmatpush1.bf16.msra.mxu0 0
        %3591 = vmatprep.subr.bf16.mxu0 0
        %3592 = vmatpush1.bf16.msra.mxu0 0
        %3593 = vmatprep.subr.bf16.mxu0 0
        %3594 = vmatpush1.bf16.msra.mxu0 0
        %3595 = vmatprep.subr.bf16.mxu0 0
        %3596 = vmatpush1.bf16.msra.mxu0 0
        %3597 = vmatprep.subr.bf16.mxu0 0
        %3598 = vmatpush1.bf16.msra.mxu0 0
        %3599 = vmatprep.subr.bf16.mxu0 0
        %3600 = vmatpush1.bf16.msra.mxu0 0
        %3601 = vmatprep.subr.bf16.mxu0 0
        %3602 = vmatpush1.bf16.msra.mxu0 0
        %3603 = vmatprep.subr.bf16.mxu0 0
        %3604 = vmatpush1.bf16.msra.mxu0 0
        %3605 = vmatprep.subr.bf16.mxu0 0
        %3606 = vmatpush1.bf16.msra.mxu0 0
        %3607 = vmatprep.subr.bf16.mxu0 0
        %3608 = vmatpush1.bf16.msra.mxu0 0
        %3609 = vmatprep.subr.bf16.mxu0 0
        %3610 = vmatpush1.bf16.msra.mxu0 0
        %3611 = vmatprep.mubr.bf16.mxu0 0
        %3612 = vmatmul.mubr.bf16.gmra.mrb[0].mxu0 %v3577
        %v3613 = vpop.f32.mrb[0].mxu0
        %v3614 = vadd.f32 0.0, %v3613
        %v3615 = vpop.f32.mrb[0].mxu0
        %v3616 = vadd.f32 0.0, %v3615
        %v3617 = vpop.f32.mrb[0].mxu0
        %v3618 = vpop.f32.mrb[0].mxu0
        %3619 = vdwg.mxu0
        %3620 = vmatprep.subr.bf16.mxu0 0
        %3621 = vmatpush1.bf16.msra.mxu0 %v3574
        %3622 = vmatprep.subr.bf16.mxu0 0
        %3623 = vmatpush1.bf16.msra.mxu0 0
        %3624 = vmatprep.subr.bf16.mxu0 0
        %3625 = vmatpush1.bf16.msra.mxu0 0
        %3626 = vmatprep.subr.bf16.mxu0 0
        %3627 = vmatpush1.bf16.msra.mxu0 0
        %3628 = vmatprep.subr.bf16.mxu0 0
        %3629 = vmatpush1.bf16.msra.mxu0 0
        %3630 = vmatprep.subr.bf16.mxu0 0
        %3631 = vmatpush1.bf16.msra.mxu0 0
        %3632 = vmatprep.subr.bf16.mxu0 0
        %3633 = vmatpush1.bf16.msra.mxu0 0
        %3634 = vmatprep.subr.bf16.mxu0 0
        %3635 = vmatpush1.bf16.msra.mxu0 0
        %3636 = vmatprep.subr.bf16.mxu0 0
        %3637 = vmatpush1.bf16.msra.mxu0 0
        %3638 = vmatprep.subr.bf16.mxu0 0
        %3639 = vmatpush1.bf16.msra.mxu0 0
        %3640 = vmatprep.subr.bf16.mxu0 0
        %3641 = vmatpush1.bf16.msra.mxu0 0
        %3642 = vmatprep.subr.bf16.mxu0 0
        %3643 = vmatpush1.bf16.msra.mxu0 0
        %3644 = vmatprep.subr.bf16.mxu0 0
        %3645 = vmatpush1.bf16.msra.mxu0 0
        %3646 = vmatprep.subr.bf16.mxu0 0
        %3647 = vmatpush1.bf16.msra.mxu0 0
        %3648 = vmatprep.subr.bf16.mxu0 0
        %3649 = vmatpush1.bf16.msra.mxu0 0
        %3650 = vmatprep.subr.bf16.mxu0 0
        %3651 = vmatpush1.bf16.msra.mxu0 0
        %3652 = vmatprep.mubr.bf16.mxu0 0
        %3653 = vmatmul.mubr.bf16.gmra.mrb[0].mxu0 %v3577
        %v3654 = vpop.f32.mrb[0].mxu0
        %v3655 = vadd.f32 0.0, %v3654
        %v3656 = vpop.f32.mrb[0].mxu0
        %v3657 = vpop.f32.mrb[0].mxu0
        %v3658 = vpop.f32.mrb[0].mxu0
        %3659 = vdwg.mxu0
        %v3660 = vadd.f32 %v3363, %v3614
        %v3661 = vadd.f32 %v3364, %v3616
        %v3662 = vadd.f32 %v3365, %v3655
        %v3663 = vld [vmem:[%s2 + $0x28] sm:$0x3f]
        %3665 = vset.pattern.permute.xlu0 0
        %3666 = vperm.xlu0 %3665, %v3663
        %v3667 = vpop.permute.xlu0 %3666
        %v3669 = vadd.f32 %v3660, %v3667
        %v3670 = vadd.f32 %v3661, %v3667
        %v3671 = vadd.f32 %v3662, %v3667
        %v3672 = vadd.f32 %v3669, %v253
        %v3673 = vadd.f32 %v3670, %v254
        %v3674 = vadd.f32 %v3671, %v255
        %s3675 = scalar_lea.vmem %s2, 112
        %v3676 = vld [vmem:[%s3675] sm:$0x3f]
        %v3677 = vld [vmem:[%s3675 + $0x8] sm:$0x3f]
        %v3678 = vsel %vm261, %v3672, 0.0
        %v3679 = vrot.slane %v3678, 4
        %v3680 = vadd.f32 %v3678, %v3679
        %v3681 = vrot.slane %v3680, 2
        %v3682 = vadd.f32 %v3680, %v3681
        %v3683 = vrot.slane %v3682, 1
        %v3684 = vadd.f32 %v3682, %v3683
        %v3685 = vsel %vm261, %v3673, 0.0
        %v3686 = vrot.slane %v3685, 4
        %v3687 = vadd.f32 %v3685, %v3686
        %v3688 = vrot.slane %v3687, 2
        %v3689 = vadd.f32 %v3687, %v3688
        %v3690 = vrot.slane %v3689, 1
        %v3691 = vadd.f32 %v3689, %v3690
        %v3692 = vsel %vm276, %v3674, 0.0
        %v3693 = vrot.slane %v3692, 4
        %v3694 = vadd.f32 %v3692, %v3693
        %v3695 = vrot.slane %v3694, 2
        %v3696 = vadd.f32 %v3694, %v3695
        %v3697 = vrot.slane %v3696, 1
        %v3698 = vadd.f32 %v3696, %v3697
        %v3699 = vmul.f32 %v3684, %v284
        %v3700 = vmul.f32 %v3691, %v284
        %v3701 = vmul.f32 %v3698, %v284
        %v3702 = vsub.f32 %v3672, %v3699
        %v3703 = vsub.f32 %v3673, %v3700
        %v3704 = vsub.f32 %v3674, %v3701
        %v3705 = vmul.f32 %v3702, %v3702
        %v3706 = vmul.f32 %v3703, %v3703
        %v3707 = vmul.f32 %v3704, %v3704
        %v3708 = vsel %vm261, %v3705, 0.0
        %v3709 = vrot.slane %v3708, 4
        %v3710 = vadd.f32 %v3708, %v3709
        %v3711 = vrot.slane %v3710, 2
        %v3712 = vadd.f32 %v3710, %v3711
        %v3713 = vrot.slane %v3712, 1
        %v3714 = vadd.f32 %v3712, %v3713
        %v3715 = vsel %vm261, %v3706, 0.0
        %v3716 = vrot.slane %v3715, 4
        %v3717 = vadd.f32 %v3715, %v3716
        %v3718 = vrot.slane %v3717, 2
        %v3719 = vadd.f32 %v3717, %v3718
        %v3720 = vrot.slane %v3719, 1
        %v3721 = vadd.f32 %v3719, %v3720
        %v3722 = vsel %vm276, %v3707, 0.0
        %v3723 = vrot.slane %v3722, 4
        %v3724 = vadd.f32 %v3722, %v3723
        %v3725 = vrot.slane %v3724, 2
        %v3726 = vadd.f32 %v3724, %v3725
        %v3727 = vrot.slane %v3726, 1
        %v3728 = vadd.f32 %v3726, %v3727
        %v3729 = vmul.f32 %v3714, %v284
        %v3730 = vmul.f32 %v3721, %v284
        %v3731 = vmul.f32 %v3728, %v284
        %v3732 = vadd.f32 %v3729, 1e-05
        %v3733 = vadd.f32 %v3730, 1e-05
        %v3734 = vadd.f32 %v3731, 1e-05
        %v3735 = vrsqrt.pop %v3732
        %v3736 = vrsqrt.pop %v3733
        %v3737 = vrsqrt.pop %v3734
        %v3738 = vmul.f32 %v3702, %v3735
        %v3739 = vmul.f32 %v3703, %v3736
        %v3740 = vmul.f32 %v3704, %v3737
        %3742 = vset.pattern.permute.xlu0 0
        %3743 = vperm.xlu0 %3742, %v3676
        %v3744 = vpop.permute.xlu0 %3743
        %v3746 = vmul.f32 %v3738, %v3744
        %v3747 = vmul.f32 %v3739, %v3744
        %v3748 = vmul.f32 %v3740, %v3744
        %3750 = vset.pattern.permute.xlu0 0
        %3751 = vperm.xlu0 %3750, %v3677
        %v3752 = vpop.permute.xlu0 %3751
        %v3754 = vadd.f32 %v3746, %v3752
        %v3755 = vadd.f32 %v3747, %v3752
        %v3756 = vadd.f32 %v3748, %v3752
        %s3757 = scalar_lea.vmem %s3, 56
        %v3758 = vld [vmem:[%s3757] sm:$0xf]
        %v3759 = vld [vmem:[%s3757 + $0x4] sm:$0xf]
        %v3760 = vld [vmem:[%s3757 + $0x8] sm:$0xf]
        %v3761 = vld [vmem:[%s3757 + $0xc] sm:$0xf]
        %v3762 = vld [vmem:[%s3757 + $0x10] sm:$0xf]
        %v3763 = vld [vmem:[%s3757 + $0x14] sm:$0xf]
        %v3764 = vpack.c.bf16 %v3754, %v3754
        %v3765 = vpack.c.bf16 %v3755, %v3755
        %v3766 = vpack.c.bf16 %v3756, %v3756
        %v3767 = vld [vmem:[%s3675 + $0x40] sm:$0xff]
        %v3768 = vld [vmem:[%s3675 + $0x48] sm:$0xff]
        %v3769 = vld [vmem:[%s3675 + $0x50] sm:$0xff]
        %v3770 = vld [vmem:[%s3675 + $0x58] sm:$0xff]
        %v3771 = vld [vmem:[%s3675 + $0x60] sm:$0xff]
        %v3772 = vld [vmem:[%s3675 + $0x68] sm:$0xff]
        %3774 = vset.pattern.permute.xlu0 0
        %3775 = vperm.xlu0 %3774, %v3767
        %v3776 = vpop.permute.xlu0 %3775
        %3779 = vset.pattern.permute.xlu0 0
        %3780 = vperm.xlu0 %3779, %v3768
        %v3781 = vpop.permute.xlu0 %3780
        %3784 = vset.pattern.permute.xlu0 0
        %3785 = vperm.xlu0 %3784, %v3769
        %v3786 = vpop.permute.xlu0 %3785
        %3789 = vset.pattern.permute.xlu0 0
        %3790 = vperm.xlu0 %3789, %v3770
        %v3791 = vpop.permute.xlu0 %3790
        %3794 = vset.pattern.permute.xlu0 0
        %3795 = vperm.xlu0 %3794, %v3771
        %v3796 = vpop.permute.xlu0 %3795
        %3799 = vset.pattern.permute.xlu0 0
        %3800 = vperm.xlu0 %3799, %v3772
        %v3801 = vpop.permute.xlu0 %3800
        %v3809 = vunpack.c.l.b16 %v3758
        %v3810 = vunpack.c.l.b16 %v3759
        %v3811 = vunpack.c.l.b16 %v3760
        %v3812 = vunpack.c.l.b16 %v3761
        %v3813 = vunpack.c.l.b16 %v3762
        %v3814 = vunpack.c.l.b16 %v3763
        %v3815 = vpack.c.b16 %v3810, %v3809
        %v3816 = vpack.c.b16 %v3812, %v3811
        %v3817 = vpack.c.b16 %v3814, %v3813
        %v3819 = vsel %vm403, %v3815, 0
        %v3822 = vsel %vm403, %v3816, 0
        %v3825 = vsel %vm403, %v3817, 0
        %v3828 = vsel %vm413, %v3764, 0
        %v3831 = vsel %vm413, %v3765, 0
        %v3834 = vsel %vm413, %v3766, 0
        %3836 = vmatprep.subr.bf16.mxu0 %v3831
        %3837 = vmatpush1.bf16.msra.mxu0 %v3828
        %3838 = vmatprep.subr.bf16.mxu0 0
        %3839 = vmatpush1.bf16.msra.mxu0 0
        %3840 = vmatprep.subr.bf16.mxu0 0
        %3841 = vmatpush1.bf16.msra.mxu0 0
        %3842 = vmatprep.subr.bf16.mxu0 0
        %3843 = vmatpush1.bf16.msra.mxu0 0
        %3844 = vmatprep.subr.bf16.mxu0 0
        %3845 = vmatpush1.bf16.msra.mxu0 0
        %3846 = vmatprep.subr.bf16.mxu0 0
        %3847 = vmatpush1.bf16.msra.mxu0 0
        %3848 = vmatprep.subr.bf16.mxu0 0
        %3849 = vmatpush1.bf16.msra.mxu0 0
        %3850 = vmatprep.subr.bf16.mxu0 0
        %3851 = vmatpush1.bf16.msra.mxu0 0
        %3852 = vmatprep.subr.bf16.mxu0 0
        %3853 = vmatpush1.bf16.msra.mxu0 0
        %3854 = vmatprep.subr.bf16.mxu0 0
        %3855 = vmatpush1.bf16.msra.mxu0 0
        %3856 = vmatprep.subr.bf16.mxu0 0
        %3857 = vmatpush1.bf16.msra.mxu0 0
        %3858 = vmatprep.subr.bf16.mxu0 0
        %3859 = vmatpush1.bf16.msra.mxu0 0
        %3860 = vmatprep.subr.bf16.mxu0 0
        %3861 = vmatpush1.bf16.msra.mxu0 0
        %3862 = vmatprep.subr.bf16.mxu0 0
        %3863 = vmatpush1.bf16.msra.mxu0 0
        %3864 = vmatprep.subr.bf16.mxu0 0
        %3865 = vmatpush1.bf16.msra.mxu0 0
        %3866 = vmatprep.subr.bf16.mxu0 0
        %3867 = vmatpush1.bf16.msra.mxu0 0
        %3868 = vmatprep.mubr.bf16.mxu0 0
        %3869 = vmatmul.mubr.bf16.gmra.mrb[0].mxu0 %v3819
        %v3870 = vpop.f32.mrb[0].mxu0
        %v3871 = vadd.f32 %v3776, %v3870
        %v3872 = vpop.f32.mrb[0].mxu0
        %v3873 = vadd.f32 %v3776, %v3872
        %v3874 = vpop.f32.mrb[0].mxu0
        %v3875 = vadd.f32 %v3781, %v3874
        %v3876 = vpop.f32.mrb[0].mxu0
        %v3877 = vadd.f32 %v3781, %v3876
        %3878 = vmatprep.mubr.bf16.mxu0 0
        %3879 = vmatmul.mubr.bf16.gmra.mrb[0].mxu0 %v3822
        %v3880 = vpop.f32.mrb[0].mxu0
        %v3881 = vadd.f32 %v3786, %v3880
        %v3882 = vpop.f32.mrb[0].mxu0
        %v3883 = vadd.f32 %v3786, %v3882
        %v3884 = vpop.f32.mrb[0].mxu0
        %v3885 = vadd.f32 %v3791, %v3884
        %v3886 = vpop.f32.mrb[0].mxu0
        %v3887 = vadd.f32 %v3791, %v3886
        %3888 = vmatprep.mubr.bf16.mxu0 0
        %3889 = vmatmul.mubr.bf16.gmra.mrb[0].mxu0 %v3825
        %v3890 = vpop.f32.mrb[0].mxu0
        %v3891 = vadd.f32 %v3796, %v3890
        %v3892 = vpop.f32.mrb[0].mxu0
        %v3893 = vadd.f32 %v3796, %v3892
        %v3894 = vpop.f32.mrb[0].mxu0
        %v3895 = vadd.f32 %v3801, %v3894
        %v3896 = vpop.f32.mrb[0].mxu0
        %v3897 = vadd.f32 %v3801, %v3896
        %3898 = vdwg.mxu0
        %3899 = vmatprep.subr.bf16.mxu0 0
        %3900 = vmatpush1.bf16.msra.mxu0 %v3834
        %3901 = vmatprep.subr.bf16.mxu0 0
        %3902 = vmatpush1.bf16.msra.mxu0 0
        %3903 = vmatprep.subr.bf16.mxu0 0
        %3904 = vmatpush1.bf16.msra.mxu0 0
        %3905 = vmatprep.subr.bf16.mxu0 0
        %3906 = vmatpush1.bf16.msra.mxu0 0
        %3907 = vmatprep.subr.bf16.mxu0 0
        %3908 = vmatpush1.bf16.msra.mxu0 0
        %3909 = vmatprep.subr.bf16.mxu0 0
        %3910 = vmatpush1.bf16.msra.mxu0 0
        %3911 = vmatprep.subr.bf16.mxu0 0
        %3912 = vmatpush1.bf16.msra.mxu0 0
        %3913 = vmatprep.subr.bf16.mxu0 0
        %3914 = vmatpush1.bf16.msra.mxu0 0
        %3915 = vmatprep.subr.bf16.mxu0 0
        %3916 = vmatpush1.bf16.msra.mxu0 0
        %3917 = vmatprep.subr.bf16.mxu0 0
        %3918 = vmatpush1.bf16.msra.mxu0 0
        %3919 = vmatprep.subr.bf16.mxu0 0
        %3920 = vmatpush1.bf16.msra.mxu0 0
        %3921 = vmatprep.subr.bf16.mxu0 0
        %3922 = vmatpush1.bf16.msra.mxu0 0
        %3923 = vmatprep.subr.bf16.mxu0 0
        %3924 = vmatpush1.bf16.msra.mxu0 0
        %3925 = vmatprep.subr.bf16.mxu0 0
        %3926 = vmatpush1.bf16.msra.mxu0 0
        %3927 = vmatprep.subr.bf16.mxu0 0
        %3928 = vmatpush1.bf16.msra.mxu0 0
        %3929 = vmatprep.subr.bf16.mxu0 0
        %3930 = vmatpush1.bf16.msra.mxu0 0
        %3931 = vmatprep.mubr.bf16.mxu0 0
        %3932 = vmatmul.mubr.bf16.gmra.mrb[0].mxu0 %v3819
        %v3933 = vpop.f32.mrb[0].mxu0
        %v3934 = vadd.f32 %v3776, %v3933
        %v3935 = vpop.f32.mrb[0].mxu0
        %v3936 = vpop.f32.mrb[0].mxu0
        %v3937 = vadd.f32 %v3781, %v3936
        %v3938 = vpop.f32.mrb[0].mxu0
        %3939 = vmatprep.mubr.bf16.mxu0 0
        %3940 = vmatmul.mubr.bf16.gmra.mrb[0].mxu0 %v3822
        %v3941 = vpop.f32.mrb[0].mxu0
        %v3942 = vadd.f32 %v3786, %v3941
        %v3943 = vpop.f32.mrb[0].mxu0
        %v3944 = vpop.f32.mrb[0].mxu0
        %v3945 = vadd.f32 %v3791, %v3944
        %v3946 = vpop.f32.mrb[0].mxu0
        %3947 = vmatprep.mubr.bf16.mxu0 0
        %3948 = vmatmul.mubr.bf16.gmra.mrb[0].mxu0 %v3825
        %v3949 = vpop.f32.mrb[0].mxu0
        %v3950 = vadd.f32 %v3796, %v3949
        %v3951 = vpop.f32.mrb[0].mxu0
        %v3952 = vpop.f32.mrb[0].mxu0
        %v3953 = vadd.f32 %v3801, %v3952
        %v3954 = vpop.f32.mrb[0].mxu0
        %3955 = vdwg.mxu0
        %v3956 = vld [vmem:[%s3675 + $0x20] sm:$0x3f]
        %v3957 = vpack.c.bf16 %v3871, %v3871
        %v3958 = vpack.c.bf16 %v3873, %v3873
        %v3959 = vpack.c.bf16 %v3934, %v3934
        %v3960 = vpack.c.bf16 %v3881, %v3881
        %v3961 = vpack.c.bf16 %v3883, %v3883
        %v3962 = vpack.c.bf16 %v3942, %v3942
        %3963 = vxpose.xlu0.c.b16.start [1/8] %v3957, 128
        %3964 = vxpose.xlu0.c.b16.cont [2/8] 0, 128
        %3965 = vxpose.xlu0.c.b16.cont [3/8] 0, 128
        %3966 = vxpose.xlu0.c.b16.cont [4/8] 0, 128
        %3967 = vxpose.xlu0.c.b16.cont [5/8] 0, 128
        %3968 = vxpose.xlu0.c.b16.cont [6/8] 0, 128
        %3969 = vxpose.xlu0.c.b16.cont [7/8] 0, 128
        %3970 = vxpose.xlu0.c.b16.end [8/8] 0, 128
        %v3971 = vpop.trf.xlu0
        %v3972 = vpop.trf.xlu0
        %v3973 = vpop.trf.xlu0
        %v3974 = vpop.trf.xlu0
        %v3975 = vpop.trf.xlu0
        %v3976 = vpop.trf.xlu0
        %v3977 = vpop.trf.xlu0
        %v3978 = vpop.trf.xlu0
        %3979 = vxpose.xlu0.c.b16.start [1/8] %v3958, 128
        %3980 = vxpose.xlu0.c.b16.cont [2/8] 0, 128
        %3981 = vxpose.xlu0.c.b16.cont [3/8] 0, 128
        %3982 = vxpose.xlu0.c.b16.cont [4/8] 0, 128
        %3983 = vxpose.xlu0.c.b16.cont [5/8] 0, 128
        %3984 = vxpose.xlu0.c.b16.cont [6/8] 0, 128
        %3985 = vxpose.xlu0.c.b16.cont [7/8] 0, 128
        %3986 = vxpose.xlu0.c.b16.end [8/8] 0, 128
        %v3987 = vpop.trf.xlu0
        %v3988 = vpop.trf.xlu0
        %v3989 = vpop.trf.xlu0
        %v3990 = vpop.trf.xlu0
        %v3991 = vpop.trf.xlu0
        %v3992 = vpop.trf.xlu0
        %v3993 = vpop.trf.xlu0
        %v3994 = vpop.trf.xlu0
        %3995 = vxpose.xlu0.c.b16.start [1/8] %v3959, 128
        %3996 = vxpose.xlu0.c.b16.cont [2/8] 0, 128
        %3997 = vxpose.xlu0.c.b16.cont [3/8] 0, 128
        %3998 = vxpose.xlu0.c.b16.cont [4/8] 0, 128
        %3999 = vxpose.xlu0.c.b16.cont [5/8] 0, 128
        %4000 = vxpose.xlu0.c.b16.cont [6/8] 0, 128
        %4001 = vxpose.xlu0.c.b16.cont [7/8] 0, 128
        %4002 = vxpose.xlu0.c.b16.end [8/8] 0, 128
        %v4003 = vpop.trf.xlu0
        %v4004 = vpop.trf.xlu0
        %v4005 = vpop.trf.xlu0
        %v4006 = vpop.trf.xlu0
        %v4007 = vpop.trf.xlu0
        %v4008 = vpop.trf.xlu0
        %v4009 = vpop.trf.xlu0
        %v4010 = vpop.trf.xlu0
        %v4012 = vsel %vm598, %v3971, 0
        %v4015 = vsel %vm598, %v3972, 0
        %v4018 = vsel %vm598, %v3973, 0
        %v4021 = vsel %vm598, %v3974, 0
        %v4024 = vsel %vm598, %v3975, 0
        %v4027 = vsel %vm598, %v3976, 0
        %v4030 = vsel %vm598, %v3977, 0
        %v4033 = vsel %vm598, %v3978, 0
        %v4036 = vsel %vm598, %v3987, 0
        %v4039 = vsel %vm598, %v3988, 0
        %v4042 = vsel %vm598, %v3989, 0
        %v4045 = vsel %vm598, %v3990, 0
        %v4048 = vsel %vm598, %v3991, 0
        %v4051 = vsel %vm598, %v3992, 0
        %v4054 = vsel %vm598, %v3993, 0
        %v4057 = vsel %vm598, %v3994, 0
        %v4060 = vsel %vm598, %v4003, 0
        %v4063 = vsel %vm598, %v4004, 0
        %v4066 = vsel %vm598, %v4005, 0
        %v4069 = vsel %vm656, %v3960, 0
        %v4072 = vsel %vm656, %v3961, 0
        %v4075 = vsel %vm656, %v3962, 0
        %4077 = vmatprep.subr.bf16.mxu0 %v4072
        %4078 = vmatpush1.bf16.msra.mxu0 %v4069
        %4079 = vmatprep.subr.bf16.mxu0 0
        %4080 = vmatpush1.bf16.msra.mxu0 0
        %4081 = vmatprep.subr.bf16.mxu0 0
        %4082 = vmatpush1.bf16.msra.mxu0 0
        %4083 = vmatprep.subr.bf16.mxu0 0
        %4084 = vmatpush1.bf16.msra.mxu0 0
        %4085 = vmatprep.subr.bf16.mxu0 0
        %4086 = vmatpush1.bf16.msra.mxu0 0
        %4087 = vmatprep.subr.bf16.mxu0 0
        %4088 = vmatpush1.bf16.msra.mxu0 0
        %4089 = vmatprep.subr.bf16.mxu0 0
        %4090 = vmatpush1.bf16.msra.mxu0 0
        %4091 = vmatprep.subr.bf16.mxu0 0
        %4092 = vmatpush1.bf16.msra.mxu0 0
        %4093 = vmatprep.subr.bf16.mxu0 0
        %4094 = vmatpush1.bf16.msra.mxu0 0
        %4095 = vmatprep.subr.bf16.mxu0 0
        %4096 = vmatpush1.bf16.msra.mxu0 0
        %4097 = vmatprep.subr.bf16.mxu0 0
        %4098 = vmatpush1.bf16.msra.mxu0 0
        %4099 = vmatprep.subr.bf16.mxu0 0
        %4100 = vmatpush1.bf16.msra.mxu0 0
        %4101 = vmatprep.subr.bf16.mxu0 0
        %4102 = vmatpush1.bf16.msra.mxu0 0
        %4103 = vmatprep.subr.bf16.mxu0 0
        %4104 = vmatpush1.bf16.msra.mxu0 0
        %4105 = vmatprep.subr.bf16.mxu0 0
        %4106 = vmatpush1.bf16.msra.mxu0 0
        %4107 = vmatprep.subr.bf16.mxu0 0
        %4108 = vmatpush1.bf16.msra.mxu0 0
        %4109 = vmatprep.mubr.bf16.mxu0 0
        %4110 = vmatmul.mubr.bf16.gmra.mrb[0].mxu0 %v4012
        %v4111 = vpop.f32.mrb[0].mxu0
        %v4112 = vadd.f32 0.0, %v4111
        %v4113 = vpop.f32.mrb[0].mxu0
        %v4114 = vadd.f32 0.0, %v4113
        %v4115 = vpop.f32.mrb[0].mxu0
        %v4116 = vadd.f32 0.0, %v4115
        %v4117 = vpop.f32.mrb[0].mxu0
        %v4118 = vadd.f32 0.0, %v4117
        %4119 = vmatprep.mubr.bf16.mxu0 0
        %4120 = vmatmul.mubr.bf16.gmra.mrb[0].mxu0 %v4015
        %v4121 = vpop.f32.mrb[0].mxu0
        %v4122 = vadd.f32 0.0, %v4121
        %v4123 = vpop.f32.mrb[0].mxu0
        %v4124 = vadd.f32 0.0, %v4123
        %v4125 = vpop.f32.mrb[0].mxu0
        %v4126 = vadd.f32 0.0, %v4125
        %v4127 = vpop.f32.mrb[0].mxu0
        %v4128 = vadd.f32 0.0, %v4127
        %4129 = vmatprep.mubr.bf16.mxu0 0
        %4130 = vmatmul.mubr.bf16.gmra.mrb[0].mxu0 %v4018
        %v4131 = vpop.f32.mrb[0].mxu0
        %v4132 = vadd.f32 0.0, %v4131
        %v4133 = vpop.f32.mrb[0].mxu0
        %v4134 = vadd.f32 0.0, %v4133
        %v4135 = vpop.f32.mrb[0].mxu0
        %v4136 = vadd.f32 0.0, %v4135
        %v4137 = vpop.f32.mrb[0].mxu0
        %v4138 = vadd.f32 0.0, %v4137
        %4139 = vmatprep.mubr.bf16.mxu0 0
        %4140 = vmatmul.mubr.bf16.gmra.mrb[0].mxu0 %v4021
        %v4141 = vpop.f32.mrb[0].mxu0
        %v4142 = vadd.f32 0.0, %v4141
        %v4143 = vpop.f32.mrb[0].mxu0
        %v4144 = vadd.f32 0.0, %v4143
        %v4145 = vpop.f32.mrb[0].mxu0
        %v4146 = vadd.f32 0.0, %v4145
        %v4147 = vpop.f32.mrb[0].mxu0
        %v4148 = vadd.f32 0.0, %v4147
        %4149 = vmatprep.mubr.bf16.mxu0 0
        %4150 = vmatmul.mubr.bf16.gmra.mrb[0].mxu0 %v4024
        %v4151 = vpop.f32.mrb[0].mxu0
        %v4152 = vadd.f32 0.0, %v4151
        %v4153 = vpop.f32.mrb[0].mxu0
        %v4154 = vadd.f32 0.0, %v4153
        %v4155 = vpop.f32.mrb[0].mxu0
        %v4156 = vadd.f32 0.0, %v4155
        %v4157 = vpop.f32.mrb[0].mxu0
        %v4158 = vadd.f32 0.0, %v4157
        %4159 = vmatprep.mubr.bf16.mxu0 0
        %4160 = vmatmul.mubr.bf16.gmra.mrb[0].mxu0 %v4027
        %v4161 = vpop.f32.mrb[0].mxu0
        %v4162 = vadd.f32 0.0, %v4161
        %v4163 = vpop.f32.mrb[0].mxu0
        %v4164 = vadd.f32 0.0, %v4163
        %v4165 = vpop.f32.mrb[0].mxu0
        %v4166 = vadd.f32 0.0, %v4165
        %v4167 = vpop.f32.mrb[0].mxu0
        %v4168 = vadd.f32 0.0, %v4167
        %4169 = vmatprep.mubr.bf16.mxu0 0
        %4170 = vmatmul.mubr.bf16.gmra.mrb[0].mxu0 %v4030
        %v4171 = vpop.f32.mrb[0].mxu0
        %v4172 = vadd.f32 0.0, %v4171
        %v4173 = vpop.f32.mrb[0].mxu0
        %v4174 = vadd.f32 0.0, %v4173
        %v4175 = vpop.f32.mrb[0].mxu0
        %v4176 = vadd.f32 0.0, %v4175
        %v4177 = vpop.f32.mrb[0].mxu0
        %v4178 = vadd.f32 0.0, %v4177
        %4179 = vmatprep.mubr.bf16.mxu0 0
        %4180 = vmatmul.mubr.bf16.gmra.mrb[0].mxu0 %v4033
        %v4181 = vpop.f32.mrb[0].mxu0
        %v4182 = vadd.f32 0.0, %v4181
        %v4183 = vpop.f32.mrb[0].mxu0
        %v4184 = vadd.f32 0.0, %v4183
        %v4185 = vpop.f32.mrb[0].mxu0
        %v4186 = vadd.f32 0.0, %v4185
        %v4187 = vpop.f32.mrb[0].mxu0
        %v4188 = vadd.f32 0.0, %v4187
        %4189 = vmatprep.mubr.bf16.mxu0 0
        %4190 = vmatmul.mubr.bf16.gmra.mrb[0].mxu0 %v4036
        %v4191 = vpop.f32.mrb[0].mxu0
        %v4192 = vadd.f32 0.0, %v4191
        %v4193 = vpop.f32.mrb[0].mxu0
        %v4194 = vadd.f32 0.0, %v4193
        %v4195 = vpop.f32.mrb[0].mxu0
        %v4196 = vadd.f32 0.0, %v4195
        %v4197 = vpop.f32.mrb[0].mxu0
        %v4198 = vadd.f32 0.0, %v4197
        %4199 = vmatprep.mubr.bf16.mxu0 0
        %4200 = vmatmul.mubr.bf16.gmra.mrb[0].mxu0 %v4039
        %v4201 = vpop.f32.mrb[0].mxu0
        %v4202 = vadd.f32 0.0, %v4201
        %v4203 = vpop.f32.mrb[0].mxu0
        %v4204 = vadd.f32 0.0, %v4203
        %v4205 = vpop.f32.mrb[0].mxu0
        %v4206 = vadd.f32 0.0, %v4205
        %v4207 = vpop.f32.mrb[0].mxu0
        %v4208 = vadd.f32 0.0, %v4207
        %4209 = vmatprep.mubr.bf16.mxu0 0
        %4210 = vmatmul.mubr.bf16.gmra.mrb[0].mxu0 %v4042
        %v4211 = vpop.f32.mrb[0].mxu0
        %v4212 = vadd.f32 0.0, %v4211
        %v4213 = vpop.f32.mrb[0].mxu0
        %v4214 = vadd.f32 0.0, %v4213
        %v4215 = vpop.f32.mrb[0].mxu0
        %v4216 = vadd.f32 0.0, %v4215
        %v4217 = vpop.f32.mrb[0].mxu0
        %v4218 = vadd.f32 0.0, %v4217
        %4219 = vmatprep.mubr.bf16.mxu0 0
        %4220 = vmatmul.mubr.bf16.gmra.mrb[0].mxu0 %v4045
        %v4221 = vpop.f32.mrb[0].mxu0
        %v4222 = vadd.f32 0.0, %v4221
        %v4223 = vpop.f32.mrb[0].mxu0
        %v4224 = vadd.f32 0.0, %v4223
        %v4225 = vpop.f32.mrb[0].mxu0
        %v4226 = vadd.f32 0.0, %v4225
        %v4227 = vpop.f32.mrb[0].mxu0
        %v4228 = vadd.f32 0.0, %v4227
        %4229 = vmatprep.mubr.bf16.mxu0 0
        %4230 = vmatmul.mubr.bf16.gmra.mrb[0].mxu0 %v4048
        %v4231 = vpop.f32.mrb[0].mxu0
        %v4232 = vadd.f32 0.0, %v4231
        %v4233 = vpop.f32.mrb[0].mxu0
        %v4234 = vadd.f32 0.0, %v4233
        %v4235 = vpop.f32.mrb[0].mxu0
        %v4236 = vadd.f32 0.0, %v4235
        %v4237 = vpop.f32.mrb[0].mxu0
        %v4238 = vadd.f32 0.0, %v4237
        %4239 = vmatprep.mubr.bf16.mxu0 0
        %4240 = vmatmul.mubr.bf16.gmra.mrb[0].mxu0 %v4051
        %v4241 = vpop.f32.mrb[0].mxu0
        %v4242 = vadd.f32 0.0, %v4241
        %v4243 = vpop.f32.mrb[0].mxu0
        %v4244 = vadd.f32 0.0, %v4243
        %v4245 = vpop.f32.mrb[0].mxu0
        %v4246 = vadd.f32 0.0, %v4245
        %v4247 = vpop.f32.mrb[0].mxu0
        %v4248 = vadd.f32 0.0, %v4247
        %4249 = vmatprep.mubr.bf16.mxu0 0
        %4250 = vmatmul.mubr.bf16.gmra.mrb[0].mxu0 %v4054
        %v4251 = vpop.f32.mrb[0].mxu0
        %v4252 = vadd.f32 0.0, %v4251
        %v4253 = vpop.f32.mrb[0].mxu0
        %v4254 = vadd.f32 0.0, %v4253
        %v4255 = vpop.f32.mrb[0].mxu0
        %v4256 = vadd.f32 0.0, %v4255
        %v4257 = vpop.f32.mrb[0].mxu0
        %v4258 = vadd.f32 0.0, %v4257
        %4259 = vmatprep.mubr.bf16.mxu0 0
        %4260 = vmatmul.mubr.bf16.gmra.mrb[0].mxu0 %v4057
        %v4261 = vpop.f32.mrb[0].mxu0
        %v4262 = vadd.f32 0.0, %v4261
        %v4263 = vpop.f32.mrb[0].mxu0
        %v4264 = vadd.f32 0.0, %v4263
        %v4265 = vpop.f32.mrb[0].mxu0
        %v4266 = vadd.f32 0.0, %v4265
        %v4267 = vpop.f32.mrb[0].mxu0
        %v4268 = vadd.f32 0.0, %v4267
        %4269 = vmatprep.mubr.bf16.mxu0 0
        %4270 = vmatmul.mubr.bf16.gmra.mrb[0].mxu0 %v4060
        %v4271 = vpop.f32.mrb[0].mxu0
        %v4272 = vadd.f32 0.0, %v4271
        %v4273 = vpop.f32.mrb[0].mxu0
        %v4274 = vadd.f32 0.0, %v4273
        %v4275 = vpop.f32.mrb[0].mxu0
        %v4276 = vadd.f32 0.0, %v4275
        %v4277 = vpop.f32.mrb[0].mxu0
        %v4278 = vadd.f32 0.0, %v4277
        %4279 = vmatprep.mubr.bf16.mxu0 0
        %4280 = vmatmul.mubr.bf16.gmra.mrb[0].mxu0 %v4063
        %v4281 = vpop.f32.mrb[0].mxu0
        %v4282 = vadd.f32 0.0, %v4281
        %v4283 = vpop.f32.mrb[0].mxu0
        %v4284 = vadd.f32 0.0, %v4283
        %v4285 = vpop.f32.mrb[0].mxu0
        %v4286 = vadd.f32 0.0, %v4285
        %v4287 = vpop.f32.mrb[0].mxu0
        %v4288 = vadd.f32 0.0, %v4287
        %4289 = vmatprep.mubr.bf16.mxu0 0
        %4290 = vmatmul.mubr.bf16.gmra.mrb[0].mxu0 %v4066
        %v4291 = vpop.f32.mrb[0].mxu0
        %v4292 = vadd.f32 0.0, %v4291
        %v4293 = vpop.f32.mrb[0].mxu0
        %v4294 = vadd.f32 0.0, %v4293
        %v4295 = vpop.f32.mrb[0].mxu0
        %v4296 = vadd.f32 0.0, %v4295
        %v4297 = vpop.f32.mrb[0].mxu0
        %v4298 = vadd.f32 0.0, %v4297
        %4299 = vdwg.mxu0
        %4300 = vmatprep.subr.bf16.mxu0 0
        %4301 = vmatpush1.bf16.msra.mxu0 %v4075
        %4302 = vmatprep.subr.bf16.mxu0 0
        %4303 = vmatpush1.bf16.msra.mxu0 0
        %4304 = vmatprep.subr.bf16.mxu0 0
        %4305 = vmatpush1.bf16.msra.mxu0 0
        %4306 = vmatprep.subr.bf16.mxu0 0
        %4307 = vmatpush1.bf16.msra.mxu0 0
        %4308 = vmatprep.subr.bf16.mxu0 0
        %4309 = vmatpush1.bf16.msra.mxu0 0
        %4310 = vmatprep.subr.bf16.mxu0 0
        %4311 = vmatpush1.bf16.msra.mxu0 0
        %4312 = vmatprep.subr.bf16.mxu0 0
        %4313 = vmatpush1.bf16.msra.mxu0 0
        %4314 = vmatprep.subr.bf16.mxu0 0
        %4315 = vmatpush1.bf16.msra.mxu0 0
        %4316 = vmatprep.subr.bf16.mxu0 0
        %4317 = vmatpush1.bf16.msra.mxu0 0
        %4318 = vmatprep.subr.bf16.mxu0 0
        %4319 = vmatpush1.bf16.msra.mxu0 0
        %4320 = vmatprep.subr.bf16.mxu0 0
        %4321 = vmatpush1.bf16.msra.mxu0 0
        %4322 = vmatprep.subr.bf16.mxu0 0
        %4323 = vmatpush1.bf16.msra.mxu0 0
        %4324 = vmatprep.subr.bf16.mxu0 0
        %4325 = vmatpush1.bf16.msra.mxu0 0
        %4326 = vmatprep.subr.bf16.mxu0 0
        %4327 = vmatpush1.bf16.msra.mxu0 0
        %4328 = vmatprep.subr.bf16.mxu0 0
        %4329 = vmatpush1.bf16.msra.mxu0 0
        %4330 = vmatprep.subr.bf16.mxu0 0
        %4331 = vmatpush1.bf16.msra.mxu0 0
        %4332 = vmatprep.mubr.bf16.mxu0 0
        %4333 = vmatmul.mubr.bf16.gmra.mrb[0].mxu0 %v4012
        %v4334 = vpop.f32.mrb[0].mxu0
        %v4335 = vadd.f32 0.0, %v4334
        %v4336 = vpop.f32.mrb[0].mxu0
        %v4337 = vpop.f32.mrb[0].mxu0
        %v4338 = vadd.f32 0.0, %v4337
        %v4339 = vpop.f32.mrb[0].mxu0
        %4340 = vmatprep.mubr.bf16.mxu0 0
        %4341 = vmatmul.mubr.bf16.gmra.mrb[0].mxu0 %v4015
        %v4342 = vpop.f32.mrb[0].mxu0
        %v4343 = vadd.f32 0.0, %v4342
        %v4344 = vpop.f32.mrb[0].mxu0
        %v4345 = vpop.f32.mrb[0].mxu0
        %v4346 = vadd.f32 0.0, %v4345
        %v4347 = vpop.f32.mrb[0].mxu0
        %4348 = vmatprep.mubr.bf16.mxu0 0
        %4349 = vmatmul.mubr.bf16.gmra.mrb[0].mxu0 %v4018
        %v4350 = vpop.f32.mrb[0].mxu0
        %v4351 = vadd.f32 0.0, %v4350
        %v4352 = vpop.f32.mrb[0].mxu0
        %v4353 = vpop.f32.mrb[0].mxu0
        %v4354 = vadd.f32 0.0, %v4353
        %v4355 = vpop.f32.mrb[0].mxu0
        %4356 = vmatprep.mubr.bf16.mxu0 0
        %4357 = vmatmul.mubr.bf16.gmra.mrb[0].mxu0 %v4021
        %v4358 = vpop.f32.mrb[0].mxu0
        %v4359 = vadd.f32 0.0, %v4358
        %v4360 = vpop.f32.mrb[0].mxu0
        %v4361 = vpop.f32.mrb[0].mxu0
        %v4362 = vadd.f32 0.0, %v4361
        %v4363 = vpop.f32.mrb[0].mxu0
        %4364 = vmatprep.mubr.bf16.mxu0 0
        %4365 = vmatmul.mubr.bf16.gmra.mrb[0].mxu0 %v4024
        %v4366 = vpop.f32.mrb[0].mxu0
        %v4367 = vadd.f32 0.0, %v4366
        %v4368 = vpop.f32.mrb[0].mxu0
        %v4369 = vpop.f32.mrb[0].mxu0
        %v4370 = vadd.f32 0.0, %v4369
        %v4371 = vpop.f32.mrb[0].mxu0
        %4372 = vmatprep.mubr.bf16.mxu0 0
        %4373 = vmatmul.mubr.bf16.gmra.mrb[0].mxu0 %v4027
        %v4374 = vpop.f32.mrb[0].mxu0
        %v4375 = vadd.f32 0.0, %v4374
        %v4376 = vpop.f32.mrb[0].mxu0
        %v4377 = vpop.f32.mrb[0].mxu0
        %v4378 = vadd.f32 0.0, %v4377
        %v4379 = vpop.f32.mrb[0].mxu0
        %4380 = vmatprep.mubr.bf16.mxu0 0
        %4381 = vmatmul.mubr.bf16.gmra.mrb[0].mxu0 %v4030
        %v4382 = vpop.f32.mrb[0].mxu0
        %v4383 = vadd.f32 0.0, %v4382
        %v4384 = vpop.f32.mrb[0].mxu0
        %v4385 = vpop.f32.mrb[0].mxu0
        %v4386 = vadd.f32 0.0, %v4385
        %v4387 = vpop.f32.mrb[0].mxu0
        %4388 = vmatprep.mubr.bf16.mxu0 0
        %4389 = vmatmul.mubr.bf16.gmra.mrb[0].mxu0 %v4033
        %v4390 = vpop.f32.mrb[0].mxu0
        %v4391 = vadd.f32 0.0, %v4390
        %v4392 = vpop.f32.mrb[0].mxu0
        %v4393 = vpop.f32.mrb[0].mxu0
        %v4394 = vadd.f32 0.0, %v4393
        %v4395 = vpop.f32.mrb[0].mxu0
        %4396 = vmatprep.mubr.bf16.mxu0 0
        %4397 = vmatmul.mubr.bf16.gmra.mrb[0].mxu0 %v4036
        %v4398 = vpop.f32.mrb[0].mxu0
        %v4399 = vadd.f32 0.0, %v4398
        %v4400 = vpop.f32.mrb[0].mxu0
        %v4401 = vpop.f32.mrb[0].mxu0
        %v4402 = vadd.f32 0.0, %v4401
        %v4403 = vpop.f32.mrb[0].mxu0
        %4404 = vmatprep.mubr.bf16.mxu0 0
        %4405 = vmatmul.mubr.bf16.gmra.mrb[0].mxu0 %v4039
        %v4406 = vpop.f32.mrb[0].mxu0
        %v4407 = vadd.f32 0.0, %v4406
        %v4408 = vpop.f32.mrb[0].mxu0
        %v4409 = vpop.f32.mrb[0].mxu0
        %v4410 = vadd.f32 0.0, %v4409
        %v4411 = vpop.f32.mrb[0].mxu0
        %4412 = vmatprep.mubr.bf16.mxu0 0
        %4413 = vmatmul.mubr.bf16.gmra.mrb[0].mxu0 %v4042
        %v4414 = vpop.f32.mrb[0].mxu0
        %v4415 = vadd.f32 0.0, %v4414
        %v4416 = vpop.f32.mrb[0].mxu0
        %v4417 = vpop.f32.mrb[0].mxu0
        %v4418 = vadd.f32 0.0, %v4417
        %v4419 = vpop.f32.mrb[0].mxu0
        %4420 = vmatprep.mubr.bf16.mxu0 0
        %4421 = vmatmul.mubr.bf16.gmra.mrb[0].mxu0 %v4045
        %v4422 = vpop.f32.mrb[0].mxu0
        %v4423 = vadd.f32 0.0, %v4422
        %v4424 = vpop.f32.mrb[0].mxu0
        %v4425 = vpop.f32.mrb[0].mxu0
        %v4426 = vadd.f32 0.0, %v4425
        %v4427 = vpop.f32.mrb[0].mxu0
        %4428 = vmatprep.mubr.bf16.mxu0 0
        %4429 = vmatmul.mubr.bf16.gmra.mrb[0].mxu0 %v4048
        %v4430 = vpop.f32.mrb[0].mxu0
        %v4431 = vadd.f32 0.0, %v4430
        %v4432 = vpop.f32.mrb[0].mxu0
        %v4433 = vpop.f32.mrb[0].mxu0
        %v4434 = vadd.f32 0.0, %v4433
        %v4435 = vpop.f32.mrb[0].mxu0
        %4436 = vmatprep.mubr.bf16.mxu0 0
        %4437 = vmatmul.mubr.bf16.gmra.mrb[0].mxu0 %v4051
        %v4438 = vpop.f32.mrb[0].mxu0
        %v4439 = vadd.f32 0.0, %v4438
        %v4440 = vpop.f32.mrb[0].mxu0
        %v4441 = vpop.f32.mrb[0].mxu0
        %v4442 = vadd.f32 0.0, %v4441
        %v4443 = vpop.f32.mrb[0].mxu0
        %4444 = vmatprep.mubr.bf16.mxu0 0
        %4445 = vmatmul.mubr.bf16.gmra.mrb[0].mxu0 %v4054
        %v4446 = vpop.f32.mrb[0].mxu0
        %v4447 = vadd.f32 0.0, %v4446
        %v4448 = vpop.f32.mrb[0].mxu0
        %v4449 = vpop.f32.mrb[0].mxu0
        %v4450 = vadd.f32 0.0, %v4449
        %v4451 = vpop.f32.mrb[0].mxu0
        %4452 = vmatprep.mubr.bf16.mxu0 0
        %4453 = vmatmul.mubr.bf16.gmra.mrb[0].mxu0 %v4057
        %v4454 = vpop.f32.mrb[0].mxu0
        %v4455 = vadd.f32 0.0, %v4454
        %v4456 = vpop.f32.mrb[0].mxu0
        %v4457 = vpop.f32.mrb[0].mxu0
        %v4458 = vadd.f32 0.0, %v4457
        %v4459 = vpop.f32.mrb[0].mxu0
        %4460 = vmatprep.mubr.bf16.mxu0 0
        %4461 = vmatmul.mubr.bf16.gmra.mrb[0].mxu0 %v4060
        %v4462 = vpop.f32.mrb[0].mxu0
        %v4463 = vadd.f32 0.0, %v4462
        %v4464 = vpop.f32.mrb[0].mxu0
        %v4465 = vpop.f32.mrb[0].mxu0
        %v4466 = vadd.f32 0.0, %v4465
        %v4467 = vpop.f32.mrb[0].mxu0
        %4468 = vmatprep.mubr.bf16.mxu0 0
        %4469 = vmatmul.mubr.bf16.gmra.mrb[0].mxu0 %v4063
        %v4470 = vpop.f32.mrb[0].mxu0
        %v4471 = vadd.f32 0.0, %v4470
        %v4472 = vpop.f32.mrb[0].mxu0
        %v4473 = vpop.f32.mrb[0].mxu0
        %v4474 = vadd.f32 0.0, %v4473
        %v4475 = vpop.f32.mrb[0].mxu0
        %4476 = vmatprep.mubr.bf16.mxu0 0
        %4477 = vmatmul.mubr.bf16.gmra.mrb[0].mxu0 %v4066
        %v4478 = vpop.f32.mrb[0].mxu0
        %v4479 = vadd.f32 0.0, %v4478
        %v4480 = vpop.f32.mrb[0].mxu0
        %v4481 = vpop.f32.mrb[0].mxu0
        %v4482 = vadd.f32 0.0, %v4481
        %v4483 = vpop.f32.mrb[0].mxu0
        %4484 = vdwg.mxu0
        %v4485 = vmax.f32 %v4112, %v4114
        %v4486 = vsel %vm1075, %v4335, -inf
        %v4487 = vmax.f32 %v4485, %v4486
        %4488 = vmax.xlane.f32.xlu0 %v4487
        %v4489 = vpop.xlane.xlu0 %4488
        %v4490 = vmax.f32 %v4116, %v4118
        %v4491 = vsel %vm1075, %v4338, -inf
        %v4492 = vmax.f32 %v4490, %v4491
        %4493 = vmax.xlane.f32.xlu0 %v4492
        %v4494 = vpop.xlane.xlu0 %4493
        %v4495 = vmax.f32 %v4122, %v4124
        %v4496 = vsel %vm1075, %v4343, -inf
        %v4497 = vmax.f32 %v4495, %v4496
        %4498 = vmax.xlane.f32.xlu0 %v4497
        %v4499 = vpop.xlane.xlu0 %4498
        %v4500 = vmax.f32 %v4126, %v4128
        %v4501 = vsel %vm1075, %v4346, -inf
        %v4502 = vmax.f32 %v4500, %v4501
        %4503 = vmax.xlane.f32.xlu0 %v4502
        %v4504 = vpop.xlane.xlu0 %4503
        %v4505 = vmax.f32 %v4132, %v4134
        %v4506 = vsel %vm1075, %v4351, -inf
        %v4507 = vmax.f32 %v4505, %v4506
        %4508 = vmax.xlane.f32.xlu0 %v4507
        %v4509 = vpop.xlane.xlu0 %4508
        %v4510 = vmax.f32 %v4136, %v4138
        %v4511 = vsel %vm1075, %v4354, -inf
        %v4512 = vmax.f32 %v4510, %v4511
        %4513 = vmax.xlane.f32.xlu0 %v4512
        %v4514 = vpop.xlane.xlu0 %4513
        %v4515 = vmax.f32 %v4142, %v4144
        %v4516 = vsel %vm1075, %v4359, -inf
        %v4517 = vmax.f32 %v4515, %v4516
        %4518 = vmax.xlane.f32.xlu0 %v4517
        %v4519 = vpop.xlane.xlu0 %4518
        %v4520 = vmax.f32 %v4146, %v4148
        %v4521 = vsel %vm1075, %v4362, -inf
        %v4522 = vmax.f32 %v4520, %v4521
        %4523 = vmax.xlane.f32.xlu0 %v4522
        %v4524 = vpop.xlane.xlu0 %4523
        %v4525 = vmax.f32 %v4152, %v4154
        %v4526 = vsel %vm1075, %v4367, -inf
        %v4527 = vmax.f32 %v4525, %v4526
        %4528 = vmax.xlane.f32.xlu0 %v4527
        %v4529 = vpop.xlane.xlu0 %4528
        %v4530 = vmax.f32 %v4156, %v4158
        %v4531 = vsel %vm1075, %v4370, -inf
        %v4532 = vmax.f32 %v4530, %v4531
        %4533 = vmax.xlane.f32.xlu0 %v4532
        %v4534 = vpop.xlane.xlu0 %4533
        %v4535 = vmax.f32 %v4162, %v4164
        %v4536 = vsel %vm1075, %v4375, -inf
        %v4537 = vmax.f32 %v4535, %v4536
        %4538 = vmax.xlane.f32.xlu0 %v4537
        %v4539 = vpop.xlane.xlu0 %4538
        %v4540 = vmax.f32 %v4166, %v4168
        %v4541 = vsel %vm1075, %v4378, -inf
        %v4542 = vmax.f32 %v4540, %v4541
        %4543 = vmax.xlane.f32.xlu0 %v4542
        %v4544 = vpop.xlane.xlu0 %4543
        %v4545 = vmax.f32 %v4172, %v4174
        %v4546 = vsel %vm1075, %v4383, -inf
        %v4547 = vmax.f32 %v4545, %v4546
        %4548 = vmax.xlane.f32.xlu0 %v4547
        %v4549 = vpop.xlane.xlu0 %4548
        %v4550 = vmax.f32 %v4176, %v4178
        %v4551 = vsel %vm1075, %v4386, -inf
        %v4552 = vmax.f32 %v4550, %v4551
        %4553 = vmax.xlane.f32.xlu0 %v4552
        %v4554 = vpop.xlane.xlu0 %4553
        %v4555 = vmax.f32 %v4182, %v4184
        %v4556 = vsel %vm1075, %v4391, -inf
        %v4557 = vmax.f32 %v4555, %v4556
        %4558 = vmax.xlane.f32.xlu0 %v4557
        %v4559 = vpop.xlane.xlu0 %4558
        %v4560 = vmax.f32 %v4186, %v4188
        %v4561 = vsel %vm1075, %v4394, -inf
        %v4562 = vmax.f32 %v4560, %v4561
        %4563 = vmax.xlane.f32.xlu0 %v4562
        %v4564 = vpop.xlane.xlu0 %4563
        %v4565 = vmax.f32 %v4192, %v4194
        %v4566 = vsel %vm1075, %v4399, -inf
        %v4567 = vmax.f32 %v4565, %v4566
        %4568 = vmax.xlane.f32.xlu0 %v4567
        %v4569 = vpop.xlane.xlu0 %4568
        %v4570 = vmax.f32 %v4196, %v4198
        %v4571 = vsel %vm1075, %v4402, -inf
        %v4572 = vmax.f32 %v4570, %v4571
        %4573 = vmax.xlane.f32.xlu0 %v4572
        %v4574 = vpop.xlane.xlu0 %4573
        %v4575 = vmax.f32 %v4202, %v4204
        %v4576 = vsel %vm1075, %v4407, -inf
        %v4577 = vmax.f32 %v4575, %v4576
        %4578 = vmax.xlane.f32.xlu0 %v4577
        %v4579 = vpop.xlane.xlu0 %4578
        %v4580 = vmax.f32 %v4206, %v4208
        %v4581 = vsel %vm1075, %v4410, -inf
        %v4582 = vmax.f32 %v4580, %v4581
        %4583 = vmax.xlane.f32.xlu0 %v4582
        %v4584 = vpop.xlane.xlu0 %4583
        %v4585 = vmax.f32 %v4212, %v4214
        %v4586 = vsel %vm1075, %v4415, -inf
        %v4587 = vmax.f32 %v4585, %v4586
        %4588 = vmax.xlane.f32.xlu0 %v4587
        %v4589 = vpop.xlane.xlu0 %4588
        %v4590 = vmax.f32 %v4216, %v4218
        %v4591 = vsel %vm1075, %v4418, -inf
        %v4592 = vmax.f32 %v4590, %v4591
        %4593 = vmax.xlane.f32.xlu0 %v4592
        %v4594 = vpop.xlane.xlu0 %4593
        %v4595 = vmax.f32 %v4222, %v4224
        %v4596 = vsel %vm1075, %v4423, -inf
        %v4597 = vmax.f32 %v4595, %v4596
        %4598 = vmax.xlane.f32.xlu0 %v4597
        %v4599 = vpop.xlane.xlu0 %4598
        %v4600 = vmax.f32 %v4226, %v4228
        %v4601 = vsel %vm1075, %v4426, -inf
        %v4602 = vmax.f32 %v4600, %v4601
        %4603 = vmax.xlane.f32.xlu0 %v4602
        %v4604 = vpop.xlane.xlu0 %4603
        %v4605 = vmax.f32 %v4232, %v4234
        %v4606 = vsel %vm1075, %v4431, -inf
        %v4607 = vmax.f32 %v4605, %v4606
        %4608 = vmax.xlane.f32.xlu0 %v4607
        %v4609 = vpop.xlane.xlu0 %4608
        %v4610 = vmax.f32 %v4236, %v4238
        %v4611 = vsel %vm1075, %v4434, -inf
        %v4612 = vmax.f32 %v4610, %v4611
        %4613 = vmax.xlane.f32.xlu0 %v4612
        %v4614 = vpop.xlane.xlu0 %4613
        %v4615 = vmax.f32 %v4242, %v4244
        %v4616 = vsel %vm1075, %v4439, -inf
        %v4617 = vmax.f32 %v4615, %v4616
        %4618 = vmax.xlane.f32.xlu0 %v4617
        %v4619 = vpop.xlane.xlu0 %4618
        %v4620 = vmax.f32 %v4246, %v4248
        %v4621 = vsel %vm1075, %v4442, -inf
        %v4622 = vmax.f32 %v4620, %v4621
        %4623 = vmax.xlane.f32.xlu0 %v4622
        %v4624 = vpop.xlane.xlu0 %4623
        %v4625 = vmax.f32 %v4252, %v4254
        %v4626 = vsel %vm1075, %v4447, -inf
        %v4627 = vmax.f32 %v4625, %v4626
        %4628 = vmax.xlane.f32.xlu0 %v4627
        %v4629 = vpop.xlane.xlu0 %4628
        %v4630 = vmax.f32 %v4256, %v4258
        %v4631 = vsel %vm1075, %v4450, -inf
        %v4632 = vmax.f32 %v4630, %v4631
        %4633 = vmax.xlane.f32.xlu0 %v4632
        %v4634 = vpop.xlane.xlu0 %4633
        %v4635 = vmax.f32 %v4262, %v4264
        %v4636 = vsel %vm1075, %v4455, -inf
        %v4637 = vmax.f32 %v4635, %v4636
        %4638 = vmax.xlane.f32.xlu0 %v4637
        %v4639 = vpop.xlane.xlu0 %4638
        %v4640 = vmax.f32 %v4266, %v4268
        %v4641 = vsel %vm1075, %v4458, -inf
        %v4642 = vmax.f32 %v4640, %v4641
        %4643 = vmax.xlane.f32.xlu0 %v4642
        %v4644 = vpop.xlane.xlu0 %4643
        %v4645 = vmax.f32 %v4272, %v4274
        %v4646 = vsel %vm1075, %v4463, -inf
        %v4647 = vmax.f32 %v4645, %v4646
        %4648 = vmax.xlane.f32.xlu0 %v4647
        %v4649 = vpop.xlane.xlu0 %4648
        %v4650 = vmax.f32 %v4276, %v4278
        %v4651 = vsel %vm1075, %v4466, -inf
        %v4652 = vmax.f32 %v4650, %v4651
        %4653 = vmax.xlane.f32.xlu0 %v4652
        %v4654 = vpop.xlane.xlu0 %4653
        %v4655 = vmax.f32 %v4282, %v4284
        %v4656 = vsel %vm1075, %v4471, -inf
        %v4657 = vmax.f32 %v4655, %v4656
        %4658 = vmax.xlane.f32.xlu0 %v4657
        %v4659 = vpop.xlane.xlu0 %4658
        %v4660 = vmax.f32 %v4286, %v4288
        %v4661 = vsel %vm1075, %v4474, -inf
        %v4662 = vmax.f32 %v4660, %v4661
        %4663 = vmax.xlane.f32.xlu0 %v4662
        %v4664 = vpop.xlane.xlu0 %4663
        %v4665 = vmax.f32 %v4292, %v4294
        %v4666 = vsel %vm1075, %v4479, -inf
        %v4667 = vmax.f32 %v4665, %v4666
        %4668 = vmax.xlane.f32.xlu0 %v4667
        %v4669 = vpop.xlane.xlu0 %4668
        %v4670 = vsel %vm656, %v4296, -inf
        %v4671 = vsel %vm656, %v4298, -inf
        %v4672 = vmax.f32 %v4670, %v4671
        %v4673 = vsel %vm1263, %v4482, -inf
        %v4674 = vmax.f32 %v4672, %v4673
        %4675 = vmax.xlane.f32.xlu0 %v4674
        %v4676 = vpop.xlane.xlu0 %4675
        %v4677 = vsub.f32 %v4112, %v4489
        %v4678 = vsub.f32 %v4114, %v4489
        %v4679 = vsub.f32 %v4335, %v4489
        %v4680 = vsub.f32 %v4116, %v4494
        %v4681 = vsub.f32 %v4118, %v4494
        %v4682 = vsub.f32 %v4338, %v4494
        %v4683 = vsub.f32 %v4122, %v4499
        %v4684 = vsub.f32 %v4124, %v4499
        %v4685 = vsub.f32 %v4343, %v4499
        %v4686 = vsub.f32 %v4126, %v4504
        %v4687 = vsub.f32 %v4128, %v4504
        %v4688 = vsub.f32 %v4346, %v4504
        %v4689 = vsub.f32 %v4132, %v4509
        %v4690 = vsub.f32 %v4134, %v4509
        %v4691 = vsub.f32 %v4351, %v4509
        %v4692 = vsub.f32 %v4136, %v4514
        %v4693 = vsub.f32 %v4138, %v4514
        %v4694 = vsub.f32 %v4354, %v4514
        %v4695 = vsub.f32 %v4142, %v4519
        %v4696 = vsub.f32 %v4144, %v4519
        %v4697 = vsub.f32 %v4359, %v4519
        %v4698 = vsub.f32 %v4146, %v4524
        %v4699 = vsub.f32 %v4148, %v4524
        %v4700 = vsub.f32 %v4362, %v4524
        %v4701 = vsub.f32 %v4152, %v4529
        %v4702 = vsub.f32 %v4154, %v4529
        %v4703 = vsub.f32 %v4367, %v4529
        %v4704 = vsub.f32 %v4156, %v4534
        %v4705 = vsub.f32 %v4158, %v4534
        %v4706 = vsub.f32 %v4370, %v4534
        %v4707 = vsub.f32 %v4162, %v4539
        %v4708 = vsub.f32 %v4164, %v4539
        %v4709 = vsub.f32 %v4375, %v4539
        %v4710 = vsub.f32 %v4166, %v4544
        %v4711 = vsub.f32 %v4168, %v4544
        %v4712 = vsub.f32 %v4378, %v4544
        %v4713 = vsub.f32 %v4172, %v4549
        %v4714 = vsub.f32 %v4174, %v4549
        %v4715 = vsub.f32 %v4383, %v4549
        %v4716 = vsub.f32 %v4176, %v4554
        %v4717 = vsub.f32 %v4178, %v4554
        %v4718 = vsub.f32 %v4386, %v4554
        %v4719 = vsub.f32 %v4182, %v4559
        %v4720 = vsub.f32 %v4184, %v4559
        %v4721 = vsub.f32 %v4391, %v4559
        %v4722 = vsub.f32 %v4186, %v4564
        %v4723 = vsub.f32 %v4188, %v4564
        %v4724 = vsub.f32 %v4394, %v4564
        %v4725 = vsub.f32 %v4192, %v4569
        %v4726 = vsub.f32 %v4194, %v4569
        %v4727 = vsub.f32 %v4399, %v4569
        %v4728 = vsub.f32 %v4196, %v4574
        %v4729 = vsub.f32 %v4198, %v4574
        %v4730 = vsub.f32 %v4402, %v4574
        %v4731 = vsub.f32 %v4202, %v4579
        %v4732 = vsub.f32 %v4204, %v4579
        %v4733 = vsub.f32 %v4407, %v4579
        %v4734 = vsub.f32 %v4206, %v4584
        %v4735 = vsub.f32 %v4208, %v4584
        %v4736 = vsub.f32 %v4410, %v4584
        %v4737 = vsub.f32 %v4212, %v4589
        %v4738 = vsub.f32 %v4214, %v4589
        %v4739 = vsub.f32 %v4415, %v4589
        %v4740 = vsub.f32 %v4216, %v4594
        %v4741 = vsub.f32 %v4218, %v4594
        %v4742 = vsub.f32 %v4418, %v4594
        %v4743 = vsub.f32 %v4222, %v4599
        %v4744 = vsub.f32 %v4224, %v4599
        %v4745 = vsub.f32 %v4423, %v4599
        %v4746 = vsub.f32 %v4226, %v4604
        %v4747 = vsub.f32 %v4228, %v4604
        %v4748 = vsub.f32 %v4426, %v4604
        %v4749 = vsub.f32 %v4232, %v4609
        %v4750 = vsub.f32 %v4234, %v4609
        %v4751 = vsub.f32 %v4431, %v4609
        %v4752 = vsub.f32 %v4236, %v4614
        %v4753 = vsub.f32 %v4238, %v4614
        %v4754 = vsub.f32 %v4434, %v4614
        %v4755 = vsub.f32 %v4242, %v4619
        %v4756 = vsub.f32 %v4244, %v4619
        %v4757 = vsub.f32 %v4439, %v4619
        %v4758 = vsub.f32 %v4246, %v4624
        %v4759 = vsub.f32 %v4248, %v4624
        %v4760 = vsub.f32 %v4442, %v4624
        %v4761 = vsub.f32 %v4252, %v4629
        %v4762 = vsub.f32 %v4254, %v4629
        %v4763 = vsub.f32 %v4447, %v4629
        %v4764 = vsub.f32 %v4256, %v4634
        %v4765 = vsub.f32 %v4258, %v4634
        %v4766 = vsub.f32 %v4450, %v4634
        %v4767 = vsub.f32 %v4262, %v4639
        %v4768 = vsub.f32 %v4264, %v4639
        %v4769 = vsub.f32 %v4455, %v4639
        %v4770 = vsub.f32 %v4266, %v4644
        %v4771 = vsub.f32 %v4268, %v4644
        %v4772 = vsub.f32 %v4458, %v4644
        %v4773 = vsub.f32 %v4272, %v4649
        %v4774 = vsub.f32 %v4274, %v4649
        %v4775 = vsub.f32 %v4463, %v4649
        %v4776 = vsub.f32 %v4276, %v4654
        %v4777 = vsub.f32 %v4278, %v4654
        %v4778 = vsub.f32 %v4466, %v4654
        %v4779 = vsub.f32 %v4282, %v4659
        %v4780 = vsub.f32 %v4284, %v4659
        %v4781 = vsub.f32 %v4471, %v4659
        %v4782 = vsub.f32 %v4286, %v4664
        %v4783 = vsub.f32 %v4288, %v4664
        %v4784 = vsub.f32 %v4474, %v4664
        %v4785 = vsub.f32 %v4292, %v4669
        %v4786 = vsub.f32 %v4294, %v4669
        %v4787 = vsub.f32 %v4479, %v4669
        %v4788 = vsub.f32 %v4296, %v4676
        %v4789 = vsub.f32 %v4298, %v4676
        %v4790 = vsub.f32 %v4482, %v4676
        %v4791 = vpack.c.bf16 %v4680, %v4677
        %v4792 = vpack.c.bf16 %v4681, %v4678
        %v4793 = vpack.c.bf16 %v4682, %v4679
        %v4794 = vpack.c.bf16 %v4686, %v4683
        %v4795 = vpack.c.bf16 %v4687, %v4684
        %v4796 = vpack.c.bf16 %v4688, %v4685
        %v4797 = vpack.c.bf16 %v4692, %v4689
        %v4798 = vpack.c.bf16 %v4693, %v4690
        %v4799 = vpack.c.bf16 %v4694, %v4691
        %v4800 = vpack.c.bf16 %v4698, %v4695
        %v4801 = vpack.c.bf16 %v4699, %v4696
        %v4802 = vpack.c.bf16 %v4700, %v4697
        %v4803 = vpack.c.bf16 %v4704, %v4701
        %v4804 = vpack.c.bf16 %v4705, %v4702
        %v4805 = vpack.c.bf16 %v4706, %v4703
        %v4806 = vpack.c.bf16 %v4710, %v4707
        %v4807 = vpack.c.bf16 %v4711, %v4708
        %v4808 = vpack.c.bf16 %v4712, %v4709
        %v4809 = vpack.c.bf16 %v4716, %v4713
        %v4810 = vpack.c.bf16 %v4717, %v4714
        %v4811 = vpack.c.bf16 %v4718, %v4715
        %v4812 = vpack.c.bf16 %v4722, %v4719
        %v4813 = vpack.c.bf16 %v4723, %v4720
        %v4814 = vpack.c.bf16 %v4724, %v4721
        %v4815 = vpack.c.bf16 %v4728, %v4725
        %v4816 = vpack.c.bf16 %v4729, %v4726
        %v4817 = vpack.c.bf16 %v4730, %v4727
        %v4818 = vpack.c.bf16 %v4734, %v4731
        %v4819 = vpack.c.bf16 %v4735, %v4732
        %v4820 = vpack.c.bf16 %v4736, %v4733
        %v4821 = vpack.c.bf16 %v4740, %v4737
        %v4822 = vpack.c.bf16 %v4741, %v4738
        %v4823 = vpack.c.bf16 %v4742, %v4739
        %v4824 = vpack.c.bf16 %v4746, %v4743
        %v4825 = vpack.c.bf16 %v4747, %v4744
        %v4826 = vpack.c.bf16 %v4748, %v4745
        %v4827 = vpack.c.bf16 %v4752, %v4749
        %v4828 = vpack.c.bf16 %v4753, %v4750
        %v4829 = vpack.c.bf16 %v4754, %v4751
        %v4830 = vpack.c.bf16 %v4758, %v4755
        %v4831 = vpack.c.bf16 %v4759, %v4756
        %v4832 = vpack.c.bf16 %v4760, %v4757
        %v4833 = vpack.c.bf16 %v4764, %v4761
        %v4834 = vpack.c.bf16 %v4765, %v4762
        %v4835 = vpack.c.bf16 %v4766, %v4763
        %v4836 = vpack.c.bf16 %v4770, %v4767
        %v4837 = vpack.c.bf16 %v4771, %v4768
        %v4838 = vpack.c.bf16 %v4772, %v4769
        %v4839 = vpack.c.bf16 %v4776, %v4773
        %v4840 = vpack.c.bf16 %v4777, %v4774
        %v4841 = vpack.c.bf16 %v4778, %v4775
        %v4842 = vpack.c.bf16 %v4782, %v4779
        %v4843 = vpack.c.bf16 %v4783, %v4780
        %v4844 = vpack.c.bf16 %v4784, %v4781
        %v4845 = vpack.c.bf16 %v4788, %v4785
        %v4846 = vpack.c.bf16 %v4789, %v4786
        %v4847 = vpack.c.bf16 %v4790, %v4787
        %v4849 = vmul.bf16 %v4791, 1069105081
        %v4850 = vpow.bf16.pop %v4849
        %v4852 = vmul.bf16 %v4792, 1069105081
        %v4853 = vpow.bf16.pop %v4852
        %v4855 = vmul.bf16 %v4793, 1069105081
        %v4856 = vpow.bf16.pop %v4855
        %v4858 = vmul.bf16 %v4794, 1069105081
        %v4859 = vpow.bf16.pop %v4858
        %v4861 = vmul.bf16 %v4795, 1069105081
        %v4862 = vpow.bf16.pop %v4861
        %v4864 = vmul.bf16 %v4796, 1069105081
        %v4865 = vpow.bf16.pop %v4864
        %v4867 = vmul.bf16 %v4797, 1069105081
        %v4868 = vpow.bf16.pop %v4867
        %v4870 = vmul.bf16 %v4798, 1069105081
        %v4871 = vpow.bf16.pop %v4870
        %v4873 = vmul.bf16 %v4799, 1069105081
        %v4874 = vpow.bf16.pop %v4873
        %v4876 = vmul.bf16 %v4800, 1069105081
        %v4877 = vpow.bf16.pop %v4876
        %v4879 = vmul.bf16 %v4801, 1069105081
        %v4880 = vpow.bf16.pop %v4879
        %v4882 = vmul.bf16 %v4802, 1069105081
        %v4883 = vpow.bf16.pop %v4882
        %v4885 = vmul.bf16 %v4803, 1069105081
        %v4886 = vpow.bf16.pop %v4885
        %v4888 = vmul.bf16 %v4804, 1069105081
        %v4889 = vpow.bf16.pop %v4888
        %v4891 = vmul.bf16 %v4805, 1069105081
        %v4892 = vpow.bf16.pop %v4891
        %v4894 = vmul.bf16 %v4806, 1069105081
        %v4895 = vpow.bf16.pop %v4894
        %v4897 = vmul.bf16 %v4807, 1069105081
        %v4898 = vpow.bf16.pop %v4897
        %v4900 = vmul.bf16 %v4808, 1069105081
        %v4901 = vpow.bf16.pop %v4900
        %v4903 = vmul.bf16 %v4809, 1069105081
        %v4904 = vpow.bf16.pop %v4903
        %v4906 = vmul.bf16 %v4810, 1069105081
        %v4907 = vpow.bf16.pop %v4906
        %v4909 = vmul.bf16 %v4811, 1069105081
        %v4910 = vpow.bf16.pop %v4909
        %v4912 = vmul.bf16 %v4812, 1069105081
        %v4913 = vpow.bf16.pop %v4912
        %v4915 = vmul.bf16 %v4813, 1069105081
        %v4916 = vpow.bf16.pop %v4915
        %v4918 = vmul.bf16 %v4814, 1069105081
        %v4919 = vpow.bf16.pop %v4918
        %v4921 = vmul.bf16 %v4815, 1069105081
        %v4922 = vpow.bf16.pop %v4921
        %v4924 = vmul.bf16 %v4816, 1069105081
        %v4925 = vpow.bf16.pop %v4924
        %v4927 = vmul.bf16 %v4817, 1069105081
        %v4928 = vpow.bf16.pop %v4927
        %v4930 = vmul.bf16 %v4818, 1069105081
        %v4931 = vpow.bf16.pop %v4930
        %v4933 = vmul.bf16 %v4819, 1069105081
        %v4934 = vpow.bf16.pop %v4933
        %v4936 = vmul.bf16 %v4820, 1069105081
        %v4937 = vpow.bf16.pop %v4936
        %v4939 = vmul.bf16 %v4821, 1069105081
        %v4940 = vpow.bf16.pop %v4939
        %v4942 = vmul.bf16 %v4822, 1069105081
        %v4943 = vpow.bf16.pop %v4942
        %v4945 = vmul.bf16 %v4823, 1069105081
        %v4946 = vpow.bf16.pop %v4945
        %v4948 = vmul.bf16 %v4824, 1069105081
        %v4949 = vpow.bf16.pop %v4948
        %v4951 = vmul.bf16 %v4825, 1069105081
        %v4952 = vpow.bf16.pop %v4951
        %v4954 = vmul.bf16 %v4826, 1069105081
        %v4955 = vpow.bf16.pop %v4954
        %v4957 = vmul.bf16 %v4827, 1069105081
        %v4958 = vpow.bf16.pop %v4957
        %v4960 = vmul.bf16 %v4828, 1069105081
        %v4961 = vpow.bf16.pop %v4960
        %v4963 = vmul.bf16 %v4829, 1069105081
        %v4964 = vpow.bf16.pop %v4963
        %v4966 = vmul.bf16 %v4830, 1069105081
        %v4967 = vpow.bf16.pop %v4966
        %v4969 = vmul.bf16 %v4831, 1069105081
        %v4970 = vpow.bf16.pop %v4969
        %v4972 = vmul.bf16 %v4832, 1069105081
        %v4973 = vpow.bf16.pop %v4972
        %v4975 = vmul.bf16 %v4833, 1069105081
        %v4976 = vpow.bf16.pop %v4975
        %v4978 = vmul.bf16 %v4834, 1069105081
        %v4979 = vpow.bf16.pop %v4978
        %v4981 = vmul.bf16 %v4835, 1069105081
        %v4982 = vpow.bf16.pop %v4981
        %v4984 = vmul.bf16 %v4836, 1069105081
        %v4985 = vpow.bf16.pop %v4984
        %v4987 = vmul.bf16 %v4837, 1069105081
        %v4988 = vpow.bf16.pop %v4987
        %v4990 = vmul.bf16 %v4838, 1069105081
        %v4991 = vpow.bf16.pop %v4990
        %v4993 = vmul.bf16 %v4839, 1069105081
        %v4994 = vpow.bf16.pop %v4993
        %v4996 = vmul.bf16 %v4840, 1069105081
        %v4997 = vpow.bf16.pop %v4996
        %v4999 = vmul.bf16 %v4841, 1069105081
        %v5000 = vpow.bf16.pop %v4999
        %v5002 = vmul.bf16 %v4842, 1069105081
        %v5003 = vpow.bf16.pop %v5002
        %v5005 = vmul.bf16 %v4843, 1069105081
        %v5006 = vpow.bf16.pop %v5005
        %v5008 = vmul.bf16 %v4844, 1069105081
        %v5009 = vpow.bf16.pop %v5008
        %v5011 = vmul.bf16 %v4845, 1069105081
        %v5012 = vpow.bf16.pop %v5011
        %v5014 = vmul.bf16 %v4846, 1069105081
        %v5015 = vpow.bf16.pop %v5014
        %v5017 = vmul.bf16 %v4847, 1069105081
        %v5018 = vpow.bf16.pop %v5017
        %v5019 = vpack.c.bf16 %v3891, %v3891
        %v5020 = vpack.c.bf16 %v3893, %v3893
        %v5021 = vpack.c.bf16 %v3950, %v3950
        %v5023 = vsel %vm1075, %v5021, 0
        %v5026 = vsel %vm1075, %v4856, 0
        %v5029 = vsel %vm1075, %v4865, 0
        %v5032 = vsel %vm1075, %v4874, 0
        %v5035 = vsel %vm1075, %v4883, 0
        %v5038 = vsel %vm1075, %v4892, 0
        %v5041 = vsel %vm1075, %v4901, 0
        %v5044 = vsel %vm1075, %v4910, 0
        %v5047 = vsel %vm1075, %v4919, 0
        %v5050 = vsel %vm1075, %v4928, 0
        %v5053 = vsel %vm1075, %v4937, 0
        %v5056 = vsel %vm1075, %v4946, 0
        %v5059 = vsel %vm1075, %v4955, 0
        %v5062 = vsel %vm1075, %v4964, 0
        %v5065 = vsel %vm1075, %v4973, 0
        %v5068 = vsel %vm1075, %v4982, 0
        %v5071 = vsel %vm1075, %v4991, 0
        %v5074 = vsel %vm1075, %v5000, 0
        %v5077 = vsel %vm1075, %v5009, 0
        %v5080 = vsel %vm1075, %v5018, 0
        %5082 = vmatprep.subr.bf16.mxu0 %v4853
        %5083 = vmatpush1.bf16.xpose.msra.mxu0 %v4850
        %5084 = vmatprep.subr.bf16.mxu0 %v4862
        %5085 = vmatpush1.bf16.xpose.msra.mxu0 %v4859
        %5086 = vmatprep.subr.bf16.mxu0 %v4871
        %5087 = vmatpush1.bf16.xpose.msra.mxu0 %v4868
        %5088 = vmatprep.subr.bf16.mxu0 %v4880
        %5089 = vmatpush1.bf16.xpose.msra.mxu0 %v4877
        %5090 = vmatprep.subr.bf16.mxu0 %v4889
        %5091 = vmatpush1.bf16.xpose.msra.mxu0 %v4886
        %5092 = vmatprep.subr.bf16.mxu0 %v4898
        %5093 = vmatpush1.bf16.xpose.msra.mxu0 %v4895
        %5094 = vmatprep.subr.bf16.mxu0 %v4907
        %5095 = vmatpush1.bf16.xpose.msra.mxu0 %v4904
        %5096 = vmatprep.subr.bf16.mxu0 %v4916
        %5097 = vmatpush1.bf16.xpose.msra.mxu0 %v4913
        %5098 = vmatprep.subr.bf16.mxu0 %v4925
        %5099 = vmatpush1.bf16.xpose.msra.mxu0 %v4922
        %5100 = vmatprep.subr.bf16.mxu0 %v4934
        %5101 = vmatpush1.bf16.xpose.msra.mxu0 %v4931
        %5102 = vmatprep.subr.bf16.mxu0 %v4943
        %5103 = vmatpush1.bf16.xpose.msra.mxu0 %v4940
        %5104 = vmatprep.subr.bf16.mxu0 %v4952
        %5105 = vmatpush1.bf16.xpose.msra.mxu0 %v4949
        %5106 = vmatprep.subr.bf16.mxu0 %v4961
        %5107 = vmatpush1.bf16.xpose.msra.mxu0 %v4958
        %5108 = vmatprep.subr.bf16.mxu0 %v4970
        %5109 = vmatpush1.bf16.xpose.msra.mxu0 %v4967
        %5110 = vmatprep.subr.bf16.mxu0 %v4979
        %5111 = vmatpush1.bf16.xpose.msra.mxu0 %v4976
        %5112 = vmatprep.subr.bf16.mxu0 %v4988
        %5113 = vmatpush1.bf16.xpose.msra.mxu0 %v4985
        %5114 = vmatprep.mubr.bf16.mxu0 %v5020
        %5115 = vmatmul.mubr.bf16.gmra.mrb[0].mxu0 %v5019
        %v5116 = vpop.f32.mrb[0].mxu0
        %v5117 = vadd.f32 0.0, %v5116
        %v5118 = vpop.f32.mrb[0].mxu0
        %v5119 = vadd.f32 0.0, %v5118
        %v5120 = vpop.f32.mrb[0].mxu0
        %v5121 = vpop.f32.mrb[0].mxu0
        %5122 = vdwg.mxu0
        %5123 = vmatprep.subr.bf16.mxu0 0
        %5124 = vmatpush1.bf16.xpose.msra.mxu0 %v5026
        %5125 = vmatprep.subr.bf16.mxu0 0
        %5126 = vmatpush1.bf16.xpose.msra.mxu0 %v5029
        %5127 = vmatprep.subr.bf16.mxu0 0
        %5128 = vmatpush1.bf16.xpose.msra.mxu0 %v5032
        %5129 = vmatprep.subr.bf16.mxu0 0
        %5130 = vmatpush1.bf16.xpose.msra.mxu0 %v5035
        %5131 = vmatprep.subr.bf16.mxu0 0
        %5132 = vmatpush1.bf16.xpose.msra.mxu0 %v5038
        %5133 = vmatprep.subr.bf16.mxu0 0
        %5134 = vmatpush1.bf16.xpose.msra.mxu0 %v5041
        %5135 = vmatprep.subr.bf16.mxu0 0
        %5136 = vmatpush1.bf16.xpose.msra.mxu0 %v5044
        %5137 = vmatprep.subr.bf16.mxu0 0
        %5138 = vmatpush1.bf16.xpose.msra.mxu0 %v5047
        %5139 = vmatprep.subr.bf16.mxu0 0
        %5140 = vmatpush1.bf16.xpose.msra.mxu0 %v5050
        %5141 = vmatprep.subr.bf16.mxu0 0
        %5142 = vmatpush1.bf16.xpose.msra.mxu0 %v5053
        %5143 = vmatprep.subr.bf16.mxu0 0
        %5144 = vmatpush1.bf16.xpose.msra.mxu0 %v5056
        %5145 = vmatprep.subr.bf16.mxu0 0
        %5146 = vmatpush1.bf16.xpose.msra.mxu0 %v5059
        %5147 = vmatprep.subr.bf16.mxu0 0
        %5148 = vmatpush1.bf16.xpose.msra.mxu0 %v5062
        %5149 = vmatprep.subr.bf16.mxu0 0
        %5150 = vmatpush1.bf16.xpose.msra.mxu0 %v5065
        %5151 = vmatprep.subr.bf16.mxu0 0
        %5152 = vmatpush1.bf16.xpose.msra.mxu0 %v5068
        %5153 = vmatprep.subr.bf16.mxu0 0
        %5154 = vmatpush1.bf16.xpose.msra.mxu0 %v5071
        %5155 = vmatprep.mubr.bf16.mxu0 0
        %5156 = vmatmul.mubr.bf16.gmra.mrb[0].mxu0 %v5023
        %v5157 = vpop.f32.mrb[0].mxu0
        %v5158 = vadd.f32 %v5117, %v5157
        %v5159 = vpop.f32.mrb[0].mxu0
        %v5160 = vadd.f32 %v5119, %v5159
        %v5161 = vpop.f32.mrb[0].mxu0
        %v5162 = vpop.f32.mrb[0].mxu0
        %5163 = vdwg.mxu0
        %5164 = vmatprep.subr.bf16.mxu0 %v4997
        %5165 = vmatpush1.bf16.xpose.msra.mxu0 %v4994
        %5166 = vmatprep.subr.bf16.mxu0 %v5006
        %5167 = vmatpush1.bf16.xpose.msra.mxu0 %v5003
        %5168 = vmatprep.subr.bf16.mxu0 %v5015
        %5169 = vmatpush1.bf16.xpose.msra.mxu0 %v5012
        %5170 = vmatprep.subr.bf16.mxu0 0
        %5171 = vmatpush1.bf16.xpose.msra.mxu0 0
        %5172 = vmatprep.subr.bf16.mxu0 0
        %5173 = vmatpush1.bf16.xpose.msra.mxu0 0
        %5174 = vmatprep.subr.bf16.mxu0 0
        %5175 = vmatpush1.bf16.xpose.msra.mxu0 0
        %5176 = vmatprep.subr.bf16.mxu0 0
        %5177 = vmatpush1.bf16.xpose.msra.mxu0 0
        %5178 = vmatprep.subr.bf16.mxu0 0
        %5179 = vmatpush1.bf16.xpose.msra.mxu0 0
        %5180 = vmatprep.subr.bf16.mxu0 0
        %5181 = vmatpush1.bf16.xpose.msra.mxu0 0
        %5182 = vmatprep.subr.bf16.mxu0 0
        %5183 = vmatpush1.bf16.xpose.msra.mxu0 0
        %5184 = vmatprep.subr.bf16.mxu0 0
        %5185 = vmatpush1.bf16.xpose.msra.mxu0 0
        %5186 = vmatprep.subr.bf16.mxu0 0
        %5187 = vmatpush1.bf16.xpose.msra.mxu0 0
        %5188 = vmatprep.subr.bf16.mxu0 0
        %5189 = vmatpush1.bf16.xpose.msra.mxu0 0
        %5190 = vmatprep.subr.bf16.mxu0 0
        %5191 = vmatpush1.bf16.xpose.msra.mxu0 0
        %5192 = vmatprep.subr.bf16.mxu0 0
        %5193 = vmatpush1.bf16.xpose.msra.mxu0 0
        %5194 = vmatprep.subr.bf16.mxu0 0
        %5195 = vmatpush1.bf16.xpose.msra.mxu0 0
        %5196 = vmatprep.mubr.bf16.mxu0 %v5020
        %5197 = vmatmul.mubr.bf16.gmra.mrb[0].mxu0 %v5019
        %v5198 = vpop.f32.mrb[0].mxu0
        %v5199 = vadd.f32 0.0, %v5198
        %v5200 = vpop.f32.mrb[0].mxu0
        %v5201 = vpop.f32.mrb[0].mxu0
        %v5202 = vpop.f32.mrb[0].mxu0
        %5203 = vdwg.mxu0
        %5204 = vmatprep.subr.bf16.mxu0 0
        %5205 = vmatpush1.bf16.xpose.msra.mxu0 %v5074
        %5206 = vmatprep.subr.bf16.mxu0 0
        %5207 = vmatpush1.bf16.xpose.msra.mxu0 %v5077
        %5208 = vmatprep.subr.bf16.mxu0 0
        %5209 = vmatpush1.bf16.xpose.msra.mxu0 %v5080
        %5210 = vmatprep.subr.bf16.mxu0 0
        %5211 = vmatpush1.bf16.xpose.msra.mxu0 0
        %5212 = vmatprep.subr.bf16.mxu0 0
        %5213 = vmatpush1.bf16.xpose.msra.mxu0 0
        %5214 = vmatprep.subr.bf16.mxu0 0
        %5215 = vmatpush1.bf16.xpose.msra.mxu0 0
        %5216 = vmatprep.subr.bf16.mxu0 0
        %5217 = vmatpush1.bf16.xpose.msra.mxu0 0
        %5218 = vmatprep.subr.bf16.mxu0 0
        %5219 = vmatpush1.bf16.xpose.msra.mxu0 0
        %5220 = vmatprep.subr.bf16.mxu0 0
        %5221 = vmatpush1.bf16.xpose.msra.mxu0 0
        %5222 = vmatprep.subr.bf16.mxu0 0
        %5223 = vmatpush1.bf16.xpose.msra.mxu0 0
        %5224 = vmatprep.subr.bf16.mxu0 0
        %5225 = vmatpush1.bf16.xpose.msra.mxu0 0
        %5226 = vmatprep.subr.bf16.mxu0 0
        %5227 = vmatpush1.bf16.xpose.msra.mxu0 0
        %5228 = vmatprep.subr.bf16.mxu0 0
        %5229 = vmatpush1.bf16.xpose.msra.mxu0 0
        %5230 = vmatprep.subr.bf16.mxu0 0
        %5231 = vmatpush1.bf16.xpose.msra.mxu0 0
        %5232 = vmatprep.subr.bf16.mxu0 0
        %5233 = vmatpush1.bf16.xpose.msra.mxu0 0
        %5234 = vmatprep.subr.bf16.mxu0 0
        %5235 = vmatpush1.bf16.xpose.msra.mxu0 0
        %5236 = vmatprep.mubr.bf16.mxu0 0
        %5237 = vmatmul.mubr.bf16.gmra.mrb[0].mxu0 %v5023
        %v5238 = vpop.f32.mrb[0].mxu0
        %v5239 = vadd.f32 %v5199, %v5238
        %v5240 = vpop.f32.mrb[0].mxu0
        %v5241 = vpop.f32.mrb[0].mxu0
        %v5242 = vpop.f32.mrb[0].mxu0
        %5243 = vdwg.mxu0
        %v5244 = vrcp.pop %v5158
        %v5245 = vrcp.pop %v5160
        %v5246 = vrcp.pop %v5239
        %v5247 = vlaneseq
        %v5248 = vshrl.u32 %v5247, 7
        %v5249 = vsub.s32 0, %v5248
        %v5250 = vrot.slane %v5244, %v5249
        %v5251 = vlaneseq
        %v5252 = vshrl.u32 %v5251, 7
        %v5253 = vsub.s32 0, %v5252
        %v5254 = vrot.slane %v5245, %v5253
        %v5255 = vlaneseq
        %v5256 = vshrl.u32 %v5255, 7
        %v5257 = vsub.s32 0, %v5256
        %v5258 = vrot.slane %v5246, %v5257
        %v5259 = vmul.f32 %v5158, %v5250
        %v5260 = vmul.f32 %v5160, %v5254
        %v5261 = vmul.f32 %v5239, %v5258
        %v5262 = vld [vmem:[%s3757 + $0x20] sm:$0x7]
        %v5263 = vpack.c.bf16 %v5259, %v5259
        %v5264 = vpack.c.bf16 %v5260, %v5260
        %v5265 = vpack.c.bf16 %v5261, %v5261
        %v5267 = vsel %vm598, %v5262, 0
        %v5270 = vsel %vm656, %v5263, 0
        %v5273 = vsel %vm656, %v5264, 0
        %v5276 = vsel %vm656, %v5265, 0
        %5278 = vmatprep.subr.bf16.mxu0 %v5273
        %5279 = vmatpush1.bf16.msra.mxu0 %v5270
        %5280 = vmatprep.subr.bf16.mxu0 0
        %5281 = vmatpush1.bf16.msra.mxu0 0
        %5282 = vmatprep.subr.bf16.mxu0 0
        %5283 = vmatpush1.bf16.msra.mxu0 0
        %5284 = vmatprep.subr.bf16.mxu0 0
        %5285 = vmatpush1.bf16.msra.mxu0 0
        %5286 = vmatprep.subr.bf16.mxu0 0
        %5287 = vmatpush1.bf16.msra.mxu0 0
        %5288 = vmatprep.subr.bf16.mxu0 0
        %5289 = vmatpush1.bf16.msra.mxu0 0
        %5290 = vmatprep.subr.bf16.mxu0 0
        %5291 = vmatpush1.bf16.msra.mxu0 0
        %5292 = vmatprep.subr.bf16.mxu0 0
        %5293 = vmatpush1.bf16.msra.mxu0 0
        %5294 = vmatprep.subr.bf16.mxu0 0
        %5295 = vmatpush1.bf16.msra.mxu0 0
        %5296 = vmatprep.subr.bf16.mxu0 0
        %5297 = vmatpush1.bf16.msra.mxu0 0
        %5298 = vmatprep.subr.bf16.mxu0 0
        %5299 = vmatpush1.bf16.msra.mxu0 0
        %5300 = vmatprep.subr.bf16.mxu0 0
        %5301 = vmatpush1.bf16.msra.mxu0 0
        %5302 = vmatprep.subr.bf16.mxu0 0
        %5303 = vmatpush1.bf16.msra.mxu0 0
        %5304 = vmatprep.subr.bf16.mxu0 0
        %5305 = vmatpush1.bf16.msra.mxu0 0
        %5306 = vmatprep.subr.bf16.mxu0 0
        %5307 = vmatpush1.bf16.msra.mxu0 0
        %5308 = vmatprep.subr.bf16.mxu0 0
        %5309 = vmatpush1.bf16.msra.mxu0 0
        %5310 = vmatprep.mubr.bf16.mxu0 0
        %5311 = vmatmul.mubr.bf16.gmra.mrb[0].mxu0 %v5267
        %v5312 = vpop.f32.mrb[0].mxu0
        %v5313 = vadd.f32 0.0, %v5312
        %v5314 = vpop.f32.mrb[0].mxu0
        %v5315 = vadd.f32 0.0, %v5314
        %v5316 = vpop.f32.mrb[0].mxu0
        %v5317 = vpop.f32.mrb[0].mxu0
        %5318 = vdwg.mxu0
        %5319 = vmatprep.subr.bf16.mxu0 0
        %5320 = vmatpush1.bf16.msra.mxu0 %v5276
        %5321 = vmatprep.subr.bf16.mxu0 0
        %5322 = vmatpush1.bf16.msra.mxu0 0
        %5323 = vmatprep.subr.bf16.mxu0 0
        %5324 = vmatpush1.bf16.msra.mxu0 0
        %5325 = vmatprep.subr.bf16.mxu0 0
        %5326 = vmatpush1.bf16.msra.mxu0 0
        %5327 = vmatprep.subr.bf16.mxu0 0
        %5328 = vmatpush1.bf16.msra.mxu0 0
        %5329 = vmatprep.subr.bf16.mxu0 0
        %5330 = vmatpush1.bf16.msra.mxu0 0
        %5331 = vmatprep.subr.bf16.mxu0 0
        %5332 = vmatpush1.bf16.msra.mxu0 0
        %5333 = vmatprep.subr.bf16.mxu0 0
        %5334 = vmatpush1.bf16.msra.mxu0 0
        %5335 = vmatprep.subr.bf16.mxu0 0
        %5336 = vmatpush1.bf16.msra.mxu0 0
        %5337 = vmatprep.subr.bf16.mxu0 0
        %5338 = vmatpush1.bf16.msra.mxu0 0
        %5339 = vmatprep.subr.bf16.mxu0 0
        %5340 = vmatpush1.bf16.msra.mxu0 0
        %5341 = vmatprep.subr.bf16.mxu0 0
        %5342 = vmatpush1.bf16.msra.mxu0 0
        %5343 = vmatprep.subr.bf16.mxu0 0
        %5344 = vmatpush1.bf16.msra.mxu0 0
        %5345 = vmatprep.subr.bf16.mxu0 0
        %5346 = vmatpush1.bf16.msra.mxu0 0
        %5347 = vmatprep.subr.bf16.mxu0 0
        %5348 = vmatpush1.bf16.msra.mxu0 0
        %5349 = vmatprep.subr.bf16.mxu0 0
        %5350 = vmatpush1.bf16.msra.mxu0 0
        %5351 = vmatprep.mubr.bf16.mxu0 0
        %5352 = vmatmul.mubr.bf16.gmra.mrb[0].mxu0 %v5267
        %v5353 = vpop.f32.mrb[0].mxu0
        %v5354 = vadd.f32 0.0, %v5353
        %v5355 = vpop.f32.mrb[0].mxu0
        %v5356 = vpop.f32.mrb[0].mxu0
        %v5357 = vpop.f32.mrb[0].mxu0
        %5358 = vdwg.mxu0
        %5360 = vset.pattern.permute.xlu0 0
        %5361 = vperm.xlu0 %5360, %v3956
        %v5362 = vpop.permute.xlu0 %5361
        %v5364 = vadd.f32 %v5362, %v5313
        %v5365 = vadd.f32 %v5362, %v5315
        %v5366 = vadd.f32 %v5362, %v5354
        %v5367 = vpack.c.bf16 %v3875, %v3875
        %v5368 = vpack.c.bf16 %v3877, %v3877
        %v5369 = vpack.c.bf16 %v3937, %v3937
        %v5370 = vpack.c.bf16 %v3885, %v3885
        %v5371 = vpack.c.bf16 %v3887, %v3887
        %v5372 = vpack.c.bf16 %v3945, %v3945
        %5373 = vxpose.xlu0.c.b16.start [1/8] %v5367, 128
        %5374 = vxpose.xlu0.c.b16.cont [2/8] 0, 128
        %5375 = vxpose.xlu0.c.b16.cont [3/8] 0, 128
        %5376 = vxpose.xlu0.c.b16.cont [4/8] 0, 128
        %5377 = vxpose.xlu0.c.b16.cont [5/8] 0, 128
        %5378 = vxpose.xlu0.c.b16.cont [6/8] 0, 128
        %5379 = vxpose.xlu0.c.b16.cont [7/8] 0, 128
        %5380 = vxpose.xlu0.c.b16.end [8/8] 0, 128
        %v5381 = vpop.trf.xlu0
        %v5382 = vpop.trf.xlu0
        %v5383 = vpop.trf.xlu0
        %v5384 = vpop.trf.xlu0
        %v5385 = vpop.trf.xlu0
        %v5386 = vpop.trf.xlu0
        %v5387 = vpop.trf.xlu0
        %v5388 = vpop.trf.xlu0
        %5389 = vxpose.xlu0.c.b16.start [1/8] %v5368, 128
        %5390 = vxpose.xlu0.c.b16.cont [2/8] 0, 128
        %5391 = vxpose.xlu0.c.b16.cont [3/8] 0, 128
        %5392 = vxpose.xlu0.c.b16.cont [4/8] 0, 128
        %5393 = vxpose.xlu0.c.b16.cont [5/8] 0, 128
        %5394 = vxpose.xlu0.c.b16.cont [6/8] 0, 128
        %5395 = vxpose.xlu0.c.b16.cont [7/8] 0, 128
        %5396 = vxpose.xlu0.c.b16.end [8/8] 0, 128
        %v5397 = vpop.trf.xlu0
        %v5398 = vpop.trf.xlu0
        %v5399 = vpop.trf.xlu0
        %v5400 = vpop.trf.xlu0
        %v5401 = vpop.trf.xlu0
        %v5402 = vpop.trf.xlu0
        %v5403 = vpop.trf.xlu0
        %v5404 = vpop.trf.xlu0
        %5405 = vxpose.xlu0.c.b16.start [1/8] %v5369, 128
        %5406 = vxpose.xlu0.c.b16.cont [2/8] 0, 128
        %5407 = vxpose.xlu0.c.b16.cont [3/8] 0, 128
        %5408 = vxpose.xlu0.c.b16.cont [4/8] 0, 128
        %5409 = vxpose.xlu0.c.b16.cont [5/8] 0, 128
        %5410 = vxpose.xlu0.c.b16.cont [6/8] 0, 128
        %5411 = vxpose.xlu0.c.b16.cont [7/8] 0, 128
        %5412 = vxpose.xlu0.c.b16.end [8/8] 0, 128
        %v5413 = vpop.trf.xlu0
        %v5414 = vpop.trf.xlu0
        %v5415 = vpop.trf.xlu0
        %v5416 = vpop.trf.xlu0
        %v5417 = vpop.trf.xlu0
        %v5418 = vpop.trf.xlu0
        %v5419 = vpop.trf.xlu0
        %v5420 = vpop.trf.xlu0
        %v5422 = vsel %vm598, %v5381, 0
        %v5425 = vsel %vm598, %v5382, 0
        %v5428 = vsel %vm598, %v5383, 0
        %v5431 = vsel %vm598, %v5384, 0
        %v5434 = vsel %vm598, %v5385, 0
        %v5437 = vsel %vm598, %v5386, 0
        %v5440 = vsel %vm598, %v5387, 0
        %v5443 = vsel %vm598, %v5388, 0
        %v5446 = vsel %vm598, %v5397, 0
        %v5449 = vsel %vm598, %v5398, 0
        %v5452 = vsel %vm598, %v5399, 0
        %v5455 = vsel %vm598, %v5400, 0
        %v5458 = vsel %vm598, %v5401, 0
        %v5461 = vsel %vm598, %v5402, 0
        %v5464 = vsel %vm598, %v5403, 0
        %v5467 = vsel %vm598, %v5404, 0
        %v5470 = vsel %vm598, %v5413, 0
        %v5473 = vsel %vm598, %v5414, 0
        %v5476 = vsel %vm598, %v5415, 0
        %v5479 = vsel %vm656, %v5370, 0
        %v5482 = vsel %vm656, %v5371, 0
        %v5485 = vsel %vm656, %v5372, 0
        %5487 = vmatprep.subr.bf16.mxu0 %v5482
        %5488 = vmatpush1.bf16.msra.mxu0 %v5479
        %5489 = vmatprep.subr.bf16.mxu0 0
        %5490 = vmatpush1.bf16.msra.mxu0 0
        %5491 = vmatprep.subr.bf16.mxu0 0
        %5492 = vmatpush1.bf16.msra.mxu0 0
        %5493 = vmatprep.subr.bf16.mxu0 0
        %5494 = vmatpush1.bf16.msra.mxu0 0
        %5495 = vmatprep.subr.bf16.mxu0 0
        %5496 = vmatpush1.bf16.msra.mxu0 0
        %5497 = vmatprep.subr.bf16.mxu0 0
        %5498 = vmatpush1.bf16.msra.mxu0 0
        %5499 = vmatprep.subr.bf16.mxu0 0
        %5500 = vmatpush1.bf16.msra.mxu0 0
        %5501 = vmatprep.subr.bf16.mxu0 0
        %5502 = vmatpush1.bf16.msra.mxu0 0
        %5503 = vmatprep.subr.bf16.mxu0 0
        %5504 = vmatpush1.bf16.msra.mxu0 0
        %5505 = vmatprep.subr.bf16.mxu0 0
        %5506 = vmatpush1.bf16.msra.mxu0 0
        %5507 = vmatprep.subr.bf16.mxu0 0
        %5508 = vmatpush1.bf16.msra.mxu0 0
        %5509 = vmatprep.subr.bf16.mxu0 0
        %5510 = vmatpush1.bf16.msra.mxu0 0
        %5511 = vmatprep.subr.bf16.mxu0 0
        %5512 = vmatpush1.bf16.msra.mxu0 0
        %5513 = vmatprep.subr.bf16.mxu0 0
        %5514 = vmatpush1.bf16.msra.mxu0 0
        %5515 = vmatprep.subr.bf16.mxu0 0
        %5516 = vmatpush1.bf16.msra.mxu0 0
        %5517 = vmatprep.subr.bf16.mxu0 0
        %5518 = vmatpush1.bf16.msra.mxu0 0
        %5519 = vmatprep.mubr.bf16.mxu0 0
        %5520 = vmatmul.mubr.bf16.gmra.mrb[0].mxu0 %v5422
        %v5521 = vpop.f32.mrb[0].mxu0
        %v5522 = vadd.f32 0.0, %v5521
        %v5523 = vpop.f32.mrb[0].mxu0
        %v5524 = vadd.f32 0.0, %v5523
        %v5525 = vpop.f32.mrb[0].mxu0
        %v5526 = vadd.f32 0.0, %v5525
        %v5527 = vpop.f32.mrb[0].mxu0
        %v5528 = vadd.f32 0.0, %v5527
        %5529 = vmatprep.mubr.bf16.mxu0 0
        %5530 = vmatmul.mubr.bf16.gmra.mrb[0].mxu0 %v5425
        %v5531 = vpop.f32.mrb[0].mxu0
        %v5532 = vadd.f32 0.0, %v5531
        %v5533 = vpop.f32.mrb[0].mxu0
        %v5534 = vadd.f32 0.0, %v5533
        %v5535 = vpop.f32.mrb[0].mxu0
        %v5536 = vadd.f32 0.0, %v5535
        %v5537 = vpop.f32.mrb[0].mxu0
        %v5538 = vadd.f32 0.0, %v5537
        %5539 = vmatprep.mubr.bf16.mxu0 0
        %5540 = vmatmul.mubr.bf16.gmra.mrb[0].mxu0 %v5428
        %v5541 = vpop.f32.mrb[0].mxu0
        %v5542 = vadd.f32 0.0, %v5541
        %v5543 = vpop.f32.mrb[0].mxu0
        %v5544 = vadd.f32 0.0, %v5543
        %v5545 = vpop.f32.mrb[0].mxu0
        %v5546 = vadd.f32 0.0, %v5545
        %v5547 = vpop.f32.mrb[0].mxu0
        %v5548 = vadd.f32 0.0, %v5547
        %5549 = vmatprep.mubr.bf16.mxu0 0
        %5550 = vmatmul.mubr.bf16.gmra.mrb[0].mxu0 %v5431
        %v5551 = vpop.f32.mrb[0].mxu0
        %v5552 = vadd.f32 0.0, %v5551
        %v5553 = vpop.f32.mrb[0].mxu0
        %v5554 = vadd.f32 0.0, %v5553
        %v5555 = vpop.f32.mrb[0].mxu0
        %v5556 = vadd.f32 0.0, %v5555
        %v5557 = vpop.f32.mrb[0].mxu0
        %v5558 = vadd.f32 0.0, %v5557
        %5559 = vmatprep.mubr.bf16.mxu0 0
        %5560 = vmatmul.mubr.bf16.gmra.mrb[0].mxu0 %v5434
        %v5561 = vpop.f32.mrb[0].mxu0
        %v5562 = vadd.f32 0.0, %v5561
        %v5563 = vpop.f32.mrb[0].mxu0
        %v5564 = vadd.f32 0.0, %v5563
        %v5565 = vpop.f32.mrb[0].mxu0
        %v5566 = vadd.f32 0.0, %v5565
        %v5567 = vpop.f32.mrb[0].mxu0
        %v5568 = vadd.f32 0.0, %v5567
        %5569 = vmatprep.mubr.bf16.mxu0 0
        %5570 = vmatmul.mubr.bf16.gmra.mrb[0].mxu0 %v5437
        %v5571 = vpop.f32.mrb[0].mxu0
        %v5572 = vadd.f32 0.0, %v5571
        %v5573 = vpop.f32.mrb[0].mxu0
        %v5574 = vadd.f32 0.0, %v5573
        %v5575 = vpop.f32.mrb[0].mxu0
        %v5576 = vadd.f32 0.0, %v5575
        %v5577 = vpop.f32.mrb[0].mxu0
        %v5578 = vadd.f32 0.0, %v5577
        %5579 = vmatprep.mubr.bf16.mxu0 0
        %5580 = vmatmul.mubr.bf16.gmra.mrb[0].mxu0 %v5440
        %v5581 = vpop.f32.mrb[0].mxu0
        %v5582 = vadd.f32 0.0, %v5581
        %v5583 = vpop.f32.mrb[0].mxu0
        %v5584 = vadd.f32 0.0, %v5583
        %v5585 = vpop.f32.mrb[0].mxu0
        %v5586 = vadd.f32 0.0, %v5585
        %v5587 = vpop.f32.mrb[0].mxu0
        %v5588 = vadd.f32 0.0, %v5587
        %5589 = vmatprep.mubr.bf16.mxu0 0
        %5590 = vmatmul.mubr.bf16.gmra.mrb[0].mxu0 %v5443
        %v5591 = vpop.f32.mrb[0].mxu0
        %v5592 = vadd.f32 0.0, %v5591
        %v5593 = vpop.f32.mrb[0].mxu0
        %v5594 = vadd.f32 0.0, %v5593
        %v5595 = vpop.f32.mrb[0].mxu0
        %v5596 = vadd.f32 0.0, %v5595
        %v5597 = vpop.f32.mrb[0].mxu0
        %v5598 = vadd.f32 0.0, %v5597
        %5599 = vmatprep.mubr.bf16.mxu0 0
        %5600 = vmatmul.mubr.bf16.gmra.mrb[0].mxu0 %v5446
        %v5601 = vpop.f32.mrb[0].mxu0
        %v5602 = vadd.f32 0.0, %v5601
        %v5603 = vpop.f32.mrb[0].mxu0
        %v5604 = vadd.f32 0.0, %v5603
        %v5605 = vpop.f32.mrb[0].mxu0
        %v5606 = vadd.f32 0.0, %v5605
        %v5607 = vpop.f32.mrb[0].mxu0
        %v5608 = vadd.f32 0.0, %v5607
        %5609 = vmatprep.mubr.bf16.mxu0 0
        %5610 = vmatmul.mubr.bf16.gmra.mrb[0].mxu0 %v5449
        %v5611 = vpop.f32.mrb[0].mxu0
        %v5612 = vadd.f32 0.0, %v5611
        %v5613 = vpop.f32.mrb[0].mxu0
        %v5614 = vadd.f32 0.0, %v5613
        %v5615 = vpop.f32.mrb[0].mxu0
        %v5616 = vadd.f32 0.0, %v5615
        %v5617 = vpop.f32.mrb[0].mxu0
        %v5618 = vadd.f32 0.0, %v5617
        %5619 = vmatprep.mubr.bf16.mxu0 0
        %5620 = vmatmul.mubr.bf16.gmra.mrb[0].mxu0 %v5452
        %v5621 = vpop.f32.mrb[0].mxu0
        %v5622 = vadd.f32 0.0, %v5621
        %v5623 = vpop.f32.mrb[0].mxu0
        %v5624 = vadd.f32 0.0, %v5623
        %v5625 = vpop.f32.mrb[0].mxu0
        %v5626 = vadd.f32 0.0, %v5625
        %v5627 = vpop.f32.mrb[0].mxu0
        %v5628 = vadd.f32 0.0, %v5627
        %5629 = vmatprep.mubr.bf16.mxu0 0
        %5630 = vmatmul.mubr.bf16.gmra.mrb[0].mxu0 %v5455
        %v5631 = vpop.f32.mrb[0].mxu0
        %v5632 = vadd.f32 0.0, %v5631
        %v5633 = vpop.f32.mrb[0].mxu0
        %v5634 = vadd.f32 0.0, %v5633
        %v5635 = vpop.f32.mrb[0].mxu0
        %v5636 = vadd.f32 0.0, %v5635
        %v5637 = vpop.f32.mrb[0].mxu0
        %v5638 = vadd.f32 0.0, %v5637
        %5639 = vmatprep.mubr.bf16.mxu0 0
        %5640 = vmatmul.mubr.bf16.gmra.mrb[0].mxu0 %v5458
        %v5641 = vpop.f32.mrb[0].mxu0
        %v5642 = vadd.f32 0.0, %v5641
        %v5643 = vpop.f32.mrb[0].mxu0
        %v5644 = vadd.f32 0.0, %v5643
        %v5645 = vpop.f32.mrb[0].mxu0
        %v5646 = vadd.f32 0.0, %v5645
        %v5647 = vpop.f32.mrb[0].mxu0
        %v5648 = vadd.f32 0.0, %v5647
        %5649 = vmatprep.mubr.bf16.mxu0 0
        %5650 = vmatmul.mubr.bf16.gmra.mrb[0].mxu0 %v5461
        %v5651 = vpop.f32.mrb[0].mxu0
        %v5652 = vadd.f32 0.0, %v5651
        %v5653 = vpop.f32.mrb[0].mxu0
        %v5654 = vadd.f32 0.0, %v5653
        %v5655 = vpop.f32.mrb[0].mxu0
        %v5656 = vadd.f32 0.0, %v5655
        %v5657 = vpop.f32.mrb[0].mxu0
        %v5658 = vadd.f32 0.0, %v5657
        %5659 = vmatprep.mubr.bf16.mxu0 0
        %5660 = vmatmul.mubr.bf16.gmra.mrb[0].mxu0 %v5464
        %v5661 = vpop.f32.mrb[0].mxu0
        %v5662 = vadd.f32 0.0, %v5661
        %v5663 = vpop.f32.mrb[0].mxu0
        %v5664 = vadd.f32 0.0, %v5663
        %v5665 = vpop.f32.mrb[0].mxu0
        %v5666 = vadd.f32 0.0, %v5665
        %v5667 = vpop.f32.mrb[0].mxu0
        %v5668 = vadd.f32 0.0, %v5667
        %5669 = vmatprep.mubr.bf16.mxu0 0
        %5670 = vmatmul.mubr.bf16.gmra.mrb[0].mxu0 %v5467
        %v5671 = vpop.f32.mrb[0].mxu0
        %v5672 = vadd.f32 0.0, %v5671
        %v5673 = vpop.f32.mrb[0].mxu0
        %v5674 = vadd.f32 0.0, %v5673
        %v5675 = vpop.f32.mrb[0].mxu0
        %v5676 = vadd.f32 0.0, %v5675
        %v5677 = vpop.f32.mrb[0].mxu0
        %v5678 = vadd.f32 0.0, %v5677
        %5679 = vmatprep.mubr.bf16.mxu0 0
        %5680 = vmatmul.mubr.bf16.gmra.mrb[0].mxu0 %v5470
        %v5681 = vpop.f32.mrb[0].mxu0
        %v5682 = vadd.f32 0.0, %v5681
        %v5683 = vpop.f32.mrb[0].mxu0
        %v5684 = vadd.f32 0.0, %v5683
        %v5685 = vpop.f32.mrb[0].mxu0
        %v5686 = vadd.f32 0.0, %v5685
        %v5687 = vpop.f32.mrb[0].mxu0
        %v5688 = vadd.f32 0.0, %v5687
        %5689 = vmatprep.mubr.bf16.mxu0 0
        %5690 = vmatmul.mubr.bf16.gmra.mrb[0].mxu0 %v5473
        %v5691 = vpop.f32.mrb[0].mxu0
        %v5692 = vadd.f32 0.0, %v5691
        %v5693 = vpop.f32.mrb[0].mxu0
        %v5694 = vadd.f32 0.0, %v5693
        %v5695 = vpop.f32.mrb[0].mxu0
        %v5696 = vadd.f32 0.0, %v5695
        %v5697 = vpop.f32.mrb[0].mxu0
        %v5698 = vadd.f32 0.0, %v5697
        %5699 = vmatprep.mubr.bf16.mxu0 0
        %5700 = vmatmul.mubr.bf16.gmra.mrb[0].mxu0 %v5476
        %v5701 = vpop.f32.mrb[0].mxu0
        %v5702 = vadd.f32 0.0, %v5701
        %v5703 = vpop.f32.mrb[0].mxu0
        %v5704 = vadd.f32 0.0, %v5703
        %v5705 = vpop.f32.mrb[0].mxu0
        %v5706 = vadd.f32 0.0, %v5705
        %v5707 = vpop.f32.mrb[0].mxu0
        %v5708 = vadd.f32 0.0, %v5707
        %5709 = vdwg.mxu0
        %5710 = vmatprep.subr.bf16.mxu0 0
        %5711 = vmatpush1.bf16.msra.mxu0 %v5485
        %5712 = vmatprep.subr.bf16.mxu0 0
        %5713 = vmatpush1.bf16.msra.mxu0 0
        %5714 = vmatprep.subr.bf16.mxu0 0
        %5715 = vmatpush1.bf16.msra.mxu0 0
        %5716 = vmatprep.subr.bf16.mxu0 0
        %5717 = vmatpush1.bf16.msra.mxu0 0
        %5718 = vmatprep.subr.bf16.mxu0 0
        %5719 = vmatpush1.bf16.msra.mxu0 0
        %5720 = vmatprep.subr.bf16.mxu0 0
        %5721 = vmatpush1.bf16.msra.mxu0 0
        %5722 = vmatprep.subr.bf16.mxu0 0
        %5723 = vmatpush1.bf16.msra.mxu0 0
        %5724 = vmatprep.subr.bf16.mxu0 0
        %5725 = vmatpush1.bf16.msra.mxu0 0
        %5726 = vmatprep.subr.bf16.mxu0 0
        %5727 = vmatpush1.bf16.msra.mxu0 0
        %5728 = vmatprep.subr.bf16.mxu0 0
        %5729 = vmatpush1.bf16.msra.mxu0 0
        %5730 = vmatprep.subr.bf16.mxu0 0
        %5731 = vmatpush1.bf16.msra.mxu0 0
        %5732 = vmatprep.subr.bf16.mxu0 0
        %5733 = vmatpush1.bf16.msra.mxu0 0
        %5734 = vmatprep.subr.bf16.mxu0 0
        %5735 = vmatpush1.bf16.msra.mxu0 0
        %5736 = vmatprep.subr.bf16.mxu0 0
        %5737 = vmatpush1.bf16.msra.mxu0 0
        %5738 = vmatprep.subr.bf16.mxu0 0
        %5739 = vmatpush1.bf16.msra.mxu0 0
        %5740 = vmatprep.subr.bf16.mxu0 0
        %5741 = vmatpush1.bf16.msra.mxu0 0
        %5742 = vmatprep.mubr.bf16.mxu0 0
        %5743 = vmatmul.mubr.bf16.gmra.mrb[0].mxu0 %v5422
        %v5744 = vpop.f32.mrb[0].mxu0
        %v5745 = vadd.f32 0.0, %v5744
        %v5746 = vpop.f32.mrb[0].mxu0
        %v5747 = vpop.f32.mrb[0].mxu0
        %v5748 = vadd.f32 0.0, %v5747
        %v5749 = vpop.f32.mrb[0].mxu0
        %5750 = vmatprep.mubr.bf16.mxu0 0
        %5751 = vmatmul.mubr.bf16.gmra.mrb[0].mxu0 %v5425
        %v5752 = vpop.f32.mrb[0].mxu0
        %v5753 = vadd.f32 0.0, %v5752
        %v5754 = vpop.f32.mrb[0].mxu0
        %v5755 = vpop.f32.mrb[0].mxu0
        %v5756 = vadd.f32 0.0, %v5755
        %v5757 = vpop.f32.mrb[0].mxu0
        %5758 = vmatprep.mubr.bf16.mxu0 0
        %5759 = vmatmul.mubr.bf16.gmra.mrb[0].mxu0 %v5428
        %v5760 = vpop.f32.mrb[0].mxu0
        %v5761 = vadd.f32 0.0, %v5760
        %v5762 = vpop.f32.mrb[0].mxu0
        %v5763 = vpop.f32.mrb[0].mxu0
        %v5764 = vadd.f32 0.0, %v5763
        %v5765 = vpop.f32.mrb[0].mxu0
        %5766 = vmatprep.mubr.bf16.mxu0 0
        %5767 = vmatmul.mubr.bf16.gmra.mrb[0].mxu0 %v5431
        %v5768 = vpop.f32.mrb[0].mxu0
        %v5769 = vadd.f32 0.0, %v5768
        %v5770 = vpop.f32.mrb[0].mxu0
        %v5771 = vpop.f32.mrb[0].mxu0
        %v5772 = vadd.f32 0.0, %v5771
        %v5773 = vpop.f32.mrb[0].mxu0
        %5774 = vmatprep.mubr.bf16.mxu0 0
        %5775 = vmatmul.mubr.bf16.gmra.mrb[0].mxu0 %v5434
        %v5776 = vpop.f32.mrb[0].mxu0
        %v5777 = vadd.f32 0.0, %v5776
        %v5778 = vpop.f32.mrb[0].mxu0
        %v5779 = vpop.f32.mrb[0].mxu0
        %v5780 = vadd.f32 0.0, %v5779
        %v5781 = vpop.f32.mrb[0].mxu0
        %5782 = vmatprep.mubr.bf16.mxu0 0
        %5783 = vmatmul.mubr.bf16.gmra.mrb[0].mxu0 %v5437
        %v5784 = vpop.f32.mrb[0].mxu0
        %v5785 = vadd.f32 0.0, %v5784
        %v5786 = vpop.f32.mrb[0].mxu0
        %v5787 = vpop.f32.mrb[0].mxu0
        %v5788 = vadd.f32 0.0, %v5787
        %v5789 = vpop.f32.mrb[0].mxu0
        %5790 = vmatprep.mubr.bf16.mxu0 0
        %5791 = vmatmul.mubr.bf16.gmra.mrb[0].mxu0 %v5440
        %v5792 = vpop.f32.mrb[0].mxu0
        %v5793 = vadd.f32 0.0, %v5792
        %v5794 = vpop.f32.mrb[0].mxu0
        %v5795 = vpop.f32.mrb[0].mxu0
        %v5796 = vadd.f32 0.0, %v5795
        %v5797 = vpop.f32.mrb[0].mxu0
        %5798 = vmatprep.mubr.bf16.mxu0 0
        %5799 = vmatmul.mubr.bf16.gmra.mrb[0].mxu0 %v5443
        %v5800 = vpop.f32.mrb[0].mxu0
        %v5801 = vadd.f32 0.0, %v5800
        %v5802 = vpop.f32.mrb[0].mxu0
        %v5803 = vpop.f32.mrb[0].mxu0
        %v5804 = vadd.f32 0.0, %v5803
        %v5805 = vpop.f32.mrb[0].mxu0
        %5806 = vmatprep.mubr.bf16.mxu0 0
        %5807 = vmatmul.mubr.bf16.gmra.mrb[0].mxu0 %v5446
        %v5808 = vpop.f32.mrb[0].mxu0
        %v5809 = vadd.f32 0.0, %v5808
        %v5810 = vpop.f32.mrb[0].mxu0
        %v5811 = vpop.f32.mrb[0].mxu0
        %v5812 = vadd.f32 0.0, %v5811
        %v5813 = vpop.f32.mrb[0].mxu0
        %5814 = vmatprep.mubr.bf16.mxu0 0
        %5815 = vmatmul.mubr.bf16.gmra.mrb[0].mxu0 %v5449
        %v5816 = vpop.f32.mrb[0].mxu0
        %v5817 = vadd.f32 0.0, %v5816
        %v5818 = vpop.f32.mrb[0].mxu0
        %v5819 = vpop.f32.mrb[0].mxu0
        %v5820 = vadd.f32 0.0, %v5819
        %v5821 = vpop.f32.mrb[0].mxu0
        %5822 = vmatprep.mubr.bf16.mxu0 0
        %5823 = vmatmul.mubr.bf16.gmra.mrb[0].mxu0 %v5452
        %v5824 = vpop.f32.mrb[0].mxu0
        %v5825 = vadd.f32 0.0, %v5824
        %v5826 = vpop.f32.mrb[0].mxu0
        %v5827 = vpop.f32.mrb[0].mxu0
        %v5828 = vadd.f32 0.0, %v5827
        %v5829 = vpop.f32.mrb[0].mxu0
        %5830 = vmatprep.mubr.bf16.mxu0 0
        %5831 = vmatmul.mubr.bf16.gmra.mrb[0].mxu0 %v5455
        %v5832 = vpop.f32.mrb[0].mxu0
        %v5833 = vadd.f32 0.0, %v5832
        %v5834 = vpop.f32.mrb[0].mxu0
        %v5835 = vpop.f32.mrb[0].mxu0
        %v5836 = vadd.f32 0.0, %v5835
        %v5837 = vpop.f32.mrb[0].mxu0
        %5838 = vmatprep.mubr.bf16.mxu0 0
        %5839 = vmatmul.mubr.bf16.gmra.mrb[0].mxu0 %v5458
        %v5840 = vpop.f32.mrb[0].mxu0
        %v5841 = vadd.f32 0.0, %v5840
        %v5842 = vpop.f32.mrb[0].mxu0
        %v5843 = vpop.f32.mrb[0].mxu0
        %v5844 = vadd.f32 0.0, %v5843
        %v5845 = vpop.f32.mrb[0].mxu0
        %5846 = vmatprep.mubr.bf16.mxu0 0
        %5847 = vmatmul.mubr.bf16.gmra.mrb[0].mxu0 %v5461
        %v5848 = vpop.f32.mrb[0].mxu0
        %v5849 = vadd.f32 0.0, %v5848
        %v5850 = vpop.f32.mrb[0].mxu0
        %v5851 = vpop.f32.mrb[0].mxu0
        %v5852 = vadd.f32 0.0, %v5851
        %v5853 = vpop.f32.mrb[0].mxu0
        %5854 = vmatprep.mubr.bf16.mxu0 0
        %5855 = vmatmul.mubr.bf16.gmra.mrb[0].mxu0 %v5464
        %v5856 = vpop.f32.mrb[0].mxu0
        %v5857 = vadd.f32 0.0, %v5856
        %v5858 = vpop.f32.mrb[0].mxu0
        %v5859 = vpop.f32.mrb[0].mxu0
        %v5860 = vadd.f32 0.0, %v5859
        %v5861 = vpop.f32.mrb[0].mxu0
        %5862 = vmatprep.mubr.bf16.mxu0 0
        %5863 = vmatmul.mubr.bf16.gmra.mrb[0].mxu0 %v5467
        %v5864 = vpop.f32.mrb[0].mxu0
        %v5865 = vadd.f32 0.0, %v5864
        %v5866 = vpop.f32.mrb[0].mxu0
        %v5867 = vpop.f32.mrb[0].mxu0
        %v5868 = vadd.f32 0.0, %v5867
        %v5869 = vpop.f32.mrb[0].mxu0
        %5870 = vmatprep.mubr.bf16.mxu0 0
        %5871 = vmatmul.mubr.bf16.gmra.mrb[0].mxu0 %v5470
        %v5872 = vpop.f32.mrb[0].mxu0
        %v5873 = vadd.f32 0.0, %v5872
        %v5874 = vpop.f32.mrb[0].mxu0
        %v5875 = vpop.f32.mrb[0].mxu0
        %v5876 = vadd.f32 0.0, %v5875
        %v5877 = vpop.f32.mrb[0].mxu0
        %5878 = vmatprep.mubr.bf16.mxu0 0
        %5879 = vmatmul.mubr.bf16.gmra.mrb[0].mxu0 %v5473
        %v5880 = vpop.f32.mrb[0].mxu0
        %v5881 = vadd.f32 0.0, %v5880
        %v5882 = vpop.f32.mrb[0].mxu0
        %v5883 = vpop.f32.mrb[0].mxu0
        %v5884 = vadd.f32 0.0, %v5883
        %v5885 = vpop.f32.mrb[0].mxu0
        %5886 = vmatprep.mubr.bf16.mxu0 0
        %5887 = vmatmul.mubr.bf16.gmra.mrb[0].mxu0 %v5476
        %v5888 = vpop.f32.mrb[0].mxu0
        %v5889 = vadd.f32 0.0, %v5888
        %v5890 = vpop.f32.mrb[0].mxu0
        %v5891 = vpop.f32.mrb[0].mxu0
        %v5892 = vadd.f32 0.0, %v5891
        %v5893 = vpop.f32.mrb[0].mxu0
        %5894 = vdwg.mxu0
        %v5895 = vmax.f32 %v5522, %v5524
        %v5896 = vsel %vm1075, %v5745, -inf
        %v5897 = vmax.f32 %v5895, %v5896
        %5898 = vmax.xlane.f32.xlu0 %v5897
        %v5899 = vpop.xlane.xlu0 %5898
        %v5900 = vmax.f32 %v5526, %v5528
        %v5901 = vsel %vm1075, %v5748, -inf
        %v5902 = vmax.f32 %v5900, %v5901
        %5903 = vmax.xlane.f32.xlu0 %v5902
        %v5904 = vpop.xlane.xlu0 %5903
        %v5905 = vmax.f32 %v5532, %v5534
        %v5906 = vsel %vm1075, %v5753, -inf
        %v5907 = vmax.f32 %v5905, %v5906
        %5908 = vmax.xlane.f32.xlu0 %v5907
        %v5909 = vpop.xlane.xlu0 %5908
        %v5910 = vmax.f32 %v5536, %v5538
        %v5911 = vsel %vm1075, %v5756, -inf
        %v5912 = vmax.f32 %v5910, %v5911
        %5913 = vmax.xlane.f32.xlu0 %v5912
        %v5914 = vpop.xlane.xlu0 %5913
        %v5915 = vmax.f32 %v5542, %v5544
        %v5916 = vsel %vm1075, %v5761, -inf
        %v5917 = vmax.f32 %v5915, %v5916
        %5918 = vmax.xlane.f32.xlu0 %v5917
        %v5919 = vpop.xlane.xlu0 %5918
        %v5920 = vmax.f32 %v5546, %v5548
        %v5921 = vsel %vm1075, %v5764, -inf
        %v5922 = vmax.f32 %v5920, %v5921
        %5923 = vmax.xlane.f32.xlu0 %v5922
        %v5924 = vpop.xlane.xlu0 %5923
        %v5925 = vmax.f32 %v5552, %v5554
        %v5926 = vsel %vm1075, %v5769, -inf
        %v5927 = vmax.f32 %v5925, %v5926
        %5928 = vmax.xlane.f32.xlu0 %v5927
        %v5929 = vpop.xlane.xlu0 %5928
        %v5930 = vmax.f32 %v5556, %v5558
        %v5931 = vsel %vm1075, %v5772, -inf
        %v5932 = vmax.f32 %v5930, %v5931
        %5933 = vmax.xlane.f32.xlu0 %v5932
        %v5934 = vpop.xlane.xlu0 %5933
        %v5935 = vmax.f32 %v5562, %v5564
        %v5936 = vsel %vm1075, %v5777, -inf
        %v5937 = vmax.f32 %v5935, %v5936
        %5938 = vmax.xlane.f32.xlu0 %v5937
        %v5939 = vpop.xlane.xlu0 %5938
        %v5940 = vmax.f32 %v5566, %v5568
        %v5941 = vsel %vm1075, %v5780, -inf
        %v5942 = vmax.f32 %v5940, %v5941
        %5943 = vmax.xlane.f32.xlu0 %v5942
        %v5944 = vpop.xlane.xlu0 %5943
        %v5945 = vmax.f32 %v5572, %v5574
        %v5946 = vsel %vm1075, %v5785, -inf
        %v5947 = vmax.f32 %v5945, %v5946
        %5948 = vmax.xlane.f32.xlu0 %v5947
        %v5949 = vpop.xlane.xlu0 %5948
        %v5950 = vmax.f32 %v5576, %v5578
        %v5951 = vsel %vm1075, %v5788, -inf
        %v5952 = vmax.f32 %v5950, %v5951
        %5953 = vmax.xlane.f32.xlu0 %v5952
        %v5954 = vpop.xlane.xlu0 %5953
        %v5955 = vmax.f32 %v5582, %v5584
        %v5956 = vsel %vm1075, %v5793, -inf
        %v5957 = vmax.f32 %v5955, %v5956
        %5958 = vmax.xlane.f32.xlu0 %v5957
        %v5959 = vpop.xlane.xlu0 %5958
        %v5960 = vmax.f32 %v5586, %v5588
        %v5961 = vsel %vm1075, %v5796, -inf
        %v5962 = vmax.f32 %v5960, %v5961
        %5963 = vmax.xlane.f32.xlu0 %v5962
        %v5964 = vpop.xlane.xlu0 %5963
        %v5965 = vmax.f32 %v5592, %v5594
        %v5966 = vsel %vm1075, %v5801, -inf
        %v5967 = vmax.f32 %v5965, %v5966
        %5968 = vmax.xlane.f32.xlu0 %v5967
        %v5969 = vpop.xlane.xlu0 %5968
        %v5970 = vmax.f32 %v5596, %v5598
        %v5971 = vsel %vm1075, %v5804, -inf
        %v5972 = vmax.f32 %v5970, %v5971
        %5973 = vmax.xlane.f32.xlu0 %v5972
        %v5974 = vpop.xlane.xlu0 %5973
        %v5975 = vmax.f32 %v5602, %v5604
        %v5976 = vsel %vm1075, %v5809, -inf
        %v5977 = vmax.f32 %v5975, %v5976
        %5978 = vmax.xlane.f32.xlu0 %v5977
        %v5979 = vpop.xlane.xlu0 %5978
        %v5980 = vmax.f32 %v5606, %v5608
        %v5981 = vsel %vm1075, %v5812, -inf
        %v5982 = vmax.f32 %v5980, %v5981
        %5983 = vmax.xlane.f32.xlu0 %v5982
        %v5984 = vpop.xlane.xlu0 %5983
        %v5985 = vmax.f32 %v5612, %v5614
        %v5986 = vsel %vm1075, %v5817, -inf
        %v5987 = vmax.f32 %v5985, %v5986
        %5988 = vmax.xlane.f32.xlu0 %v5987
        %v5989 = vpop.xlane.xlu0 %5988
        %v5990 = vmax.f32 %v5616, %v5618
        %v5991 = vsel %vm1075, %v5820, -inf
        %v5992 = vmax.f32 %v5990, %v5991
        %5993 = vmax.xlane.f32.xlu0 %v5992
        %v5994 = vpop.xlane.xlu0 %5993
        %v5995 = vmax.f32 %v5622, %v5624
        %v5996 = vsel %vm1075, %v5825, -inf
        %v5997 = vmax.f32 %v5995, %v5996
        %5998 = vmax.xlane.f32.xlu0 %v5997
        %v5999 = vpop.xlane.xlu0 %5998
        %v6000 = vmax.f32 %v5626, %v5628
        %v6001 = vsel %vm1075, %v5828, -inf
        %v6002 = vmax.f32 %v6000, %v6001
        %6003 = vmax.xlane.f32.xlu0 %v6002
        %v6004 = vpop.xlane.xlu0 %6003
        %v6005 = vmax.f32 %v5632, %v5634
        %v6006 = vsel %vm1075, %v5833, -inf
        %v6007 = vmax.f32 %v6005, %v6006
        %6008 = vmax.xlane.f32.xlu0 %v6007
        %v6009 = vpop.xlane.xlu0 %6008
        %v6010 = vmax.f32 %v5636, %v5638
        %v6011 = vsel %vm1075, %v5836, -inf
        %v6012 = vmax.f32 %v6010, %v6011
        %6013 = vmax.xlane.f32.xlu0 %v6012
        %v6014 = vpop.xlane.xlu0 %6013
        %v6015 = vmax.f32 %v5642, %v5644
        %v6016 = vsel %vm1075, %v5841, -inf
        %v6017 = vmax.f32 %v6015, %v6016
        %6018 = vmax.xlane.f32.xlu0 %v6017
        %v6019 = vpop.xlane.xlu0 %6018
        %v6020 = vmax.f32 %v5646, %v5648
        %v6021 = vsel %vm1075, %v5844, -inf
        %v6022 = vmax.f32 %v6020, %v6021
        %6023 = vmax.xlane.f32.xlu0 %v6022
        %v6024 = vpop.xlane.xlu0 %6023
        %v6025 = vmax.f32 %v5652, %v5654
        %v6026 = vsel %vm1075, %v5849, -inf
        %v6027 = vmax.f32 %v6025, %v6026
        %6028 = vmax.xlane.f32.xlu0 %v6027
        %v6029 = vpop.xlane.xlu0 %6028
        %v6030 = vmax.f32 %v5656, %v5658
        %v6031 = vsel %vm1075, %v5852, -inf
        %v6032 = vmax.f32 %v6030, %v6031
        %6033 = vmax.xlane.f32.xlu0 %v6032
        %v6034 = vpop.xlane.xlu0 %6033
        %v6035 = vmax.f32 %v5662, %v5664
        %v6036 = vsel %vm1075, %v5857, -inf
        %v6037 = vmax.f32 %v6035, %v6036
        %6038 = vmax.xlane.f32.xlu0 %v6037
        %v6039 = vpop.xlane.xlu0 %6038
        %v6040 = vmax.f32 %v5666, %v5668
        %v6041 = vsel %vm1075, %v5860, -inf
        %v6042 = vmax.f32 %v6040, %v6041
        %6043 = vmax.xlane.f32.xlu0 %v6042
        %v6044 = vpop.xlane.xlu0 %6043
        %v6045 = vmax.f32 %v5672, %v5674
        %v6046 = vsel %vm1075, %v5865, -inf
        %v6047 = vmax.f32 %v6045, %v6046
        %6048 = vmax.xlane.f32.xlu0 %v6047
        %v6049 = vpop.xlane.xlu0 %6048
        %v6050 = vmax.f32 %v5676, %v5678
        %v6051 = vsel %vm1075, %v5868, -inf
        %v6052 = vmax.f32 %v6050, %v6051
        %6053 = vmax.xlane.f32.xlu0 %v6052
        %v6054 = vpop.xlane.xlu0 %6053
        %v6055 = vmax.f32 %v5682, %v5684
        %v6056 = vsel %vm1075, %v5873, -inf
        %v6057 = vmax.f32 %v6055, %v6056
        %6058 = vmax.xlane.f32.xlu0 %v6057
        %v6059 = vpop.xlane.xlu0 %6058
        %v6060 = vmax.f32 %v5686, %v5688
        %v6061 = vsel %vm1075, %v5876, -inf
        %v6062 = vmax.f32 %v6060, %v6061
        %6063 = vmax.xlane.f32.xlu0 %v6062
        %v6064 = vpop.xlane.xlu0 %6063
        %v6065 = vmax.f32 %v5692, %v5694
        %v6066 = vsel %vm1075, %v5881, -inf
        %v6067 = vmax.f32 %v6065, %v6066
        %6068 = vmax.xlane.f32.xlu0 %v6067
        %v6069 = vpop.xlane.xlu0 %6068
        %v6070 = vmax.f32 %v5696, %v5698
        %v6071 = vsel %vm1075, %v5884, -inf
        %v6072 = vmax.f32 %v6070, %v6071
        %6073 = vmax.xlane.f32.xlu0 %v6072
        %v6074 = vpop.xlane.xlu0 %6073
        %v6075 = vmax.f32 %v5702, %v5704
        %v6076 = vsel %vm1075, %v5889, -inf
        %v6077 = vmax.f32 %v6075, %v6076
        %6078 = vmax.xlane.f32.xlu0 %v6077
        %v6079 = vpop.xlane.xlu0 %6078
        %v6080 = vsel %vm656, %v5706, -inf
        %v6081 = vsel %vm656, %v5708, -inf
        %v6082 = vmax.f32 %v6080, %v6081
        %v6083 = vsel %vm1263, %v5892, -inf
        %v6084 = vmax.f32 %v6082, %v6083
        %6085 = vmax.xlane.f32.xlu0 %v6084
        %v6086 = vpop.xlane.xlu0 %6085
        %v6087 = vsub.f32 %v5522, %v5899
        %v6088 = vsub.f32 %v5524, %v5899
        %v6089 = vsub.f32 %v5745, %v5899
        %v6090 = vsub.f32 %v5526, %v5904
        %v6091 = vsub.f32 %v5528, %v5904
        %v6092 = vsub.f32 %v5748, %v5904
        %v6093 = vsub.f32 %v5532, %v5909
        %v6094 = vsub.f32 %v5534, %v5909
        %v6095 = vsub.f32 %v5753, %v5909
        %v6096 = vsub.f32 %v5536, %v5914
        %v6097 = vsub.f32 %v5538, %v5914
        %v6098 = vsub.f32 %v5756, %v5914
        %v6099 = vsub.f32 %v5542, %v5919
        %v6100 = vsub.f32 %v5544, %v5919
        %v6101 = vsub.f32 %v5761, %v5919
        %v6102 = vsub.f32 %v5546, %v5924
        %v6103 = vsub.f32 %v5548, %v5924
        %v6104 = vsub.f32 %v5764, %v5924
        %v6105 = vsub.f32 %v5552, %v5929
        %v6106 = vsub.f32 %v5554, %v5929
        %v6107 = vsub.f32 %v5769, %v5929
        %v6108 = vsub.f32 %v5556, %v5934
        %v6109 = vsub.f32 %v5558, %v5934
        %v6110 = vsub.f32 %v5772, %v5934
        %v6111 = vsub.f32 %v5562, %v5939
        %v6112 = vsub.f32 %v5564, %v5939
        %v6113 = vsub.f32 %v5777, %v5939
        %v6114 = vsub.f32 %v5566, %v5944
        %v6115 = vsub.f32 %v5568, %v5944
        %v6116 = vsub.f32 %v5780, %v5944
        %v6117 = vsub.f32 %v5572, %v5949
        %v6118 = vsub.f32 %v5574, %v5949
        %v6119 = vsub.f32 %v5785, %v5949
        %v6120 = vsub.f32 %v5576, %v5954
        %v6121 = vsub.f32 %v5578, %v5954
        %v6122 = vsub.f32 %v5788, %v5954
        %v6123 = vsub.f32 %v5582, %v5959
        %v6124 = vsub.f32 %v5584, %v5959
        %v6125 = vsub.f32 %v5793, %v5959
        %v6126 = vsub.f32 %v5586, %v5964
        %v6127 = vsub.f32 %v5588, %v5964
        %v6128 = vsub.f32 %v5796, %v5964
        %v6129 = vsub.f32 %v5592, %v5969
        %v6130 = vsub.f32 %v5594, %v5969
        %v6131 = vsub.f32 %v5801, %v5969
        %v6132 = vsub.f32 %v5596, %v5974
        %v6133 = vsub.f32 %v5598, %v5974
        %v6134 = vsub.f32 %v5804, %v5974
        %v6135 = vsub.f32 %v5602, %v5979
        %v6136 = vsub.f32 %v5604, %v5979
        %v6137 = vsub.f32 %v5809, %v5979
        %v6138 = vsub.f32 %v5606, %v5984
        %v6139 = vsub.f32 %v5608, %v5984
        %v6140 = vsub.f32 %v5812, %v5984
        %v6141 = vsub.f32 %v5612, %v5989
        %v6142 = vsub.f32 %v5614, %v5989
        %v6143 = vsub.f32 %v5817, %v5989
        %v6144 = vsub.f32 %v5616, %v5994
        %v6145 = vsub.f32 %v5618, %v5994
        %v6146 = vsub.f32 %v5820, %v5994
        %v6147 = vsub.f32 %v5622, %v5999
        %v6148 = vsub.f32 %v5624, %v5999
        %v6149 = vsub.f32 %v5825, %v5999
        %v6150 = vsub.f32 %v5626, %v6004
        %v6151 = vsub.f32 %v5628, %v6004
        %v6152 = vsub.f32 %v5828, %v6004
        %v6153 = vsub.f32 %v5632, %v6009
        %v6154 = vsub.f32 %v5634, %v6009
        %v6155 = vsub.f32 %v5833, %v6009
        %v6156 = vsub.f32 %v5636, %v6014
        %v6157 = vsub.f32 %v5638, %v6014
        %v6158 = vsub.f32 %v5836, %v6014
        %v6159 = vsub.f32 %v5642, %v6019
        %v6160 = vsub.f32 %v5644, %v6019
        %v6161 = vsub.f32 %v5841, %v6019
        %v6162 = vsub.f32 %v5646, %v6024
        %v6163 = vsub.f32 %v5648, %v6024
        %v6164 = vsub.f32 %v5844, %v6024
        %v6165 = vsub.f32 %v5652, %v6029
        %v6166 = vsub.f32 %v5654, %v6029
        %v6167 = vsub.f32 %v5849, %v6029
        %v6168 = vsub.f32 %v5656, %v6034
        %v6169 = vsub.f32 %v5658, %v6034
        %v6170 = vsub.f32 %v5852, %v6034
        %v6171 = vsub.f32 %v5662, %v6039
        %v6172 = vsub.f32 %v5664, %v6039
        %v6173 = vsub.f32 %v5857, %v6039
        %v6174 = vsub.f32 %v5666, %v6044
        %v6175 = vsub.f32 %v5668, %v6044
        %v6176 = vsub.f32 %v5860, %v6044
        %v6177 = vsub.f32 %v5672, %v6049
        %v6178 = vsub.f32 %v5674, %v6049
        %v6179 = vsub.f32 %v5865, %v6049
        %v6180 = vsub.f32 %v5676, %v6054
        %v6181 = vsub.f32 %v5678, %v6054
        %v6182 = vsub.f32 %v5868, %v6054
        %v6183 = vsub.f32 %v5682, %v6059
        %v6184 = vsub.f32 %v5684, %v6059
        %v6185 = vsub.f32 %v5873, %v6059
        %v6186 = vsub.f32 %v5686, %v6064
        %v6187 = vsub.f32 %v5688, %v6064
        %v6188 = vsub.f32 %v5876, %v6064
        %v6189 = vsub.f32 %v5692, %v6069
        %v6190 = vsub.f32 %v5694, %v6069
        %v6191 = vsub.f32 %v5881, %v6069
        %v6192 = vsub.f32 %v5696, %v6074
        %v6193 = vsub.f32 %v5698, %v6074
        %v6194 = vsub.f32 %v5884, %v6074
        %v6195 = vsub.f32 %v5702, %v6079
        %v6196 = vsub.f32 %v5704, %v6079
        %v6197 = vsub.f32 %v5889, %v6079
        %v6198 = vsub.f32 %v5706, %v6086
        %v6199 = vsub.f32 %v5708, %v6086
        %v6200 = vsub.f32 %v5892, %v6086
        %v6201 = vpack.c.bf16 %v6090, %v6087
        %v6202 = vpack.c.bf16 %v6091, %v6088
        %v6203 = vpack.c.bf16 %v6092, %v6089
        %v6204 = vpack.c.bf16 %v6096, %v6093
        %v6205 = vpack.c.bf16 %v6097, %v6094
        %v6206 = vpack.c.bf16 %v6098, %v6095
        %v6207 = vpack.c.bf16 %v6102, %v6099
        %v6208 = vpack.c.bf16 %v6103, %v6100
        %v6209 = vpack.c.bf16 %v6104, %v6101
        %v6210 = vpack.c.bf16 %v6108, %v6105
        %v6211 = vpack.c.bf16 %v6109, %v6106
        %v6212 = vpack.c.bf16 %v6110, %v6107
        %v6213 = vpack.c.bf16 %v6114, %v6111
        %v6214 = vpack.c.bf16 %v6115, %v6112
        %v6215 = vpack.c.bf16 %v6116, %v6113
        %v6216 = vpack.c.bf16 %v6120, %v6117
        %v6217 = vpack.c.bf16 %v6121, %v6118
        %v6218 = vpack.c.bf16 %v6122, %v6119
        %v6219 = vpack.c.bf16 %v6126, %v6123
        %v6220 = vpack.c.bf16 %v6127, %v6124
        %v6221 = vpack.c.bf16 %v6128, %v6125
        %v6222 = vpack.c.bf16 %v6132, %v6129
        %v6223 = vpack.c.bf16 %v6133, %v6130
        %v6224 = vpack.c.bf16 %v6134, %v6131
        %v6225 = vpack.c.bf16 %v6138, %v6135
        %v6226 = vpack.c.bf16 %v6139, %v6136
        %v6227 = vpack.c.bf16 %v6140, %v6137
        %v6228 = vpack.c.bf16 %v6144, %v6141
        %v6229 = vpack.c.bf16 %v6145, %v6142
        %v6230 = vpack.c.bf16 %v6146, %v6143
        %v6231 = vpack.c.bf16 %v6150, %v6147
        %v6232 = vpack.c.bf16 %v6151, %v6148
        %v6233 = vpack.c.bf16 %v6152, %v6149
        %v6234 = vpack.c.bf16 %v6156, %v6153
        %v6235 = vpack.c.bf16 %v6157, %v6154
        %v6236 = vpack.c.bf16 %v6158, %v6155
        %v6237 = vpack.c.bf16 %v6162, %v6159
        %v6238 = vpack.c.bf16 %v6163, %v6160
        %v6239 = vpack.c.bf16 %v6164, %v6161
        %v6240 = vpack.c.bf16 %v6168, %v6165
        %v6241 = vpack.c.bf16 %v6169, %v6166
        %v6242 = vpack.c.bf16 %v6170, %v6167
        %v6243 = vpack.c.bf16 %v6174, %v6171
        %v6244 = vpack.c.bf16 %v6175, %v6172
        %v6245 = vpack.c.bf16 %v6176, %v6173
        %v6246 = vpack.c.bf16 %v6180, %v6177
        %v6247 = vpack.c.bf16 %v6181, %v6178
        %v6248 = vpack.c.bf16 %v6182, %v6179
        %v6249 = vpack.c.bf16 %v6186, %v6183
        %v6250 = vpack.c.bf16 %v6187, %v6184
        %v6251 = vpack.c.bf16 %v6188, %v6185
        %v6252 = vpack.c.bf16 %v6192, %v6189
        %v6253 = vpack.c.bf16 %v6193, %v6190
        %v6254 = vpack.c.bf16 %v6194, %v6191
        %v6255 = vpack.c.bf16 %v6198, %v6195
        %v6256 = vpack.c.bf16 %v6199, %v6196
        %v6257 = vpack.c.bf16 %v6200, %v6197
        %v6259 = vmul.bf16 %v6201, 1069105081
        %v6260 = vpow.bf16.pop %v6259
        %v6262 = vmul.bf16 %v6202, 1069105081
        %v6263 = vpow.bf16.pop %v6262
        %v6265 = vmul.bf16 %v6203, 1069105081
        %v6266 = vpow.bf16.pop %v6265
        %v6268 = vmul.bf16 %v6204, 1069105081
        %v6269 = vpow.bf16.pop %v6268
        %v6271 = vmul.bf16 %v6205, 1069105081
        %v6272 = vpow.bf16.pop %v6271
        %v6274 = vmul.bf16 %v6206, 1069105081
        %v6275 = vpow.bf16.pop %v6274
        %v6277 = vmul.bf16 %v6207, 1069105081
        %v6278 = vpow.bf16.pop %v6277
        %v6280 = vmul.bf16 %v6208, 1069105081
        %v6281 = vpow.bf16.pop %v6280
        %v6283 = vmul.bf16 %v6209, 1069105081
        %v6284 = vpow.bf16.pop %v6283
        %v6286 = vmul.bf16 %v6210, 1069105081
        %v6287 = vpow.bf16.pop %v6286
        %v6289 = vmul.bf16 %v6211, 1069105081
        %v6290 = vpow.bf16.pop %v6289
        %v6292 = vmul.bf16 %v6212, 1069105081
        %v6293 = vpow.bf16.pop %v6292
        %v6295 = vmul.bf16 %v6213, 1069105081
        %v6296 = vpow.bf16.pop %v6295
        %v6298 = vmul.bf16 %v6214, 1069105081
        %v6299 = vpow.bf16.pop %v6298
        %v6301 = vmul.bf16 %v6215, 1069105081
        %v6302 = vpow.bf16.pop %v6301
        %v6304 = vmul.bf16 %v6216, 1069105081
        %v6305 = vpow.bf16.pop %v6304
        %v6307 = vmul.bf16 %v6217, 1069105081
        %v6308 = vpow.bf16.pop %v6307
        %v6310 = vmul.bf16 %v6218, 1069105081
        %v6311 = vpow.bf16.pop %v6310
        %v6313 = vmul.bf16 %v6219, 1069105081
        %v6314 = vpow.bf16.pop %v6313
        %v6316 = vmul.bf16 %v6220, 1069105081
        %v6317 = vpow.bf16.pop %v6316
        %v6319 = vmul.bf16 %v6221, 1069105081
        %v6320 = vpow.bf16.pop %v6319
        %v6322 = vmul.bf16 %v6222, 1069105081
        %v6323 = vpow.bf16.pop %v6322
        %v6325 = vmul.bf16 %v6223, 1069105081
        %v6326 = vpow.bf16.pop %v6325
        %v6328 = vmul.bf16 %v6224, 1069105081
        %v6329 = vpow.bf16.pop %v6328
        %v6331 = vmul.bf16 %v6225, 1069105081
        %v6332 = vpow.bf16.pop %v6331
        %v6334 = vmul.bf16 %v6226, 1069105081
        %v6335 = vpow.bf16.pop %v6334
        %v6337 = vmul.bf16 %v6227, 1069105081
        %v6338 = vpow.bf16.pop %v6337
        %v6340 = vmul.bf16 %v6228, 1069105081
        %v6341 = vpow.bf16.pop %v6340
        %v6343 = vmul.bf16 %v6229, 1069105081
        %v6344 = vpow.bf16.pop %v6343
        %v6346 = vmul.bf16 %v6230, 1069105081
        %v6347 = vpow.bf16.pop %v6346
        %v6349 = vmul.bf16 %v6231, 1069105081
        %v6350 = vpow.bf16.pop %v6349
        %v6352 = vmul.bf16 %v6232, 1069105081
        %v6353 = vpow.bf16.pop %v6352
        %v6355 = vmul.bf16 %v6233, 1069105081
        %v6356 = vpow.bf16.pop %v6355
        %v6358 = vmul.bf16 %v6234, 1069105081
        %v6359 = vpow.bf16.pop %v6358
        %v6361 = vmul.bf16 %v6235, 1069105081
        %v6362 = vpow.bf16.pop %v6361
        %v6364 = vmul.bf16 %v6236, 1069105081
        %v6365 = vpow.bf16.pop %v6364
        %v6367 = vmul.bf16 %v6237, 1069105081
        %v6368 = vpow.bf16.pop %v6367
        %v6370 = vmul.bf16 %v6238, 1069105081
        %v6371 = vpow.bf16.pop %v6370
        %v6373 = vmul.bf16 %v6239, 1069105081
        %v6374 = vpow.bf16.pop %v6373
        %v6376 = vmul.bf16 %v6240, 1069105081
        %v6377 = vpow.bf16.pop %v6376
        %v6379 = vmul.bf16 %v6241, 1069105081
        %v6380 = vpow.bf16.pop %v6379
        %v6382 = vmul.bf16 %v6242, 1069105081
        %v6383 = vpow.bf16.pop %v6382
        %v6385 = vmul.bf16 %v6243, 1069105081
        %v6386 = vpow.bf16.pop %v6385
        %v6388 = vmul.bf16 %v6244, 1069105081
        %v6389 = vpow.bf16.pop %v6388
        %v6391 = vmul.bf16 %v6245, 1069105081
        %v6392 = vpow.bf16.pop %v6391
        %v6394 = vmul.bf16 %v6246, 1069105081
        %v6395 = vpow.bf16.pop %v6394
        %v6397 = vmul.bf16 %v6247, 1069105081
        %v6398 = vpow.bf16.pop %v6397
        %v6400 = vmul.bf16 %v6248, 1069105081
        %v6401 = vpow.bf16.pop %v6400
        %v6403 = vmul.bf16 %v6249, 1069105081
        %v6404 = vpow.bf16.pop %v6403
        %v6406 = vmul.bf16 %v6250, 1069105081
        %v6407 = vpow.bf16.pop %v6406
        %v6409 = vmul.bf16 %v6251, 1069105081
        %v6410 = vpow.bf16.pop %v6409
        %v6412 = vmul.bf16 %v6252, 1069105081
        %v6413 = vpow.bf16.pop %v6412
        %v6415 = vmul.bf16 %v6253, 1069105081
        %v6416 = vpow.bf16.pop %v6415
        %v6418 = vmul.bf16 %v6254, 1069105081
        %v6419 = vpow.bf16.pop %v6418
        %v6421 = vmul.bf16 %v6255, 1069105081
        %v6422 = vpow.bf16.pop %v6421
        %v6424 = vmul.bf16 %v6256, 1069105081
        %v6425 = vpow.bf16.pop %v6424
        %v6427 = vmul.bf16 %v6257, 1069105081
        %v6428 = vpow.bf16.pop %v6427
        %v6429 = vpack.c.bf16 %v3895, %v3895
        %v6430 = vpack.c.bf16 %v3897, %v3897
        %v6431 = vpack.c.bf16 %v3953, %v3953
        %v6433 = vsel %vm1075, %v6431, 0
        %v6436 = vsel %vm1075, %v6266, 0
        %v6439 = vsel %vm1075, %v6275, 0
        %v6442 = vsel %vm1075, %v6284, 0
        %v6445 = vsel %vm1075, %v6293, 0
        %v6448 = vsel %vm1075, %v6302, 0
        %v6451 = vsel %vm1075, %v6311, 0
        %v6454 = vsel %vm1075, %v6320, 0
        %v6457 = vsel %vm1075, %v6329, 0
        %v6460 = vsel %vm1075, %v6338, 0
        %v6463 = vsel %vm1075, %v6347, 0
        %v6466 = vsel %vm1075, %v6356, 0
        %v6469 = vsel %vm1075, %v6365, 0
        %v6472 = vsel %vm1075, %v6374, 0
        %v6475 = vsel %vm1075, %v6383, 0
        %v6478 = vsel %vm1075, %v6392, 0
        %v6481 = vsel %vm1075, %v6401, 0
        %v6484 = vsel %vm1075, %v6410, 0
        %v6487 = vsel %vm1075, %v6419, 0
        %v6490 = vsel %vm1075, %v6428, 0
        %6492 = vmatprep.subr.bf16.mxu0 %v6263
        %6493 = vmatpush1.bf16.xpose.msra.mxu0 %v6260
        %6494 = vmatprep.subr.bf16.mxu0 %v6272
        %6495 = vmatpush1.bf16.xpose.msra.mxu0 %v6269
        %6496 = vmatprep.subr.bf16.mxu0 %v6281
        %6497 = vmatpush1.bf16.xpose.msra.mxu0 %v6278
        %6498 = vmatprep.subr.bf16.mxu0 %v6290
        %6499 = vmatpush1.bf16.xpose.msra.mxu0 %v6287
        %6500 = vmatprep.subr.bf16.mxu0 %v6299
        %6501 = vmatpush1.bf16.xpose.msra.mxu0 %v6296
        %6502 = vmatprep.subr.bf16.mxu0 %v6308
        %6503 = vmatpush1.bf16.xpose.msra.mxu0 %v6305
        %6504 = vmatprep.subr.bf16.mxu0 %v6317
        %6505 = vmatpush1.bf16.xpose.msra.mxu0 %v6314
        %6506 = vmatprep.subr.bf16.mxu0 %v6326
        %6507 = vmatpush1.bf16.xpose.msra.mxu0 %v6323
        %6508 = vmatprep.subr.bf16.mxu0 %v6335
        %6509 = vmatpush1.bf16.xpose.msra.mxu0 %v6332
        %6510 = vmatprep.subr.bf16.mxu0 %v6344
        %6511 = vmatpush1.bf16.xpose.msra.mxu0 %v6341
        %6512 = vmatprep.subr.bf16.mxu0 %v6353
        %6513 = vmatpush1.bf16.xpose.msra.mxu0 %v6350
        %6514 = vmatprep.subr.bf16.mxu0 %v6362
        %6515 = vmatpush1.bf16.xpose.msra.mxu0 %v6359
        %6516 = vmatprep.subr.bf16.mxu0 %v6371
        %6517 = vmatpush1.bf16.xpose.msra.mxu0 %v6368
        %6518 = vmatprep.subr.bf16.mxu0 %v6380
        %6519 = vmatpush1.bf16.xpose.msra.mxu0 %v6377
        %6520 = vmatprep.subr.bf16.mxu0 %v6389
        %6521 = vmatpush1.bf16.xpose.msra.mxu0 %v6386
        %6522 = vmatprep.subr.bf16.mxu0 %v6398
        %6523 = vmatpush1.bf16.xpose.msra.mxu0 %v6395
        %6524 = vmatprep.mubr.bf16.mxu0 %v6430
        %6525 = vmatmul.mubr.bf16.gmra.mrb[0].mxu0 %v6429
        %v6526 = vpop.f32.mrb[0].mxu0
        %v6527 = vadd.f32 0.0, %v6526
        %v6528 = vpop.f32.mrb[0].mxu0
        %v6529 = vadd.f32 0.0, %v6528
        %v6530 = vpop.f32.mrb[0].mxu0
        %v6531 = vpop.f32.mrb[0].mxu0
        %6532 = vdwg.mxu0
        %6533 = vmatprep.subr.bf16.mxu0 0
        %6534 = vmatpush1.bf16.xpose.msra.mxu0 %v6436
        %6535 = vmatprep.subr.bf16.mxu0 0
        %6536 = vmatpush1.bf16.xpose.msra.mxu0 %v6439
        %6537 = vmatprep.subr.bf16.mxu0 0
        %6538 = vmatpush1.bf16.xpose.msra.mxu0 %v6442
        %6539 = vmatprep.subr.bf16.mxu0 0
        %6540 = vmatpush1.bf16.xpose.msra.mxu0 %v6445
        %6541 = vmatprep.subr.bf16.mxu0 0
        %6542 = vmatpush1.bf16.xpose.msra.mxu0 %v6448
        %6543 = vmatprep.subr.bf16.mxu0 0
        %6544 = vmatpush1.bf16.xpose.msra.mxu0 %v6451
        %6545 = vmatprep.subr.bf16.mxu0 0
        %6546 = vmatpush1.bf16.xpose.msra.mxu0 %v6454
        %6547 = vmatprep.subr.bf16.mxu0 0
        %6548 = vmatpush1.bf16.xpose.msra.mxu0 %v6457
        %6549 = vmatprep.subr.bf16.mxu0 0
        %6550 = vmatpush1.bf16.xpose.msra.mxu0 %v6460
        %6551 = vmatprep.subr.bf16.mxu0 0
        %6552 = vmatpush1.bf16.xpose.msra.mxu0 %v6463
        %6553 = vmatprep.subr.bf16.mxu0 0
        %6554 = vmatpush1.bf16.xpose.msra.mxu0 %v6466
        %6555 = vmatprep.subr.bf16.mxu0 0
        %6556 = vmatpush1.bf16.xpose.msra.mxu0 %v6469
        %6557 = vmatprep.subr.bf16.mxu0 0
        %6558 = vmatpush1.bf16.xpose.msra.mxu0 %v6472
        %6559 = vmatprep.subr.bf16.mxu0 0
        %6560 = vmatpush1.bf16.xpose.msra.mxu0 %v6475
        %6561 = vmatprep.subr.bf16.mxu0 0
        %6562 = vmatpush1.bf16.xpose.msra.mxu0 %v6478
        %6563 = vmatprep.subr.bf16.mxu0 0
        %6564 = vmatpush1.bf16.xpose.msra.mxu0 %v6481
        %6565 = vmatprep.mubr.bf16.mxu0 0
        %6566 = vmatmul.mubr.bf16.gmra.mrb[0].mxu0 %v6433
        %v6567 = vpop.f32.mrb[0].mxu0
        %v6568 = vadd.f32 %v6527, %v6567
        %v6569 = vpop.f32.mrb[0].mxu0
        %v6570 = vadd.f32 %v6529, %v6569
        %v6571 = vpop.f32.mrb[0].mxu0
        %v6572 = vpop.f32.mrb[0].mxu0
        %6573 = vdwg.mxu0
        %6574 = vmatprep.subr.bf16.mxu0 %v6407
        %6575 = vmatpush1.bf16.xpose.msra.mxu0 %v6404
        %6576 = vmatprep.subr.bf16.mxu0 %v6416
        %6577 = vmatpush1.bf16.xpose.msra.mxu0 %v6413
        %6578 = vmatprep.subr.bf16.mxu0 %v6425
        %6579 = vmatpush1.bf16.xpose.msra.mxu0 %v6422
        %6580 = vmatprep.subr.bf16.mxu0 0
        %6581 = vmatpush1.bf16.xpose.msra.mxu0 0
        %6582 = vmatprep.subr.bf16.mxu0 0
        %6583 = vmatpush1.bf16.xpose.msra.mxu0 0
        %6584 = vmatprep.subr.bf16.mxu0 0
        %6585 = vmatpush1.bf16.xpose.msra.mxu0 0
        %6586 = vmatprep.subr.bf16.mxu0 0
        %6587 = vmatpush1.bf16.xpose.msra.mxu0 0
        %6588 = vmatprep.subr.bf16.mxu0 0
        %6589 = vmatpush1.bf16.xpose.msra.mxu0 0
        %6590 = vmatprep.subr.bf16.mxu0 0
        %6591 = vmatpush1.bf16.xpose.msra.mxu0 0
        %6592 = vmatprep.subr.bf16.mxu0 0
        %6593 = vmatpush1.bf16.xpose.msra.mxu0 0
        %6594 = vmatprep.subr.bf16.mxu0 0
        %6595 = vmatpush1.bf16.xpose.msra.mxu0 0
        %6596 = vmatprep.subr.bf16.mxu0 0
        %6597 = vmatpush1.bf16.xpose.msra.mxu0 0
        %6598 = vmatprep.subr.bf16.mxu0 0
        %6599 = vmatpush1.bf16.xpose.msra.mxu0 0
        %6600 = vmatprep.subr.bf16.mxu0 0
        %6601 = vmatpush1.bf16.xpose.msra.mxu0 0
        %6602 = vmatprep.subr.bf16.mxu0 0
        %6603 = vmatpush1.bf16.xpose.msra.mxu0 0
        %6604 = vmatprep.subr.bf16.mxu0 0
        %6605 = vmatpush1.bf16.xpose.msra.mxu0 0
        %6606 = vmatprep.mubr.bf16.mxu0 %v6430
        %6607 = vmatmul.mubr.bf16.gmra.mrb[0].mxu0 %v6429
        %v6608 = vpop.f32.mrb[0].mxu0
        %v6609 = vadd.f32 0.0, %v6608
        %v6610 = vpop.f32.mrb[0].mxu0
        %v6611 = vpop.f32.mrb[0].mxu0
        %v6612 = vpop.f32.mrb[0].mxu0
        %6613 = vdwg.mxu0
        %6614 = vmatprep.subr.bf16.mxu0 0
        %6615 = vmatpush1.bf16.xpose.msra.mxu0 %v6484
        %6616 = vmatprep.subr.bf16.mxu0 0
        %6617 = vmatpush1.bf16.xpose.msra.mxu0 %v6487
        %6618 = vmatprep.subr.bf16.mxu0 0
        %6619 = vmatpush1.bf16.xpose.msra.mxu0 %v6490
        %6620 = vmatprep.subr.bf16.mxu0 0
        %6621 = vmatpush1.bf16.xpose.msra.mxu0 0
        %6622 = vmatprep.subr.bf16.mxu0 0
        %6623 = vmatpush1.bf16.xpose.msra.mxu0 0
        %6624 = vmatprep.subr.bf16.mxu0 0
        %6625 = vmatpush1.bf16.xpose.msra.mxu0 0
        %6626 = vmatprep.subr.bf16.mxu0 0
        %6627 = vmatpush1.bf16.xpose.msra.mxu0 0
        %6628 = vmatprep.subr.bf16.mxu0 0
        %6629 = vmatpush1.bf16.xpose.msra.mxu0 0
        %6630 = vmatprep.subr.bf16.mxu0 0
        %6631 = vmatpush1.bf16.xpose.msra.mxu0 0
        %6632 = vmatprep.subr.bf16.mxu0 0
        %6633 = vmatpush1.bf16.xpose.msra.mxu0 0
        %6634 = vmatprep.subr.bf16.mxu0 0
        %6635 = vmatpush1.bf16.xpose.msra.mxu0 0
        %6636 = vmatprep.subr.bf16.mxu0 0
        %6637 = vmatpush1.bf16.xpose.msra.mxu0 0
        %6638 = vmatprep.subr.bf16.mxu0 0
        %6639 = vmatpush1.bf16.xpose.msra.mxu0 0
        %6640 = vmatprep.subr.bf16.mxu0 0
        %6641 = vmatpush1.bf16.xpose.msra.mxu0 0
        %6642 = vmatprep.subr.bf16.mxu0 0
        %6643 = vmatpush1.bf16.xpose.msra.mxu0 0
        %6644 = vmatprep.subr.bf16.mxu0 0
        %6645 = vmatpush1.bf16.xpose.msra.mxu0 0
        %6646 = vmatprep.mubr.bf16.mxu0 0
        %6647 = vmatmul.mubr.bf16.gmra.mrb[0].mxu0 %v6433
        %v6648 = vpop.f32.mrb[0].mxu0
        %v6649 = vadd.f32 %v6609, %v6648
        %v6650 = vpop.f32.mrb[0].mxu0
        %v6651 = vpop.f32.mrb[0].mxu0
        %v6652 = vpop.f32.mrb[0].mxu0
        %6653 = vdwg.mxu0
        %v6654 = vrcp.pop %v6568
        %v6655 = vrcp.pop %v6570
        %v6656 = vrcp.pop %v6649
        %v6657 = vlaneseq
        %v6658 = vshrl.u32 %v6657, 7
        %v6659 = vsub.s32 0, %v6658
        %v6660 = vrot.slane %v6654, %v6659
        %v6661 = vlaneseq
        %v6662 = vshrl.u32 %v6661, 7
        %v6663 = vsub.s32 0, %v6662
        %v6664 = vrot.slane %v6655, %v6663
        %v6665 = vlaneseq
        %v6666 = vshrl.u32 %v6665, 7
        %v6667 = vsub.s32 0, %v6666
        %v6668 = vrot.slane %v6656, %v6667
        %v6669 = vmul.f32 %v6568, %v6660
        %v6670 = vmul.f32 %v6570, %v6664
        %v6671 = vmul.f32 %v6649, %v6668
        %v6672 = vld [vmem:[%s3757 + $0x28] sm:$0x7]
        %v6673 = vpack.c.bf16 %v6669, %v6669
        %v6674 = vpack.c.bf16 %v6670, %v6670
        %v6675 = vpack.c.bf16 %v6671, %v6671
        %v6677 = vsel %vm598, %v6672, 0
        %v6680 = vsel %vm656, %v6673, 0
        %v6683 = vsel %vm656, %v6674, 0
        %v6686 = vsel %vm656, %v6675, 0
        %6688 = vmatprep.subr.bf16.mxu0 %v6683
        %6689 = vmatpush1.bf16.msra.mxu0 %v6680
        %6690 = vmatprep.subr.bf16.mxu0 0
        %6691 = vmatpush1.bf16.msra.mxu0 0
        %6692 = vmatprep.subr.bf16.mxu0 0
        %6693 = vmatpush1.bf16.msra.mxu0 0
        %6694 = vmatprep.subr.bf16.mxu0 0
        %6695 = vmatpush1.bf16.msra.mxu0 0
        %6696 = vmatprep.subr.bf16.mxu0 0
        %6697 = vmatpush1.bf16.msra.mxu0 0
        %6698 = vmatprep.subr.bf16.mxu0 0
        %6699 = vmatpush1.bf16.msra.mxu0 0
        %6700 = vmatprep.subr.bf16.mxu0 0
        %6701 = vmatpush1.bf16.msra.mxu0 0
        %6702 = vmatprep.subr.bf16.mxu0 0
        %6703 = vmatpush1.bf16.msra.mxu0 0
        %6704 = vmatprep.subr.bf16.mxu0 0
        %6705 = vmatpush1.bf16.msra.mxu0 0
        %6706 = vmatprep.subr.bf16.mxu0 0
        %6707 = vmatpush1.bf16.msra.mxu0 0
        %6708 = vmatprep.subr.bf16.mxu0 0
        %6709 = vmatpush1.bf16.msra.mxu0 0
        %6710 = vmatprep.subr.bf16.mxu0 0
        %6711 = vmatpush1.bf16.msra.mxu0 0
        %6712 = vmatprep.subr.bf16.mxu0 0
        %6713 = vmatpush1.bf16.msra.mxu0 0
        %6714 = vmatprep.subr.bf16.mxu0 0
        %6715 = vmatpush1.bf16.msra.mxu0 0
        %6716 = vmatprep.subr.bf16.mxu0 0
        %6717 = vmatpush1.bf16.msra.mxu0 0
        %6718 = vmatprep.subr.bf16.mxu0 0
        %6719 = vmatpush1.bf16.msra.mxu0 0
        %6720 = vmatprep.mubr.bf16.mxu0 0
        %6721 = vmatmul.mubr.bf16.gmra.mrb[0].mxu0 %v6677
        %v6722 = vpop.f32.mrb[0].mxu0
        %v6723 = vadd.f32 0.0, %v6722
        %v6724 = vpop.f32.mrb[0].mxu0
        %v6725 = vadd.f32 0.0, %v6724
        %v6726 = vpop.f32.mrb[0].mxu0
        %v6727 = vpop.f32.mrb[0].mxu0
        %6728 = vdwg.mxu0
        %6729 = vmatprep.subr.bf16.mxu0 0
        %6730 = vmatpush1.bf16.msra.mxu0 %v6686
        %6731 = vmatprep.subr.bf16.mxu0 0
        %6732 = vmatpush1.bf16.msra.mxu0 0
        %6733 = vmatprep.subr.bf16.mxu0 0
        %6734 = vmatpush1.bf16.msra.mxu0 0
        %6735 = vmatprep.subr.bf16.mxu0 0
        %6736 = vmatpush1.bf16.msra.mxu0 0
        %6737 = vmatprep.subr.bf16.mxu0 0
        %6738 = vmatpush1.bf16.msra.mxu0 0
        %6739 = vmatprep.subr.bf16.mxu0 0
        %6740 = vmatpush1.bf16.msra.mxu0 0
        %6741 = vmatprep.subr.bf16.mxu0 0
        %6742 = vmatpush1.bf16.msra.mxu0 0
        %6743 = vmatprep.subr.bf16.mxu0 0
        %6744 = vmatpush1.bf16.msra.mxu0 0
        %6745 = vmatprep.subr.bf16.mxu0 0
        %6746 = vmatpush1.bf16.msra.mxu0 0
        %6747 = vmatprep.subr.bf16.mxu0 0
        %6748 = vmatpush1.bf16.msra.mxu0 0
        %6749 = vmatprep.subr.bf16.mxu0 0
        %6750 = vmatpush1.bf16.msra.mxu0 0
        %6751 = vmatprep.subr.bf16.mxu0 0
        %6752 = vmatpush1.bf16.msra.mxu0 0
        %6753 = vmatprep.subr.bf16.mxu0 0
        %6754 = vmatpush1.bf16.msra.mxu0 0
        %6755 = vmatprep.subr.bf16.mxu0 0
        %6756 = vmatpush1.bf16.msra.mxu0 0
        %6757 = vmatprep.subr.bf16.mxu0 0
        %6758 = vmatpush1.bf16.msra.mxu0 0
        %6759 = vmatprep.subr.bf16.mxu0 0
        %6760 = vmatpush1.bf16.msra.mxu0 0
        %6761 = vmatprep.mubr.bf16.mxu0 0
        %6762 = vmatmul.mubr.bf16.gmra.mrb[0].mxu0 %v6677
        %v6763 = vpop.f32.mrb[0].mxu0
        %v6764 = vadd.f32 0.0, %v6763
        %v6765 = vpop.f32.mrb[0].mxu0
        %v6766 = vpop.f32.mrb[0].mxu0
        %v6767 = vpop.f32.mrb[0].mxu0
        %6768 = vdwg.mxu0
        %v6769 = vadd.f32 %v5364, %v6723
        %v6770 = vadd.f32 %v5365, %v6725
        %v6771 = vadd.f32 %v5366, %v6764
        %v6772 = vadd.f32 %v3672, %v6769
        %v6773 = vadd.f32 %v3673, %v6770
        %v6774 = vadd.f32 %v3674, %v6771
        %v6775 = vld [vmem:[%s3675 + $0x10] sm:$0x3f]
        %v6776 = vld [vmem:[%s3675 + $0x18] sm:$0x3f]
        %v6777 = vsel %vm261, %v6772, 0.0
        %v6778 = vrot.slane %v6777, 4
        %v6779 = vadd.f32 %v6777, %v6778
        %v6780 = vrot.slane %v6779, 2
        %v6781 = vadd.f32 %v6779, %v6780
        %v6782 = vrot.slane %v6781, 1
        %v6783 = vadd.f32 %v6781, %v6782
        %v6784 = vsel %vm261, %v6773, 0.0
        %v6785 = vrot.slane %v6784, 4
        %v6786 = vadd.f32 %v6784, %v6785
        %v6787 = vrot.slane %v6786, 2
        %v6788 = vadd.f32 %v6786, %v6787
        %v6789 = vrot.slane %v6788, 1
        %v6790 = vadd.f32 %v6788, %v6789
        %v6791 = vsel %vm276, %v6774, 0.0
        %v6792 = vrot.slane %v6791, 4
        %v6793 = vadd.f32 %v6791, %v6792
        %v6794 = vrot.slane %v6793, 2
        %v6795 = vadd.f32 %v6793, %v6794
        %v6796 = vrot.slane %v6795, 1
        %v6797 = vadd.f32 %v6795, %v6796
        %v6798 = vmul.f32 %v6783, %v284
        %v6799 = vmul.f32 %v6790, %v284
        %v6800 = vmul.f32 %v6797, %v284
        %v6801 = vsub.f32 %v6772, %v6798
        %v6802 = vsub.f32 %v6773, %v6799
        %v6803 = vsub.f32 %v6774, %v6800
        %v6804 = vmul.f32 %v6801, %v6801
        %v6805 = vmul.f32 %v6802, %v6802
        %v6806 = vmul.f32 %v6803, %v6803
        %v6807 = vsel %vm261, %v6804, 0.0
        %v6808 = vrot.slane %v6807, 4
        %v6809 = vadd.f32 %v6807, %v6808
        %v6810 = vrot.slane %v6809, 2
        %v6811 = vadd.f32 %v6809, %v6810
        %v6812 = vrot.slane %v6811, 1
        %v6813 = vadd.f32 %v6811, %v6812
        %v6814 = vsel %vm261, %v6805, 0.0
        %v6815 = vrot.slane %v6814, 4
        %v6816 = vadd.f32 %v6814, %v6815
        %v6817 = vrot.slane %v6816, 2
        %v6818 = vadd.f32 %v6816, %v6817
        %v6819 = vrot.slane %v6818, 1
        %v6820 = vadd.f32 %v6818, %v6819
        %v6821 = vsel %vm276, %v6806, 0.0
        %v6822 = vrot.slane %v6821, 4
        %v6823 = vadd.f32 %v6821, %v6822
        %v6824 = vrot.slane %v6823, 2
        %v6825 = vadd.f32 %v6823, %v6824
        %v6826 = vrot.slane %v6825, 1
        %v6827 = vadd.f32 %v6825, %v6826
        %v6828 = vmul.f32 %v6813, %v284
        %v6829 = vmul.f32 %v6820, %v284
        %v6830 = vmul.f32 %v6827, %v284
        %v6831 = vadd.f32 %v6828, 1e-05
        %v6832 = vadd.f32 %v6829, 1e-05
        %v6833 = vadd.f32 %v6830, 1e-05
        %v6834 = vrsqrt.pop %v6831
        %v6835 = vrsqrt.pop %v6832
        %v6836 = vrsqrt.pop %v6833
        %v6837 = vmul.f32 %v6801, %v6834
        %v6838 = vmul.f32 %v6802, %v6835
        %v6839 = vmul.f32 %v6803, %v6836
        %6841 = vset.pattern.permute.xlu0 0
        %6842 = vperm.xlu0 %6841, %v6775
        %v6843 = vpop.permute.xlu0 %6842
        %v6845 = vmul.f32 %v6837, %v6843
        %v6846 = vmul.f32 %v6838, %v6843
        %v6847 = vmul.f32 %v6839, %v6843
        %6849 = vset.pattern.permute.xlu0 0
        %6850 = vperm.xlu0 %6849, %v6776
        %v6851 = vpop.permute.xlu0 %6850
        %v6853 = vadd.f32 %v6845, %v6851
        %v6854 = vadd.f32 %v6846, %v6851
        %v6855 = vadd.f32 %v6847, %v6851
        %v6856 = vld [vmem:[%s3757 + $0x18] sm:$0xf]
        %v6857 = vld [vmem:[%s3757 + $0x1c] sm:$0xf]
        %v6858 = vpack.c.bf16 %v6853, %v6853
        %v6859 = vpack.c.bf16 %v6854, %v6854
        %v6860 = vpack.c.bf16 %v6855, %v6855
        %v6861 = vld [vmem:[%s3675 + $0x30] sm:$0xff]
        %v6862 = vld [vmem:[%s3675 + $0x38] sm:$0xff]
        %6864 = vset.pattern.permute.xlu0 0
        %6865 = vperm.xlu0 %6864, %v6861
        %v6866 = vpop.permute.xlu0 %6865
        %6869 = vset.pattern.permute.xlu0 0
        %6870 = vperm.xlu0 %6869, %v6862
        %v6871 = vpop.permute.xlu0 %6870
        %v6875 = vunpack.c.l.b16 %v6856
        %v6876 = vunpack.c.l.b16 %v6857
        %v6877 = vpack.c.b16 %v6876, %v6875
        %v6879 = vsel %vm403, %v6877, 0
        %v6882 = vsel %vm413, %v6858, 0
        %v6885 = vsel %vm413, %v6859, 0
        %v6888 = vsel %vm413, %v6860, 0
        %6890 = vmatprep.subr.bf16.mxu0 %v6885
        %6891 = vmatpush1.bf16.msra.mxu0 %v6882
        %6892 = vmatprep.subr.bf16.mxu0 0
        %6893 = vmatpush1.bf16.msra.mxu0 0
        %6894 = vmatprep.subr.bf16.mxu0 0
        %6895 = vmatpush1.bf16.msra.mxu0 0
        %6896 = vmatprep.subr.bf16.mxu0 0
        %6897 = vmatpush1.bf16.msra.mxu0 0
        %6898 = vmatprep.subr.bf16.mxu0 0
        %6899 = vmatpush1.bf16.msra.mxu0 0
        %6900 = vmatprep.subr.bf16.mxu0 0
        %6901 = vmatpush1.bf16.msra.mxu0 0
        %6902 = vmatprep.subr.bf16.mxu0 0
        %6903 = vmatpush1.bf16.msra.mxu0 0
        %6904 = vmatprep.subr.bf16.mxu0 0
        %6905 = vmatpush1.bf16.msra.mxu0 0
        %6906 = vmatprep.subr.bf16.mxu0 0
        %6907 = vmatpush1.bf16.msra.mxu0 0
        %6908 = vmatprep.subr.bf16.mxu0 0
        %6909 = vmatpush1.bf16.msra.mxu0 0
        %6910 = vmatprep.subr.bf16.mxu0 0
        %6911 = vmatpush1.bf16.msra.mxu0 0
        %6912 = vmatprep.subr.bf16.mxu0 0
        %6913 = vmatpush1.bf16.msra.mxu0 0
        %6914 = vmatprep.subr.bf16.mxu0 0
        %6915 = vmatpush1.bf16.msra.mxu0 0
        %6916 = vmatprep.subr.bf16.mxu0 0
        %6917 = vmatpush1.bf16.msra.mxu0 0
        %6918 = vmatprep.subr.bf16.mxu0 0
        %6919 = vmatpush1.bf16.msra.mxu0 0
        %6920 = vmatprep.subr.bf16.mxu0 0
        %6921 = vmatpush1.bf16.msra.mxu0 0
        %6922 = vmatprep.mubr.bf16.mxu0 0
        %6923 = vmatmul.mubr.bf16.gmra.mrb[0].mxu0 %v6879
        %v6924 = vpop.f32.mrb[0].mxu0
        %v6925 = vadd.f32 %v6866, %v6924
        %v6926 = vpop.f32.mrb[0].mxu0
        %v6927 = vadd.f32 %v6866, %v6926
        %v6928 = vpop.f32.mrb[0].mxu0
        %v6929 = vadd.f32 %v6871, %v6928
        %v6930 = vpop.f32.mrb[0].mxu0
        %v6931 = vadd.f32 %v6871, %v6930
        %6932 = vdwg.mxu0
        %6933 = vmatprep.subr.bf16.mxu0 0
        %6934 = vmatpush1.bf16.msra.mxu0 %v6888
        %6935 = vmatprep.subr.bf16.mxu0 0
        %6936 = vmatpush1.bf16.msra.mxu0 0
        %6937 = vmatprep.subr.bf16.mxu0 0
        %6938 = vmatpush1.bf16.msra.mxu0 0
        %6939 = vmatprep.subr.bf16.mxu0 0
        %6940 = vmatpush1.bf16.msra.mxu0 0
        %6941 = vmatprep.subr.bf16.mxu0 0
        %6942 = vmatpush1.bf16.msra.mxu0 0
        %6943 = vmatprep.subr.bf16.mxu0 0
        %6944 = vmatpush1.bf16.msra.mxu0 0
        %6945 = vmatprep.subr.bf16.mxu0 0
        %6946 = vmatpush1.bf16.msra.mxu0 0
        %6947 = vmatprep.subr.bf16.mxu0 0
        %6948 = vmatpush1.bf16.msra.mxu0 0
        %6949 = vmatprep.subr.bf16.mxu0 0
        %6950 = vmatpush1.bf16.msra.mxu0 0
        %6951 = vmatprep.subr.bf16.mxu0 0
        %6952 = vmatpush1.bf16.msra.mxu0 0
        %6953 = vmatprep.subr.bf16.mxu0 0
        %6954 = vmatpush1.bf16.msra.mxu0 0
        %6955 = vmatprep.subr.bf16.mxu0 0
        %6956 = vmatpush1.bf16.msra.mxu0 0
        %6957 = vmatprep.subr.bf16.mxu0 0
        %6958 = vmatpush1.bf16.msra.mxu0 0
        %6959 = vmatprep.subr.bf16.mxu0 0
        %6960 = vmatpush1.bf16.msra.mxu0 0
        %6961 = vmatprep.subr.bf16.mxu0 0
        %6962 = vmatpush1.bf16.msra.mxu0 0
        %6963 = vmatprep.subr.bf16.mxu0 0
        %6964 = vmatpush1.bf16.msra.mxu0 0
        %6965 = vmatprep.mubr.bf16.mxu0 0
        %6966 = vmatmul.mubr.bf16.gmra.mrb[0].mxu0 %v6879
        %v6967 = vpop.f32.mrb[0].mxu0
        %v6968 = vadd.f32 %v6866, %v6967
        %v6969 = vpop.f32.mrb[0].mxu0
        %v6970 = vpop.f32.mrb[0].mxu0
        %v6971 = vadd.f32 %v6871, %v6970
        %v6972 = vpop.f32.mrb[0].mxu0
        %6973 = vdwg.mxu0
        %v6974 = vmax.f32 %v6925, 0.0
        %v6975 = vmax.f32 %v6927, 0.0
        %v6976 = vmax.f32 %v6968, 0.0
        %v6977 = vmax.f32 %v6929, 0.0
        %v6978 = vmax.f32 %v6931, 0.0
        %v6979 = vmax.f32 %v6971, 0.0
        %v6980 = vld [vmem:[%s3757 + $0x30] sm:$0x7]
        %v6981 = vpack.c.bf16 %v6977, %v6974
        %v6982 = vpack.c.bf16 %v6978, %v6975
        %v6983 = vpack.c.bf16 %v6979, %v6976
        %v6985 = vsel %vm3575, %v6980, 0
        %6987 = vmatprep.subr.bf16.mxu0 %v6982
        %6988 = vmatpush1.bf16.msra.mxu0 %v6981
        %6989 = vmatprep.subr.bf16.mxu0 0
        %6990 = vmatpush1.bf16.msra.mxu0 0
        %6991 = vmatprep.subr.bf16.mxu0 0
        %6992 = vmatpush1.bf16.msra.mxu0 0
        %6993 = vmatprep.subr.bf16.mxu0 0
        %6994 = vmatpush1.bf16.msra.mxu0 0
        %6995 = vmatprep.subr.bf16.mxu0 0
        %6996 = vmatpush1.bf16.msra.mxu0 0
        %6997 = vmatprep.subr.bf16.mxu0 0
        %6998 = vmatpush1.bf16.msra.mxu0 0
        %6999 = vmatprep.subr.bf16.mxu0 0
        %7000 = vmatpush1.bf16.msra.mxu0 0
        %7001 = vmatprep.subr.bf16.mxu0 0
        %7002 = vmatpush1.bf16.msra.mxu0 0
        %7003 = vmatprep.subr.bf16.mxu0 0
        %7004 = vmatpush1.bf16.msra.mxu0 0
        %7005 = vmatprep.subr.bf16.mxu0 0
        %7006 = vmatpush1.bf16.msra.mxu0 0
        %7007 = vmatprep.subr.bf16.mxu0 0
        %7008 = vmatpush1.bf16.msra.mxu0 0
        %7009 = vmatprep.subr.bf16.mxu0 0
        %7010 = vmatpush1.bf16.msra.mxu0 0
        %7011 = vmatprep.subr.bf16.mxu0 0
        %7012 = vmatpush1.bf16.msra.mxu0 0
        %7013 = vmatprep.subr.bf16.mxu0 0
        %7014 = vmatpush1.bf16.msra.mxu0 0
        %7015 = vmatprep.subr.bf16.mxu0 0
        %7016 = vmatpush1.bf16.msra.mxu0 0
        %7017 = vmatprep.subr.bf16.mxu0 0
        %7018 = vmatpush1.bf16.msra.mxu0 0
        %7019 = vmatprep.mubr.bf16.mxu0 0
        %7020 = vmatmul.mubr.bf16.gmra.mrb[0].mxu0 %v6985
        %v7021 = vpop.f32.mrb[0].mxu0
        %v7022 = vadd.f32 0.0, %v7021
        %v7023 = vpop.f32.mrb[0].mxu0
        %v7024 = vadd.f32 0.0, %v7023
        %v7025 = vpop.f32.mrb[0].mxu0
        %v7026 = vpop.f32.mrb[0].mxu0
        %7027 = vdwg.mxu0
        %7028 = vmatprep.subr.bf16.mxu0 0
        %7029 = vmatpush1.bf16.msra.mxu0 %v6983
        %7030 = vmatprep.subr.bf16.mxu0 0
        %7031 = vmatpush1.bf16.msra.mxu0 0
        %7032 = vmatprep.subr.bf16.mxu0 0
        %7033 = vmatpush1.bf16.msra.mxu0 0
        %7034 = vmatprep.subr.bf16.mxu0 0
        %7035 = vmatpush1.bf16.msra.mxu0 0
        %7036 = vmatprep.subr.bf16.mxu0 0
        %7037 = vmatpush1.bf16.msra.mxu0 0
        %7038 = vmatprep.subr.bf16.mxu0 0
        %7039 = vmatpush1.bf16.msra.mxu0 0
        %7040 = vmatprep.subr.bf16.mxu0 0
        %7041 = vmatpush1.bf16.msra.mxu0 0
        %7042 = vmatprep.subr.bf16.mxu0 0
        %7043 = vmatpush1.bf16.msra.mxu0 0
        %7044 = vmatprep.subr.bf16.mxu0 0
        %7045 = vmatpush1.bf16.msra.mxu0 0
        %7046 = vmatprep.subr.bf16.mxu0 0
        %7047 = vmatpush1.bf16.msra.mxu0 0
        %7048 = vmatprep.subr.bf16.mxu0 0
        %7049 = vmatpush1.bf16.msra.mxu0 0
        %7050 = vmatprep.subr.bf16.mxu0 0
        %7051 = vmatpush1.bf16.msra.mxu0 0
        %7052 = vmatprep.subr.bf16.mxu0 0
        %7053 = vmatpush1.bf16.msra.mxu0 0
        %7054 = vmatprep.subr.bf16.mxu0 0
        %7055 = vmatpush1.bf16.msra.mxu0 0
        %7056 = vmatprep.subr.bf16.mxu0 0
        %7057 = vmatpush1.bf16.msra.mxu0 0
        %7058 = vmatprep.subr.bf16.mxu0 0
        %7059 = vmatpush1.bf16.msra.mxu0 0
        %7060 = vmatprep.mubr.bf16.mxu0 0
        %7061 = vmatmul.mubr.bf16.gmra.mrb[0].mxu0 %v6985
        %v7062 = vpop.f32.mrb[0].mxu0
        %v7063 = vadd.f32 0.0, %v7062
        %v7064 = vpop.f32.mrb[0].mxu0
        %v7065 = vpop.f32.mrb[0].mxu0
        %v7066 = vpop.f32.mrb[0].mxu0
        %7067 = vdwg.mxu0
        %v7068 = vadd.f32 %v6772, %v7022
        %v7069 = vadd.f32 %v6773, %v7024
        %v7070 = vadd.f32 %v6774, %v7063
        %v7071 = vld [vmem:[%s3675 + $0x28] sm:$0x3f]
        %7073 = vset.pattern.permute.xlu0 0
        %7074 = vperm.xlu0 %7073, %v7071
        %v7075 = vpop.permute.xlu0 %7074
        %v7077 = vadd.f32 %v7068, %v7075
        %v7078 = vadd.f32 %v7069, %v7075
        %v7079 = vadd.f32 %v7070, %v7075
        %v7080 = vld [vmem:[%s5] sm:$0x1]
        %v7081 = vld [vmem:[%s4] sm:$0xf]
        %v7082 = vld [vmem:[%s4 + $0x4] sm:$0xf]
        %v7083 = vld [vmem:[%s4 + $0x8] sm:$0xf]
        %v7084 = vld [vmem:[%s4 + $0xc] sm:$0xf]
        %v7085 = vld [vmem:[%s4 + $0x10] sm:$0xf]
        %v7086 = vld [vmem:[%s4 + $0x14] sm:$0xf]
        %v7087 = vld [vmem:[%s4 + $0x18] sm:$0xf]
        %v7088 = vld [vmem:[%s4 + $0x1c] sm:$0xf]
        %v7089 = vld [vmem:[%s4 + $0x20] sm:$0xf]
        %v7090 = vld [vmem:[%s4 + $0x24] sm:$0xf]
        %v7091 = vld [vmem:[%s4 + $0x28] sm:$0xf]
        %v7092 = vld [vmem:[%s4 + $0x2c] sm:$0xf]
        %v7093 = vld [vmem:[%s4 + $0x30] sm:$0xf]
        %v7094 = vld [vmem:[%s4 + $0x34] sm:$0xf]
        %v7095 = vld [vmem:[%s4 + $0x38] sm:$0xf]
        %v7096 = vld [vmem:[%s4 + $0x3c] sm:$0xf]
        %v7097 = vld [vmem:[%s4 + $0x40] sm:$0xf]
        %v7098 = vld [vmem:[%s4 + $0x44] sm:$0xf]
        %v7099 = vld [vmem:[%s4 + $0x48] sm:$0xf]
        %v7100 = vld [vmem:[%s4 + $0x4c] sm:$0xf]
        %v7101 = vld [vmem:[%s4 + $0x50] sm:$0xf]
        %v7102 = vld [vmem:[%s4 + $0x54] sm:$0xf]
        %v7103 = vld [vmem:[%s4 + $0x58] sm:$0xf]
        %v7104 = vld [vmem:[%s4 + $0x5c] sm:$0xf]
        %v7105 = vld [vmem:[%s4 + $0x60] sm:$0xf]
        %v7106 = vld [vmem:[%s4 + $0x64] sm:$0xf]
        %v7107 = vld [vmem:[%s4 + $0x68] sm:$0xf]
        %v7108 = vld [vmem:[%s4 + $0x6c] sm:$0xf]
        %v7109 = vld [vmem:[%s4 + $0x70] sm:$0xf]
        %v7110 = vld [vmem:[%s4 + $0x74] sm:$0xf]
        %v7111 = vld [vmem:[%s4 + $0x78] sm:$0xf]
        %v7112 = vld [vmem:[%s4 + $0x7c] sm:$0xf]
        %v7113 = vld [vmem:[%s4 + $0x80] sm:$0xf]
        %v7114 = vld [vmem:[%s4 + $0x84] sm:$0xf]
        %v7115 = vld [vmem:[%s4 + $0x88] sm:$0xf]
        %v7116 = vld [vmem:[%s4 + $0x8c] sm:$0xf]
        %v7117 = vld [vmem:[%s4 + $0x90] sm:$0xf]
        %v7118 = vld [vmem:[%s4 + $0x94] sm:$0x3]
        %v7119 = vpack.c.bf16 %v7077, %v7077
        %v7120 = vpack.c.bf16 %v7078, %v7078
        %v7121 = vpack.c.bf16 %v7079, %v7079
        %v7160 = vunpack.c.l.b16 %v7081
        %v7161 = vunpack.c.l.b16 %v7082
        %v7162 = vunpack.c.l.b16 %v7083
        %v7163 = vunpack.c.l.b16 %v7084
        %v7164 = vunpack.c.l.b16 %v7085
        %v7165 = vunpack.c.l.b16 %v7086
        %v7166 = vunpack.c.l.b16 %v7087
        %v7167 = vunpack.c.l.b16 %v7088
        %v7168 = vunpack.c.l.b16 %v7089
        %v7169 = vunpack.c.l.b16 %v7090
        %v7170 = vunpack.c.l.b16 %v7091
        %v7171 = vunpack.c.l.b16 %v7092
        %v7172 = vunpack.c.l.b16 %v7093
        %v7173 = vunpack.c.l.b16 %v7094
        %v7174 = vunpack.c.l.b16 %v7095
        %v7175 = vunpack.c.l.b16 %v7096
        %v7176 = vunpack.c.l.b16 %v7097
        %v7177 = vunpack.c.l.b16 %v7098
        %v7178 = vunpack.c.l.b16 %v7099
        %v7179 = vunpack.c.l.b16 %v7100
        %v7180 = vunpack.c.l.b16 %v7101
        %v7181 = vunpack.c.l.b16 %v7102
        %v7182 = vunpack.c.l.b16 %v7103
        %v7183 = vunpack.c.l.b16 %v7104
        %v7184 = vunpack.c.l.b16 %v7105
        %v7185 = vunpack.c.l.b16 %v7106
        %v7186 = vunpack.c.l.b16 %v7107
        %v7187 = vunpack.c.l.b16 %v7108
        %v7188 = vunpack.c.l.b16 %v7109
        %v7189 = vunpack.c.l.b16 %v7110
        %v7190 = vunpack.c.l.b16 %v7111
        %v7191 = vunpack.c.l.b16 %v7112
        %v7192 = vunpack.c.l.b16 %v7113
        %v7193 = vunpack.c.l.b16 %v7114
        %v7194 = vunpack.c.l.b16 %v7115
        %v7195 = vunpack.c.l.b16 %v7116
        %v7196 = vunpack.c.l.b16 %v7117
        %v7197 = vunpack.c.l.b16 %v7118
        %v7198 = vpack.c.b16 %v7161, %v7160
        %v7199 = vpack.c.b16 %v7163, %v7162
        %v7200 = vpack.c.b16 %v7165, %v7164
        %v7201 = vpack.c.b16 %v7167, %v7166
        %v7202 = vpack.c.b16 %v7169, %v7168
        %v7203 = vpack.c.b16 %v7171, %v7170
        %v7204 = vpack.c.b16 %v7173, %v7172
        %v7205 = vpack.c.b16 %v7175, %v7174
        %v7206 = vpack.c.b16 %v7177, %v7176
        %v7207 = vpack.c.b16 %v7179, %v7178
        %v7208 = vpack.c.b16 %v7181, %v7180
        %v7209 = vpack.c.b16 %v7183, %v7182
        %v7210 = vpack.c.b16 %v7185, %v7184
        %v7211 = vpack.c.b16 %v7187, %v7186
        %v7212 = vpack.c.b16 %v7189, %v7188
        %v7213 = vpack.c.b16 %v7191, %v7190
        %v7214 = vpack.c.b16 %v7193, %v7192
        %v7215 = vpack.c.b16 %v7195, %v7194
        %v7216 = vpack.c.b16 %v7197, %v7196
        %v7236 = vsel %vm1075, %v7121, 0
        %v7239 = vsel %vm261, %v7216, 0
        %7241 = vmatprep.subr.bf16.mxu0 0
        %7242 = vmatpush1.bf16.msra.mxu0 %v7198
        %7243 = vmatprep.subr.bf16.mxu0 0
        %7244 = vmatpush1.bf16.msra.mxu0 %v7199
        %7245 = vmatprep.subr.bf16.mxu0 0
        %7246 = vmatpush1.bf16.msra.mxu0 %v7200
        %7247 = vmatprep.subr.bf16.mxu0 0
        %7248 = vmatpush1.bf16.msra.mxu0 %v7201
        %7249 = vmatprep.subr.bf16.mxu0 0
        %7250 = vmatpush1.bf16.msra.mxu0 %v7202
        %7251 = vmatprep.subr.bf16.mxu0 0
        %7252 = vmatpush1.bf16.msra.mxu0 %v7203
        %7253 = vmatprep.subr.bf16.mxu0 0
        %7254 = vmatpush1.bf16.msra.mxu0 %v7204
        %7255 = vmatprep.subr.bf16.mxu0 0
        %7256 = vmatpush1.bf16.msra.mxu0 %v7205
        %7257 = vmatprep.subr.bf16.mxu0 0
        %7258 = vmatpush1.bf16.msra.mxu0 %v7206
        %7259 = vmatprep.subr.bf16.mxu0 0
        %7260 = vmatpush1.bf16.msra.mxu0 %v7207
        %7261 = vmatprep.subr.bf16.mxu0 0
        %7262 = vmatpush1.bf16.msra.mxu0 %v7208
        %7263 = vmatprep.subr.bf16.mxu0 0
        %7264 = vmatpush1.bf16.msra.mxu0 %v7209
        %7265 = vmatprep.subr.bf16.mxu0 0
        %7266 = vmatpush1.bf16.msra.mxu0 %v7210
        %7267 = vmatprep.subr.bf16.mxu0 0
        %7268 = vmatpush1.bf16.msra.mxu0 %v7211
        %7269 = vmatprep.subr.bf16.mxu0 0
        %7270 = vmatpush1.bf16.msra.mxu0 %v7212
        %7271 = vmatprep.subr.bf16.mxu0 0
        %7272 = vmatpush1.bf16.msra.mxu0 %v7213
        %7273 = vmatprep.mubr.bf16.mxu0 %v7120
        %7274 = vmatmul.mubr.bf16.gmra.mrb[0].mxu0 %v7119
        %v7275 = vpop.f32.mrb[0].mxu0
        %v7276 = vadd.f32 0.0, %v7275
        %v7277 = vpop.f32.mrb[0].mxu0
        %v7278 = vpop.f32.mrb[0].mxu0
        %v7279 = vpop.f32.mrb[0].mxu0
        %7280 = vdwg.mxu0
        %7281 = vmatprep.subr.bf16.mxu0 0
        %7282 = vmatpush1.bf16.msra.mxu0 %v7214
        %7283 = vmatprep.subr.bf16.mxu0 0
        %7284 = vmatpush1.bf16.msra.mxu0 %v7215
        %7285 = vmatprep.subr.bf16.mxu0 0
        %7286 = vmatpush1.bf16.msra.mxu0 %v7239
        %7287 = vmatprep.subr.bf16.mxu0 0
        %7288 = vmatpush1.bf16.msra.mxu0 0
        %7289 = vmatprep.subr.bf16.mxu0 0
        %7290 = vmatpush1.bf16.msra.mxu0 0
        %7291 = vmatprep.subr.bf16.mxu0 0
        %7292 = vmatpush1.bf16.msra.mxu0 0
        %7293 = vmatprep.subr.bf16.mxu0 0
        %7294 = vmatpush1.bf16.msra.mxu0 0
        %7295 = vmatprep.subr.bf16.mxu0 0
        %7296 = vmatpush1.bf16.msra.mxu0 0
        %7297 = vmatprep.subr.bf16.mxu0 0
        %7298 = vmatpush1.bf16.msra.mxu0 0
        %7299 = vmatprep.subr.bf16.mxu0 0
        %7300 = vmatpush1.bf16.msra.mxu0 0
        %7301 = vmatprep.subr.bf16.mxu0 0
        %7302 = vmatpush1.bf16.msra.mxu0 0
        %7303 = vmatprep.subr.bf16.mxu0 0
        %7304 = vmatpush1.bf16.msra.mxu0 0
        %7305 = vmatprep.subr.bf16.mxu0 0
        %7306 = vmatpush1.bf16.msra.mxu0 0
        %7307 = vmatprep.subr.bf16.mxu0 0
        %7308 = vmatpush1.bf16.msra.mxu0 0
        %7309 = vmatprep.subr.bf16.mxu0 0
        %7310 = vmatpush1.bf16.msra.mxu0 0
        %7311 = vmatprep.subr.bf16.mxu0 0
        %7312 = vmatpush1.bf16.msra.mxu0 0
        %7313 = vmatprep.mubr.bf16.mxu0 0
        %7314 = vmatmul.mubr.bf16.gmra.mrb[0].mxu0 %v7236
        %v7315 = vpop.f32.mrb[0].mxu0
        %v7316 = vadd.f32 %v7276, %v7315
        %v7317 = vpop.f32.mrb[0].mxu0
        %v7318 = vpop.f32.mrb[0].mxu0
        %v7319 = vpop.f32.mrb[0].mxu0
        %7320 = vdwg.mxu0
        %v7321 = vadd.f32 %v7080, %v7316
        %s7322 = scalar_lea.vmem %s4, 152
        %v7323 = vld [vmem:[%s7322] sm:$0xf]
        %v7324 = vld [vmem:[%s7322 + $0x4] sm:$0xf]
        %v7325 = vld [vmem:[%s7322 + $0x8] sm:$0xf]
        %v7326 = vld [vmem:[%s7322 + $0xc] sm:$0xf]
        %v7327 = vld [vmem:[%s7322 + $0x10] sm:$0xf]
        %v7328 = vld [vmem:[%s7322 + $0x14] sm:$0xf]
        %v7329 = vld [vmem:[%s7322 + $0x18] sm:$0xf]
        %v7330 = vld [vmem:[%s7322 + $0x1c] sm:$0xf]
        %v7331 = vld [vmem:[%s7322 + $0x20] sm:$0xf]
        %v7332 = vld [vmem:[%s7322 + $0x24] sm:$0xf]
        %v7333 = vld [vmem:[%s7322 + $0x28] sm:$0xf]
        %v7334 = vld [vmem:[%s7322 + $0x2c] sm:$0xf]
        %v7335 = vld [vmem:[%s7322 + $0x30] sm:$0xf]
        %v7336 = vld [vmem:[%s7322 + $0x34] sm:$0xf]
        %v7337 = vld [vmem:[%s7322 + $0x38] sm:$0xf]
        %v7338 = vld [vmem:[%s7322 + $0x3c] sm:$0xf]
        %v7339 = vld [vmem:[%s7322 + $0x40] sm:$0xf]
        %v7340 = vld [vmem:[%s7322 + $0x44] sm:$0xf]
        %v7341 = vld [vmem:[%s7322 + $0x48] sm:$0xf]
        %v7342 = vld [vmem:[%s7322 + $0x4c] sm:$0xf]
        %v7343 = vld [vmem:[%s7322 + $0x50] sm:$0xf]
        %v7344 = vld [vmem:[%s7322 + $0x54] sm:$0xf]
        %v7345 = vld [vmem:[%s7322 + $0x58] sm:$0xf]
        %v7346 = vld [vmem:[%s7322 + $0x5c] sm:$0xf]
        %v7347 = vld [vmem:[%s7322 + $0x60] sm:$0xf]
        %v7348 = vld [vmem:[%s7322 + $0x64] sm:$0xf]
        %v7349 = vld [vmem:[%s7322 + $0x68] sm:$0xf]
        %v7350 = vld [vmem:[%s7322 + $0x6c] sm:$0xf]
        %v7351 = vld [vmem:[%s7322 + $0x70] sm:$0xf]
        %v7352 = vld [vmem:[%s7322 + $0x74] sm:$0xf]
        %v7353 = vld [vmem:[%s7322 + $0x78] sm:$0xf]
        %v7354 = vld [vmem:[%s7322 + $0x7c] sm:$0xf]
        %v7355 = vld [vmem:[%s7322 + $0x80] sm:$0xf]
        %v7356 = vld [vmem:[%s7322 + $0x84] sm:$0xf]
        %v7357 = vld [vmem:[%s7322 + $0x88] sm:$0xf]
        %v7358 = vld [vmem:[%s7322 + $0x8c] sm:$0xf]
        %v7359 = vld [vmem:[%s7322 + $0x90] sm:$0xf]
        %v7360 = vld [vmem:[%s7322 + $0x94] sm:$0x3]
        %v7362 = vshrl.u32 %v7119, 16
        %v7365 = vshrl.u32 %v7120, 16
        %v7367 = vshrl.u32 %v7121, 16
        %v7409 = vunpack.c.l.b16 %v7323
        %v7410 = vunpack.c.l.b16 %v7324
        %v7411 = vunpack.c.l.b16 %v7325
        %v7412 = vunpack.c.l.b16 %v7326
        %v7413 = vunpack.c.l.b16 %v7327
        %v7414 = vunpack.c.l.b16 %v7328
        %v7415 = vunpack.c.l.b16 %v7329
        %v7416 = vunpack.c.l.b16 %v7330
        %v7417 = vunpack.c.l.b16 %v7331
        %v7418 = vunpack.c.l.b16 %v7332
        %v7419 = vunpack.c.l.b16 %v7333
        %v7420 = vunpack.c.l.b16 %v7334
        %v7421 = vunpack.c.l.b16 %v7335
        %v7422 = vunpack.c.l.b16 %v7336
        %v7423 = vunpack.c.l.b16 %v7337
        %v7424 = vunpack.c.l.b16 %v7338
        %v7425 = vunpack.c.l.b16 %v7339
        %v7426 = vunpack.c.l.b16 %v7340
        %v7427 = vunpack.c.l.b16 %v7341
        %v7428 = vunpack.c.l.b16 %v7342
        %v7429 = vunpack.c.l.b16 %v7343
        %v7430 = vunpack.c.l.b16 %v7344
        %v7431 = vunpack.c.l.b16 %v7345
        %v7432 = vunpack.c.l.b16 %v7346
        %v7433 = vunpack.c.l.b16 %v7347
        %v7434 = vunpack.c.l.b16 %v7348
        %v7435 = vunpack.c.l.b16 %v7349
        %v7436 = vunpack.c.l.b16 %v7350
        %v7437 = vunpack.c.l.b16 %v7351
        %v7438 = vunpack.c.l.b16 %v7352
        %v7439 = vunpack.c.l.b16 %v7353
        %v7440 = vunpack.c.l.b16 %v7354
        %v7441 = vunpack.c.l.b16 %v7355
        %v7442 = vunpack.c.l.b16 %v7356
        %v7443 = vunpack.c.l.b16 %v7357
        %v7444 = vunpack.c.l.b16 %v7358
        %v7445 = vunpack.c.l.b16 %v7359
        %v7446 = vunpack.c.l.b16 %v7360
        %v7447 = vpack.c.b16 %v7410, %v7409
        %v7448 = vpack.c.b16 %v7412, %v7411
        %v7449 = vpack.c.b16 %v7414, %v7413
        %v7450 = vpack.c.b16 %v7416, %v7415
        %v7451 = vpack.c.b16 %v7418, %v7417
        %v7452 = vpack.c.b16 %v7420, %v7419
        %v7453 = vpack.c.b16 %v7422, %v7421
        %v7454 = vpack.c.b16 %v7424, %v7423
        %v7455 = vpack.c.b16 %v7426, %v7425
        %v7456 = vpack.c.b16 %v7428, %v7427
        %v7457 = vpack.c.b16 %v7430, %v7429
        %v7458 = vpack.c.b16 %v7432, %v7431
        %v7459 = vpack.c.b16 %v7434, %v7433
        %v7460 = vpack.c.b16 %v7436, %v7435
        %v7461 = vpack.c.b16 %v7438, %v7437
        %v7462 = vpack.c.b16 %v7440, %v7439
        %v7463 = vpack.c.b16 %v7442, %v7441
        %v7464 = vpack.c.b16 %v7444, %v7443
        %v7465 = vpack.c.b16 %v7446, %v7445
        %v7485 = vsel %vm1075, %v7367, 0
        %v7488 = vsel %vm261, %v7465, 0
        %7490 = vmatprep.subr.bf16.mxu0 0
        %7491 = vmatpush1.bf16.msra.mxu0 %v7447
        %7492 = vmatprep.subr.bf16.mxu0 0
        %7493 = vmatpush1.bf16.msra.mxu0 %v7448
        %7494 = vmatprep.subr.bf16.mxu0 0
        %7495 = vmatpush1.bf16.msra.mxu0 %v7449
        %7496 = vmatprep.subr.bf16.mxu0 0
        %7497 = vmatpush1.bf16.msra.mxu0 %v7450
        %7498 = vmatprep.subr.bf16.mxu0 0
        %7499 = vmatpush1.bf16.msra.mxu0 %v7451
        %7500 = vmatprep.subr.bf16.mxu0 0
        %7501 = vmatpush1.bf16.msra.mxu0 %v7452
        %7502 = vmatprep.subr.bf16.mxu0 0
        %7503 = vmatpush1.bf16.msra.mxu0 %v7453
        %7504 = vmatprep.subr.bf16.mxu0 0
        %7505 = vmatpush1.bf16.msra.mxu0 %v7454
        %7506 = vmatprep.subr.bf16.mxu0 0
        %7507 = vmatpush1.bf16.msra.mxu0 %v7455
        %7508 = vmatprep.subr.bf16.mxu0 0
        %7509 = vmatpush1.bf16.msra.mxu0 %v7456
        %7510 = vmatprep.subr.bf16.mxu0 0
        %7511 = vmatpush1.bf16.msra.mxu0 %v7457
        %7512 = vmatprep.subr.bf16.mxu0 0
        %7513 = vmatpush1.bf16.msra.mxu0 %v7458
        %7514 = vmatprep.subr.bf16.mxu0 0
        %7515 = vmatpush1.bf16.msra.mxu0 %v7459
        %7516 = vmatprep.subr.bf16.mxu0 0
        %7517 = vmatpush1.bf16.msra.mxu0 %v7460
        %7518 = vmatprep.subr.bf16.mxu0 0
        %7519 = vmatpush1.bf16.msra.mxu0 %v7461
        %7520 = vmatprep.subr.bf16.mxu0 0
        %7521 = vmatpush1.bf16.msra.mxu0 %v7462
        %7522 = vmatprep.mubr.bf16.mxu0 %v7365
        %7523 = vmatmul.mubr.bf16.gmra.mrb[0].mxu0 %v7362
        %v7524 = vpop.f32.mrb[0].mxu0
        %v7525 = vadd.f32 0.0, %v7524
        %v7526 = vpop.f32.mrb[0].mxu0
        %v7527 = vpop.f32.mrb[0].mxu0
        %v7528 = vpop.f32.mrb[0].mxu0
        %7529 = vdwg.mxu0
        %7530 = vmatprep.subr.bf16.mxu0 0
        %7531 = vmatpush1.bf16.msra.mxu0 %v7463
        %7532 = vmatprep.subr.bf16.mxu0 0
        %7533 = vmatpush1.bf16.msra.mxu0 %v7464
        %7534 = vmatprep.subr.bf16.mxu0 0
        %7535 = vmatpush1.bf16.msra.mxu0 %v7488
        %7536 = vmatprep.subr.bf16.mxu0 0
        %7537 = vmatpush1.bf16.msra.mxu0 0
        %7538 = vmatprep.subr.bf16.mxu0 0
        %7539 = vmatpush1.bf16.msra.mxu0 0
        %7540 = vmatprep.subr.bf16.mxu0 0
        %7541 = vmatpush1.bf16.msra.mxu0 0
        %7542 = vmatprep.subr.bf16.mxu0 0
        %7543 = vmatpush1.bf16.msra.mxu0 0
        %7544 = vmatprep.subr.bf16.mxu0 0
        %7545 = vmatpush1.bf16.msra.mxu0 0
        %7546 = vmatprep.subr.bf16.mxu0 0
        %7547 = vmatpush1.bf16.msra.mxu0 0
        %7548 = vmatprep.subr.bf16.mxu0 0
        %7549 = vmatpush1.bf16.msra.mxu0 0
        %7550 = vmatprep.subr.bf16.mxu0 0
        %7551 = vmatpush1.bf16.msra.mxu0 0
        %7552 = vmatprep.subr.bf16.mxu0 0
        %7553 = vmatpush1.bf16.msra.mxu0 0
        %7554 = vmatprep.subr.bf16.mxu0 0
        %7555 = vmatpush1.bf16.msra.mxu0 0
        %7556 = vmatprep.subr.bf16.mxu0 0
        %7557 = vmatpush1.bf16.msra.mxu0 0
        %7558 = vmatprep.subr.bf16.mxu0 0
        %7559 = vmatpush1.bf16.msra.mxu0 0
        %7560 = vmatprep.subr.bf16.mxu0 0
        %7561 = vmatpush1.bf16.msra.mxu0 0
        %7562 = vmatprep.mubr.bf16.mxu0 0
        %7563 = vmatmul.mubr.bf16.gmra.mrb[0].mxu0 %v7485
        %v7564 = vpop.f32.mrb[0].mxu0
        %v7565 = vadd.f32 %v7525, %v7564
        %v7566 = vpop.f32.mrb[0].mxu0
        %v7567 = vpop.f32.mrb[0].mxu0
        %v7568 = vpop.f32.mrb[0].mxu0
        %7569 = vdwg.mxu0
        %v7570 = vadd.f32 %v7321, %v7565
        %s7571 = scalar_lea.vmem %s4, 304
        %v7572 = vld [vmem:[%s7571] sm:$0xf]
        %v7573 = vld [vmem:[%s7571 + $0x4] sm:$0xf]
        %v7574 = vld [vmem:[%s7571 + $0x8] sm:$0xf]
        %v7575 = vld [vmem:[%s7571 + $0xc] sm:$0xf]
        %v7576 = vld [vmem:[%s7571 + $0x10] sm:$0xf]
        %v7577 = vld [vmem:[%s7571 + $0x14] sm:$0xf]
        %v7578 = vld [vmem:[%s7571 + $0x18] sm:$0xf]
        %v7579 = vld [vmem:[%s7571 + $0x1c] sm:$0xf]
        %v7580 = vld [vmem:[%s7571 + $0x20] sm:$0xf]
        %v7581 = vld [vmem:[%s7571 + $0x24] sm:$0xf]
        %v7582 = vld [vmem:[%s7571 + $0x28] sm:$0xf]
        %v7583 = vld [vmem:[%s7571 + $0x2c] sm:$0xf]
        %v7584 = vld [vmem:[%s7571 + $0x30] sm:$0xf]
        %v7585 = vld [vmem:[%s7571 + $0x34] sm:$0xf]
        %v7586 = vld [vmem:[%s7571 + $0x38] sm:$0xf]
        %v7587 = vld [vmem:[%s7571 + $0x3c] sm:$0xf]
        %v7588 = vld [vmem:[%s7571 + $0x40] sm:$0xf]
        %v7589 = vld [vmem:[%s7571 + $0x44] sm:$0xf]
        %v7590 = vld [vmem:[%s7571 + $0x48] sm:$0xf]
        %v7591 = vld [vmem:[%s7571 + $0x4c] sm:$0xf]
        %v7592 = vld [vmem:[%s7571 + $0x50] sm:$0xf]
        %v7593 = vld [vmem:[%s7571 + $0x54] sm:$0xf]
        %v7594 = vld [vmem:[%s7571 + $0x58] sm:$0xf]
        %v7595 = vld [vmem:[%s7571 + $0x5c] sm:$0xf]
        %v7596 = vld [vmem:[%s7571 + $0x60] sm:$0xf]
        %v7597 = vld [vmem:[%s7571 + $0x64] sm:$0xf]
        %v7598 = vld [vmem:[%s7571 + $0x68] sm:$0xf]
        %v7599 = vld [vmem:[%s7571 + $0x6c] sm:$0xf]
        %v7600 = vld [vmem:[%s7571 + $0x70] sm:$0xf]
        %v7601 = vld [vmem:[%s7571 + $0x74] sm:$0xf]
        %v7602 = vld [vmem:[%s7571 + $0x78] sm:$0xf]
        %v7603 = vld [vmem:[%s7571 + $0x7c] sm:$0xf]
        %v7604 = vld [vmem:[%s7571 + $0x80] sm:$0xf]
        %v7605 = vld [vmem:[%s7571 + $0x84] sm:$0xf]
        %v7606 = vld [vmem:[%s7571 + $0x88] sm:$0xf]
        %v7607 = vld [vmem:[%s7571 + $0x8c] sm:$0xf]
        %v7608 = vld [vmem:[%s7571 + $0x90] sm:$0xf]
        %v7609 = vld [vmem:[%s7571 + $0x94] sm:$0x3]
        %v7613 = vrot.slane %v7119, 1
        %v7614 = vrot.slane %v7120, 1
        %v7615 = vrot.slane %v7121, 1
        %v7656 = vunpack.c.l.b16 %v7572
        %v7657 = vunpack.c.l.b16 %v7573
        %v7658 = vunpack.c.l.b16 %v7574
        %v7659 = vunpack.c.l.b16 %v7575
        %v7660 = vunpack.c.l.b16 %v7576
        %v7661 = vunpack.c.l.b16 %v7577
        %v7662 = vunpack.c.l.b16 %v7578
        %v7663 = vunpack.c.l.b16 %v7579
        %v7664 = vunpack.c.l.b16 %v7580
        %v7665 = vunpack.c.l.b16 %v7581
        %v7666 = vunpack.c.l.b16 %v7582
        %v7667 = vunpack.c.l.b16 %v7583
        %v7668 = vunpack.c.l.b16 %v7584
        %v7669 = vunpack.c.l.b16 %v7585
        %v7670 = vunpack.c.l.b16 %v7586
        %v7671 = vunpack.c.l.b16 %v7587
        %v7672 = vunpack.c.l.b16 %v7588
        %v7673 = vunpack.c.l.b16 %v7589
        %v7674 = vunpack.c.l.b16 %v7590
        %v7675 = vunpack.c.l.b16 %v7591
        %v7676 = vunpack.c.l.b16 %v7592
        %v7677 = vunpack.c.l.b16 %v7593
        %v7678 = vunpack.c.l.b16 %v7594
        %v7679 = vunpack.c.l.b16 %v7595
        %v7680 = vunpack.c.l.b16 %v7596
        %v7681 = vunpack.c.l.b16 %v7597
        %v7682 = vunpack.c.l.b16 %v7598
        %v7683 = vunpack.c.l.b16 %v7599
        %v7684 = vunpack.c.l.b16 %v7600
        %v7685 = vunpack.c.l.b16 %v7601
        %v7686 = vunpack.c.l.b16 %v7602
        %v7687 = vunpack.c.l.b16 %v7603
        %v7688 = vunpack.c.l.b16 %v7604
        %v7689 = vunpack.c.l.b16 %v7605
        %v7690 = vunpack.c.l.b16 %v7606
        %v7691 = vunpack.c.l.b16 %v7607
        %v7692 = vunpack.c.l.b16 %v7608
        %v7693 = vunpack.c.l.b16 %v7609
        %v7694 = vpack.c.b16 %v7657, %v7656
        %v7695 = vpack.c.b16 %v7659, %v7658
        %v7696 = vpack.c.b16 %v7661, %v7660
        %v7697 = vpack.c.b16 %v7663, %v7662
        %v7698 = vpack.c.b16 %v7665, %v7664
        %v7699 = vpack.c.b16 %v7667, %v7666
        %v7700 = vpack.c.b16 %v7669, %v7668
        %v7701 = vpack.c.b16 %v7671, %v7670
        %v7702 = vpack.c.b16 %v7673, %v7672
        %v7703 = vpack.c.b16 %v7675, %v7674
        %v7704 = vpack.c.b16 %v7677, %v7676
        %v7705 = vpack.c.b16 %v7679, %v7678
        %v7706 = vpack.c.b16 %v7681, %v7680
        %v7707 = vpack.c.b16 %v7683, %v7682
        %v7708 = vpack.c.b16 %v7685, %v7684
        %v7709 = vpack.c.b16 %v7687, %v7686
        %v7710 = vpack.c.b16 %v7689, %v7688
        %v7711 = vpack.c.b16 %v7691, %v7690
        %v7712 = vpack.c.b16 %v7693, %v7692
        %v7732 = vsel %vm1075, %v7615, 0
        %v7735 = vsel %vm261, %v7712, 0
        %7737 = vmatprep.subr.bf16.mxu0 0
        %7738 = vmatpush1.bf16.msra.mxu0 %v7694
        %7739 = vmatprep.subr.bf16.mxu0 0
        %7740 = vmatpush1.bf16.msra.mxu0 %v7695
        %7741 = vmatprep.subr.bf16.mxu0 0
        %7742 = vmatpush1.bf16.msra.mxu0 %v7696
        %7743 = vmatprep.subr.bf16.mxu0 0
        %7744 = vmatpush1.bf16.msra.mxu0 %v7697
        %7745 = vmatprep.subr.bf16.mxu0 0
        %7746 = vmatpush1.bf16.msra.mxu0 %v7698
        %7747 = vmatprep.subr.bf16.mxu0 0
        %7748 = vmatpush1.bf16.msra.mxu0 %v7699
        %7749 = vmatprep.subr.bf16.mxu0 0
        %7750 = vmatpush1.bf16.msra.mxu0 %v7700
        %7751 = vmatprep.subr.bf16.mxu0 0
        %7752 = vmatpush1.bf16.msra.mxu0 %v7701
        %7753 = vmatprep.subr.bf16.mxu0 0
        %7754 = vmatpush1.bf16.msra.mxu0 %v7702
        %7755 = vmatprep.subr.bf16.mxu0 0
        %7756 = vmatpush1.bf16.msra.mxu0 %v7703
        %7757 = vmatprep.subr.bf16.mxu0 0
        %7758 = vmatpush1.bf16.msra.mxu0 %v7704
        %7759 = vmatprep.subr.bf16.mxu0 0
        %7760 = vmatpush1.bf16.msra.mxu0 %v7705
        %7761 = vmatprep.subr.bf16.mxu0 0
        %7762 = vmatpush1.bf16.msra.mxu0 %v7706
        %7763 = vmatprep.subr.bf16.mxu0 0
        %7764 = vmatpush1.bf16.msra.mxu0 %v7707
        %7765 = vmatprep.subr.bf16.mxu0 0
        %7766 = vmatpush1.bf16.msra.mxu0 %v7708
        %7767 = vmatprep.subr.bf16.mxu0 0
        %7768 = vmatpush1.bf16.msra.mxu0 %v7709
        %7769 = vmatprep.mubr.bf16.mxu0 %v7614
        %7770 = vmatmul.mubr.bf16.gmra.mrb[0].mxu0 %v7613
        %v7771 = vpop.f32.mrb[0].mxu0
        %v7772 = vadd.f32 0.0, %v7771
        %v7773 = vpop.f32.mrb[0].mxu0
        %v7774 = vpop.f32.mrb[0].mxu0
        %v7775 = vpop.f32.mrb[0].mxu0
        %7776 = vdwg.mxu0
        %7777 = vmatprep.subr.bf16.mxu0 0
        %7778 = vmatpush1.bf16.msra.mxu0 %v7710
        %7779 = vmatprep.subr.bf16.mxu0 0
        %7780 = vmatpush1.bf16.msra.mxu0 %v7711
        %7781 = vmatprep.subr.bf16.mxu0 0
        %7782 = vmatpush1.bf16.msra.mxu0 %v7735
        %7783 = vmatprep.subr.bf16.mxu0 0
        %7784 = vmatpush1.bf16.msra.mxu0 0
        %7785 = vmatprep.subr.bf16.mxu0 0
        %7786 = vmatpush1.bf16.msra.mxu0 0
        %7787 = vmatprep.subr.bf16.mxu0 0
        %7788 = vmatpush1.bf16.msra.mxu0 0
        %7789 = vmatprep.subr.bf16.mxu0 0
        %7790 = vmatpush1.bf16.msra.mxu0 0
        %7791 = vmatprep.subr.bf16.mxu0 0
        %7792 = vmatpush1.bf16.msra.mxu0 0
        %7793 = vmatprep.subr.bf16.mxu0 0
        %7794 = vmatpush1.bf16.msra.mxu0 0
        %7795 = vmatprep.subr.bf16.mxu0 0
        %7796 = vmatpush1.bf16.msra.mxu0 0
        %7797 = vmatprep.subr.bf16.mxu0 0
        %7798 = vmatpush1.bf16.msra.mxu0 0
        %7799 = vmatprep.subr.bf16.mxu0 0
        %7800 = vmatpush1.bf16.msra.mxu0 0
        %7801 = vmatprep.subr.bf16.mxu0 0
        %7802 = vmatpush1.bf16.msra.mxu0 0
        %7803 = vmatprep.subr.bf16.mxu0 0
        %7804 = vmatpush1.bf16.msra.mxu0 0
        %7805 = vmatprep.subr.bf16.mxu0 0
        %7806 = vmatpush1.bf16.msra.mxu0 0
        %7807 = vmatprep.subr.bf16.mxu0 0
        %7808 = vmatpush1.bf16.msra.mxu0 0
        %7809 = vmatprep.mubr.bf16.mxu0 0
        %7810 = vmatmul.mubr.bf16.gmra.mrb[0].mxu0 %v7732
        %v7811 = vpop.f32.mrb[0].mxu0
        %v7812 = vadd.f32 %v7772, %v7811
        %v7813 = vpop.f32.mrb[0].mxu0
        %v7814 = vpop.f32.mrb[0].mxu0
        %v7815 = vpop.f32.mrb[0].mxu0
        %7816 = vdwg.mxu0
        %v7817 = vadd.f32 %v7570, %v7812
        %s7818 = scalar_lea.vmem %s4, 456
        %v7819 = vld [vmem:[%s7818] sm:$0xf]
        %v7820 = vld [vmem:[%s7818 + $0x4] sm:$0xf]
        %v7821 = vld [vmem:[%s7818 + $0x8] sm:$0xf]
        %v7822 = vld [vmem:[%s7818 + $0xc] sm:$0xf]
        %v7823 = vld [vmem:[%s7818 + $0x10] sm:$0xf]
        %v7824 = vld [vmem:[%s7818 + $0x14] sm:$0xf]
        %v7825 = vld [vmem:[%s7818 + $0x18] sm:$0xf]
        %v7826 = vld [vmem:[%s7818 + $0x1c] sm:$0xf]
        %v7827 = vld [vmem:[%s7818 + $0x20] sm:$0xf]
        %v7828 = vld [vmem:[%s7818 + $0x24] sm:$0xf]
        %v7829 = vld [vmem:[%s7818 + $0x28] sm:$0xf]
        %v7830 = vld [vmem:[%s7818 + $0x2c] sm:$0xf]
        %v7831 = vld [vmem:[%s7818 + $0x30] sm:$0xf]
        %v7832 = vld [vmem:[%s7818 + $0x34] sm:$0xf]
        %v7833 = vld [vmem:[%s7818 + $0x38] sm:$0xf]
        %v7834 = vld [vmem:[%s7818 + $0x3c] sm:$0xf]
        %v7835 = vld [vmem:[%s7818 + $0x40] sm:$0xf]
        %v7836 = vld [vmem:[%s7818 + $0x44] sm:$0xf]
        %v7837 = vld [vmem:[%s7818 + $0x48] sm:$0xf]
        %v7838 = vld [vmem:[%s7818 + $0x4c] sm:$0xf]
        %v7839 = vld [vmem:[%s7818 + $0x50] sm:$0xf]
        %v7840 = vld [vmem:[%s7818 + $0x54] sm:$0xf]
        %v7841 = vld [vmem:[%s7818 + $0x58] sm:$0xf]
        %v7842 = vld [vmem:[%s7818 + $0x5c] sm:$0xf]
        %v7843 = vld [vmem:[%s7818 + $0x60] sm:$0xf]
        %v7844 = vld [vmem:[%s7818 + $0x64] sm:$0xf]
        %v7845 = vld [vmem:[%s7818 + $0x68] sm:$0xf]
        %v7846 = vld [vmem:[%s7818 + $0x6c] sm:$0xf]
        %v7847 = vld [vmem:[%s7818 + $0x70] sm:$0xf]
        %v7848 = vld [vmem:[%s7818 + $0x74] sm:$0xf]
        %v7849 = vld [vmem:[%s7818 + $0x78] sm:$0xf]
        %v7850 = vld [vmem:[%s7818 + $0x7c] sm:$0xf]
        %v7851 = vld [vmem:[%s7818 + $0x80] sm:$0xf]
        %v7852 = vld [vmem:[%s7818 + $0x84] sm:$0xf]
        %v7853 = vld [vmem:[%s7818 + $0x88] sm:$0xf]
        %v7854 = vld [vmem:[%s7818 + $0x8c] sm:$0xf]
        %v7855 = vld [vmem:[%s7818 + $0x90] sm:$0xf]
        %v7856 = vld [vmem:[%s7818 + $0x94] sm:$0x3]
        %v7857 = vrot.slane %v7362, 1
        %v7858 = vrot.slane %v7365, 1
        %v7859 = vrot.slane %v7367, 1
        %v7900 = vunpack.c.l.b16 %v7819
        %v7901 = vunpack.c.l.b16 %v7820
        %v7902 = vunpack.c.l.b16 %v7821
        %v7903 = vunpack.c.l.b16 %v7822
        %v7904 = vunpack.c.l.b16 %v7823
        %v7905 = vunpack.c.l.b16 %v7824
        %v7906 = vunpack.c.l.b16 %v7825
        %v7907 = vunpack.c.l.b16 %v7826
        %v7908 = vunpack.c.l.b16 %v7827
        %v7909 = vunpack.c.l.b16 %v7828
        %v7910 = vunpack.c.l.b16 %v7829
        %v7911 = vunpack.c.l.b16 %v7830
        %v7912 = vunpack.c.l.b16 %v7831
        %v7913 = vunpack.c.l.b16 %v7832
        %v7914 = vunpack.c.l.b16 %v7833
        %v7915 = vunpack.c.l.b16 %v7834
        %v7916 = vunpack.c.l.b16 %v7835
        %v7917 = vunpack.c.l.b16 %v7836
        %v7918 = vunpack.c.l.b16 %v7837
        %v7919 = vunpack.c.l.b16 %v7838
        %v7920 = vunpack.c.l.b16 %v7839
        %v7921 = vunpack.c.l.b16 %v7840
        %v7922 = vunpack.c.l.b16 %v7841
        %v7923 = vunpack.c.l.b16 %v7842
        %v7924 = vunpack.c.l.b16 %v7843
        %v7925 = vunpack.c.l.b16 %v7844
        %v7926 = vunpack.c.l.b16 %v7845
        %v7927 = vunpack.c.l.b16 %v7846
        %v7928 = vunpack.c.l.b16 %v7847
        %v7929 = vunpack.c.l.b16 %v7848
        %v7930 = vunpack.c.l.b16 %v7849
        %v7931 = vunpack.c.l.b16 %v7850
        %v7932 = vunpack.c.l.b16 %v7851
        %v7933 = vunpack.c.l.b16 %v7852
        %v7934 = vunpack.c.l.b16 %v7853
        %v7935 = vunpack.c.l.b16 %v7854
        %v7936 = vunpack.c.l.b16 %v7855
        %v7937 = vunpack.c.l.b16 %v7856
        %v7938 = vpack.c.b16 %v7901, %v7900
        %v7939 = vpack.c.b16 %v7903, %v7902
        %v7940 = vpack.c.b16 %v7905, %v7904
        %v7941 = vpack.c.b16 %v7907, %v7906
        %v7942 = vpack.c.b16 %v7909, %v7908
        %v7943 = vpack.c.b16 %v7911, %v7910
        %v7944 = vpack.c.b16 %v7913, %v7912
        %v7945 = vpack.c.b16 %v7915, %v7914
        %v7946 = vpack.c.b16 %v7917, %v7916
        %v7947 = vpack.c.b16 %v7919, %v7918
        %v7948 = vpack.c.b16 %v7921, %v7920
        %v7949 = vpack.c.b16 %v7923, %v7922
        %v7950 = vpack.c.b16 %v7925, %v7924
        %v7951 = vpack.c.b16 %v7927, %v7926
        %v7952 = vpack.c.b16 %v7929, %v7928
        %v7953 = vpack.c.b16 %v7931, %v7930
        %v7954 = vpack.c.b16 %v7933, %v7932
        %v7955 = vpack.c.b16 %v7935, %v7934
        %v7956 = vpack.c.b16 %v7937, %v7936
        %v7976 = vsel %vm1075, %v7859, 0
        %v7979 = vsel %vm261, %v7956, 0
        %7981 = vmatprep.subr.bf16.mxu0 0
        %7982 = vmatpush1.bf16.msra.mxu0 %v7938
        %7983 = vmatprep.subr.bf16.mxu0 0
        %7984 = vmatpush1.bf16.msra.mxu0 %v7939
        %7985 = vmatprep.subr.bf16.mxu0 0
        %7986 = vmatpush1.bf16.msra.mxu0 %v7940
        %7987 = vmatprep.subr.bf16.mxu0 0
        %7988 = vmatpush1.bf16.msra.mxu0 %v7941
        %7989 = vmatprep.subr.bf16.mxu0 0
        %7990 = vmatpush1.bf16.msra.mxu0 %v7942
        %7991 = vmatprep.subr.bf16.mxu0 0
        %7992 = vmatpush1.bf16.msra.mxu0 %v7943
        %7993 = vmatprep.subr.bf16.mxu0 0
        %7994 = vmatpush1.bf16.msra.mxu0 %v7944
        %7995 = vmatprep.subr.bf16.mxu0 0
        %7996 = vmatpush1.bf16.msra.mxu0 %v7945
        %7997 = vmatprep.subr.bf16.mxu0 0
        %7998 = vmatpush1.bf16.msra.mxu0 %v7946
        %7999 = vmatprep.subr.bf16.mxu0 0
        %8000 = vmatpush1.bf16.msra.mxu0 %v7947
        %8001 = vmatprep.subr.bf16.mxu0 0
        %8002 = vmatpush1.bf16.msra.mxu0 %v7948
        %8003 = vmatprep.subr.bf16.mxu0 0
        %8004 = vmatpush1.bf16.msra.mxu0 %v7949
        %8005 = vmatprep.subr.bf16.mxu0 0
        %8006 = vmatpush1.bf16.msra.mxu0 %v7950
        %8007 = vmatprep.subr.bf16.mxu0 0
        %8008 = vmatpush1.bf16.msra.mxu0 %v7951
        %8009 = vmatprep.subr.bf16.mxu0 0
        %8010 = vmatpush1.bf16.msra.mxu0 %v7952
        %8011 = vmatprep.subr.bf16.mxu0 0
        %8012 = vmatpush1.bf16.msra.mxu0 %v7953
        %8013 = vmatprep.mubr.bf16.mxu0 %v7858
        %8014 = vmatmul.mubr.bf16.gmra.mrb[0].mxu0 %v7857
        %v8015 = vpop.f32.mrb[0].mxu0
        %v8016 = vadd.f32 0.0, %v8015
        %v8017 = vpop.f32.mrb[0].mxu0
        %v8018 = vpop.f32.mrb[0].mxu0
        %v8019 = vpop.f32.mrb[0].mxu0
        %8020 = vdwg.mxu0
        %8021 = vmatprep.subr.bf16.mxu0 0
        %8022 = vmatpush1.bf16.msra.mxu0 %v7954
        %8023 = vmatprep.subr.bf16.mxu0 0
        %8024 = vmatpush1.bf16.msra.mxu0 %v7955
        %8025 = vmatprep.subr.bf16.mxu0 0
        %8026 = vmatpush1.bf16.msra.mxu0 %v7979
        %8027 = vmatprep.subr.bf16.mxu0 0
        %8028 = vmatpush1.bf16.msra.mxu0 0
        %8029 = vmatprep.subr.bf16.mxu0 0
        %8030 = vmatpush1.bf16.msra.mxu0 0
        %8031 = vmatprep.subr.bf16.mxu0 0
        %8032 = vmatpush1.bf16.msra.mxu0 0
        %8033 = vmatprep.subr.bf16.mxu0 0
        %8034 = vmatpush1.bf16.msra.mxu0 0
        %8035 = vmatprep.subr.bf16.mxu0 0
        %8036 = vmatpush1.bf16.msra.mxu0 0
        %8037 = vmatprep.subr.bf16.mxu0 0
        %8038 = vmatpush1.bf16.msra.mxu0 0
        %8039 = vmatprep.subr.bf16.mxu0 0
        %8040 = vmatpush1.bf16.msra.mxu0 0
        %8041 = vmatprep.subr.bf16.mxu0 0
        %8042 = vmatpush1.bf16.msra.mxu0 0
        %8043 = vmatprep.subr.bf16.mxu0 0
        %8044 = vmatpush1.bf16.msra.mxu0 0
        %8045 = vmatprep.subr.bf16.mxu0 0
        %8046 = vmatpush1.bf16.msra.mxu0 0
        %8047 = vmatprep.subr.bf16.mxu0 0
        %8048 = vmatpush1.bf16.msra.mxu0 0
        %8049 = vmatprep.subr.bf16.mxu0 0
        %8050 = vmatpush1.bf16.msra.mxu0 0
        %8051 = vmatprep.subr.bf16.mxu0 0
        %8052 = vmatpush1.bf16.msra.mxu0 0
        %8053 = vmatprep.mubr.bf16.mxu0 0
        %8054 = vmatmul.mubr.bf16.gmra.mrb[0].mxu0 %v7976
        %v8055 = vpop.f32.mrb[0].mxu0
        %v8056 = vadd.f32 %v8016, %v8055
        %v8057 = vpop.f32.mrb[0].mxu0
        %v8058 = vpop.f32.mrb[0].mxu0
        %v8059 = vpop.f32.mrb[0].mxu0
        %8060 = vdwg.mxu0
        %v8061 = vadd.f32 %v7817, %v8056
        %s8062 = scalar_lea.vmem %s4, 608
        %v8063 = vld [vmem:[%s8062] sm:$0xf]
        %v8064 = vld [vmem:[%s8062 + $0x4] sm:$0xf]
        %v8065 = vld [vmem:[%s8062 + $0x8] sm:$0xf]
        %v8066 = vld [vmem:[%s8062 + $0xc] sm:$0xf]
        %v8067 = vld [vmem:[%s8062 + $0x10] sm:$0xf]
        %v8068 = vld [vmem:[%s8062 + $0x14] sm:$0xf]
        %v8069 = vld [vmem:[%s8062 + $0x18] sm:$0xf]
        %v8070 = vld [vmem:[%s8062 + $0x1c] sm:$0xf]
        %v8071 = vld [vmem:[%s8062 + $0x20] sm:$0xf]
        %v8072 = vld [vmem:[%s8062 + $0x24] sm:$0xf]
        %v8073 = vld [vmem:[%s8062 + $0x28] sm:$0xf]
        %v8074 = vld [vmem:[%s8062 + $0x2c] sm:$0xf]
        %v8075 = vld [vmem:[%s8062 + $0x30] sm:$0xf]
        %v8076 = vld [vmem:[%s8062 + $0x34] sm:$0xf]
        %v8077 = vld [vmem:[%s8062 + $0x38] sm:$0xf]
        %v8078 = vld [vmem:[%s8062 + $0x3c] sm:$0xf]
        %v8079 = vld [vmem:[%s8062 + $0x40] sm:$0xf]
        %v8080 = vld [vmem:[%s8062 + $0x44] sm:$0xf]
        %v8081 = vld [vmem:[%s8062 + $0x48] sm:$0xf]
        %v8082 = vld [vmem:[%s8062 + $0x4c] sm:$0xf]
        %v8083 = vld [vmem:[%s8062 + $0x50] sm:$0xf]
        %v8084 = vld [vmem:[%s8062 + $0x54] sm:$0xf]
        %v8085 = vld [vmem:[%s8062 + $0x58] sm:$0xf]
        %v8086 = vld [vmem:[%s8062 + $0x5c] sm:$0xf]
        %v8087 = vld [vmem:[%s8062 + $0x60] sm:$0xf]
        %v8088 = vld [vmem:[%s8062 + $0x64] sm:$0xf]
        %v8089 = vld [vmem:[%s8062 + $0x68] sm:$0xf]
        %v8090 = vld [vmem:[%s8062 + $0x6c] sm:$0xf]
        %v8091 = vld [vmem:[%s8062 + $0x70] sm:$0xf]
        %v8092 = vld [vmem:[%s8062 + $0x74] sm:$0xf]
        %v8093 = vld [vmem:[%s8062 + $0x78] sm:$0xf]
        %v8094 = vld [vmem:[%s8062 + $0x7c] sm:$0xf]
        %v8095 = vld [vmem:[%s8062 + $0x80] sm:$0xf]
        %v8096 = vld [vmem:[%s8062 + $0x84] sm:$0xf]
        %v8097 = vld [vmem:[%s8062 + $0x88] sm:$0xf]
        %v8098 = vld [vmem:[%s8062 + $0x8c] sm:$0xf]
        %v8099 = vld [vmem:[%s8062 + $0x90] sm:$0xf]
        %v8100 = vld [vmem:[%s8062 + $0x94] sm:$0x3]
        %v8101 = vrot.slane %v7119, 2
        %v8102 = vrot.slane %v7120, 2
        %v8103 = vrot.slane %v7121, 2
        %v8144 = vunpack.c.l.b16 %v8063
        %v8145 = vunpack.c.l.b16 %v8064
        %v8146 = vunpack.c.l.b16 %v8065
        %v8147 = vunpack.c.l.b16 %v8066
        %v8148 = vunpack.c.l.b16 %v8067
        %v8149 = vunpack.c.l.b16 %v8068
        %v8150 = vunpack.c.l.b16 %v8069
        %v8151 = vunpack.c.l.b16 %v8070
        %v8152 = vunpack.c.l.b16 %v8071
        %v8153 = vunpack.c.l.b16 %v8072
        %v8154 = vunpack.c.l.b16 %v8073
        %v8155 = vunpack.c.l.b16 %v8074
        %v8156 = vunpack.c.l.b16 %v8075
        %v8157 = vunpack.c.l.b16 %v8076
        %v8158 = vunpack.c.l.b16 %v8077
        %v8159 = vunpack.c.l.b16 %v8078
        %v8160 = vunpack.c.l.b16 %v8079
        %v8161 = vunpack.c.l.b16 %v8080
        %v8162 = vunpack.c.l.b16 %v8081
        %v8163 = vunpack.c.l.b16 %v8082
        %v8164 = vunpack.c.l.b16 %v8083
        %v8165 = vunpack.c.l.b16 %v8084
        %v8166 = vunpack.c.l.b16 %v8085
        %v8167 = vunpack.c.l.b16 %v8086
        %v8168 = vunpack.c.l.b16 %v8087
        %v8169 = vunpack.c.l.b16 %v8088
        %v8170 = vunpack.c.l.b16 %v8089
        %v8171 = vunpack.c.l.b16 %v8090
        %v8172 = vunpack.c.l.b16 %v8091
        %v8173 = vunpack.c.l.b16 %v8092
        %v8174 = vunpack.c.l.b16 %v8093
        %v8175 = vunpack.c.l.b16 %v8094
        %v8176 = vunpack.c.l.b16 %v8095
        %v8177 = vunpack.c.l.b16 %v8096
        %v8178 = vunpack.c.l.b16 %v8097
        %v8179 = vunpack.c.l.b16 %v8098
        %v8180 = vunpack.c.l.b16 %v8099
        %v8181 = vunpack.c.l.b16 %v8100
        %v8182 = vpack.c.b16 %v8145, %v8144
        %v8183 = vpack.c.b16 %v8147, %v8146
        %v8184 = vpack.c.b16 %v8149, %v8148
        %v8185 = vpack.c.b16 %v8151, %v8150
        %v8186 = vpack.c.b16 %v8153, %v8152
        %v8187 = vpack.c.b16 %v8155, %v8154
        %v8188 = vpack.c.b16 %v8157, %v8156
        %v8189 = vpack.c.b16 %v8159, %v8158
        %v8190 = vpack.c.b16 %v8161, %v8160
        %v8191 = vpack.c.b16 %v8163, %v8162
        %v8192 = vpack.c.b16 %v8165, %v8164
        %v8193 = vpack.c.b16 %v8167, %v8166
        %v8194 = vpack.c.b16 %v8169, %v8168
        %v8195 = vpack.c.b16 %v8171, %v8170
        %v8196 = vpack.c.b16 %v8173, %v8172
        %v8197 = vpack.c.b16 %v8175, %v8174
        %v8198 = vpack.c.b16 %v8177, %v8176
        %v8199 = vpack.c.b16 %v8179, %v8178
        %v8200 = vpack.c.b16 %v8181, %v8180
        %v8220 = vsel %vm1075, %v8103, 0
        %v8223 = vsel %vm261, %v8200, 0
        %8225 = vmatprep.subr.bf16.mxu0 0
        %8226 = vmatpush1.bf16.msra.mxu0 %v8182
        %8227 = vmatprep.subr.bf16.mxu0 0
        %8228 = vmatpush1.bf16.msra.mxu0 %v8183
        %8229 = vmatprep.subr.bf16.mxu0 0
        %8230 = vmatpush1.bf16.msra.mxu0 %v8184
        %8231 = vmatprep.subr.bf16.mxu0 0
        %8232 = vmatpush1.bf16.msra.mxu0 %v8185
        %8233 = vmatprep.subr.bf16.mxu0 0
        %8234 = vmatpush1.bf16.msra.mxu0 %v8186
        %8235 = vmatprep.subr.bf16.mxu0 0
        %8236 = vmatpush1.bf16.msra.mxu0 %v8187
        %8237 = vmatprep.subr.bf16.mxu0 0
        %8238 = vmatpush1.bf16.msra.mxu0 %v8188
        %8239 = vmatprep.subr.bf16.mxu0 0
        %8240 = vmatpush1.bf16.msra.mxu0 %v8189
        %8241 = vmatprep.subr.bf16.mxu0 0
        %8242 = vmatpush1.bf16.msra.mxu0 %v8190
        %8243 = vmatprep.subr.bf16.mxu0 0
        %8244 = vmatpush1.bf16.msra.mxu0 %v8191
        %8245 = vmatprep.subr.bf16.mxu0 0
        %8246 = vmatpush1.bf16.msra.mxu0 %v8192
        %8247 = vmatprep.subr.bf16.mxu0 0
        %8248 = vmatpush1.bf16.msra.mxu0 %v8193
        %8249 = vmatprep.subr.bf16.mxu0 0
        %8250 = vmatpush1.bf16.msra.mxu0 %v8194
        %8251 = vmatprep.subr.bf16.mxu0 0
        %8252 = vmatpush1.bf16.msra.mxu0 %v8195
        %8253 = vmatprep.subr.bf16.mxu0 0
        %8254 = vmatpush1.bf16.msra.mxu0 %v8196
        %8255 = vmatprep.subr.bf16.mxu0 0
        %8256 = vmatpush1.bf16.msra.mxu0 %v8197
        %8257 = vmatprep.mubr.bf16.mxu0 %v8102
        %8258 = vmatmul.mubr.bf16.gmra.mrb[0].mxu0 %v8101
        %v8259 = vpop.f32.mrb[0].mxu0
        %v8260 = vadd.f32 0.0, %v8259
        %v8261 = vpop.f32.mrb[0].mxu0
        %v8262 = vpop.f32.mrb[0].mxu0
        %v8263 = vpop.f32.mrb[0].mxu0
        %8264 = vdwg.mxu0
        %8265 = vmatprep.subr.bf16.mxu0 0
        %8266 = vmatpush1.bf16.msra.mxu0 %v8198
        %8267 = vmatprep.subr.bf16.mxu0 0
        %8268 = vmatpush1.bf16.msra.mxu0 %v8199
        %8269 = vmatprep.subr.bf16.mxu0 0
        %8270 = vmatpush1.bf16.msra.mxu0 %v8223
        %8271 = vmatprep.subr.bf16.mxu0 0
        %8272 = vmatpush1.bf16.msra.mxu0 0
        %8273 = vmatprep.subr.bf16.mxu0 0
        %8274 = vmatpush1.bf16.msra.mxu0 0
        %8275 = vmatprep.subr.bf16.mxu0 0
        %8276 = vmatpush1.bf16.msra.mxu0 0
        %8277 = vmatprep.subr.bf16.mxu0 0
        %8278 = vmatpush1.bf16.msra.mxu0 0
        %8279 = vmatprep.subr.bf16.mxu0 0
        %8280 = vmatpush1.bf16.msra.mxu0 0
        %8281 = vmatprep.subr.bf16.mxu0 0
        %8282 = vmatpush1.bf16.msra.mxu0 0
        %8283 = vmatprep.subr.bf16.mxu0 0
        %8284 = vmatpush1.bf16.msra.mxu0 0
        %8285 = vmatprep.subr.bf16.mxu0 0
        %8286 = vmatpush1.bf16.msra.mxu0 0
        %8287 = vmatprep.subr.bf16.mxu0 0
        %8288 = vmatpush1.bf16.msra.mxu0 0
        %8289 = vmatprep.subr.bf16.mxu0 0
        %8290 = vmatpush1.bf16.msra.mxu0 0
        %8291 = vmatprep.subr.bf16.mxu0 0
        %8292 = vmatpush1.bf16.msra.mxu0 0
        %8293 = vmatprep.subr.bf16.mxu0 0
        %8294 = vmatpush1.bf16.msra.mxu0 0
        %8295 = vmatprep.subr.bf16.mxu0 0
        %8296 = vmatpush1.bf16.msra.mxu0 0
        %8297 = vmatprep.mubr.bf16.mxu0 0
        %8298 = vmatmul.mubr.bf16.gmra.mrb[0].mxu0 %v8220
        %v8299 = vpop.f32.mrb[0].mxu0
        %v8300 = vadd.f32 %v8260, %v8299
        %v8301 = vpop.f32.mrb[0].mxu0
        %v8302 = vpop.f32.mrb[0].mxu0
        %v8303 = vpop.f32.mrb[0].mxu0
        %8304 = vdwg.mxu0
        %v8305 = vadd.f32 %v8061, %v8300
        %s8306 = scalar_lea.vmem %s4, 760
        %v8307 = vld [vmem:[%s8306] sm:$0xf]
        %v8308 = vld [vmem:[%s8306 + $0x4] sm:$0xf]
        %v8309 = vld [vmem:[%s8306 + $0x8] sm:$0xf]
        %v8310 = vld [vmem:[%s8306 + $0xc] sm:$0xf]
        %v8311 = vld [vmem:[%s8306 + $0x10] sm:$0xf]
        %v8312 = vld [vmem:[%s8306 + $0x14] sm:$0xf]
        %v8313 = vld [vmem:[%s8306 + $0x18] sm:$0xf]
        %v8314 = vld [vmem:[%s8306 + $0x1c] sm:$0xf]
        %v8315 = vld [vmem:[%s8306 + $0x20] sm:$0xf]
        %v8316 = vld [vmem:[%s8306 + $0x24] sm:$0xf]
        %v8317 = vld [vmem:[%s8306 + $0x28] sm:$0xf]
        %v8318 = vld [vmem:[%s8306 + $0x2c] sm:$0xf]
        %v8319 = vld [vmem:[%s8306 + $0x30] sm:$0xf]
        %v8320 = vld [vmem:[%s8306 + $0x34] sm:$0xf]
        %v8321 = vld [vmem:[%s8306 + $0x38] sm:$0xf]
        %v8322 = vld [vmem:[%s8306 + $0x3c] sm:$0xf]
        %v8323 = vld [vmem:[%s8306 + $0x40] sm:$0xf]
        %v8324 = vld [vmem:[%s8306 + $0x44] sm:$0xf]
        %v8325 = vld [vmem:[%s8306 + $0x48] sm:$0xf]
        %v8326 = vld [vmem:[%s8306 + $0x4c] sm:$0xf]
        %v8327 = vld [vmem:[%s8306 + $0x50] sm:$0xf]
        %v8328 = vld [vmem:[%s8306 + $0x54] sm:$0xf]
        %v8329 = vld [vmem:[%s8306 + $0x58] sm:$0xf]
        %v8330 = vld [vmem:[%s8306 + $0x5c] sm:$0xf]
        %v8331 = vld [vmem:[%s8306 + $0x60] sm:$0xf]
        %v8332 = vld [vmem:[%s8306 + $0x64] sm:$0xf]
        %v8333 = vld [vmem:[%s8306 + $0x68] sm:$0xf]
        %v8334 = vld [vmem:[%s8306 + $0x6c] sm:$0xf]
        %v8335 = vld [vmem:[%s8306 + $0x70] sm:$0xf]
        %v8336 = vld [vmem:[%s8306 + $0x74] sm:$0xf]
        %v8337 = vld [vmem:[%s8306 + $0x78] sm:$0xf]
        %v8338 = vld [vmem:[%s8306 + $0x7c] sm:$0xf]
        %v8339 = vld [vmem:[%s8306 + $0x80] sm:$0xf]
        %v8340 = vld [vmem:[%s8306 + $0x84] sm:$0xf]
        %v8341 = vld [vmem:[%s8306 + $0x88] sm:$0xf]
        %v8342 = vld [vmem:[%s8306 + $0x8c] sm:$0xf]
        %v8343 = vld [vmem:[%s8306 + $0x90] sm:$0xf]
        %v8344 = vld [vmem:[%s8306 + $0x94] sm:$0x3]
        %v8345 = vrot.slane %v7362, 2
        %v8346 = vrot.slane %v7365, 2
        %v8347 = vrot.slane %v7367, 2
        %v8388 = vunpack.c.l.b16 %v8307
        %v8389 = vunpack.c.l.b16 %v8308
        %v8390 = vunpack.c.l.b16 %v8309
        %v8391 = vunpack.c.l.b16 %v8310
        %v8392 = vunpack.c.l.b16 %v8311
        %v8393 = vunpack.c.l.b16 %v8312
        %v8394 = vunpack.c.l.b16 %v8313
        %v8395 = vunpack.c.l.b16 %v8314
        %v8396 = vunpack.c.l.b16 %v8315
        %v8397 = vunpack.c.l.b16 %v8316
        %v8398 = vunpack.c.l.b16 %v8317
        %v8399 = vunpack.c.l.b16 %v8318
        %v8400 = vunpack.c.l.b16 %v8319
        %v8401 = vunpack.c.l.b16 %v8320
        %v8402 = vunpack.c.l.b16 %v8321
        %v8403 = vunpack.c.l.b16 %v8322
        %v8404 = vunpack.c.l.b16 %v8323
        %v8405 = vunpack.c.l.b16 %v8324
        %v8406 = vunpack.c.l.b16 %v8325
        %v8407 = vunpack.c.l.b16 %v8326
        %v8408 = vunpack.c.l.b16 %v8327
        %v8409 = vunpack.c.l.b16 %v8328
        %v8410 = vunpack.c.l.b16 %v8329
        %v8411 = vunpack.c.l.b16 %v8330
        %v8412 = vunpack.c.l.b16 %v8331
        %v8413 = vunpack.c.l.b16 %v8332
        %v8414 = vunpack.c.l.b16 %v8333
        %v8415 = vunpack.c.l.b16 %v8334
        %v8416 = vunpack.c.l.b16 %v8335
        %v8417 = vunpack.c.l.b16 %v8336
        %v8418 = vunpack.c.l.b16 %v8337
        %v8419 = vunpack.c.l.b16 %v8338
        %v8420 = vunpack.c.l.b16 %v8339
        %v8421 = vunpack.c.l.b16 %v8340
        %v8422 = vunpack.c.l.b16 %v8341
        %v8423 = vunpack.c.l.b16 %v8342
        %v8424 = vunpack.c.l.b16 %v8343
        %v8425 = vunpack.c.l.b16 %v8344
        %v8426 = vpack.c.b16 %v8389, %v8388
        %v8427 = vpack.c.b16 %v8391, %v8390
        %v8428 = vpack.c.b16 %v8393, %v8392
        %v8429 = vpack.c.b16 %v8395, %v8394
        %v8430 = vpack.c.b16 %v8397, %v8396
        %v8431 = vpack.c.b16 %v8399, %v8398
        %v8432 = vpack.c.b16 %v8401, %v8400
        %v8433 = vpack.c.b16 %v8403, %v8402
        %v8434 = vpack.c.b16 %v8405, %v8404
        %v8435 = vpack.c.b16 %v8407, %v8406
        %v8436 = vpack.c.b16 %v8409, %v8408
        %v8437 = vpack.c.b16 %v8411, %v8410
        %v8438 = vpack.c.b16 %v8413, %v8412
        %v8439 = vpack.c.b16 %v8415, %v8414
        %v8440 = vpack.c.b16 %v8417, %v8416
        %v8441 = vpack.c.b16 %v8419, %v8418
        %v8442 = vpack.c.b16 %v8421, %v8420
        %v8443 = vpack.c.b16 %v8423, %v8422
        %v8444 = vpack.c.b16 %v8425, %v8424
        %v8464 = vsel %vm1075, %v8347, 0
        %v8467 = vsel %vm261, %v8444, 0
        %8469 = vmatprep.subr.bf16.mxu0 0
        %8470 = vmatpush1.bf16.msra.mxu0 %v8426
        %8471 = vmatprep.subr.bf16.mxu0 0
        %8472 = vmatpush1.bf16.msra.mxu0 %v8427
        %8473 = vmatprep.subr.bf16.mxu0 0
        %8474 = vmatpush1.bf16.msra.mxu0 %v8428
        %8475 = vmatprep.subr.bf16.mxu0 0
        %8476 = vmatpush1.bf16.msra.mxu0 %v8429
        %8477 = vmatprep.subr.bf16.mxu0 0
        %8478 = vmatpush1.bf16.msra.mxu0 %v8430
        %8479 = vmatprep.subr.bf16.mxu0 0
        %8480 = vmatpush1.bf16.msra.mxu0 %v8431
        %8481 = vmatprep.subr.bf16.mxu0 0
        %8482 = vmatpush1.bf16.msra.mxu0 %v8432
        %8483 = vmatprep.subr.bf16.mxu0 0
        %8484 = vmatpush1.bf16.msra.mxu0 %v8433
        %8485 = vmatprep.subr.bf16.mxu0 0
        %8486 = vmatpush1.bf16.msra.mxu0 %v8434
        %8487 = vmatprep.subr.bf16.mxu0 0
        %8488 = vmatpush1.bf16.msra.mxu0 %v8435
        %8489 = vmatprep.subr.bf16.mxu0 0
        %8490 = vmatpush1.bf16.msra.mxu0 %v8436
        %8491 = vmatprep.subr.bf16.mxu0 0
        %8492 = vmatpush1.bf16.msra.mxu0 %v8437
        %8493 = vmatprep.subr.bf16.mxu0 0
        %8494 = vmatpush1.bf16.msra.mxu0 %v8438
        %8495 = vmatprep.subr.bf16.mxu0 0
        %8496 = vmatpush1.bf16.msra.mxu0 %v8439
        %8497 = vmatprep.subr.bf16.mxu0 0
        %8498 = vmatpush1.bf16.msra.mxu0 %v8440
        %8499 = vmatprep.subr.bf16.mxu0 0
        %8500 = vmatpush1.bf16.msra.mxu0 %v8441
        %8501 = vmatprep.mubr.bf16.mxu0 %v8346
        %8502 = vmatmul.mubr.bf16.gmra.mrb[0].mxu0 %v8345
        %v8503 = vpop.f32.mrb[0].mxu0
        %v8504 = vadd.f32 0.0, %v8503
        %v8505 = vpop.f32.mrb[0].mxu0
        %v8506 = vpop.f32.mrb[0].mxu0
        %v8507 = vpop.f32.mrb[0].mxu0
        %8508 = vdwg.mxu0
        %8509 = vmatprep.subr.bf16.mxu0 0
        %8510 = vmatpush1.bf16.msra.mxu0 %v8442
        %8511 = vmatprep.subr.bf16.mxu0 0
        %8512 = vmatpush1.bf16.msra.mxu0 %v8443
        %8513 = vmatprep.subr.bf16.mxu0 0
        %8514 = vmatpush1.bf16.msra.mxu0 %v8467
        %8515 = vmatprep.subr.bf16.mxu0 0
        %8516 = vmatpush1.bf16.msra.mxu0 0
        %8517 = vmatprep.subr.bf16.mxu0 0
        %8518 = vmatpush1.bf16.msra.mxu0 0
        %8519 = vmatprep.subr.bf16.mxu0 0
        %8520 = vmatpush1.bf16.msra.mxu0 0
        %8521 = vmatprep.subr.bf16.mxu0 0
        %8522 = vmatpush1.bf16.msra.mxu0 0
        %8523 = vmatprep.subr.bf16.mxu0 0
        %8524 = vmatpush1.bf16.msra.mxu0 0
        %8525 = vmatprep.subr.bf16.mxu0 0
        %8526 = vmatpush1.bf16.msra.mxu0 0
        %8527 = vmatprep.subr.bf16.mxu0 0
        %8528 = vmatpush1.bf16.msra.mxu0 0
        %8529 = vmatprep.subr.bf16.mxu0 0
        %8530 = vmatpush1.bf16.msra.mxu0 0
        %8531 = vmatprep.subr.bf16.mxu0 0
        %8532 = vmatpush1.bf16.msra.mxu0 0
        %8533 = vmatprep.subr.bf16.mxu0 0
        %8534 = vmatpush1.bf16.msra.mxu0 0
        %8535 = vmatprep.subr.bf16.mxu0 0
        %8536 = vmatpush1.bf16.msra.mxu0 0
        %8537 = vmatprep.subr.bf16.mxu0 0
        %8538 = vmatpush1.bf16.msra.mxu0 0
        %8539 = vmatprep.subr.bf16.mxu0 0
        %8540 = vmatpush1.bf16.msra.mxu0 0
        %8541 = vmatprep.mubr.bf16.mxu0 0
        %8542 = vmatmul.mubr.bf16.gmra.mrb[0].mxu0 %v8464
        %v8543 = vpop.f32.mrb[0].mxu0
        %v8544 = vadd.f32 %v8504, %v8543
        %v8545 = vpop.f32.mrb[0].mxu0
        %v8546 = vpop.f32.mrb[0].mxu0
        %v8547 = vpop.f32.mrb[0].mxu0
        %8548 = vdwg.mxu0
        %v8549 = vadd.f32 %v8305, %v8544
        %v8550 = vmax.f32 %v8549, 0.0
        %v8551 = vld [vmem:[%s5 + $0x8] sm:$0xff]
        %v8552 = vld [vmem:[%s5 + $0x10] sm:$0xff]
        %v8553 = vld [vmem:[%s5 + $0x18] sm:$0xff]
        %v8554 = vld [vmem:[%s5 + $0x20] sm:$0xff]
        %v8555 = vld [vmem:[%s5 + $0x28] sm:$0xff]
        %v8556 = vld [vmem:[%s5 + $0x30] sm:$0xff]
        %v8557 = vld [vmem:[%s5 + $0x38] sm:$0xff]
        %v8558 = vld [vmem:[%s5 + $0x40] sm:$0xff]
        %v8559 = vld [vmem:[%s5 + $0x1] sm:$0x1]
        %vm8560 = vcmask 523264
        %v8562 = vsel %vm8560, %v8550, 0
        %8564 = vmatprep.subr.mxu0 0.0
        %8565 = vmatpush1.msra.mxu0 %v8551
        %8566 = vmatprep.subr.mxu0 0.0
        %8567 = vmatpush1.msra.mxu0 %v8552
        %8568 = vmatprep.subr.mxu0 0.0
        %8569 = vmatpush1.msra.mxu0 %v8553
        %8570 = vmatprep.subr.mxu0 0.0
        %8571 = vmatpush1.msra.mxu0 %v8554
        %8572 = vmatprep.subr.mxu0 0.0
        %8573 = vmatpush1.msra.mxu0 %v8555
        %8574 = vmatprep.subr.mxu0 0.0
        %8575 = vmatpush1.msra.mxu0 %v8556
        %8576 = vmatprep.subr.mxu0 0.0
        %8577 = vmatpush1.msra.mxu0 %v8557
        %8578 = vmatprep.subr.mxu0 0.0
        %8579 = vmatpush1.msra.mxu0 %v8558
        %8580 = vmatprep.subr.mxu0 0.0
        %8581 = vmatpush1.msra.mxu0 0.0
        %8582 = vmatprep.subr.mxu0 0.0
        %8583 = vmatpush1.msra.mxu0 0.0
        %8584 = vmatprep.subr.mxu0 0.0
        %8585 = vmatpush1.msra.mxu0 0.0
        %8586 = vmatprep.subr.mxu0 0.0
        %8587 = vmatpush1.msra.mxu0 0.0
        %8588 = vmatprep.subr.mxu0 0.0
        %8589 = vmatpush1.msra.mxu0 0.0
        %8590 = vmatprep.subr.mxu0 0.0
        %8591 = vmatpush1.msra.mxu0 0.0
        %8592 = vmatprep.subr.mxu0 0.0
        %8593 = vmatpush1.msra.mxu0 0.0
        %8594 = vmatprep.subr.mxu0 0.0
        %8595 = vmatpush1.msra.mxu0 0.0
        %8596 = vmatprep.subr.mxu0 0.0
        %8597 = vmatpush1.msra.mxu0 0.0
        %8598 = vmatprep.subr.mxu0 0.0
        %8599 = vmatpush1.msra.mxu0 0.0
        %8600 = vmatprep.subr.mxu0 0.0
        %8601 = vmatpush1.msra.mxu0 0.0
        %8602 = vmatprep.subr.mxu0 0.0
        %8603 = vmatpush1.msra.mxu0 0.0
        %8604 = vmatprep.subr.mxu0 0.0
        %8605 = vmatpush1.msra.mxu0 0.0
        %8606 = vmatprep.subr.mxu0 0.0
        %8607 = vmatpush1.msra.mxu0 0.0
        %8608 = vmatprep.subr.mxu0 0.0
        %8609 = vmatpush1.msra.mxu0 0.0
        %8610 = vmatprep.subr.mxu0 0.0
        %8611 = vmatpush1.msra.mxu0 0.0
        %8612 = vmatprep.subr.mxu0 0.0
        %8613 = vmatpush1.msra.mxu0 0.0
        %8614 = vmatprep.subr.mxu0 0.0
        %8615 = vmatpush1.msra.mxu0 0.0
        %8616 = vmatprep.subr.mxu0 0.0
        %8617 = vmatpush1.msra.mxu0 0.0
        %8618 = vmatprep.subr.mxu0 0.0
        %8619 = vmatpush1.msra.mxu0 0.0
        %8620 = vmatprep.subr.mxu0 0.0
        %8621 = vmatpush1.msra.mxu0 0.0
        %8622 = vmatprep.subr.mxu0 0.0
        %8623 = vmatpush1.msra.mxu0 0.0
        %8624 = vmatprep.subr.mxu0 0.0
        %8625 = vmatpush1.msra.mxu0 0.0
        %8626 = vmatprep.subr.mxu0 0.0
        %8627 = vmatpush1.msra.mxu0 0.0
        %8628 = vmatprep.mubr.f32.mxu0 0.0
        %8629 = vmatmul.mubr.f32.gmra.mrb[0].mxu0 %v8562
        %v8630 = vpop.f32.mrb[0].mxu0
        %v8631 = vadd.f32 %v8559, %v8630
        %v8632 = vpop.f32.mrb[0].mxu0
        %8633 = vdwg.mxu0
        %8635 = vrot.lane.b32.xlu0 %v8631, 127
        %v8636 = vpop.permute.xlu0 %8635
        %vm8638 = vcmask 24576
        %v8639 = vsel %vm8638, %v8636, 0.0
        %8640 = vadd.xlane.f32.xlu0 %v8639
        %v8641 = vpop.xlane.xlu0 %8640
        %v8642 = vrcp.pop 4.0
        %v8643 = vmul.f32 %v8641, %v8642
        %v8644 = vsub.f32 %v8631, %v8643
        %8645 = vset.pattern.permute.xlu0 0
        %8646 = vperm.xlu0 %8645, %v8631
        %v8647 = vpop.permute.xlu0 %8646
        %v8649 = vadd.f32 %v8647, %v8644
        %8651 = vrot.lane.b32.xlu0 %v8649, 127
        %v8652 = vpop.permute.xlu0 %8651
        %8654 = vst.msk [vmem:[%s243] sm:$0x1] %vm8638, %v8652
        %s8655 = sand.u32 %s159, 1
        %s8656 = scalar_lea.sflag [#allocation3], %s8655
        %s8657 = sand.u32 %s159, 1
        %s8658 = scalar_lea.vmem [#allocation2], %s8657
        // Predicated region
        $region45: #{run_fused.1} parent=43 // pred_check
          %p8659 = pneg %p169
        $region46: #{run_fused.1} parent=43 // pred_check_branch
          %8661 = sbr.rel (%p8659) target = $region48
        $region47: #{run_fused.1} parent=43 // pred_region
          %s8663 = ssub.s32 16, 16
          %8664 = vsyncadd %s8656, %s8663
          %s8665 = smul.addr %s20, 16
          %s8666 = scalar_lea.hbm %s6, %s8665
          %s8668 = sshll.u32 %s8658, 4
          %s8669 = int_to_ptr.vmem [resolvable:$true] %s8668
          %8671 = dma.vmem_to_hbm [thread:$0]  %s8669, 16, %s8666, %s8656
        $region48: #{run_fused.1} parent=43 // pred_fallthru
          _
      $region44: #{run_fused.1} parent=5 // pred_fallthru
        _
      %p8672 = scmp.le.s32.totalorder 2, %s15
      // Predicated region
      $region49: #{run_fused.1} parent=5 // pred_check
        %p8673 = pneg %p8672
      $region50: #{run_fused.1} parent=5 // pred_check_branch
        %8675 = sbr.rel (%p8673) target = $region52
      $region51: #{run_fused.1} parent=5 // pred_region
        %s8676 = ssub.s32 %s15, 2
        // Predicated region
        $region53: #{run_fused.1} parent=51 // pred_check
          %p8677 = pneg %p175
        $region54: #{run_fused.1} parent=51 // pred_check_branch
          %8679 = sbr.rel (%p8677) target = $region56
        $region55: #{run_fused.1} parent=51 // pred_region
          %s8680 = sand.u32 %s160, 1
          %s8681 = scalar_lea.sflag [#allocation3], %s8680
          %s8682 = sand.u32 %s160, 1
          %s8683 = scalar_lea.vmem [#allocation2], %s8682
          %8684 = dma.done %s8681, 16
        $region56: #{run_fused.1} parent=51 // pred_fallthru
          _
      $region52: #{run_fused.1} parent=5 // pred_fallthru
        _
    $region6: #{run_fused.1} parent=1 // loop_footer
      %s19 = sadd.s32 1, %s15
    $region7: #{run_fused.1} parent=1 // loop_footer_branch
      %14 = sbr.rel target = $region3
    $region8: #{run_fused.1} parent=1 // loop_exit
      _
    %8685 = vsyncpa [#allocation3], 1
    %s8686 = scalar_lea.sflag [#allocation3], 1
    %8687 = vsyncpa %s8686, 1

</llo_original>
